<compile_context>
chip_gen: v6e
topology: v6e:2x2x1
jax: 0.10.0
libtpu: 0.0.40
codegen_flags: <defaults>
</compile_context>

<pallas_src>
import functools

import jax
import jax.numpy as jnp
from jax.experimental import pallas as pl
from jax.experimental.pallas import tpu as pltpu

BN_EPS = 1e-5
LEAKY_SLOPE = 0.2


def _round_up(x, m):
    return (x + m - 1) // m * m


def _tpu_vmem_limit_bytes():
    """Generation-aware scoped-VMEM budget: ~3/4 of physical VMEM.
    v5e/v6e (128 MiB) -> 96 MiB, v7x (64 MiB) -> 48 MiB, conservative fallback."""
    try:
        cap = int(getattr(pltpu.get_tpu_info(), "vmem_capacity_bytes"))
    except Exception:
        cap = 64 * 1024 * 1024
    return max(32 * 1024 * 1024, min(3 * cap // 4, 100 * 1024 * 1024))


VMEM_LIMIT = _tpu_vmem_limit_bytes()
FC_TK_TARGET = 4096 if VMEM_LIMIT >= 80 * 1024 * 1024 else 2048


# ---------------------------------------------------------------------------
# In-kernel helpers (pure jnp, traced inside the kernels)
# ---------------------------------------------------------------------------
def _leaky(y):
    return jnp.where(y > 0, y, LEAKY_SLOPE * y)


def _batchnorm_rows(y, gamma, beta):
    """Training-mode BN over rows (per column); two-pass (centered) variance."""
    inv_m = 1.0 / y.shape[0]
    mean = jnp.sum(y, axis=0, keepdims=True) * inv_m
    yc = y - mean
    var = jnp.sum(yc * yc, axis=0, keepdims=True) * inv_m   # biased, as PyTorch
    inv_std = jax.lax.rsqrt(var + BN_EPS)
    return yc * (inv_std * gamma) + beta


def _stable_sigmoid(z):
    p = 1.0 / (1.0 + jnp.exp(-jnp.abs(z)))
    return jnp.where(z >= 0, p, 1.0 - p)


# ---------------------------------------------------------------------------
# Pallas kernels
# ---------------------------------------------------------------------------
def _conv_mm_leaky_kernel(a_ref, b_ref, bias_ref, o_ref):
    """conv1: im2col matmul + bias + LeakyReLU; single K step, M-tiled grid."""
    acc = jnp.dot(a_ref[...], b_ref[...], preferred_element_type=jnp.float32)
    o_ref[...] = _leaky(acc + bias_ref[...]).astype(o_ref.dtype)


def _conv2_fused_kernel(x_ref, w_ref, bias_ref, y_ref, stat_ref, *, h2, w2, cin):
    """conv2 with in-kernel im2col.

    x_ref:   (1, 2, 2, h2+1, w2+1, cin)  parity-split (space-to-depth) padded
             NHWC conv1 activations for one batch element.
    w_ref:   (16*cin, cout) rows ordered (kh, kw, cin).
    y_ref:   (1, h2*w2, cout) pre-BN conv2 output (+bias), rows = (ho, wo).
    stat_ref:(1, 2, cout)   per-batch BatchNorm2d partial [sum, sumsq] (f32).
    """
    cout = w_ref.shape[1]
    acc = jnp.zeros((h2 * w2, cout), jnp.float32)
    tap = 0
    for kh in range(4):
        for kw in range(4):
            # Parity split makes every tap a contiguous static slice (no
            # strided sublane reads): padded row 2*ho+kh -> parity kh&1,
            # offset ho + kh//2.
            slab = x_ref[0, kh & 1, kw & 1,
                         (kh // 2):(kh // 2) + h2,
                         (kw // 2):(kw // 2) + w2, :]          # (h2, w2, cin)
            acc = acc + jnp.dot(slab.reshape(h2 * w2, cin),
                                w_ref[tap * cin:(tap + 1) * cin, :],
                                preferred_element_type=jnp.float32)
            tap += 1
    y = acc + bias_ref[...]
    y_ref[0] = y.astype(y_ref.dtype)
    # One-pass partial stats in f32 (values are small; cancellation negligible;
    # the cross-batch reduction + clamp happens in XLA on a tiny tensor).
    stat_ref[0, 0:1, :] = jnp.sum(y, axis=0, keepdims=True)
    stat_ref[0, 1:2, :] = jnp.sum(y * y, axis=0, keepdims=True)


def _fc_fused_kernel(a_ref, asc_ref, ash_ref, w1_ref, w1s_ref, b1_ref,
                     g_ref, be_ref, w2_ref, b2_ref, o_ref, acc_ref):
    """[BN2d + LeakyReLU on A-read] + fc1 (int8 weights, K-tiled) + BN1d +
    LeakyReLU + fc2 (bf16) + stable sigmoid, fully fused."""
    k = pl.program_id(0)

    @pl.when(k == 0)
    def _():
        acc_ref[...] = jnp.zeros_like(acc_ref)

    # conv2's BatchNorm2d affine (from batch stats) + LeakyReLU fused into the
    # A-matrix read; wf1 streams from HBM as int8 (half the bytes of bf16) and
    # is dequantized on-chip, keeping the MXU on the bf16 path.
    a = _leaky(a_ref[...].astype(jnp.float32) * asc_ref[...] + ash_ref[...])
    w1 = w1_ref[...].astype(jnp.float32).astype(jnp.bfloat16)
    acc_ref[...] += jnp.dot(a.astype(jnp.bfloat16), w1,
                            preferred_element_type=jnp.float32)

    @pl.when(k == pl.num_programs(0) - 1)
    def _():
        y = acc_ref[...] * w1s_ref[...] + b1_ref[...]   # int8 col scales + bias
        y = _leaky(_batchnorm_rows(y, g_ref[...], be_ref[...]))
        z = jnp.dot(y.astype(jnp.bfloat16), w2_ref[...],
                    preferred_element_type=jnp.float32) + b2_ref[...]
        o_ref[...] = _stable_sigmoid(z)


# ---------------------------------------------------------------------------
# pallas_call wrappers
# ---------------------------------------------------------------------------
def conv_matmul_leaky(a, b, bias, *, tm_target=512):
    """a: (M, K) bf16, b: (K, N) bf16, bias: (N,) f32 -> (M, N) bf16."""
    m, k = a.shape
    _, n = b.shape
    tm = min(tm_target, _round_up(m, 8))
    m_pad = _round_up(m, tm)
    if m_pad != m:
        a = jnp.pad(a, ((0, m_pad - m), (0, 0)))
    out = pl.pallas_call(
        _conv_mm_leaky_kernel,
        out_shape=jax.ShapeDtypeStruct((m_pad, n), jnp.bfloat16),
        grid_spec=pltpu.PrefetchScalarGridSpec(
            num_scalar_prefetch=0,
            grid=(m_pad // tm,),
            in_specs=[
                pl.BlockSpec((tm, k), lambda i: (i, 0)),
                pl.BlockSpec((k, n), lambda i: (0, 0)),
                pl.BlockSpec((1, n), lambda i: (0, 0)),
            ],
            out_specs=pl.BlockSpec((tm, n), lambda i: (i, 0)),
        ),
        compiler_params=pltpu.CompilerParams(
            dimension_semantics=("parallel",),
            vmem_limit_bytes=VMEM_LIMIT),
    )(a, b, bias.reshape(1, n))
    return out if m_pad == m else out[:m]


def conv2_fused(xs, w, bias):
    """xs: (N, 2, 2, h2+1, w2+1, cin) bf16 parity-split padded activations.
    Returns pre-BN conv2 output (N, h2*w2, cout) bf16 and per-batch BN partial
    stats (N, 2, cout) f32."""
    n = xs.shape[0]
    hh, wh, cin = xs.shape[3], xs.shape[4], xs.shape[5]
    h2, w2 = hh - 1, wh - 1
    cout = w.shape[1]
    kernel = functools.partial(_conv2_fused_kernel, h2=h2, w2=w2, cin=cin)
    return pl.pallas_call(
        kernel,
        out_shape=(jax.ShapeDtypeStruct((n, h2 * w2, cout), jnp.bfloat16),
                   jax.ShapeDtypeStruct((n, 2, cout), jnp.float32)),
        grid_spec=pltpu.PrefetchScalarGridSpec(
            num_scalar_prefetch=0,
            grid=(n,),
            in_specs=[
                pl.BlockSpec((1, 2, 2, hh, wh, cin),
                             lambda b: (b, 0, 0, 0, 0, 0)),
                pl.BlockSpec((16 * cin, cout), lambda b: (0, 0)),
                pl.BlockSpec((1, cout), lambda b: (0, 0)),
            ],
            out_specs=(pl.BlockSpec((1, h2 * w2, cout), lambda b: (b, 0, 0)),
                       pl.BlockSpec((1, 2, cout), lambda b: (b, 0, 0))),
        ),
        compiler_params=pltpu.CompilerParams(
            dimension_semantics=("parallel",),
            vmem_limit_bytes=VMEM_LIMIT),
    )(xs, w, bias.reshape(1, cout))


def fc_fused(a, a_scale, a_shift, w1q, w1s, b1, gamma, beta, w2, b2):
    """a: (M, K) bf16 pre-BN conv2 activations, a_scale/a_shift: (K,) f32 BN2d
    affine, w1q: (K, H) int8, w1s: (H,) f32, w2: (H, Npad) bf16 -> (M, Npad) f32."""
    m, k = a.shape
    _, h = w1q.shape
    _, npad = w2.shape
    tk = min(FC_TK_TARGET, k)
    k_pad = _round_up(k, tk)
    if k_pad != k:                       # zero-pad K so the tile always divides
        a = jnp.pad(a, ((0, 0), (0, k_pad - k)))
        a_scale = jnp.pad(a_scale, (0, k_pad - k))
        a_shift = jnp.pad(a_shift, (0, k_pad - k))
        w1q = jnp.pad(w1q, ((0, k_pad - k), (0, 0)))
    return pl.pallas_call(
        _fc_fused_kernel,
        out_shape=jax.ShapeDtypeStruct((m, npad), jnp.float32),
        grid_spec=pltpu.PrefetchScalarGridSpec(
            num_scalar_prefetch=0,
            grid=(k_pad // tk,),
            in_specs=[
                pl.BlockSpec((m, tk), lambda i: (0, i)),
                pl.BlockSpec((1, tk), lambda i: (0, i)),
                pl.BlockSpec((1, tk), lambda i: (0, i)),
                pl.BlockSpec((tk, h), lambda i: (i, 0)),
                pl.BlockSpec((1, h), lambda i: (0, 0)),
                pl.BlockSpec((1, h), lambda i: (0, 0)),
                pl.BlockSpec((1, h), lambda i: (0, 0)),
                pl.BlockSpec((1, h), lambda i: (0, 0)),
                pl.BlockSpec((h, npad), lambda i: (0, 0)),
                pl.BlockSpec((1, npad), lambda i: (0, 0)),
            ],
            out_specs=pl.BlockSpec((m, npad), lambda i: (0, 0)),
            scratch_shapes=[pltpu.VMEM((m, h), jnp.float32)],
        ),
        compiler_params=pltpu.CompilerParams(
            dimension_semantics=("arbitrary",),
            vmem_limit_bytes=VMEM_LIMIT),
    )(a, a_scale.reshape(1, k_pad), a_shift.reshape(1, k_pad),
      w1q, w1s.reshape(1, h), b1.reshape(1, h),
      gamma.reshape(1, h), beta.reshape(1, h), w2, b2.reshape(1, npad))


# ---------------------------------------------------------------------------
# JAX glue: NHWC im2col for conv1 only (K = 16*input_dim -> negligible traffic)
# ---------------------------------------------------------------------------
def im2col_nhwc(x, k=4, stride=2, pad=1):
    """x: (N, H, W, C) -> (N*Ho*Wo, k*k*C) with column order (kh, kw, cin)."""
    n, h, w, c = x.shape
    xp = jnp.pad(x, ((0, 0), (pad, pad), (pad, pad), (0, 0)))
    ho = (h + 2 * pad - k) // stride + 1
    wo = (w + 2 * pad - k) // stride + 1
    cols = []
    for kh in range(k):
        for kw in range(k):
            cols.append(xp[:, kh:kh + stride * ho:stride,
                           kw:kw + stride * wo:stride, :])   # (N, Ho, Wo, C)
    col = jnp.stack(cols, axis=3)                            # (N, Ho, Wo, k*k, C)
    return col.reshape(n * ho * wo, k * k * c), ho, wo


# ---------------------------------------------------------------------------
# Parameters
# ---------------------------------------------------------------------------
def init_params(key, input_dim, output_dim, input_size):
    # Mimics utils.initialize_weights: conv/linear ~ N(0, 0.02), biases 0,
    # BN gamma 1, beta 0. PyTorch layouts. Deterministic via PRNGKey.
    k0, k1, k2, k3 = jax.random.split(key, 4)
    s4 = input_size // 4
    return {
        "w_conv1": 0.02 * jax.random.normal(k0, (64, input_dim, 4, 4), jnp.float32),
        "b_conv1": jnp.zeros((64,), jnp.float32),
        "w_conv2": 0.02 * jax.random.normal(k1, (128, 64, 4, 4), jnp.float32),
        "b_conv2": jnp.zeros((128,), jnp.float32),
        "bn2d_gamma": jnp.ones((128,), jnp.float32),
        "bn2d_beta": jnp.zeros((128,), jnp.float32),
        "w_fc1": 0.02 * jax.random.normal(k2, (1024, 128 * s4 * s4), jnp.float32),
        "b_fc1": jnp.zeros((1024,), jnp.float32),
        "bn1d_gamma": jnp.ones((1024,), jnp.float32),
        "bn1d_beta": jnp.zeros((1024,), jnp.float32),
        "w_fc2": 0.02 * jax.random.normal(k3, (output_dim, 1024), jnp.float32),
        "b_fc2": jnp.zeros((output_dim,), jnp.float32),
    }


def prepare_params(params, input_size):
    """One-time re-layout of PyTorch-layout params into kernel layout:
    conv weights as im2col matrices (rows = (kh, kw, cin)), fc1 columns
    permuted to the NHWC flatten order and quantized to int8 with per-output
    column scales, fc2 as bf16, conv1/fc2 outputs padded to 128 lanes."""
    s4 = input_size // 4
    cin = params["w_conv1"].shape[1]
    f32 = jnp.float32

    w1 = jnp.transpose(params["w_conv1"], (2, 3, 1, 0)).reshape(16 * cin, 64)
    w1 = jnp.pad(w1, ((0, 0), (0, 64)))                    # Cout 64 -> 128 lanes
    b1 = jnp.pad(params["b_conv1"], (0, 64))

    w2 = jnp.transpose(params["w_conv2"], (2, 3, 1, 0)).reshape(16 * 64, 128)

    # PyTorch flatten order is (c, h, w); our NHWC flatten is (h, w, c).
    wf1 = params["w_fc1"].reshape(1024, 128, s4, s4)
    wf1 = jnp.transpose(wf1, (0, 2, 3, 1)).reshape(1024, 128 * s4 * s4).T
    # int8 symmetric per-output-column quantization of the dominant HBM stream.
    col_absmax = jnp.max(jnp.abs(wf1), axis=0, keepdims=True)
    wf1_s = jnp.maximum(col_absmax, 1e-12) / 127.0
    wf1_q = jnp.clip(jnp.round(wf1 / wf1_s), -127.0, 127.0).astype(jnp.int8)

    out_dim = params["w_fc2"].shape[0]
    n_pad = ((out_dim + 127) // 128) * 128                 # lane-dense fc2 output
    wf2 = jnp.pad(params["w_fc2"].T, ((0, 0), (0, n_pad - out_dim)))
    bf2 = jnp.pad(params["b_fc2"], (0, n_pad - out_dim))

    return {
        "w1": w1.astype(jnp.bfloat16), "b1": b1.astype(f32),
        "w2": w2.astype(jnp.bfloat16), "b2": params["b_conv2"].astype(f32),
        "bn2_g": params["bn2d_gamma"].astype(f32),
        "bn2_b": params["bn2d_beta"].astype(f32),
        "wf1_q": wf1_q, "wf1_s": wf1_s.reshape(-1).astype(f32),
        "bf1": params["b_fc1"].astype(f32),
        "bn1_g": params["bn1d_gamma"].astype(f32),
        "bn1_b": params["bn1d_beta"].astype(f32),
        "wf2": wf2.astype(jnp.bfloat16), "bf2": bf2.astype(f32),
    }


# ---------------------------------------------------------------------------
# Discriminator forward (module boundary is NCHW, like PyTorch)
# ---------------------------------------------------------------------------
def discriminator_forward(x_nchw, kp, input_size, output_dim):
    n = x_nchw.shape[0]
    x = jnp.transpose(x_nchw, (0, 2, 3, 1)).astype(jnp.bfloat16)   # NHWC, once

    # conv1: Conv2d(in, 64, 4, 2, 1) + LeakyReLU(0.2). XLA im2col is negligible
    # here (K = 16*input_dim); conv2 (the heavy one) does im2col in-kernel.
    col1, h1, w1 = im2col_nhwc(x)
    y1 = conv_matmul_leaky(col1, kp["w1"], kp["b1"])               # (M1, 128) bf16
    y1 = y1[:, :64].reshape(n, h1, w1, 64)                         # drop pad lanes

    # conv2: Conv2d(64, 128, 4, 2, 1) + bias. Parity-split (space-to-depth)
    # padded view -> in-kernel im2col; emits pre-BN output + BN partial stats.
    h2, w2 = h1 // 2, w1 // 2
    y1p = jnp.pad(y1, ((0, 0), (1, 1), (1, 1), (0, 0)))            # (N,H+2,W+2,64)
    y1s = y1p.reshape(n, h2 + 1, 2, w2 + 1, 2, 64).transpose(0, 2, 4, 1, 3, 5)
    y2, stats = conv2_fused(y1s, kp["w2"], kp["b2"])               # (N,h2*w2,128)

    # BatchNorm2d(128) batch stats -> per-channel affine; the normalize +
    # LeakyReLU are applied inside the fc kernel's A read (no extra HBM pass).
    tot = jnp.sum(stats, axis=0)
    cnt = float(n * h2 * w2)
    mean = tot[0] / cnt
    var = jnp.maximum(tot[1] / cnt - mean * mean, 0.0)             # biased var
    inv_std = jax.lax.rsqrt(var + BN_EPS)
    sc = kp["bn2_g"] * inv_std
    sh = kp["bn2_b"] - mean * sc
    a_scale = jnp.tile(sc, h2 * w2)            # flatten col order is (h, w, c)
    a_shift = jnp.tile(sh, h2 * w2)

    # flatten: rows already enumerate (n, h, w), columns are channels
    flat = y2.reshape(n, h2 * w2 * 128)

    # [BN2d+LeakyReLU] + fc1(int8) + BN1d + LeakyReLU + fc2 + Sigmoid, fused
    out = fc_fused(flat, a_scale, a_shift, kp["wf1_q"], kp["wf1_s"], kp["bf1"],
                   kp["bn1_g"], kp["bn1_b"], kp["wf2"], kp["bf2"])  # (N,128) f32
    return out[:, :output_dim]


if __name__ == "__main__":
    batch, input_dim, output_dim, input_size = 2, 1, 1, 32

    key = jax.random.PRNGKey(0)
    key_x, key_p = jax.random.split(key)
    x = jax.random.normal(key_x, (batch, input_dim, input_size, input_size),
                          jnp.float32)
    params = init_params(key_p, input_dim, output_dim, input_size)
    kparams = prepare_params(params, input_size)   # one-time layout/quant prep

    fwd = jax.jit(functools.partial(discriminator_forward,
                                    input_size=input_size,
                                    output_dim=output_dim))
    out = jax.block_until_ready(fwd(x, kparams))

    assert out.shape == (batch, output_dim), out.shape
    assert bool(jnp.all((out >= 0.0) & (out <= 1.0)))   # sigmoid range
    assert bool(jnp.all(jnp.isfinite(out)))
    print("KERNEL_OK")
</pallas_src>

<mosaic_0001>
module attributes {stable_mosaic.version = 11 : i64} {
  func.func @_conv_mm_leaky_kernel(%arg0: i32, %arg1: memref<512x16xbf16, #tpu.memory_space<vmem>>, %arg2: memref<16x128xbf16, #tpu.memory_space<vmem>>, %arg3: memref<1x128xf32, #tpu.memory_space<vmem>>, %arg4: memref<512x128xbf16, #tpu.memory_space<vmem>>) attributes {dimension_semantics = [#tpu.dimension_semantics<parallel>], iteration_bounds = array<i64: 1>, scalar_prefetch = 0 : i64, scratch_operands = 0 : i64, tpu.core_type = #tpu.core_type<tc>, window_params = [{transform_indices = @transform_0, window_bounds = array<i64: 512, 16>}, {pipeline_mode = #tpu.pipeline_mode<synchronous>, transform_indices = @transform_1, window_bounds = array<i64: 16, 128>}, {pipeline_mode = #tpu.pipeline_mode<synchronous>, transform_indices = @transform_2, window_bounds = array<i64: 1, 128>}, {transform_indices = @transform_3, window_bounds = array<i64: 512, 128>}]} {
    %c0 = arith.constant 0 : index
    %c0_0 = arith.constant 0 : index
    %0 = vector.load %arg1[%c0, %c0_0] : memref<512x16xbf16, #tpu.memory_space<vmem>>, vector<512x16xbf16>
    %c0_1 = arith.constant 0 : index
    %c0_2 = arith.constant 0 : index
    %1 = vector.load %arg2[%c0_1, %c0_2] : memref<16x128xbf16, #tpu.memory_space<vmem>>, vector<16x128xbf16>
    %cst = arith.constant dense<0.000000e+00> : vector<512x128xf32>
    %2 = tpu.matmul %0, %1, %cst {dimension_numbers = #tpu.dot_dimension_numbers<[1], [0], [0], [1], [0, 0, 1, 1], [], []>} : vector<512x16xbf16>, vector<16x128xbf16>, vector<512x128xf32> -> vector<512x128xf32>
    %c0_3 = arith.constant 0 : index
    %c0_4 = arith.constant 0 : index
    %3 = vector.load %arg3[%c0_3, %c0_4] : memref<1x128xf32, #tpu.memory_space<vmem>>, vector<1x128xf32>
    %4 = vector.broadcast %3 : vector<1x128xf32> to vector<512x128xf32>
    %5 = arith.addf %2, %4 : vector<512x128xf32>
    %cst_5 = arith.constant 0.000000e+00 : f32
    %6 = vector.broadcast %cst_5 : f32 to vector<512x128xf32>
    %7 = arith.cmpf ogt, %5, %6 : vector<512x128xf32>
    %cst_6 = arith.constant 2.000000e-01 : f32
    %8 = vector.broadcast %cst_6 : f32 to vector<512x128xf32>
    %9 = arith.mulf %8, %5 : vector<512x128xf32>
    %10 = arith.select %7, %5, %9 : vector<512x128xi1>, vector<512x128xf32>
    %11 = arith.truncf %10 : vector<512x128xf32> to vector<512x128xbf16>
    %c0_7 = arith.constant 0 : index
    %c0_8 = arith.constant 0 : index
    %12 = vector.load %arg4[%c0_7, %c0_8] : memref<512x128xbf16, #tpu.memory_space<vmem>>, vector<512x128xbf16>
    tpu.vector_store %arg4[%c0_7, %c0_8], %11 {strides = array<i32>} : memref<512x128xbf16, #tpu.memory_space<vmem>>, vector<512x128xbf16>,
    return
  }
  func.func @transform_0(%arg0: i32) -> (i32, i32) {
    %c0_i32 = arith.constant 0 : i32
    %c0_i32_0 = arith.constant 0 : i32
    return %arg0, %c0_i32 : i32, i32
  }
  func.func @transform_1(%arg0: i32) -> (i32, i32) {
    %c0_i32 = arith.constant 0 : i32
    %c0_i32_0 = arith.constant 0 : i32
    %c0_i32_1 = arith.constant 0 : i32
    return %c0_i32, %c0_i32_0 : i32, i32
  }
  func.func @transform_2(%arg0: i32) -> (i32, i32) {
    %c0_i32 = arith.constant 0 : i32
    %c0_i32_0 = arith.constant 0 : i32
    %c0_i32_1 = arith.constant 0 : i32
    return %c0_i32, %c0_i32_0 : i32, i32
  }
  func.func @transform_3(%arg0: i32) -> (i32, i32) {
    %c0_i32 = arith.constant 0 : i32
    %c0_i32_0 = arith.constant 0 : i32
    return %arg0, %c0_i32 : i32, i32
  }
}

module attributes {stable_mosaic.version = 11 : i64} {
  func.func @_conv2_fused_kernel(%arg0: i32, %arg1: memref<1x2x2x9x9x64xbf16, #tpu.memory_space<vmem>>, %arg2: memref<1024x128xbf16, #tpu.memory_space<vmem>>, %arg3: memref<1x128xf32, #tpu.memory_space<vmem>>, %arg4: memref<1x64x128xbf16, #tpu.memory_space<vmem>>, %arg5: memref<1x2x128xf32, #tpu.memory_space<vmem>>) attributes {dimension_semantics = [#tpu.dimension_semantics<parallel>], iteration_bounds = array<i64: 2>, scalar_prefetch = 0 : i64, scratch_operands = 0 : i64, tpu.core_type = #tpu.core_type<tc>, window_params = [{transform_indices = @transform_0, window_bounds = array<i64: 1, 2, 2, 9, 9, 64>}, {pipeline_mode = #tpu.pipeline_mode<synchronous>, transform_indices = @transform_1, window_bounds = array<i64: 1024, 128>}, {pipeline_mode = #tpu.pipeline_mode<synchronous>, transform_indices = @transform_2, window_bounds = array<i64: 1, 128>}, {transform_indices = @transform_3, window_bounds = array<i64: 1, 64, 128>}, {transform_indices = @transform_4, window_bounds = array<i64: 1, 2, 128>}]} {
    %cst = arith.constant 0.000000e+00 : f32
    %0 = vector.broadcast %cst : f32 to vector<64x128xf32>
    %c0 = arith.constant 0 : index
    %c0_0 = arith.constant 0 : index
    %c0_1 = arith.constant 0 : index
    %c0_2 = arith.constant 0 : index
    %c0_3 = arith.constant 0 : index
    %c0_4 = arith.constant 0 : index
    %1 = vector.load %arg1[%c0, %c0_0, %c0_1, %c0_2, %c0_3, %c0_4] : memref<1x2x2x9x9x64xbf16, #tpu.memory_space<vmem>>, vector<1x1x1x8x8x64xbf16>
    %2 = vector.shape_cast %1 : vector<1x1x1x8x8x64xbf16> to vector<8x8x64xbf16>
    %3 = vector.shape_cast %2 : vector<8x8x64xbf16> to vector<64x64xbf16>
    %c0_5 = arith.constant 0 : index
    %c0_6 = arith.constant 0 : index
    %4 = vector.load %arg2[%c0_5, %c0_6] : memref<1024x128xbf16, #tpu.memory_space<vmem>>, vector<64x128xbf16>
    %cst_7 = arith.constant dense<0.000000e+00> : vector<64x128xf32>
    %5 = tpu.matmul %3, %4, %cst_7 {dimension_numbers = #tpu.dot_dimension_numbers<[1], [0], [0], [1], [0, 0, 1, 1], [], []>} : vector<64x64xbf16>, vector<64x128xbf16>, vector<64x128xf32> -> vector<64x128xf32>
    %6 = arith.addf %0, %5 : vector<64x128xf32>
    %c0_8 = arith.constant 0 : index
    %c0_9 = arith.constant 0 : index
    %c1 = arith.constant 1 : index
    %c0_10 = arith.constant 0 : index
    %c0_11 = arith.constant 0 : index
    %c0_12 = arith.constant 0 : index
    %7 = vector.load %arg1[%c0_8, %c0_9, %c1, %c0_10, %c0_11, %c0_12] : memref<1x2x2x9x9x64xbf16, #tpu.memory_space<vmem>>, vector<1x1x1x8x8x64xbf16>
    %8 = vector.shape_cast %7 : vector<1x1x1x8x8x64xbf16> to vector<8x8x64xbf16>
    %9 = vector.shape_cast %8 : vector<8x8x64xbf16> to vector<64x64xbf16>
    %c64 = arith.constant 64 : index
    %c0_13 = arith.constant 0 : index
    %10 = vector.load %arg2[%c64, %c0_13] : memref<1024x128xbf16, #tpu.memory_space<vmem>>, vector<64x128xbf16>
    %cst_14 = arith.constant dense<0.000000e+00> : vector<64x128xf32>
    %11 = tpu.matmul %9, %10, %cst_14 {dimension_numbers = #tpu.dot_dimension_numbers<[1], [0], [0], [1], [0, 0, 1, 1], [], []>} : vector<64x64xbf16>, vector<64x128xbf16>, vector<64x128xf32> -> vector<64x128xf32>
    %12 = arith.addf %6, %11 : vector<64x128xf32>
    %c0_15 = arith.constant 0 : index
    %c0_16 = arith.constant 0 : index
    %c0_17 = arith.constant 0 : index
    %c0_18 = arith.constant 0 : index
    %c1_19 = arith.constant 1 : index
    %c0_20 = arith.constant 0 : index
    %13 = vector.load %arg1[%c0_15, %c0_16, %c0_17, %c0_18, %c1_19, %c0_20] : memref<1x2x2x9x9x64xbf16, #tpu.memory_space<vmem>>, vector<1x1x1x8x8x64xbf16>
    %14 = vector.shape_cast %13 : vector<1x1x1x8x8x64xbf16> to vector<8x8x64xbf16>
    %15 = vector.shape_cast %14 : vector<8x8x64xbf16> to vector<64x64xbf16>
    %c128 = arith.constant 128 : index
    %c0_21 = arith.constant 0 : index
    %16 = vector.load %arg2[%c128, %c0_21] : memref<1024x128xbf16, #tpu.memory_space<vmem>>, vector<64x128xbf16>
    %cst_22 = arith.constant dense<0.000000e+00> : vector<64x128xf32>
    %17 = tpu.matmul %15, %16, %cst_22 {dimension_numbers = #tpu.dot_dimension_numbers<[1], [0], [0], [1], [0, 0, 1, 1], [], []>} : vector<64x64xbf16>, vector<64x128xbf16>, vector<64x128xf32> -> vector<64x128xf32>
    %18 = arith.addf %12, %17 : vector<64x128xf32>
    %c0_23 = arith.constant 0 : index
    %c0_24 = arith.constant 0 : index
    %c1_25 = arith.constant 1 : index
    %c0_26 = arith.constant 0 : index
    %c1_27 = arith.constant 1 : index
    %c0_28 = arith.constant 0 : index
    %19 = vector.load %arg1[%c0_23, %c0_24, %c1_25, %c0_26, %c1_27, %c0_28] : memref<1x2x2x9x9x64xbf16, #tpu.memory_space<vmem>>, vector<1x1x1x8x8x64xbf16>
    %20 = vector.shape_cast %19 : vector<1x1x1x8x8x64xbf16> to vector<8x8x64xbf16>
    %21 = vector.shape_cast %20 : vector<8x8x64xbf16> to vector<64x64xbf16>
    %c192 = arith.constant 192 : index
    %c0_29 = arith.constant 0 : index
    %22 = vector.load %arg2[%c192, %c0_29] : memref<1024x128xbf16, #tpu.memory_space<vmem>>, vector<64x128xbf16>
    %cst_30 = arith.constant dense<0.000000e+00> : vector<64x128xf32>
    %23 = tpu.matmul %21, %22, %cst_30 {dimension_numbers = #tpu.dot_dimension_numbers<[1], [0], [0], [1], [0, 0, 1, 1], [], []>} : vector<64x64xbf16>, vector<64x128xbf16>, vector<64x128xf32> -> vector<64x128xf32>
    %24 = arith.addf %18, %23 : vector<64x128xf32>
    %c0_31 = arith.constant 0 : index
    %c1_32 = arith.constant 1 : index
    %c0_33 = arith.constant 0 : index
    %c0_34 = arith.constant 0 : index
    %c0_35 = arith.constant 0 : index
    %c0_36 = arith.constant 0 : index
    %25 = vector.load %arg1[%c0_31, %c1_32, %c0_33, %c0_34, %c0_35, %c0_36] : memref<1x2x2x9x9x64xbf16, #tpu.memory_space<vmem>>, vector<1x1x1x8x8x64xbf16>
    %26 = vector.shape_cast %25 : vector<1x1x1x8x8x64xbf16> to vector<8x8x64xbf16>
    %27 = vector.shape_cast %26 : vector<8x8x64xbf16> to vector<64x64xbf16>
    %c256 = arith.constant 256 : index
    %c0_37 = arith.constant 0 : index
    %28 = vector.load %arg2[%c256, %c0_37] : memref<1024x128xbf16, #tpu.memory_space<vmem>>, vector<64x128xbf16>
    %cst_38 = arith.constant dense<0.000000e+00> : vector<64x128xf32>
    %29 = tpu.matmul %27, %28, %cst_38 {dimension_numbers = #tpu.dot_dimension_numbers<[1], [0], [0], [1], [0, 0, 1, 1], [], []>} : vector<64x64xbf16>, vector<64x128xbf16>, vector<64x128xf32> -> vector<64x128xf32>
    %30 = arith.addf %24, %29 : vector<64x128xf32>
    %c0_39 = arith.constant 0 : index
    %c1_40 = arith.constant 1 : index
    %c1_41 = arith.constant 1 : index
    %c0_42 = arith.constant 0 : index
    %c0_43 = arith.constant 0 : index
    %c0_44 = arith.constant 0 : index
    %31 = vector.load %arg1[%c0_39, %c1_40, %c1_41, %c0_42, %c0_43, %c0_44] : memref<1x2x2x9x9x64xbf16, #tpu.memory_space<vmem>>, vector<1x1x1x8x8x64xbf16>
    %32 = vector.shape_cast %31 : vector<1x1x1x8x8x64xbf16> to vector<8x8x64xbf16>
    %33 = vector.shape_cast %32 : vector<8x8x64xbf16> to vector<64x64xbf16>
    %c320 = arith.constant 320 : index
    %c0_45 = arith.constant 0 : index
    %34 = vector.load %arg2[%c320, %c0_45] : memref<1024x128xbf16, #tpu.memory_space<vmem>>, vector<64x128xbf16>
    %cst_46 = arith.constant dense<0.000000e+00> : vector<64x128xf32>
    %35 = tpu.matmul %33, %34, %cst_46 {dimension_numbers = #tpu.dot_dimension_numbers<[1], [0], [0], [1], [0, 0, 1, 1], [], []>} : vector<64x64xbf16>, vector<64x128xbf16>, vector<64x128xf32> -> vector<64x128xf32>
    %36 = arith.addf %30, %35 : vector<64x128xf32>
    %c0_47 = arith.constant 0 : index
    %c1_48 = arith.constant 1 : index
    %c0_49 = arith.constant 0 : index
    %c0_50 = arith.constant 0 : index
    %c1_51 = arith.constant 1 : index
    %c0_52 = arith.constant 0 : index
    %37 = vector.load %arg1[%c0_47, %c1_48, %c0_49, %c0_50, %c1_51, %c0_52] : memref<1x2x2x9x9x64xbf16, #tpu.memory_space<vmem>>, vector<1x1x1x8x8x64xbf16>
    %38 = vector.shape_cast %37 : vector<1x1x1x8x8x64xbf16> to vector<8x8x64xbf16>
    %39 = vector.shape_cast %38 : vector<8x8x64xbf16> to vector<64x64xbf16>
    %c384 = arith.constant 384 : index
    %c0_53 = arith.constant 0 : index
    %40 = vector.load %arg2[%c384, %c0_53] : memref<1024x128xbf16, #tpu.memory_space<vmem>>, vector<64x128xbf16>
    %cst_54 = arith.constant dense<0.000000e+00> : vector<64x128xf32>
    %41 = tpu.matmul %39, %40, %cst_54 {dimension_numbers = #tpu.dot_dimension_numbers<[1], [0], [0], [1], [0, 0, 1, 1], [], []>} : vector<64x64xbf16>, vector<64x128xbf16>, vector<64x128xf32> -> vector<64x128xf32>
    %42 = arith.addf %36, %41 : vector<64x128xf32>
    %c0_55 = arith.constant 0 : index
    %c1_56 = arith.constant 1 : index
    %c1_57 = arith.constant 1 : index
    %c0_58 = arith.constant 0 : index
    %c1_59 = arith.constant 1 : index
    %c0_60 = arith.constant 0 : index
    %43 = vector.load %arg1[%c0_55, %c1_56, %c1_57, %c0_58, %c1_59, %c0_60] : memref<1x2x2x9x9x64xbf16, #tpu.memory_space<vmem>>, vector<1x1x1x8x8x64xbf16>
    %44 = vector.shape_cast %43 : vector<1x1x1x8x8x64xbf16> to vector<8x8x64xbf16>
    %45 = vector.shape_cast %44 : vector<8x8x64xbf16> to vector<64x64xbf16>
    %c448 = arith.constant 448 : index
    %c0_61 = arith.constant 0 : index
    %46 = vector.load %arg2[%c448, %c0_61] : memref<1024x128xbf16, #tpu.memory_space<vmem>>, vector<64x128xbf16>
    %cst_62 = arith.constant dense<0.000000e+00> : vector<64x128xf32>
    %47 = tpu.matmul %45, %46, %cst_62 {dimension_numbers = #tpu.dot_dimension_numbers<[1], [0], [0], [1], [0, 0, 1, 1], [], []>} : vector<64x64xbf16>, vector<64x128xbf16>, vector<64x128xf32> -> vector<64x128xf32>
    %48 = arith.addf %42, %47 : vector<64x128xf32>
    %c0_63 = arith.constant 0 : index
    %c0_64 = arith.constant 0 : index
    %c0_65 = arith.constant 0 : index
    %c1_66 = arith.constant 1 : index
    %c0_67 = arith.constant 0 : index
    %c0_68 = arith.constant 0 : index
    %49 = vector.load %arg1[%c0_63, %c0_64, %c0_65, %c1_66, %c0_67, %c0_68] : memref<1x2x2x9x9x64xbf16, #tpu.memory_space<vmem>>, vector<1x1x1x8x8x64xbf16>
    %50 = vector.shape_cast %49 : vector<1x1x1x8x8x64xbf16> to vector<8x8x64xbf16>
    %51 = vector.shape_cast %50 : vector<8x8x64xbf16> to vector<64x64xbf16>
    %c512 = arith.constant 512 : index
    %c0_69 = arith.constant 0 : index
    %52 = vector.load %arg2[%c512, %c0_69] : memref<1024x128xbf16, #tpu.memory_space<vmem>>, vector<64x128xbf16>
    %cst_70 = arith.constant dense<0.000000e+00> : vector<64x128xf32>
    %53 = tpu.matmul %51, %52, %cst_70 {dimension_numbers = #tpu.dot_dimension_numbers<[1], [0], [0], [1], [0, 0, 1, 1], [], []>} : vector<64x64xbf16>, vector<64x128xbf16>, vector<64x128xf32> -> vector<64x128xf32>
    %54 = arith.addf %48, %53 : vector<64x128xf32>
    %c0_71 = arith.constant 0 : index
    %c0_72 = arith.constant 0 : index
    %c1_73 = arith.constant 1 : index
    %c1_74 = arith.constant 1 : index
    %c0_75 = arith.constant 0 : index
    %c0_76 = arith.constant 0 : index
    %55 = vector.load %arg1[%c0_71, %c0_72, %c1_73, %c1_74, %c0_75, %c0_76] : memref<1x2x2x9x9x64xbf16, #tpu.memory_space<vmem>>, vector<1x1x1x8x8x64xbf16>
    %56 = vector.shape_cast %55 : vector<1x1x1x8x8x64xbf16> to vector<8x8x64xbf16>
    %57 = vector.shape_cast %56 : vector<8x8x64xbf16> to vector<64x64xbf16>
    %c576 = arith.constant 576 : index
    %c0_77 = arith.constant 0 : index
    %58 = vector.load %arg2[%c576, %c0_77] : memref<1024x128xbf16, #tpu.memory_space<vmem>>, vector<64x128xbf16>
    %cst_78 = arith.constant dense<0.000000e+00> : vector<64x128xf32>
    %59 = tpu.matmul %57, %58, %cst_78 {dimension_numbers = #tpu.dot_dimension_numbers<[1], [0], [0], [1], [0, 0, 1, 1], [], []>} : vector<64x64xbf16>, vector<64x128xbf16>, vector<64x128xf32> -> vector<64x128xf32>
    %60 = arith.addf %54, %59 : vector<64x128xf32>
    %c0_79 = arith.constant 0 : index
    %c0_80 = arith.constant 0 : index
    %c0_81 = arith.constant 0 : index
    %c1_82 = arith.constant 1 : index
    %c1_83 = arith.constant 1 : index
    %c0_84 = arith.constant 0 : index
    %61 = vector.load %arg1[%c0_79, %c0_80, %c0_81, %c1_82, %c1_83, %c0_84] : memref<1x2x2x9x9x64xbf16, #tpu.memory_space<vmem>>, vector<1x1x1x8x8x64xbf16>
    %62 = vector.shape_cast %61 : vector<1x1x1x8x8x64xbf16> to vector<8x8x64xbf16>
    %63 = vector.shape_cast %62 : vector<8x8x64xbf16> to vector<64x64xbf16>
    %c640 = arith.constant 640 : index
    %c0_85 = arith.constant 0 : index
    %64 = vector.load %arg2[%c640, %c0_85] : memref<1024x128xbf16, #tpu.memory_space<vmem>>, vector<64x128xbf16>
    %cst_86 = arith.constant dense<0.000000e+00> : vector<64x128xf32>
    %65 = tpu.matmul %63, %64, %cst_86 {dimension_numbers = #tpu.dot_dimension_numbers<[1], [0], [0], [1], [0, 0, 1, 1], [], []>} : vector<64x64xbf16>, vector<64x128xbf16>, vector<64x128xf32> -> vector<64x128xf32>
    %66 = arith.addf %60, %65 : vector<64x128xf32>
    %c0_87 = arith.constant 0 : index
    %c0_88 = arith.constant 0 : index
    %c1_89 = arith.constant 1 : index
    %c1_90 = arith.constant 1 : index
    %c1_91 = arith.constant 1 : index
    %c0_92 = arith.constant 0 : index
    %67 = vector.load %arg1[%c0_87, %c0_88, %c1_89, %c1_90, %c1_91, %c0_92] : memref<1x2x2x9x9x64xbf16, #tpu.memory_space<vmem>>, vector<1x1x1x8x8x64xbf16>
    %68 = vector.shape_cast %67 : vector<1x1x1x8x8x64xbf16> to vector<8x8x64xbf16>
    %69 = vector.shape_cast %68 : vector<8x8x64xbf16> to vector<64x64xbf16>
    %c704 = arith.constant 704 : index
    %c0_93 = arith.constant 0 : index
    %70 = vector.load %arg2[%c704, %c0_93] : memref<1024x128xbf16, #tpu.memory_space<vmem>>, vector<64x128xbf16>
    %cst_94 = arith.constant dense<0.000000e+00> : vector<64x128xf32>
    %71 = tpu.matmul %69, %70, %cst_94 {dimension_numbers = #tpu.dot_dimension_numbers<[1], [0], [0], [1], [0, 0, 1, 1], [], []>} : vector<64x64xbf16>, vector<64x128xbf16>, vector<64x128xf32> -> vector<64x128xf32>
    %72 = arith.addf %66, %71 : vector<64x128xf32>
    %c0_95 = arith.constant 0 : index
    %c1_96 = arith.constant 1 : index
    %c0_97 = arith.constant 0 : index
    %c1_98 = arith.constant 1 : index
    %c0_99 = arith.constant 0 : index
    %c0_100 = arith.constant 0 : index
    %73 = vector.load %arg1[%c0_95, %c1_96, %c0_97, %c1_98, %c0_99, %c0_100] : memref<1x2x2x9x9x64xbf16, #tpu.memory_space<vmem>>, vector<1x1x1x8x8x64xbf16>
    %74 = vector.shape_cast %73 : vector<1x1x1x8x8x64xbf16> to vector<8x8x64xbf16>
    %75 = vector.shape_cast %74 : vector<8x8x64xbf16> to vector<64x64xbf16>
    %c768 = arith.constant 768 : index
    %c0_101 = arith.constant 0 : index
    %76 = vector.load %arg2[%c768, %c0_101] : memref<1024x128xbf16, #tpu.memory_space<vmem>>, vector<64x128xbf16>
    %cst_102 = arith.constant dense<0.000000e+00> : vector<64x128xf32>
    %77 = tpu.matmul %75, %76, %cst_102 {dimension_numbers = #tpu.dot_dimension_numbers<[1], [0], [0], [1], [0, 0, 1, 1], [], []>} : vector<64x64xbf16>, vector<64x128xbf16>, vector<64x128xf32> -> vector<64x128xf32>
    %78 = arith.addf %72, %77 : vector<64x128xf32>
    %c0_103 = arith.constant 0 : index
    %c1_104 = arith.constant 1 : index
    %c1_105 = arith.constant 1 : index
    %c1_106 = arith.constant 1 : index
    %c0_107 = arith.constant 0 : index
    %c0_108 = arith.constant 0 : index
    %79 = vector.load %arg1[%c0_103, %c1_104, %c1_105, %c1_106, %c0_107, %c0_108] : memref<1x2x2x9x9x64xbf16, #tpu.memory_space<vmem>>, vector<1x1x1x8x8x64xbf16>
    %80 = vector.shape_cast %79 : vector<1x1x1x8x8x64xbf16> to vector<8x8x64xbf16>
    %81 = vector.shape_cast %80 : vector<8x8x64xbf16> to vector<64x64xbf16>
    %c832 = arith.constant 832 : index
    %c0_109 = arith.constant 0 : index
    %82 = vector.load %arg2[%c832, %c0_109] : memref<1024x128xbf16, #tpu.memory_space<vmem>>, vector<64x128xbf16>
    %cst_110 = arith.constant dense<0.000000e+00> : vector<64x128xf32>
    %83 = tpu.matmul %81, %82, %cst_110 {dimension_numbers = #tpu.dot_dimension_numbers<[1], [0], [0], [1], [0, 0, 1, 1], [], []>} : vector<64x64xbf16>, vector<64x128xbf16>, vector<64x128xf32> -> vector<64x128xf32>
    %84 = arith.addf %78, %83 : vector<64x128xf32>
    %c0_111 = arith.constant 0 : index
    %c1_112 = arith.constant 1 : index
    %c0_113 = arith.constant 0 : index
    %c1_114 = arith.constant 1 : index
    %c1_115 = arith.constant 1 : index
    %c0_116 = arith.constant 0 : index
    %85 = vector.load %arg1[%c0_111, %c1_112, %c0_113, %c1_114, %c1_115, %c0_116] : memref<1x2x2x9x9x64xbf16, #tpu.memory_space<vmem>>, vector<1x1x1x8x8x64xbf16>
    %86 = vector.shape_cast %85 : vector<1x1x1x8x8x64xbf16> to vector<8x8x64xbf16>
    %87 = vector.shape_cast %86 : vector<8x8x64xbf16> to vector<64x64xbf16>
    %c896 = arith.constant 896 : index
    %c0_117 = arith.constant 0 : index
    %88 = vector.load %arg2[%c896, %c0_117] : memref<1024x128xbf16, #tpu.memory_space<vmem>>, vector<64x128xbf16>
    %cst_118 = arith.constant dense<0.000000e+00> : vector<64x128xf32>
    %89 = tpu.matmul %87, %88, %cst_118 {dimension_numbers = #tpu.dot_dimension_numbers<[1], [0], [0], [1], [0, 0, 1, 1], [], []>} : vector<64x64xbf16>, vector<64x128xbf16>, vector<64x128xf32> -> vector<64x128xf32>
    %90 = arith.addf %84, %89 : vector<64x128xf32>
    %c0_119 = arith.constant 0 : index
    %c1_120 = arith.constant 1 : index
    %c1_121 = arith.constant 1 : index
    %c1_122 = arith.constant 1 : index
    %c1_123 = arith.constant 1 : index
    %c0_124 = arith.constant 0 : index
    %91 = vector.load %arg1[%c0_119, %c1_120, %c1_121, %c1_122, %c1_123, %c0_124] : memref<1x2x2x9x9x64xbf16, #tpu.memory_space<vmem>>, vector<1x1x1x8x8x64xbf16>
    %92 = vector.shape_cast %91 : vector<1x1x1x8x8x64xbf16> to vector<8x8x64xbf16>
    %93 = vector.shape_cast %92 : vector<8x8x64xbf16> to vector<64x64xbf16>
    %c960 = arith.constant 960 : index
    %c0_125 = arith.constant 0 : index
    %94 = vector.load %arg2[%c960, %c0_125] : memref<1024x128xbf16, #tpu.memory_space<vmem>>, vector<64x128xbf16>
    %cst_126 = arith.constant dense<0.000000e+00> : vector<64x128xf32>
    %95 = tpu.matmul %93, %94, %cst_126 {dimension_numbers = #tpu.dot_dimension_numbers<[1], [0], [0], [1], [0, 0, 1, 1], [], []>} : vector<64x64xbf16>, vector<64x128xbf16>, vector<64x128xf32> -> vector<64x128xf32>
    %96 = arith.addf %90, %95 : vector<64x128xf32>
    %c0_127 = arith.constant 0 : index
    %c0_128 = arith.constant 0 : index
    %97 = vector.load %arg3[%c0_127, %c0_128] : memref<1x128xf32, #tpu.memory_space<vmem>>, vector<1x128xf32>
    %98 = vector.broadcast %97 : vector<1x128xf32> to vector<64x128xf32>
    %99 = arith.addf %96, %98 : vector<64x128xf32>
    %100 = arith.truncf %99 : vector<64x128xf32> to vector<64x128xbf16>
    %c0_129 = arith.constant 0 : index
    %c0_130 = arith.constant 0 : index
    %c0_131 = arith.constant 0 : index
    %101 = vector.load %arg4[%c0_129, %c0_130, %c0_131] : memref<1x64x128xbf16, #tpu.memory_space<vmem>>, vector<1x64x128xbf16>
    %102 = vector.shape_cast %101 : vector<1x64x128xbf16> to vector<64x128xbf16>
    %103 = vector.shape_cast %100 : vector<64x128xbf16> to vector<1x64x128xbf16>
    tpu.vector_store %arg4[%c0_129, %c0_130, %c0_131], %103 {strides = array<i32>} : memref<1x64x128xbf16, #tpu.memory_space<vmem>>, vector<1x64x128xbf16>,
    %cst_132 = arith.constant dense<0.000000e+00> : vector<128xf32>
    %104 = vector.multi_reduction <add>, %99, %cst_132 [0] : vector<64x128xf32> to vector<128xf32>
    %105 = vector.shape_cast %104 : vector<128xf32> to vector<1x128xf32>
    %c0_133 = arith.constant 0 : index
    %c0_134 = arith.constant 0 : index
    %c0_135 = arith.constant 0 : index
    %106 = vector.load %arg5[%c0_133, %c0_134, %c0_135] : memref<1x2x128xf32, #tpu.memory_space<vmem>>, vector<1x1x128xf32>
    %107 = vector.shape_cast %106 : vector<1x1x128xf32> to vector<1x128xf32>
    %108 = vector.shape_cast %105 : vector<1x128xf32> to vector<1x1x128xf32>
    tpu.vector_store %arg5[%c0_133, %c0_134, %c0_135], %108 {strides = array<i32>} : memref<1x2x128xf32, #tpu.memory_space<vmem>>, vector<1x1x128xf32>,
    %109 = arith.mulf %99, %99 : vector<64x128xf32>
    %cst_136 = arith.constant dense<0.000000e+00> : vector<128xf32>
    %110 = vector.multi_reduction <add>, %109, %cst_136 [0] : vector<64x128xf32> to vector<128xf32>
    %111 = vector.shape_cast %110 : vector<128xf32> to vector<1x128xf32>
    %c0_137 = arith.constant 0 : index
    %c1_138 = arith.constant 1 : index
    %c0_139 = arith.constant 0 : index
    %112 = vector.load %arg5[%c0_137, %c1_138, %c0_139] : memref<1x2x128xf32, #tpu.memory_space<vmem>>, vector<1x1x128xf32>
    %113 = vector.shape_cast %112 : vector<1x1x128xf32> to vector<1x128xf32>
    %114 = vector.shape_cast %111 : vector<1x128xf32> to vector<1x1x128xf32>
    tpu.vector_store %arg5[%c0_137, %c1_138, %c0_139], %114 {strides = array<i32>} : memref<1x2x128xf32, #tpu.memory_space<vmem>>, vector<1x1x128xf32>,
    return
  }
  func.func @transform_0(%arg0: i32) -> (i32, i32, i32, i32, i32, i32) {
    %c0_i32 = arith.constant 0 : i32
    %c0_i32_0 = arith.constant 0 : i32
    %c0_i32_1 = arith.constant 0 : i32
    %c0_i32_2 = arith.constant 0 : i32
    %c0_i32_3 = arith.constant 0 : i32
    %c0_i32_4 = arith.constant 0 : i32
    return %arg0, %c0_i32, %c0_i32_0, %c0_i32_1, %c0_i32_2, %c0_i32_3 : i32, i32, i32, i32, i32, i32
  }
  func.func @transform_1(%arg0: i32) -> (i32, i32) {
    %c0_i32 = arith.constant 0 : i32
    %c0_i32_0 = arith.constant 0 : i32
    %c0_i32_1 = arith.constant 0 : i32
    return %c0_i32, %c0_i32_0 : i32, i32
  }
  func.func @transform_2(%arg0: i32) -> (i32, i32) {
    %c0_i32 = arith.constant 0 : i32
    %c0_i32_0 = arith.constant 0 : i32
    %c0_i32_1 = arith.constant 0 : i32
    return %c0_i32, %c0_i32_0 : i32, i32
  }
  func.func @transform_3(%arg0: i32) -> (i32, i32, i32) {
    %c0_i32 = arith.constant 0 : i32
    %c0_i32_0 = arith.constant 0 : i32
    %c0_i32_1 = arith.constant 0 : i32
    return %arg0, %c0_i32, %c0_i32_0 : i32, i32, i32
  }
  func.func @transform_4(%arg0: i32) -> (i32, i32, i32) {
    %c0_i32 = arith.constant 0 : i32
    %c0_i32_0 = arith.constant 0 : i32
    %c0_i32_1 = arith.constant 0 : i32
    return %arg0, %c0_i32, %c0_i32_0 : i32, i32, i32
  }
}

module attributes {stable_mosaic.version = 11 : i64} {
  func.func @_fc_fused_kernel(%arg0: i32, %arg1: memref<2x2048xbf16, #tpu.memory_space<vmem>>, %arg2: memref<1x2048xf32, #tpu.memory_space<vmem>>, %arg3: memref<1x2048xf32, #tpu.memory_space<vmem>>, %arg4: memref<2048x1024xi8, #tpu.memory_space<vmem>>, %arg5: memref<1x1024xf32, #tpu.memory_space<vmem>>, %arg6: memref<1x1024xf32, #tpu.memory_space<vmem>>, %arg7: memref<1x1024xf32, #tpu.memory_space<vmem>>, %arg8: memref<1x1024xf32, #tpu.memory_space<vmem>>, %arg9: memref<1024x128xbf16, #tpu.memory_space<vmem>>, %arg10: memref<1x128xf32, #tpu.memory_space<vmem>>, %arg11: memref<2x128xf32, #tpu.memory_space<vmem>>, %arg12: memref<2x1024xf32, #tpu.memory_space<vmem>>) attributes {dimension_semantics = [#tpu.dimension_semantics<arbitrary>], iteration_bounds = array<i64: 4>, scalar_prefetch = 0 : i64, scratch_operands = 1 : i64, tpu.core_type = #tpu.core_type<tc>, window_params = [{transform_indices = @transform_0, window_bounds = array<i64: 2, 2048>}, {transform_indices = @transform_1, window_bounds = array<i64: 1, 2048>}, {transform_indices = @transform_2, window_bounds = array<i64: 1, 2048>}, {transform_indices = @transform_3, window_bounds = array<i64: 2048, 1024>}, {pipeline_mode = #tpu.pipeline_mode<synchronous>, transform_indices = @transform_4, window_bounds = array<i64: 1, 1024>}, {pipeline_mode = #tpu.pipeline_mode<synchronous>, transform_indices = @transform_5, window_bounds = array<i64: 1, 1024>}, {pipeline_mode = #tpu.pipeline_mode<synchronous>, transform_indices = @transform_6, window_bounds = array<i64: 1, 1024>}, {pipeline_mode = #tpu.pipeline_mode<synchronous>, transform_indices = @transform_7, window_bounds = array<i64: 1, 1024>}, {pipeline_mode = #tpu.pipeline_mode<synchronous>, transform_indices = @transform_8, window_bounds = array<i64: 1024, 128>}, {pipeline_mode = #tpu.pipeline_mode<synchronous>, transform_indices = @transform_9, window_bounds = array<i64: 1, 128>}, {pipeline_mode = #tpu.pipeline_mode<synchronous>, transform_indices = @transform_10, window_bounds = array<i64: 2, 128>}]} {
    %c0_i32 = arith.constant 0 : i32
    %0 = arith.cmpi eq, %arg0, %c0_i32 : i32
    %1 = arith.extui %0 : i1 to i32
    %c0_i32_0 = arith.constant 0 : i32
    %2 = arith.cmpi ne, %1, %c0_i32_0 : i32
    scf.if %2 {
      %cst_15 = arith.constant 0.000000e+00 : f32
      %27 = vector.broadcast %cst_15 : f32 to vector<2x1024xf32>
      %c0_16 = arith.constant 0 : index
      %c0_17 = arith.constant 0 : index
      %28 = vector.load %arg12[%c0_16, %c0_17] : memref<2x1024xf32, #tpu.memory_space<vmem>>, vector<2x1024xf32>
      tpu.vector_store %arg12[%c0_16, %c0_17], %27 {strides = array<i32>} : memref<2x1024xf32, #tpu.memory_space<vmem>>, vector<2x1024xf32>,
    } else {
    }
    %c0 = arith.constant 0 : index
    %c0_1 = arith.constant 0 : index
    %3 = vector.load %arg1[%c0, %c0_1] : memref<2x2048xbf16, #tpu.memory_space<vmem>>, vector<2x2048xbf16>
    %4 = arith.extf %3 : vector<2x2048xbf16> to vector<2x2048xf32>
    %c0_2 = arith.constant 0 : index
    %c0_3 = arith.constant 0 : index
    %5 = vector.load %arg2[%c0_2, %c0_3] : memref<1x2048xf32, #tpu.memory_space<vmem>>, vector<1x2048xf32>
    %6 = vector.broadcast %5 : vector<1x2048xf32> to vector<2x2048xf32>
    %7 = arith.mulf %4, %6 : vector<2x2048xf32>
    %c0_4 = arith.constant 0 : index
    %c0_5 = arith.constant 0 : index
    %8 = vector.load %arg3[%c0_4, %c0_5] : memref<1x2048xf32, #tpu.memory_space<vmem>>, vector<1x2048xf32>
    %9 = vector.broadcast %8 : vector<1x2048xf32> to vector<2x2048xf32>
    %10 = arith.addf %7, %9 : vector<2x2048xf32>
    %cst = arith.constant 0.000000e+00 : f32
    %11 = vector.broadcast %cst : f32 to vector<2x2048xf32>
    %12 = arith.cmpf ogt, %10, %11 : vector<2x2048xf32>
    %cst_6 = arith.constant 2.000000e-01 : f32
    %13 = vector.broadcast %cst_6 : f32 to vector<2x2048xf32>
    %14 = arith.mulf %13, %10 : vector<2x2048xf32>
    %15 = arith.select %12, %10, %14 : vector<2x2048xi1>, vector<2x2048xf32>
    %c0_7 = arith.constant 0 : index
    %c0_8 = arith.constant 0 : index
    %16 = vector.load %arg4[%c0_7, %c0_8] : memref<2048x1024xi8, #tpu.memory_space<vmem>>, vector<2048x1024xi8>
    %17 = arith.sitofp %16 : vector<2048x1024xi8> to vector<2048x1024xf32>
    %18 = arith.truncf %17 : vector<2048x1024xf32> to vector<2048x1024xbf16>
    %c0_9 = arith.constant 0 : index
    %c0_10 = arith.constant 0 : index
    %19 = vector.load %arg12[%c0_9, %c0_10] : memref<2x1024xf32, #tpu.memory_space<vmem>>, vector<2x1024xf32>
    %20 = arith.truncf %15 : vector<2x2048xf32> to vector<2x2048xbf16>
    %cst_11 = arith.constant dense<0.000000e+00> : vector<2x1024xf32>
    %21 = tpu.matmul %20, %18, %cst_11 {dimension_numbers = #tpu.dot_dimension_numbers<[1], [0], [0], [1], [0, 0, 1, 1], [], []>} : vector<2x2048xbf16>, vector<2048x1024xbf16>, vector<2x1024xf32> -> vector<2x1024xf32>
    %22 = arith.addf %19, %21 : vector<2x1024xf32>
    %c0_12 = arith.constant 0 : index
    %c0_13 = arith.constant 0 : index
    %23 = vector.load %arg12[%c0_12, %c0_13] : memref<2x1024xf32, #tpu.memory_space<vmem>>, vector<2x1024xf32>
    tpu.vector_store %arg12[%c0_12, %c0_13], %22 {strides = array<i32>} : memref<2x1024xf32, #tpu.memory_space<vmem>>, vector<2x1024xf32>,
    %c3_i32 = arith.constant 3 : i32
    %24 = arith.cmpi eq, %arg0, %c3_i32 : i32
    %25 = arith.extui %24 : i1 to i32
    %c0_i32_14 = arith.constant 0 : i32
    %26 = arith.cmpi ne, %25, %c0_i32_14 : i32
    scf.if %26 {
      %c0_15 = arith.constant 0 : index
      %c0_16 = arith.constant 0 : index
      %27 = vector.load %arg12[%c0_15, %c0_16] : memref<2x1024xf32, #tpu.memory_space<vmem>>, vector<2x1024xf32>
      %c0_17 = arith.constant 0 : index
      %c0_18 = arith.constant 0 : index
      %28 = vector.load %arg5[%c0_17, %c0_18] : memref<1x1024xf32, #tpu.memory_space<vmem>>, vector<1x1024xf32>
      %29 = vector.broadcast %28 : vector<1x1024xf32> to vector<2x1024xf32>
      %30 = arith.mulf %27, %29 : vector<2x1024xf32>
      %c0_19 = arith.constant 0 : index
      %c0_20 = arith.constant 0 : index
      %31 = vector.load %arg6[%c0_19, %c0_20] : memref<1x1024xf32, #tpu.memory_space<vmem>>, vector<1x1024xf32>
      %32 = vector.broadcast %31 : vector<1x1024xf32> to vector<2x1024xf32>
      %33 = arith.addf %30, %32 : vector<2x1024xf32>
      %c0_21 = arith.constant 0 : index
      %c0_22 = arith.constant 0 : index
      %34 = vector.load %arg7[%c0_21, %c0_22] : memref<1x1024xf32, #tpu.memory_space<vmem>>, vector<1x1024xf32>
      %c0_23 = arith.constant 0 : index
      %c0_24 = arith.constant 0 : index
      %35 = vector.load %arg8[%c0_23, %c0_24] : memref<1x1024xf32, #tpu.memory_space<vmem>>, vector<1x1024xf32>
      %cst_25 = arith.constant dense<0.000000e+00> : vector<1024xf32>
      %36 = vector.multi_reduction <add>, %33, %cst_25 [0] : vector<2x1024xf32> to vector<1024xf32>
      %37 = vector.shape_cast %36 : vector<1024xf32> to vector<1x1024xf32>
      %cst_26 = arith.constant 5.000000e-01 : f32
      %38 = vector.broadcast %cst_26 : f32 to vector<1x1024xf32>
      %39 = arith.mulf %37, %38 : vector<1x1024xf32>
      %40 = vector.broadcast %39 : vector<1x1024xf32> to vector<2x1024xf32>
      %41 = arith.subf %33, %40 : vector<2x1024xf32>
      %42 = arith.mulf %41, %41 : vector<2x1024xf32>
      %cst_27 = arith.constant dense<0.000000e+00> : vector<1024xf32>
      %43 = vector.multi_reduction <add>, %42, %cst_27 [0] : vector<2x1024xf32> to vector<1024xf32>
      %44 = vector.shape_cast %43 : vector<1024xf32> to vector<1x1024xf32>
      %cst_28 = arith.constant 5.000000e-01 : f32
      %45 = vector.broadcast %cst_28 : f32 to vector<1x1024xf32>
      %46 = arith.mulf %44, %45 : vector<1x1024xf32>
      %cst_29 = arith.constant 9.99999974E-6 : f32
      %47 = vector.broadcast %cst_29 : f32 to vector<1x1024xf32>
      %48 = arith.addf %46, %47 : vector<1x1024xf32>
      %49 = math.rsqrt %48 : vector<1x1024xf32>
      %50 = arith.mulf %49, %34 : vector<1x1024xf32>
      %51 = vector.broadcast %50 : vector<1x1024xf32> to vector<2x1024xf32>
      %52 = arith.mulf %41, %51 : vector<2x1024xf32>
      %53 = vector.broadcast %35 : vector<1x1024xf32> to vector<2x1024xf32>
      %54 = arith.addf %52, %53 : vector<2x1024xf32>
      %cst_30 = arith.constant 0.000000e+00 : f32
      %55 = vector.broadcast %cst_30 : f32 to vector<2x1024xf32>
      %56 = arith.cmpf ogt, %54, %55 : vector<2x1024xf32>
      %cst_31 = arith.constant 2.000000e-01 : f32
      %57 = vector.broadcast %cst_31 : f32 to vector<2x1024xf32>
      %58 = arith.mulf %57, %54 : vector<2x1024xf32>
      %59 = arith.select %56, %54, %58 : vector<2x1024xi1>, vector<2x1024xf32>
      %60 = arith.truncf %59 : vector<2x1024xf32> to vector<2x1024xbf16>
      %c0_32 = arith.constant 0 : index
      %c0_33 = arith.constant 0 : index
      %61 = vector.load %arg9[%c0_32, %c0_33] : memref<1024x128xbf16, #tpu.memory_space<vmem>>, vector<1024x128xbf16>
      %cst_34 = arith.constant dense<0.000000e+00> : vector<2x128xf32>
      %62 = tpu.matmul %60, %61, %cst_34 {dimension_numbers = #tpu.dot_dimension_numbers<[1], [0], [0], [1], [0, 0, 1, 1], [], []>} : vector<2x1024xbf16>, vector<1024x128xbf16>, vector<2x128xf32> -> vector<2x128xf32>
      %c0_35 = arith.constant 0 : index
      %c0_36 = arith.constant 0 : index
      %63 = vector.load %arg10[%c0_35, %c0_36] : memref<1x128xf32, #tpu.memory_space<vmem>>, vector<1x128xf32>
      %64 = vector.broadcast %63 : vector<1x128xf32> to vector<2x128xf32>
      %65 = arith.addf %62, %64 : vector<2x128xf32>
      %66 = math.absf %65 : vector<2x128xf32>
      %cst_37 = arith.constant 0.000000e+00 : f32
      %67 = vector.broadcast %cst_37 : f32 to vector<2x128xf32>
      %68 = arith.subf %67, %66 : vector<2x128xf32>
      %69 = math.exp %68 : vector<2x128xf32>
      %cst_38 = arith.constant 1.000000e+00 : f32
      %70 = vector.broadcast %cst_38 : f32 to vector<2x128xf32>
      %71 = arith.addf %70, %69 : vector<2x128xf32>
      %cst_39 = arith.constant 1.000000e+00 : f32
      %72 = vector.broadcast %cst_39 : f32 to vector<2x128xf32>
      %73 = arith.divf %72, %71 : vector<2x128xf32>
      %cst_40 = arith.constant 0.000000e+00 : f32
      %74 = vector.broadcast %cst_40 : f32 to vector<2x128xf32>
      %75 = arith.cmpf oge, %65, %74 : vector<2x128xf32>
      %cst_41 = arith.constant 1.000000e+00 : f32
      %76 = vector.broadcast %cst_41 : f32 to vector<2x128xf32>
      %77 = arith.subf %76, %73 : vector<2x128xf32>
      %78 = arith.select %75, %73, %77 : vector<2x128xi1>, vector<2x128xf32>
      %c0_42 = arith.constant 0 : index
      %c0_43 = arith.constant 0 : index
      %79 = vector.load %arg11[%c0_42, %c0_43] : memref<2x128xf32, #tpu.memory_space<vmem>>, vector<2x128xf32>
      tpu.vector_store %arg11[%c0_42, %c0_43], %78 {strides = array<i32>} : memref<2x128xf32, #tpu.memory_space<vmem>>, vector<2x128xf32>,
    } else {
    }
    return
  }
  func.func @transform_0(%arg0: i32) -> (i32, i32) {
    %c0_i32 = arith.constant 0 : i32
    %c0_i32_0 = arith.constant 0 : i32
    return %c0_i32, %arg0 : i32, i32
  }
  func.func @transform_1(%arg0: i32) -> (i32, i32) {
    %c0_i32 = arith.constant 0 : i32
    %c0_i32_0 = arith.constant 0 : i32
    return %c0_i32, %arg0 : i32, i32
  }
  func.func @transform_2(%arg0: i32) -> (i32, i32) {
    %c0_i32 = arith.constant 0 : i32
    %c0_i32_0 = arith.constant 0 : i32
    return %c0_i32, %arg0 : i32, i32
  }
  func.func @transform_3(%arg0: i32) -> (i32, i32) {
    %c0_i32 = arith.constant 0 : i32
    %c0_i32_0 = arith.constant 0 : i32
    return %arg0, %c0_i32 : i32, i32
  }
  func.func @transform_4(%arg0: i32) -> (i32, i32) {
    %c0_i32 = arith.constant 0 : i32
    %c0_i32_0 = arith.constant 0 : i32
    %c0_i32_1 = arith.constant 0 : i32
    return %c0_i32, %c0_i32_0 : i32, i32
  }
  func.func @transform_5(%arg0: i32) -> (i32, i32) {
    %c0_i32 = arith.constant 0 : i32
    %c0_i32_0 = arith.constant 0 : i32
    %c0_i32_1 = arith.constant 0 : i32
    return %c0_i32, %c0_i32_0 : i32, i32
  }
  func.func @transform_6(%arg0: i32) -> (i32, i32) {
    %c0_i32 = arith.constant 0 : i32
    %c0_i32_0 = arith.constant 0 : i32
    %c0_i32_1 = arith.constant 0 : i32
    return %c0_i32, %c0_i32_0 : i32, i32
  }
  func.func @transform_7(%arg0: i32) -> (i32, i32) {
    %c0_i32 = arith.constant 0 : i32
    %c0_i32_0 = arith.constant 0 : i32
    %c0_i32_1 = arith.constant 0 : i32
    return %c0_i32, %c0_i32_0 : i32, i32
  }
  func.func @transform_8(%arg0: i32) -> (i32, i32) {
    %c0_i32 = arith.constant 0 : i32
    %c0_i32_0 = arith.constant 0 : i32
    %c0_i32_1 = arith.constant 0 : i32
    return %c0_i32, %c0_i32_0 : i32, i32
  }
  func.func @transform_9(%arg0: i32) -> (i32, i32) {
    %c0_i32 = arith.constant 0 : i32
    %c0_i32_0 = arith.constant 0 : i32
    %c0_i32_1 = arith.constant 0 : i32
    return %c0_i32, %c0_i32_0 : i32, i32
  }
  func.func @transform_10(%arg0: i32) -> (i32, i32) {
    %c0_i32 = arith.constant 0 : i32
    %c0_i32_0 = arith.constant 0 : i32
    %c0_i32_1 = arith.constant 0 : i32
    return %c0_i32, %c0_i32_0 : i32, i32
  }
}

</mosaic_0001>

<llo_original>
// kernel: discriminator_forward.3
$region0: #{discriminator_forward.3}
  #allocation0 [shape = 'u32[]', space=smem, size = 0x4, offset = 0x4, fixed_abs, tag = 'smem constant byte address 0x4 - core index']
  #allocation1 [shape = 'u32[144,128]{1,0:T(1,128)}', space=vmem, size = 0x12000, scoped, tag = 'internal scratch']
  %s0 = inlined_call_operand.vmem [shape: bf16[512,16], index: 0, kind: input, shape index: {}]
  %s1 = inlined_call_operand.hbm [shape: bf16[16,128], index: 1, kind: input, shape index: {}]
  %s2 = inlined_call_operand.hbm [shape: f32[1,128], index: 2, kind: input, shape index: {}]
  %s3 = inlined_call_operand.vmem [shape: bf16[512,128], index: 3, kind: output, shape index: {}]
  %s4 = sld [smem:[#allocation0]]
  $region30: #{discriminator_forward.3} parent=0
    _
  %s6 = ssub.s32 1, %s4
  %s7 = scalar_select 0, %s6, %s4
  $region1: #{discriminator_forward.3} parent=0
    #allocation2 [shape = 'u8[4096]{0}', space=vmem, size = 0x1000, scoped, tag = 'input window, operand 1, single buffered']
    #allocation3 [shape = 's32[1]{0}', space=sflag, size = 0x4, scoped, tag = 'scoped memory for discriminator_forward.3']
    #allocation4 [shape = 'u8[512]{0}', space=vmem, size = 0x400, scoped, tag = 'input window, operand 2, single buffered']
    #allocation5 [shape = 's32[1]{0}', space=sflag, size = 0x4, scoped, tag = 'scoped memory for discriminator_forward.3']
    %8 = vsyncpa [#allocation3], 0
    %9 = vsyncpa [#allocation5], 0
    // Predicated region
    $region2: #{discriminator_forward.3} parent=1 // pred_check
      _
    $region3: #{discriminator_forward.3} parent=1 // pred_check_branch
      %11 = sbr.rel (0) target = $region5
    $region4: #{discriminator_forward.3} parent=1 // pred_region
      _
    $region5: #{discriminator_forward.3} parent=1 // pred_fallthru
      _
    // Predicated region
    $region6: #{discriminator_forward.3} parent=1 // pred_check
      _
    $region7: #{discriminator_forward.3} parent=1 // pred_check_branch
      %13 = sbr.rel (0) target = $region9
    $region8: #{discriminator_forward.3} parent=1 // pred_region
      %s15 = ssub.s32 128, 128
      %16 = vsyncadd [#allocation3], %s15
      %s17 = sshll.u32 [#allocation2], 4
      %s18 = int_to_ptr.vmem [resolvable:$true] %s17
      %23 = dma.hbm_to_vmem [thread:$0]  %s1, 128, %s18, [#allocation3], 64, 64, 4
    $region9: #{discriminator_forward.3} parent=1 // pred_fallthru
      _
    // Predicated region
    $region10: #{discriminator_forward.3} parent=1 // pred_check
      _
    $region11: #{discriminator_forward.3} parent=1 // pred_check_branch
      %25 = sbr.rel (0) target = $region13
    $region12: #{discriminator_forward.3} parent=1 // pred_region
      %s27 = ssub.s32 16, 16
      %28 = vsyncadd [#allocation5], %s27
      %s30 = sshll.u32 [#allocation4], 4
      %s31 = int_to_ptr.vmem [resolvable:$true] %s30
      %33 = dma.hbm_to_vmem [thread:$0]  %s2, 16, %s31, [#allocation5]
    $region13: #{discriminator_forward.3} parent=1 // pred_fallthru
      _
    // Predicated region
    $region14: #{discriminator_forward.3} parent=1 // pred_check
      _
    $region15: #{discriminator_forward.3} parent=1 // pred_check_branch
      %35 = sbr.rel (0) target = $region17
    $region16: #{discriminator_forward.3} parent=1 // pred_region
      %36 = dma.done [#allocation3], 128
    $region17: #{discriminator_forward.3} parent=1 // pred_fallthru
      _
    // Predicated region
    $region18: #{discriminator_forward.3} parent=1 // pred_check
      _
    $region19: #{discriminator_forward.3} parent=1 // pred_check_branch
      %38 = sbr.rel (0) target = $region21
    $region20: #{discriminator_forward.3} parent=1 // pred_region
      %39 = dma.done [#allocation5], 16
    $region21: #{discriminator_forward.3} parent=1 // pred_fallthru
      _
    %v41 = vld [vmem:[%s0] sm:$0xf]
    %v42 = vld [vmem:[%s0 + $0x4] sm:$0xf]
    %v43 = vld [vmem:[%s0 + $0x8] sm:$0xf]
    %v44 = vld [vmem:[%s0 + $0xc] sm:$0xf]
    %v45 = vld [vmem:[%s0 + $0x10] sm:$0xf]
    %v46 = vld [vmem:[%s0 + $0x14] sm:$0xf]
    %v47 = vld [vmem:[%s0 + $0x18] sm:$0xf]
    %v48 = vld [vmem:[%s0 + $0x1c] sm:$0xf]
    %v49 = vld [vmem:[%s0 + $0x20] sm:$0xf]
    %v50 = vld [vmem:[%s0 + $0x24] sm:$0xf]
    %v51 = vld [vmem:[%s0 + $0x28] sm:$0xf]
    %v52 = vld [vmem:[%s0 + $0x2c] sm:$0xf]
    %v53 = vld [vmem:[%s0 + $0x30] sm:$0xf]
    %v54 = vld [vmem:[%s0 + $0x34] sm:$0xf]
    %v55 = vld [vmem:[%s0 + $0x38] sm:$0xf]
    %v56 = vld [vmem:[%s0 + $0x3c] sm:$0xf]
    %v57 = vld [vmem:[%s0 + $0x40] sm:$0xf]
    %v58 = vld [vmem:[%s0 + $0x44] sm:$0xf]
    %v59 = vld [vmem:[%s0 + $0x48] sm:$0xf]
    %v60 = vld [vmem:[%s0 + $0x4c] sm:$0xf]
    %v61 = vld [vmem:[%s0 + $0x50] sm:$0xf]
    %v62 = vld [vmem:[%s0 + $0x54] sm:$0xf]
    %v63 = vld [vmem:[%s0 + $0x58] sm:$0xf]
    %v64 = vld [vmem:[%s0 + $0x5c] sm:$0xf]
    %v65 = vld [vmem:[%s0 + $0x60] sm:$0xf]
    %v66 = vld [vmem:[%s0 + $0x64] sm:$0xf]
    %v67 = vld [vmem:[%s0 + $0x68] sm:$0xf]
    %v68 = vld [vmem:[%s0 + $0x6c] sm:$0xf]
    %v69 = vld [vmem:[%s0 + $0x70] sm:$0xf]
    %v70 = vld [vmem:[%s0 + $0x74] sm:$0xf]
    %v71 = vld [vmem:[%s0 + $0x78] sm:$0xf]
    %v72 = vld [vmem:[%s0 + $0x7c] sm:$0xf]
    %v73 = vld [vmem:[%s0 + $0x80] sm:$0xf]
    %v74 = vld [vmem:[%s0 + $0x84] sm:$0xf]
    %v75 = vld [vmem:[%s0 + $0x88] sm:$0xf]
    %v76 = vld [vmem:[%s0 + $0x8c] sm:$0xf]
    %v77 = vld [vmem:[%s0 + $0x90] sm:$0xf]
    %v78 = vld [vmem:[%s0 + $0x94] sm:$0xf]
    %v79 = vld [vmem:[%s0 + $0x98] sm:$0xf]
    %v80 = vld [vmem:[%s0 + $0x9c] sm:$0xf]
    %v81 = vld [vmem:[%s0 + $0xa0] sm:$0xf]
    %v82 = vld [vmem:[%s0 + $0xa4] sm:$0xf]
    %v83 = vld [vmem:[%s0 + $0xa8] sm:$0xf]
    %v84 = vld [vmem:[%s0 + $0xac] sm:$0xf]
    %v85 = vld [vmem:[%s0 + $0xb0] sm:$0xf]
    %v86 = vld [vmem:[%s0 + $0xb4] sm:$0xf]
    %v87 = vld [vmem:[%s0 + $0xb8] sm:$0xf]
    %v88 = vld [vmem:[%s0 + $0xbc] sm:$0xf]
    %v89 = vld [vmem:[%s0 + $0xc0] sm:$0xf]
    %v90 = vld [vmem:[%s0 + $0xc4] sm:$0xf]
    %v91 = vld [vmem:[%s0 + $0xc8] sm:$0xf]
    %v92 = vld [vmem:[%s0 + $0xcc] sm:$0xf]
    %v93 = vld [vmem:[%s0 + $0xd0] sm:$0xf]
    %v94 = vld [vmem:[%s0 + $0xd4] sm:$0xf]
    %v95 = vld [vmem:[%s0 + $0xd8] sm:$0xf]
    %v96 = vld [vmem:[%s0 + $0xdc] sm:$0xf]
    %v97 = vld [vmem:[%s0 + $0xe0] sm:$0xf]
    %v98 = vld [vmem:[%s0 + $0xe4] sm:$0xf]
    %v99 = vld [vmem:[%s0 + $0xe8] sm:$0xf]
    %v100 = vld [vmem:[%s0 + $0xec] sm:$0xf]
    %v101 = vld [vmem:[%s0 + $0xf0] sm:$0xf]
    %v102 = vld [vmem:[%s0 + $0xf4] sm:$0xf]
    %v103 = vld [vmem:[%s0 + $0xf8] sm:$0xf]
    %v104 = vld [vmem:[%s0 + $0xfc] sm:$0xf]
    %v105 = vld [vmem:[#allocation2] sm:$0xf]
    %v106 = vld [vmem:[#allocation2 + $0x4] sm:$0xf]
    %v107 = vld [vmem:[#allocation4] sm:$0x1]
    %v109 = vlaneseq
    %v110 = vshrl.u32 %v109, 7
    %v111 = vsub.s32 0, %v110
    %v112 = vrot.slane %v107, %v111
    %v178 = vunpack.c.l.b16 %v41
    %v179 = vunpack.c.l.b16 %v42
    %v180 = vunpack.c.l.b16 %v43
    %v181 = vunpack.c.l.b16 %v44
    %v182 = vunpack.c.l.b16 %v45
    %v183 = vunpack.c.l.b16 %v46
    %v184 = vunpack.c.l.b16 %v47
    %v185 = vunpack.c.l.b16 %v48
    %v186 = vunpack.c.l.b16 %v49
    %v187 = vunpack.c.l.b16 %v50
    %v188 = vunpack.c.l.b16 %v51
    %v189 = vunpack.c.l.b16 %v52
    %v190 = vunpack.c.l.b16 %v53
    %v191 = vunpack.c.l.b16 %v54
    %v192 = vunpack.c.l.b16 %v55
    %v193 = vunpack.c.l.b16 %v56
    %v194 = vunpack.c.l.b16 %v57
    %v195 = vunpack.c.l.b16 %v58
    %v196 = vunpack.c.l.b16 %v59
    %v197 = vunpack.c.l.b16 %v60
    %v198 = vunpack.c.l.b16 %v61
    %v199 = vunpack.c.l.b16 %v62
    %v200 = vunpack.c.l.b16 %v63
    %v201 = vunpack.c.l.b16 %v64
    %v202 = vunpack.c.l.b16 %v65
    %v203 = vunpack.c.l.b16 %v66
    %v204 = vunpack.c.l.b16 %v67
    %v205 = vunpack.c.l.b16 %v68
    %v206 = vunpack.c.l.b16 %v69
    %v207 = vunpack.c.l.b16 %v70
    %v208 = vunpack.c.l.b16 %v71
    %v209 = vunpack.c.l.b16 %v72
    %v210 = vunpack.c.l.b16 %v73
    %v211 = vunpack.c.l.b16 %v74
    %v212 = vunpack.c.l.b16 %v75
    %v213 = vunpack.c.l.b16 %v76
    %v214 = vunpack.c.l.b16 %v77
    %v215 = vunpack.c.l.b16 %v78
    %v216 = vunpack.c.l.b16 %v79
    %v217 = vunpack.c.l.b16 %v80
    %v218 = vunpack.c.l.b16 %v81
    %v219 = vunpack.c.l.b16 %v82
    %v220 = vunpack.c.l.b16 %v83
    %v221 = vunpack.c.l.b16 %v84
    %v222 = vunpack.c.l.b16 %v85
    %v223 = vunpack.c.l.b16 %v86
    %v224 = vunpack.c.l.b16 %v87
    %v225 = vunpack.c.l.b16 %v88
    %v226 = vunpack.c.l.b16 %v89
    %v227 = vunpack.c.l.b16 %v90
    %v228 = vunpack.c.l.b16 %v91
    %v229 = vunpack.c.l.b16 %v92
    %v230 = vunpack.c.l.b16 %v93
    %v231 = vunpack.c.l.b16 %v94
    %v232 = vunpack.c.l.b16 %v95
    %v233 = vunpack.c.l.b16 %v96
    %v234 = vunpack.c.l.b16 %v97
    %v235 = vunpack.c.l.b16 %v98
    %v236 = vunpack.c.l.b16 %v99
    %v237 = vunpack.c.l.b16 %v100
    %v238 = vunpack.c.l.b16 %v101
    %v239 = vunpack.c.l.b16 %v102
    %v240 = vunpack.c.l.b16 %v103
    %v241 = vunpack.c.l.b16 %v104
    %v242 = vpack.c.b16 %v179, %v178
    %v243 = vpack.c.b16 %v181, %v180
    %v244 = vpack.c.b16 %v183, %v182
    %v245 = vpack.c.b16 %v185, %v184
    %v246 = vpack.c.b16 %v187, %v186
    %v247 = vpack.c.b16 %v189, %v188
    %v248 = vpack.c.b16 %v191, %v190
    %v249 = vpack.c.b16 %v193, %v192
    %v250 = vpack.c.b16 %v195, %v194
    %v251 = vpack.c.b16 %v197, %v196
    %v252 = vpack.c.b16 %v199, %v198
    %v253 = vpack.c.b16 %v201, %v200
    %v254 = vpack.c.b16 %v203, %v202
    %v255 = vpack.c.b16 %v205, %v204
    %v256 = vpack.c.b16 %v207, %v206
    %v257 = vpack.c.b16 %v209, %v208
    %v258 = vpack.c.b16 %v211, %v210
    %v259 = vpack.c.b16 %v213, %v212
    %v260 = vpack.c.b16 %v215, %v214
    %v261 = vpack.c.b16 %v217, %v216
    %v262 = vpack.c.b16 %v219, %v218
    %v263 = vpack.c.b16 %v221, %v220
    %v264 = vpack.c.b16 %v223, %v222
    %v265 = vpack.c.b16 %v225, %v224
    %v266 = vpack.c.b16 %v227, %v226
    %v267 = vpack.c.b16 %v229, %v228
    %v268 = vpack.c.b16 %v231, %v230
    %v269 = vpack.c.b16 %v233, %v232
    %v270 = vpack.c.b16 %v235, %v234
    %v271 = vpack.c.b16 %v237, %v236
    %v272 = vpack.c.b16 %v239, %v238
    %v273 = vpack.c.b16 %v241, %v240
    %v276 = vunpack.c.l.b16 %v105
    %v277 = vunpack.c.l.b16 %v106
    %v278 = vpack.c.b16 %v277, %v276
    %vm280 = vcmask 130048
    %v282 = vsel %vm280, %v242, 0
    %v285 = vsel %vm280, %v243, 0
    %v288 = vsel %vm280, %v244, 0
    %v291 = vsel %vm280, %v245, 0
    %v294 = vsel %vm280, %v246, 0
    %v297 = vsel %vm280, %v247, 0
    %v300 = vsel %vm280, %v248, 0
    %v303 = vsel %vm280, %v249, 0
    %v306 = vsel %vm280, %v250, 0
    %v309 = vsel %vm280, %v251, 0
    %v312 = vsel %vm280, %v252, 0
    %v315 = vsel %vm280, %v253, 0
    %v318 = vsel %vm280, %v254, 0
    %v321 = vsel %vm280, %v255, 0
    %v324 = vsel %vm280, %v256, 0
    %v327 = vsel %vm280, %v257, 0
    %v330 = vsel %vm280, %v258, 0
    %v333 = vsel %vm280, %v259, 0
    %v336 = vsel %vm280, %v260, 0
    %v339 = vsel %vm280, %v261, 0
    %v342 = vsel %vm280, %v262, 0
    %v345 = vsel %vm280, %v263, 0
    %v348 = vsel %vm280, %v264, 0
    %v351 = vsel %vm280, %v265, 0
    %v354 = vsel %vm280, %v266, 0
    %v357 = vsel %vm280, %v267, 0
    %v360 = vsel %vm280, %v268, 0
    %v363 = vsel %vm280, %v269, 0
    %v366 = vsel %vm280, %v270, 0
    %v369 = vsel %vm280, %v271, 0
    %v372 = vsel %vm280, %v272, 0
    %v375 = vsel %vm280, %v273, 0
    %377 = vmatprep.subr.bf16.mxu0 0
    %378 = vmatpush1.bf16.msra.mxu0 0
    %379 = vmatprep.subr.bf16.mxu0 0
    %380 = vmatpush1.bf16.msra.mxu0 0
    %381 = vmatprep.subr.bf16.mxu0 0
    %382 = vmatpush1.bf16.msra.mxu0 0
    %383 = vmatprep.subr.bf16.mxu0 0
    %384 = vmatpush1.bf16.msra.mxu0 0
    %385 = vmatprep.subr.bf16.mxu0 0
    %386 = vmatpush1.bf16.msra.mxu0 0
    %387 = vmatprep.subr.bf16.mxu0 0
    %388 = vmatpush1.bf16.msra.mxu0 0
    %389 = vmatprep.subr.bf16.mxu0 0
    %390 = vmatpush1.bf16.msra.mxu0 0
    %391 = vmatprep.subr.bf16.mxu0 0
    %392 = vmatpush1.bf16.msra.mxu0 %v278
    %393 = vmatprep.subr.bf16.mxu0 0
    %394 = vmatpush2.bf16.msra.mxu0 0
    %395 = vmatprep.subr.bf16.mxu0 0
    %396 = vmatpush2.bf16.msra.mxu0 0
    %397 = vmatprep.subr.bf16.mxu0 0
    %398 = vmatpush2.bf16.msra.mxu0 0
    %399 = vmatprep.subr.bf16.mxu0 0
    %400 = vmatpush2.bf16.msra.mxu0 0
    %401 = vmatprep.subr.bf16.mxu0 0
    %402 = vmatpush2.bf16.msra.mxu0 0
    %403 = vmatprep.subr.bf16.mxu0 0
    %404 = vmatpush2.bf16.msra.mxu0 0
    %405 = vmatprep.subr.bf16.mxu0 0
    %406 = vmatpush2.bf16.msra.mxu0 0
    %407 = vmatprep.subr.bf16.mxu0 0
    %408 = vmatpush2.bf16.msra.mxu0 0
    %409 = vmatprep.mubr.bf16.mxu0 0
    %410 = vmatmul.mubr.bf16.gmra.mxu0 %v282
    %v411 = vpop.f32.mrf.mxu0
    %v412 = vadd.f32 %v112, %v411
    %v413 = vpop.f32.mrf.mxu0
    %v414 = vpop.f32.mrf.mxu0
    %v415 = vadd.f32 %v112, %v414
    %v416 = vpop.f32.mrf.mxu0
    %417 = vmatprep.mubr.bf16.mxu0 0
    %418 = vmatmul.mubr.bf16.gmra.mxu0 %v285
    %v419 = vpop.f32.mrf.mxu0
    %v420 = vadd.f32 %v112, %v419
    %v421 = vpop.f32.mrf.mxu0
    %v422 = vpop.f32.mrf.mxu0
    %v423 = vadd.f32 %v112, %v422
    %v424 = vpop.f32.mrf.mxu0
    %425 = vmatprep.mubr.bf16.mxu0 0
    %426 = vmatmul.mubr.bf16.gmra.mxu0 %v288
    %v427 = vpop.f32.mrf.mxu0
    %v428 = vadd.f32 %v112, %v427
    %v429 = vpop.f32.mrf.mxu0
    %v430 = vpop.f32.mrf.mxu0
    %v431 = vadd.f32 %v112, %v430
    %v432 = vpop.f32.mrf.mxu0
    %433 = vmatprep.mubr.bf16.mxu0 0
    %434 = vmatmul.mubr.bf16.gmra.mxu0 %v291
    %v435 = vpop.f32.mrf.mxu0
    %v436 = vadd.f32 %v112, %v435
    %v437 = vpop.f32.mrf.mxu0
    %v438 = vpop.f32.mrf.mxu0
    %v439 = vadd.f32 %v112, %v438
    %v440 = vpop.f32.mrf.mxu0
    %441 = vmatprep.mubr.bf16.mxu0 0
    %442 = vmatmul.mubr.bf16.gmra.mxu0 %v294
    %v443 = vpop.f32.mrf.mxu0
    %v444 = vadd.f32 %v112, %v443
    %v445 = vpop.f32.mrf.mxu0
    %v446 = vpop.f32.mrf.mxu0
    %v447 = vadd.f32 %v112, %v446
    %v448 = vpop.f32.mrf.mxu0
    %449 = vmatprep.mubr.bf16.mxu0 0
    %450 = vmatmul.mubr.bf16.gmra.mxu0 %v297
    %v451 = vpop.f32.mrf.mxu0
    %v452 = vadd.f32 %v112, %v451
    %v453 = vpop.f32.mrf.mxu0
    %v454 = vpop.f32.mrf.mxu0
    %v455 = vadd.f32 %v112, %v454
    %v456 = vpop.f32.mrf.mxu0
    %457 = vmatprep.mubr.bf16.mxu0 0
    %458 = vmatmul.mubr.bf16.gmra.mxu0 %v300
    %v459 = vpop.f32.mrf.mxu0
    %v460 = vadd.f32 %v112, %v459
    %v461 = vpop.f32.mrf.mxu0
    %v462 = vpop.f32.mrf.mxu0
    %v463 = vadd.f32 %v112, %v462
    %v464 = vpop.f32.mrf.mxu0
    %465 = vmatprep.mubr.bf16.mxu0 0
    %466 = vmatmul.mubr.bf16.gmra.mxu0 %v303
    %v467 = vpop.f32.mrf.mxu0
    %v468 = vadd.f32 %v112, %v467
    %v469 = vpop.f32.mrf.mxu0
    %v470 = vpop.f32.mrf.mxu0
    %v471 = vadd.f32 %v112, %v470
    %v472 = vpop.f32.mrf.mxu0
    %473 = vmatprep.mubr.bf16.mxu0 0
    %474 = vmatmul.mubr.bf16.gmra.mxu0 %v306
    %v475 = vpop.f32.mrf.mxu0
    %v476 = vadd.f32 %v112, %v475
    %v477 = vpop.f32.mrf.mxu0
    %v478 = vpop.f32.mrf.mxu0
    %v479 = vadd.f32 %v112, %v478
    %v480 = vpop.f32.mrf.mxu0
    %481 = vmatprep.mubr.bf16.mxu0 0
    %482 = vmatmul.mubr.bf16.gmra.mxu0 %v309
    %v483 = vpop.f32.mrf.mxu0
    %v484 = vadd.f32 %v112, %v483
    %v485 = vpop.f32.mrf.mxu0
    %v486 = vpop.f32.mrf.mxu0
    %v487 = vadd.f32 %v112, %v486
    %v488 = vpop.f32.mrf.mxu0
    %489 = vmatprep.mubr.bf16.mxu0 0
    %490 = vmatmul.mubr.bf16.gmra.mxu0 %v312
    %v491 = vpop.f32.mrf.mxu0
    %v492 = vadd.f32 %v112, %v491
    %v493 = vpop.f32.mrf.mxu0
    %v494 = vpop.f32.mrf.mxu0
    %v495 = vadd.f32 %v112, %v494
    %v496 = vpop.f32.mrf.mxu0
    %497 = vmatprep.mubr.bf16.mxu0 0
    %498 = vmatmul.mubr.bf16.gmra.mxu0 %v315
    %v499 = vpop.f32.mrf.mxu0
    %v500 = vadd.f32 %v112, %v499
    %v501 = vpop.f32.mrf.mxu0
    %v502 = vpop.f32.mrf.mxu0
    %v503 = vadd.f32 %v112, %v502
    %v504 = vpop.f32.mrf.mxu0
    %505 = vmatprep.mubr.bf16.mxu0 0
    %506 = vmatmul.mubr.bf16.gmra.mxu0 %v318
    %v507 = vpop.f32.mrf.mxu0
    %v508 = vadd.f32 %v112, %v507
    %v509 = vpop.f32.mrf.mxu0
    %v510 = vpop.f32.mrf.mxu0
    %v511 = vadd.f32 %v112, %v510
    %v512 = vpop.f32.mrf.mxu0
    %513 = vmatprep.mubr.bf16.mxu0 0
    %514 = vmatmul.mubr.bf16.gmra.mxu0 %v321
    %v515 = vpop.f32.mrf.mxu0
    %v516 = vadd.f32 %v112, %v515
    %v517 = vpop.f32.mrf.mxu0
    %v518 = vpop.f32.mrf.mxu0
    %v519 = vadd.f32 %v112, %v518
    %v520 = vpop.f32.mrf.mxu0
    %521 = vmatprep.mubr.bf16.mxu0 0
    %522 = vmatmul.mubr.bf16.gmra.mxu0 %v324
    %v523 = vpop.f32.mrf.mxu0
    %v524 = vadd.f32 %v112, %v523
    %v525 = vpop.f32.mrf.mxu0
    %v526 = vpop.f32.mrf.mxu0
    %v527 = vadd.f32 %v112, %v526
    %v528 = vpop.f32.mrf.mxu0
    %529 = vmatprep.mubr.bf16.mxu0 0
    %530 = vmatmul.mubr.bf16.gmra.mxu0 %v327
    %v531 = vpop.f32.mrf.mxu0
    %v532 = vadd.f32 %v112, %v531
    %v533 = vpop.f32.mrf.mxu0
    %v534 = vpop.f32.mrf.mxu0
    %v535 = vadd.f32 %v112, %v534
    %v536 = vpop.f32.mrf.mxu0
    %537 = vmatprep.mubr.bf16.mxu0 0
    %538 = vmatmul.mubr.bf16.gmra.mxu0 %v330
    %v539 = vpop.f32.mrf.mxu0
    %v540 = vadd.f32 %v112, %v539
    %v541 = vpop.f32.mrf.mxu0
    %v542 = vpop.f32.mrf.mxu0
    %v543 = vadd.f32 %v112, %v542
    %v544 = vpop.f32.mrf.mxu0
    %545 = vmatprep.mubr.bf16.mxu0 0
    %546 = vmatmul.mubr.bf16.gmra.mxu0 %v333
    %v547 = vpop.f32.mrf.mxu0
    %v548 = vadd.f32 %v112, %v547
    %v549 = vpop.f32.mrf.mxu0
    %v550 = vpop.f32.mrf.mxu0
    %v551 = vadd.f32 %v112, %v550
    %v552 = vpop.f32.mrf.mxu0
    %553 = vmatprep.mubr.bf16.mxu0 0
    %554 = vmatmul.mubr.bf16.gmra.mxu0 %v336
    %v555 = vpop.f32.mrf.mxu0
    %v556 = vadd.f32 %v112, %v555
    %v557 = vpop.f32.mrf.mxu0
    %v558 = vpop.f32.mrf.mxu0
    %v559 = vadd.f32 %v112, %v558
    %v560 = vpop.f32.mrf.mxu0
    %561 = vmatprep.mubr.bf16.mxu0 0
    %562 = vmatmul.mubr.bf16.gmra.mxu0 %v339
    %v563 = vpop.f32.mrf.mxu0
    %v564 = vadd.f32 %v112, %v563
    %v565 = vpop.f32.mrf.mxu0
    %v566 = vpop.f32.mrf.mxu0
    %v567 = vadd.f32 %v112, %v566
    %v568 = vpop.f32.mrf.mxu0
    %569 = vmatprep.mubr.bf16.mxu0 0
    %570 = vmatmul.mubr.bf16.gmra.mxu0 %v342
    %v571 = vpop.f32.mrf.mxu0
    %v572 = vadd.f32 %v112, %v571
    %v573 = vpop.f32.mrf.mxu0
    %v574 = vpop.f32.mrf.mxu0
    %v575 = vadd.f32 %v112, %v574
    %v576 = vpop.f32.mrf.mxu0
    %577 = vmatprep.mubr.bf16.mxu0 0
    %578 = vmatmul.mubr.bf16.gmra.mxu0 %v345
    %v579 = vpop.f32.mrf.mxu0
    %v580 = vadd.f32 %v112, %v579
    %v581 = vpop.f32.mrf.mxu0
    %v582 = vpop.f32.mrf.mxu0
    %v583 = vadd.f32 %v112, %v582
    %v584 = vpop.f32.mrf.mxu0
    %585 = vmatprep.mubr.bf16.mxu0 0
    %586 = vmatmul.mubr.bf16.gmra.mxu0 %v348
    %v587 = vpop.f32.mrf.mxu0
    %v588 = vadd.f32 %v112, %v587
    %v589 = vpop.f32.mrf.mxu0
    %v590 = vpop.f32.mrf.mxu0
    %v591 = vadd.f32 %v112, %v590
    %v592 = vpop.f32.mrf.mxu0
    %593 = vmatprep.mubr.bf16.mxu0 0
    %594 = vmatmul.mubr.bf16.gmra.mxu0 %v351
    %v595 = vpop.f32.mrf.mxu0
    %v596 = vadd.f32 %v112, %v595
    %v597 = vpop.f32.mrf.mxu0
    %v598 = vpop.f32.mrf.mxu0
    %v599 = vadd.f32 %v112, %v598
    %v600 = vpop.f32.mrf.mxu0
    %601 = vmatprep.mubr.bf16.mxu0 0
    %602 = vmatmul.mubr.bf16.gmra.mxu0 %v354
    %v603 = vpop.f32.mrf.mxu0
    %v604 = vadd.f32 %v112, %v603
    %v605 = vpop.f32.mrf.mxu0
    %v606 = vpop.f32.mrf.mxu0
    %v607 = vadd.f32 %v112, %v606
    %v608 = vpop.f32.mrf.mxu0
    %609 = vmatprep.mubr.bf16.mxu0 0
    %610 = vmatmul.mubr.bf16.gmra.mxu0 %v357
    %v611 = vpop.f32.mrf.mxu0
    %v612 = vadd.f32 %v112, %v611
    %v613 = vpop.f32.mrf.mxu0
    %v614 = vpop.f32.mrf.mxu0
    %v615 = vadd.f32 %v112, %v614
    %v616 = vpop.f32.mrf.mxu0
    %617 = vmatprep.mubr.bf16.mxu0 0
    %618 = vmatmul.mubr.bf16.gmra.mxu0 %v360
    %v619 = vpop.f32.mrf.mxu0
    %v620 = vadd.f32 %v112, %v619
    %v621 = vpop.f32.mrf.mxu0
    %v622 = vpop.f32.mrf.mxu0
    %v623 = vadd.f32 %v112, %v622
    %v624 = vpop.f32.mrf.mxu0
    %625 = vmatprep.mubr.bf16.mxu0 0
    %626 = vmatmul.mubr.bf16.gmra.mxu0 %v363
    %v627 = vpop.f32.mrf.mxu0
    %v628 = vadd.f32 %v112, %v627
    %v629 = vpop.f32.mrf.mxu0
    %v630 = vpop.f32.mrf.mxu0
    %v631 = vadd.f32 %v112, %v630
    %v632 = vpop.f32.mrf.mxu0
    %633 = vmatprep.mubr.bf16.mxu0 0
    %634 = vmatmul.mubr.bf16.gmra.mxu0 %v366
    %v635 = vpop.f32.mrf.mxu0
    %v636 = vadd.f32 %v112, %v635
    %v637 = vpop.f32.mrf.mxu0
    %v638 = vpop.f32.mrf.mxu0
    %v639 = vadd.f32 %v112, %v638
    %v640 = vpop.f32.mrf.mxu0
    %641 = vmatprep.mubr.bf16.mxu0 0
    %642 = vmatmul.mubr.bf16.gmra.mxu0 %v369
    %v643 = vpop.f32.mrf.mxu0
    %v644 = vadd.f32 %v112, %v643
    %v645 = vpop.f32.mrf.mxu0
    %v646 = vpop.f32.mrf.mxu0
    %v647 = vadd.f32 %v112, %v646
    %v648 = vpop.f32.mrf.mxu0
    %649 = vmatprep.mubr.bf16.mxu0 0
    %650 = vmatmul.mubr.bf16.gmra.mxu0 %v372
    %v651 = vpop.f32.mrf.mxu0
    %v652 = vadd.f32 %v112, %v651
    %v653 = vpop.f32.mrf.mxu0
    %v654 = vpop.f32.mrf.mxu0
    %v655 = vadd.f32 %v112, %v654
    %v656 = vpop.f32.mrf.mxu0
    %657 = vmatprep.mubr.bf16.mxu0 0
    %658 = vmatmul.mubr.bf16.gmra.mxu0 %v375
    %v659 = vpop.f32.mrf.mxu0
    %v660 = vadd.f32 %v112, %v659
    %v661 = vpop.f32.mrf.mxu0
    %v662 = vpop.f32.mrf.mxu0
    %v663 = vadd.f32 %v112, %v662
    %v664 = vpop.f32.mrf.mxu0
    %665 = vdwg.mxu0
    %vm666 = vcmp.gt.f32.partialorder %v412, 0.0
    %vm667 = vcmp.gt.f32.partialorder %v415, 0.0
    %vm668 = vcmp.gt.f32.partialorder %v420, 0.0
    %vm669 = vcmp.gt.f32.partialorder %v423, 0.0
    %vm670 = vcmp.gt.f32.partialorder %v428, 0.0
    %vm671 = vcmp.gt.f32.partialorder %v431, 0.0
    %vm672 = vcmp.gt.f32.partialorder %v436, 0.0
    %vm673 = vcmp.gt.f32.partialorder %v439, 0.0
    %vm674 = vcmp.gt.f32.partialorder %v444, 0.0
    %vm675 = vcmp.gt.f32.partialorder %v447, 0.0
    %vm676 = vcmp.gt.f32.partialorder %v452, 0.0
    %vm677 = vcmp.gt.f32.partialorder %v455, 0.0
    %vm678 = vcmp.gt.f32.partialorder %v460, 0.0
    %vm679 = vcmp.gt.f32.partialorder %v463, 0.0
    %vm680 = vcmp.gt.f32.partialorder %v468, 0.0
    %vm681 = vcmp.gt.f32.partialorder %v471, 0.0
    %vm682 = vcmp.gt.f32.partialorder %v476, 0.0
    %vm683 = vcmp.gt.f32.partialorder %v479, 0.0
    %vm684 = vcmp.gt.f32.partialorder %v484, 0.0
    %vm685 = vcmp.gt.f32.partialorder %v487, 0.0
    %vm686 = vcmp.gt.f32.partialorder %v492, 0.0
    %vm687 = vcmp.gt.f32.partialorder %v495, 0.0
    %vm688 = vcmp.gt.f32.partialorder %v500, 0.0
    %vm689 = vcmp.gt.f32.partialorder %v503, 0.0
    %vm690 = vcmp.gt.f32.partialorder %v508, 0.0
    %vm691 = vcmp.gt.f32.partialorder %v511, 0.0
    %vm692 = vcmp.gt.f32.partialorder %v516, 0.0
    %vm693 = vcmp.gt.f32.partialorder %v519, 0.0
    %vm694 = vcmp.gt.f32.partialorder %v524, 0.0
    %vm695 = vcmp.gt.f32.partialorder %v527, 0.0
    %vm696 = vcmp.gt.f32.partialorder %v532, 0.0
    %vm697 = vcmp.gt.f32.partialorder %v535, 0.0
    %vm698 = vcmp.gt.f32.partialorder %v540, 0.0
    %vm699 = vcmp.gt.f32.partialorder %v543, 0.0
    %vm700 = vcmp.gt.f32.partialorder %v548, 0.0
    %vm701 = vcmp.gt.f32.partialorder %v551, 0.0
    %vm702 = vcmp.gt.f32.partialorder %v556, 0.0
    %vm703 = vcmp.gt.f32.partialorder %v559, 0.0
    %vm704 = vcmp.gt.f32.partialorder %v564, 0.0
    %vm705 = vcmp.gt.f32.partialorder %v567, 0.0
    %vm706 = vcmp.gt.f32.partialorder %v572, 0.0
    %vm707 = vcmp.gt.f32.partialorder %v575, 0.0
    %vm708 = vcmp.gt.f32.partialorder %v580, 0.0
    %vm709 = vcmp.gt.f32.partialorder %v583, 0.0
    %vm710 = vcmp.gt.f32.partialorder %v588, 0.0
    %vm711 = vcmp.gt.f32.partialorder %v591, 0.0
    %vm712 = vcmp.gt.f32.partialorder %v596, 0.0
    %vm713 = vcmp.gt.f32.partialorder %v599, 0.0
    %vm714 = vcmp.gt.f32.partialorder %v604, 0.0
    %vm715 = vcmp.gt.f32.partialorder %v607, 0.0
    %vm716 = vcmp.gt.f32.partialorder %v612, 0.0
    %vm717 = vcmp.gt.f32.partialorder %v615, 0.0
    %vm718 = vcmp.gt.f32.partialorder %v620, 0.0
    %vm719 = vcmp.gt.f32.partialorder %v623, 0.0
    %vm720 = vcmp.gt.f32.partialorder %v628, 0.0
    %vm721 = vcmp.gt.f32.partialorder %v631, 0.0
    %vm722 = vcmp.gt.f32.partialorder %v636, 0.0
    %vm723 = vcmp.gt.f32.partialorder %v639, 0.0
    %vm724 = vcmp.gt.f32.partialorder %v644, 0.0
    %vm725 = vcmp.gt.f32.partialorder %v647, 0.0
    %vm726 = vcmp.gt.f32.partialorder %v652, 0.0
    %vm727 = vcmp.gt.f32.partialorder %v655, 0.0
    %vm728 = vcmp.gt.f32.partialorder %v660, 0.0
    %vm729 = vcmp.gt.f32.partialorder %v663, 0.0
    %v730 = vmul.f32 %v412, 0.2
    %v731 = vmul.f32 %v415, 0.2
    %v732 = vmul.f32 %v420, 0.2
    %v733 = vmul.f32 %v423, 0.2
    %v734 = vmul.f32 %v428, 0.2
    %v735 = vmul.f32 %v431, 0.2
    %v736 = vmul.f32 %v436, 0.2
    %v737 = vmul.f32 %v439, 0.2
    %v738 = vmul.f32 %v444, 0.2
    %v739 = vmul.f32 %v447, 0.2
    %v740 = vmul.f32 %v452, 0.2
    %v741 = vmul.f32 %v455, 0.2
    %v742 = vmul.f32 %v460, 0.2
    %v743 = vmul.f32 %v463, 0.2
    %v744 = vmul.f32 %v468, 0.2
    %v745 = vmul.f32 %v471, 0.2
    %v746 = vmul.f32 %v476, 0.2
    %v747 = vmul.f32 %v479, 0.2
    %v748 = vmul.f32 %v484, 0.2
    %v749 = vmul.f32 %v487, 0.2
    %v750 = vmul.f32 %v492, 0.2
    %v751 = vmul.f32 %v495, 0.2
    %v752 = vmul.f32 %v500, 0.2
    %v753 = vmul.f32 %v503, 0.2
    %v754 = vmul.f32 %v508, 0.2
    %v755 = vmul.f32 %v511, 0.2
    %v756 = vmul.f32 %v516, 0.2
    %v757 = vmul.f32 %v519, 0.2
    %v758 = vmul.f32 %v524, 0.2
    %v759 = vmul.f32 %v527, 0.2
    %v760 = vmul.f32 %v532, 0.2
    %v761 = vmul.f32 %v535, 0.2
    %v762 = vmul.f32 %v540, 0.2
    %v763 = vmul.f32 %v543, 0.2
    %v764 = vmul.f32 %v548, 0.2
    %v765 = vmul.f32 %v551, 0.2
    %v766 = vmul.f32 %v556, 0.2
    %v767 = vmul.f32 %v559, 0.2
    %v768 = vmul.f32 %v564, 0.2
    %v769 = vmul.f32 %v567, 0.2
    %v770 = vmul.f32 %v572, 0.2
    %v771 = vmul.f32 %v575, 0.2
    %v772 = vmul.f32 %v580, 0.2
    %v773 = vmul.f32 %v583, 0.2
    %v774 = vmul.f32 %v588, 0.2
    %v775 = vmul.f32 %v591, 0.2
    %v776 = vmul.f32 %v596, 0.2
    %v777 = vmul.f32 %v599, 0.2
    %v778 = vmul.f32 %v604, 0.2
    %v779 = vmul.f32 %v607, 0.2
    %v780 = vmul.f32 %v612, 0.2
    %v781 = vmul.f32 %v615, 0.2
    %v782 = vmul.f32 %v620, 0.2
    %v783 = vmul.f32 %v623, 0.2
    %v784 = vmul.f32 %v628, 0.2
    %v785 = vmul.f32 %v631, 0.2
    %v786 = vmul.f32 %v636, 0.2
    %v787 = vmul.f32 %v639, 0.2
    %v788 = vmul.f32 %v644, 0.2
    %v789 = vmul.f32 %v647, 0.2
    %v790 = vmul.f32 %v652, 0.2
    %v791 = vmul.f32 %v655, 0.2
    %v792 = vmul.f32 %v660, 0.2
    %v793 = vmul.f32 %v663, 0.2
    %v794 = vsel %vm666, %v412, %v730
    %v795 = vsel %vm667, %v415, %v731
    %v796 = vsel %vm668, %v420, %v732
    %v797 = vsel %vm669, %v423, %v733
    %v798 = vsel %vm670, %v428, %v734
    %v799 = vsel %vm671, %v431, %v735
    %v800 = vsel %vm672, %v436, %v736
    %v801 = vsel %vm673, %v439, %v737
    %v802 = vsel %vm674, %v444, %v738
    %v803 = vsel %vm675, %v447, %v739
    %v804 = vsel %vm676, %v452, %v740
    %v805 = vsel %vm677, %v455, %v741
    %v806 = vsel %vm678, %v460, %v742
    %v807 = vsel %vm679, %v463, %v743
    %v808 = vsel %vm680, %v468, %v744
    %v809 = vsel %vm681, %v471, %v745
    %v810 = vsel %vm682, %v476, %v746
    %v811 = vsel %vm683, %v479, %v747
    %v812 = vsel %vm684, %v484, %v748
    %v813 = vsel %vm685, %v487, %v749
    %v814 = vsel %vm686, %v492, %v750
    %v815 = vsel %vm687, %v495, %v751
    %v816 = vsel %vm688, %v500, %v752
    %v817 = vsel %vm689, %v503, %v753
    %v818 = vsel %vm690, %v508, %v754
    %v819 = vsel %vm691, %v511, %v755
    %v820 = vsel %vm692, %v516, %v756
    %v821 = vsel %vm693, %v519, %v757
    %v822 = vsel %vm694, %v524, %v758
    %v823 = vsel %vm695, %v527, %v759
    %v824 = vsel %vm696, %v532, %v760
    %v825 = vsel %vm697, %v535, %v761
    %v826 = vsel %vm698, %v540, %v762
    %v827 = vsel %vm699, %v543, %v763
    %v828 = vsel %vm700, %v548, %v764
    %v829 = vsel %vm701, %v551, %v765
    %v830 = vsel %vm702, %v556, %v766
    %v831 = vsel %vm703, %v559, %v767
    %v832 = vsel %vm704, %v564, %v768
    %v833 = vsel %vm705, %v567, %v769
    %v834 = vsel %vm706, %v572, %v770
    %v835 = vsel %vm707, %v575, %v771
    %v836 = vsel %vm708, %v580, %v772
    %v837 = vsel %vm709, %v583, %v773
    %v838 = vsel %vm710, %v588, %v774
    %v839 = vsel %vm711, %v591, %v775
    %v840 = vsel %vm712, %v596, %v776
    %v841 = vsel %vm713, %v599, %v777
    %v842 = vsel %vm714, %v604, %v778
    %v843 = vsel %vm715, %v607, %v779
    %v844 = vsel %vm716, %v612, %v780
    %v845 = vsel %vm717, %v615, %v781
    %v846 = vsel %vm718, %v620, %v782
    %v847 = vsel %vm719, %v623, %v783
    %v848 = vsel %vm720, %v628, %v784
    %v849 = vsel %vm721, %v631, %v785
    %v850 = vsel %vm722, %v636, %v786
    %v851 = vsel %vm723, %v639, %v787
    %v852 = vsel %vm724, %v644, %v788
    %v853 = vsel %vm725, %v647, %v789
    %v854 = vsel %vm726, %v652, %v790
    %v855 = vsel %vm727, %v655, %v791
    %v856 = vsel %vm728, %v660, %v792
    %v857 = vsel %vm729, %v663, %v793
    %v858 = vpack.c.bf16 %v795, %v794
    %v859 = vpack.c.bf16 %v797, %v796
    %v860 = vpack.c.bf16 %v799, %v798
    %v861 = vpack.c.bf16 %v801, %v800
    %v862 = vpack.c.bf16 %v803, %v802
    %v863 = vpack.c.bf16 %v805, %v804
    %v864 = vpack.c.bf16 %v807, %v806
    %v865 = vpack.c.bf16 %v809, %v808
    %v866 = vpack.c.bf16 %v811, %v810
    %v867 = vpack.c.bf16 %v813, %v812
    %v868 = vpack.c.bf16 %v815, %v814
    %v869 = vpack.c.bf16 %v817, %v816
    %v870 = vpack.c.bf16 %v819, %v818
    %v871 = vpack.c.bf16 %v821, %v820
    %v872 = vpack.c.bf16 %v823, %v822
    %v873 = vpack.c.bf16 %v825, %v824
    %v874 = vpack.c.bf16 %v827, %v826
    %v875 = vpack.c.bf16 %v829, %v828
    %v876 = vpack.c.bf16 %v831, %v830
    %v877 = vpack.c.bf16 %v833, %v832
    %v878 = vpack.c.bf16 %v835, %v834
    %v879 = vpack.c.bf16 %v837, %v836
    %v880 = vpack.c.bf16 %v839, %v838
    %v881 = vpack.c.bf16 %v841, %v840
    %v882 = vpack.c.bf16 %v843, %v842
    %v883 = vpack.c.bf16 %v845, %v844
    %v884 = vpack.c.bf16 %v847, %v846
    %v885 = vpack.c.bf16 %v849, %v848
    %v886 = vpack.c.bf16 %v851, %v850
    %v887 = vpack.c.bf16 %v853, %v852
    %v888 = vpack.c.bf16 %v855, %v854
    %v889 = vpack.c.bf16 %v857, %v856
    %v922 = vunpack.c.l.b16 %v858
    %v923 = vunpack.c.h.b16 %v858
    %v924 = vunpack.c.l.b16 %v859
    %v925 = vunpack.c.h.b16 %v859
    %v926 = vunpack.c.l.b16 %v860
    %v927 = vunpack.c.h.b16 %v860
    %v928 = vunpack.c.l.b16 %v861
    %v929 = vunpack.c.h.b16 %v861
    %v930 = vunpack.c.l.b16 %v862
    %v931 = vunpack.c.h.b16 %v862
    %v932 = vunpack.c.l.b16 %v863
    %v933 = vunpack.c.h.b16 %v863
    %v934 = vunpack.c.l.b16 %v864
    %v935 = vunpack.c.h.b16 %v864
    %v936 = vunpack.c.l.b16 %v865
    %v937 = vunpack.c.h.b16 %v865
    %v938 = vunpack.c.l.b16 %v866
    %v939 = vunpack.c.h.b16 %v866
    %v940 = vunpack.c.l.b16 %v867
    %v941 = vunpack.c.h.b16 %v867
    %v942 = vunpack.c.l.b16 %v868
    %v943 = vunpack.c.h.b16 %v868
    %v944 = vunpack.c.l.b16 %v869
    %v945 = vunpack.c.h.b16 %v869
    %v946 = vunpack.c.l.b16 %v870
    %v947 = vunpack.c.h.b16 %v870
    %v948 = vunpack.c.l.b16 %v871
    %v949 = vunpack.c.h.b16 %v871
    %v950 = vunpack.c.l.b16 %v872
    %v951 = vunpack.c.h.b16 %v872
    %v952 = vunpack.c.l.b16 %v873
    %v953 = vunpack.c.h.b16 %v873
    %v954 = vunpack.c.l.b16 %v874
    %v955 = vunpack.c.h.b16 %v874
    %v956 = vunpack.c.l.b16 %v875
    %v957 = vunpack.c.h.b16 %v875
    %v958 = vunpack.c.l.b16 %v876
    %v959 = vunpack.c.h.b16 %v876
    %v960 = vunpack.c.l.b16 %v877
    %v961 = vunpack.c.h.b16 %v877
    %v962 = vunpack.c.l.b16 %v878
    %v963 = vunpack.c.h.b16 %v878
    %v964 = vunpack.c.l.b16 %v879
    %v965 = vunpack.c.h.b16 %v879
    %v966 = vunpack.c.l.b16 %v880
    %v967 = vunpack.c.h.b16 %v880
    %v968 = vunpack.c.l.b16 %v881
    %v969 = vunpack.c.h.b16 %v881
    %v970 = vunpack.c.l.b16 %v882
    %v971 = vunpack.c.h.b16 %v882
    %v972 = vunpack.c.l.b16 %v883
    %v973 = vunpack.c.h.b16 %v883
    %v974 = vunpack.c.l.b16 %v884
    %v975 = vunpack.c.h.b16 %v884
    %v976 = vunpack.c.l.b16 %v885
    %v977 = vunpack.c.h.b16 %v885
    %v978 = vunpack.c.l.b16 %v886
    %v979 = vunpack.c.h.b16 %v886
    %v980 = vunpack.c.l.b16 %v887
    %v981 = vunpack.c.h.b16 %v887
    %v982 = vunpack.c.l.b16 %v888
    %v983 = vunpack.c.h.b16 %v888
    %v984 = vunpack.c.l.b16 %v889
    %v985 = vunpack.c.h.b16 %v889
    %v986 = vpack.c.b16 %v922, %v922
    %v987 = vpack.c.b16 %v923, %v923
    %v988 = vpack.c.b16 %v924, %v924
    %v989 = vpack.c.b16 %v925, %v925
    %v990 = vpack.c.b16 %v926, %v926
    %v991 = vpack.c.b16 %v927, %v927
    %v992 = vpack.c.b16 %v928, %v928
    %v993 = vpack.c.b16 %v929, %v929
    %v994 = vpack.c.b16 %v930, %v930
    %v995 = vpack.c.b16 %v931, %v931
    %v996 = vpack.c.b16 %v932, %v932
    %v997 = vpack.c.b16 %v933, %v933
    %v998 = vpack.c.b16 %v934, %v934
    %v999 = vpack.c.b16 %v935, %v935
    %v1000 = vpack.c.b16 %v936, %v936
    %v1001 = vpack.c.b16 %v937, %v937
    %v1002 = vpack.c.b16 %v938, %v938
    %v1003 = vpack.c.b16 %v939, %v939
    %v1004 = vpack.c.b16 %v940, %v940
    %v1005 = vpack.c.b16 %v941, %v941
    %v1006 = vpack.c.b16 %v942, %v942
    %v1007 = vpack.c.b16 %v943, %v943
    %v1008 = vpack.c.b16 %v944, %v944
    %v1009 = vpack.c.b16 %v945, %v945
    %v1010 = vpack.c.b16 %v946, %v946
    %v1011 = vpack.c.b16 %v947, %v947
    %v1012 = vpack.c.b16 %v948, %v948
    %v1013 = vpack.c.b16 %v949, %v949
    %v1014 = vpack.c.b16 %v950, %v950
    %v1015 = vpack.c.b16 %v951, %v951
    %v1016 = vpack.c.b16 %v952, %v952
    %v1017 = vpack.c.b16 %v953, %v953
    %v1018 = vpack.c.b16 %v954, %v954
    %v1019 = vpack.c.b16 %v955, %v955
    %v1020 = vpack.c.b16 %v956, %v956
    %v1021 = vpack.c.b16 %v957, %v957
    %v1022 = vpack.c.b16 %v958, %v958
    %v1023 = vpack.c.b16 %v959, %v959
    %v1024 = vpack.c.b16 %v960, %v960
    %v1025 = vpack.c.b16 %v961, %v961
    %v1026 = vpack.c.b16 %v962, %v962
    %v1027 = vpack.c.b16 %v963, %v963
    %v1028 = vpack.c.b16 %v964, %v964
    %v1029 = vpack.c.b16 %v965, %v965
    %v1030 = vpack.c.b16 %v966, %v966
    %v1031 = vpack.c.b16 %v967, %v967
    %v1032 = vpack.c.b16 %v968, %v968
    %v1033 = vpack.c.b16 %v969, %v969
    %v1034 = vpack.c.b16 %v970, %v970
    %v1035 = vpack.c.b16 %v971, %v971
    %v1036 = vpack.c.b16 %v972, %v972
    %v1037 = vpack.c.b16 %v973, %v973
    %v1038 = vpack.c.b16 %v974, %v974
    %v1039 = vpack.c.b16 %v975, %v975
    %v1040 = vpack.c.b16 %v976, %v976
    %v1041 = vpack.c.b16 %v977, %v977
    %v1042 = vpack.c.b16 %v978, %v978
    %v1043 = vpack.c.b16 %v979, %v979
    %v1044 = vpack.c.b16 %v980, %v980
    %v1045 = vpack.c.b16 %v981, %v981
    %v1046 = vpack.c.b16 %v982, %v982
    %v1047 = vpack.c.b16 %v983, %v983
    %v1048 = vpack.c.b16 %v984, %v984
    %v1049 = vpack.c.b16 %v985, %v985
    %1114 = vst [vmem:[%s3] sm:$0xf] %v986
    %1115 = vst [vmem:[%s3 + $0x4] sm:$0xf] %v987
    %1116 = vst [vmem:[%s3 + $0x8] sm:$0xf] %v988
    %1117 = vst [vmem:[%s3 + $0xc] sm:$0xf] %v989
    %1118 = vst [vmem:[%s3 + $0x10] sm:$0xf] %v990
    %1119 = vst [vmem:[%s3 + $0x14] sm:$0xf] %v991
    %1120 = vst [vmem:[%s3 + $0x18] sm:$0xf] %v992
    %1121 = vst [vmem:[%s3 + $0x1c] sm:$0xf] %v993
    %1122 = vst [vmem:[%s3 + $0x20] sm:$0xf] %v994
    %1123 = vst [vmem:[%s3 + $0x24] sm:$0xf] %v995
    %1124 = vst [vmem:[%s3 + $0x28] sm:$0xf] %v996
    %1125 = vst [vmem:[%s3 + $0x2c] sm:$0xf] %v997
    %1126 = vst [vmem:[%s3 + $0x30] sm:$0xf] %v998
    %1127 = vst [vmem:[%s3 + $0x34] sm:$0xf] %v999
    %1128 = vst [vmem:[%s3 + $0x38] sm:$0xf] %v1000
    %1129 = vst [vmem:[%s3 + $0x3c] sm:$0xf] %v1001
    %1130 = vst [vmem:[%s3 + $0x40] sm:$0xf] %v1002
    %1131 = vst [vmem:[%s3 + $0x44] sm:$0xf] %v1003
    %1132 = vst [vmem:[%s3 + $0x48] sm:$0xf] %v1004
    %1133 = vst [vmem:[%s3 + $0x4c] sm:$0xf] %v1005
    %1134 = vst [vmem:[%s3 + $0x50] sm:$0xf] %v1006
    %1135 = vst [vmem:[%s3 + $0x54] sm:$0xf] %v1007
    %1136 = vst [vmem:[%s3 + $0x58] sm:$0xf] %v1008
    %1137 = vst [vmem:[%s3 + $0x5c] sm:$0xf] %v1009
    %1138 = vst [vmem:[%s3 + $0x60] sm:$0xf] %v1010
    %1139 = vst [vmem:[%s3 + $0x64] sm:$0xf] %v1011
    %1140 = vst [vmem:[%s3 + $0x68] sm:$0xf] %v1012
    %1141 = vst [vmem:[%s3 + $0x6c] sm:$0xf] %v1013
    %1142 = vst [vmem:[%s3 + $0x70] sm:$0xf] %v1014
    %1143 = vst [vmem:[%s3 + $0x74] sm:$0xf] %v1015
    %1144 = vst [vmem:[%s3 + $0x78] sm:$0xf] %v1016
    %1145 = vst [vmem:[%s3 + $0x7c] sm:$0xf] %v1017
    %1146 = vst [vmem:[%s3 + $0x80] sm:$0xf] %v1018
    %1147 = vst [vmem:[%s3 + $0x84] sm:$0xf] %v1019
    %1148 = vst [vmem:[%s3 + $0x88] sm:$0xf] %v1020
    %1149 = vst [vmem:[%s3 + $0x8c] sm:$0xf] %v1021
    %1150 = vst [vmem:[%s3 + $0x90] sm:$0xf] %v1022
    %1151 = vst [vmem:[%s3 + $0x94] sm:$0xf] %v1023
    %1152 = vst [vmem:[%s3 + $0x98] sm:$0xf] %v1024
    %1153 = vst [vmem:[%s3 + $0x9c] sm:$0xf] %v1025
    %1154 = vst [vmem:[%s3 + $0xa0] sm:$0xf] %v1026
    %1155 = vst [vmem:[%s3 + $0xa4] sm:$0xf] %v1027
    %1156 = vst [vmem:[%s3 + $0xa8] sm:$0xf] %v1028
    %1157 = vst [vmem:[%s3 + $0xac] sm:$0xf] %v1029
    %1158 = vst [vmem:[%s3 + $0xb0] sm:$0xf] %v1030
    %1159 = vst [vmem:[%s3 + $0xb4] sm:$0xf] %v1031
    %1160 = vst [vmem:[%s3 + $0xb8] sm:$0xf] %v1032
    %1161 = vst [vmem:[%s3 + $0xbc] sm:$0xf] %v1033
    %1162 = vst [vmem:[%s3 + $0xc0] sm:$0xf] %v1034
    %1163 = vst [vmem:[%s3 + $0xc4] sm:$0xf] %v1035
    %1164 = vst [vmem:[%s3 + $0xc8] sm:$0xf] %v1036
    %1165 = vst [vmem:[%s3 + $0xcc] sm:$0xf] %v1037
    %1166 = vst [vmem:[%s3 + $0xd0] sm:$0xf] %v1038
    %1167 = vst [vmem:[%s3 + $0xd4] sm:$0xf] %v1039
    %1168 = vst [vmem:[%s3 + $0xd8] sm:$0xf] %v1040
    %1169 = vst [vmem:[%s3 + $0xdc] sm:$0xf] %v1041
    %1170 = vst [vmem:[%s3 + $0xe0] sm:$0xf] %v1042
    %1171 = vst [vmem:[%s3 + $0xe4] sm:$0xf] %v1043
    %1172 = vst [vmem:[%s3 + $0xe8] sm:$0xf] %v1044
    %1173 = vst [vmem:[%s3 + $0xec] sm:$0xf] %v1045
    %1174 = vst [vmem:[%s3 + $0xf0] sm:$0xf] %v1046
    %1175 = vst [vmem:[%s3 + $0xf4] sm:$0xf] %v1047
    %1176 = vst [vmem:[%s3 + $0xf8] sm:$0xf] %v1048
    %1177 = vst [vmem:[%s3 + $0xfc] sm:$0xf] %v1049
    // Predicated region
    $region22: #{discriminator_forward.3} parent=1 // pred_check
      _
    $region23: #{discriminator_forward.3} parent=1 // pred_check_branch
      %1179 = sbr.rel (0) target = $region25
    $region24: #{discriminator_forward.3} parent=1 // pred_region
      _
    $region25: #{discriminator_forward.3} parent=1 // pred_fallthru
      _
    // Predicated region
    $region26: #{discriminator_forward.3} parent=1 // pred_check
      _
    $region27: #{discriminator_forward.3} parent=1 // pred_check_branch
      %1181 = sbr.rel (0) target = $region29
    $region28: #{discriminator_forward.3} parent=1 // pred_region
      _
    $region29: #{discriminator_forward.3} parent=1 // pred_fallthru
      _
    %1182 = vsyncpa [#allocation3], 1
    %1183 = vsyncpa [#allocation5], 1

// kernel: tile.17
$region0: #{tile.17}
  #allocation0 [shape = 's32[1]{0}', space=sflag, size = 0x4, scoped, tag = 'scoped memory for tile.17']
  %s0 = inlined_call_operand.vmem [shape: f32[128], index: 0, kind: input, shape index: {}]
  %s1 = inlined_call_operand.vmem [shape: f32[64,128], index: 1, kind: output, shape index: {}]
  // Predicated region
  $region2: #{tile.17} parent=0 // pred_check
    _
  $region3: #{tile.17} parent=0 // pred_check_branch
    %3 = sbr.rel (0) target = $region5
  $region4: #{tile.17} parent=0 // pred_region
    _
  $region5: #{tile.17} parent=0 // pred_fallthru
    _
  %v4 = vld [vmem:[%s0] ss:$0 sm:$0xff]
  %5 = vst [vmem:[%s1] sm:$0xff] %v4
  %s6 = scalar_lea.vmem %s1, 8
  %7 = vst [vmem:[%s6] sm:$0xff] %v4
  %s8 = scalar_lea.vmem %s1, 16
  %9 = vst [vmem:[%s8] sm:$0xff] %v4
  %s10 = scalar_lea.vmem %s1, 24
  %11 = vst [vmem:[%s10] sm:$0xff] %v4
  %s12 = scalar_lea.vmem %s1, 32
  %13 = vst [vmem:[%s12] sm:$0xff] %v4
  %s14 = scalar_lea.vmem %s1, 40
  %15 = vst [vmem:[%s14] sm:$0xff] %v4
  %s16 = scalar_lea.vmem %s1, 48
  %17 = vst [vmem:[%s16] sm:$0xff] %v4
  %s18 = scalar_lea.vmem %s1, 56
  %19 = vst [vmem:[%s18] sm:$0xff] %v4

// kernel: discriminator_forward.4
$region0: #{discriminator_forward.4}
  #allocation0 [shape = 'u32[]', space=smem, size = 0x4, offset = 0x4, fixed_abs, tag = 'smem constant byte address 0x4 - core index']
  #allocation1 [shape = 'u32[144,128]{1,0:T(1,128)}', space=vmem, size = 0x12000, scoped, tag = 'internal scratch']
  %s0 = inlined_call_operand.vmem [shape: bf16[2,2,2,9,9,64], index: 0, kind: input, shape index: {}]
  %s1 = inlined_call_operand.hbm [shape: bf16[1024,128], index: 1, kind: input, shape index: {}]
  %s2 = inlined_call_operand.hbm [shape: f32[1,128], index: 2, kind: input, shape index: {}]
  %s3 = inlined_call_operand.vmem [shape: bf16[2,64,128], index: 3, kind: output, shape index: {0}]
  %s4 = inlined_call_operand.vmem [shape: f32[2,2,128], index: 4, kind: output, shape index: {1}]
  %5 = xla_tuple %s3, %s4
  %s6 = sld [smem:[#allocation0]]
  $region61: #{discriminator_forward.4} parent=0
    _
  %s8 = ssub.s32 1, %s6
  %s9 = scalar_select 0, %s8, %s6
  $region1: #{discriminator_forward.4} parent=0
    #allocation2 [shape = 'u8[262144]{0}', space=vmem, size = 0x40000, scoped, tag = 'input window, operand 1, single buffered']
    #allocation3 [shape = 's32[2]{0}', space=sflag, size = 0x8, scoped, tag = 'scoped memory for discriminator_forward.4']
    #allocation4 [shape = 'u8[512]{0}', space=vmem, size = 0x400, scoped, tag = 'input window, operand 2, single buffered']
    #allocation5 [shape = 's32[1]{0}', space=sflag, size = 0x4, scoped, tag = 'scoped memory for discriminator_forward.4']
    %10 = vsyncpa [#allocation3], 0
    %11 = vsyncpa [#allocation5], 0
    loop: start=0, step=1, limit=4
    $region2: #{discriminator_forward.4} parent=1 // loop_pre_header
      _
    $region3: #{discriminator_forward.4} parent=1 // loop_header
      %s13 = sphi 0, %s17
      %p14 = scmp.ge.s32.totalorder %s13, 4
      %s23 = sphi 0, %s25
      %s26 = sphi 0, %s23
      %s27 = sphi 0, %s26
      %s43 = sphi 0, %s27
      %s47 = sphi 0, %s47
      %s49 = sphi 0, %s47
      %s50 = sphi 0, %s49
      %s64 = sphi 0, %s50
      %s68 = sphi 0, %s68
      %s70 = sphi 0, %s68
      %s71 = sphi 0, %s70
      %s85 = sphi 0, %s71
      %s91 = sphi 0, %s93
      %s94 = sphi 0, %s91
      %s95 = sphi 0, %s94
      %s111 = sphi 0, %s95
      %s117 = sphi 0, %s119
      %s120 = sphi 0, %s117
      %s121 = sphi 0, %s120
      %s137 = sphi 0, %s121
    $region4: #{discriminator_forward.4} parent=1 // loop_header_branch
      %16 = sbr.rel (%p14) target = $region8
    $region5: #{discriminator_forward.4} parent=1 // loop_body
      %s18 = ssub.s32 %s13, 1
      %s19 = ssub.s32 %s13, 2
      %s20 = sadd.s32 %s13, 1
      %s21 = ssub.s32 %s13, %s20
      %p22 = scmp.eq.s32.totalorder %s21, 0
      %s24 = sadd.s32 %s23, 1
      %s25 = scalar_select %p22, %s23, %s24
      %p28 = pneg %p22
      %p29 = scmp.eq.s32.totalorder %s13, 1
      %p30 = por %p28, %p29
      %p31 = scmp.ne.s32.totalorder %s23, %s26
      %p32 = scmp.eq.s32.totalorder %s13, 0
      %p33 = por %p31, %p32
      %p34 = scmp.ne.s32.totalorder %s23, %s26
      %p35 = scmp.eq.s32.totalorder %s18, 1
      %p36 = por %p34, %p35
      %p37 = scmp.ne.s32.totalorder %s26, %s27
      %p38 = scmp.eq.s32.totalorder %s18, 0
      %p39 = por %p37, %p38
      %p40 = scmp.ne.s32.totalorder %s26, %s27
      %p41 = scmp.eq.s32.totalorder %s19, 1
      %p42 = por %p40, %p41
      %p44 = scmp.ne.s32.totalorder %s27, %s43
      %p45 = scmp.eq.s32.totalorder %s19, 0
      %p46 = por %p44, %p45
      %s48 = sadd.s32 %s47, 1
      %p51 = scmp.eq.s32.totalorder %s13, 1
      %p52 = scmp.ne.s32.totalorder %s47, %s49
      %p53 = scmp.eq.s32.totalorder %s13, 0
      %p54 = por %p52, %p53
      %p55 = scmp.ne.s32.totalorder %s47, %s49
      %p56 = scmp.eq.s32.totalorder %s18, 1
      %p57 = por %p55, %p56
      %p58 = scmp.ne.s32.totalorder %s49, %s50
      %p59 = scmp.eq.s32.totalorder %s18, 0
      %p60 = por %p58, %p59
      %p61 = scmp.ne.s32.totalorder %s49, %s50
      %p62 = scmp.eq.s32.totalorder %s19, 1
      %p63 = por %p61, %p62
      %p65 = scmp.ne.s32.totalorder %s50, %s64
      %p66 = scmp.eq.s32.totalorder %s19, 0
      %p67 = por %p65, %p66
      %s69 = sadd.s32 %s68, 1
      %p72 = scmp.eq.s32.totalorder %s13, 1
      %p73 = scmp.ne.s32.totalorder %s68, %s70
      %p74 = scmp.eq.s32.totalorder %s13, 0
      %p75 = por %p73, %p74
      %p76 = scmp.ne.s32.totalorder %s68, %s70
      %p77 = scmp.eq.s32.totalorder %s18, 1
      %p78 = por %p76, %p77
      %p79 = scmp.ne.s32.totalorder %s70, %s71
      %p80 = scmp.eq.s32.totalorder %s18, 0
      %p81 = por %p79, %p80
      %p82 = scmp.ne.s32.totalorder %s70, %s71
      %p83 = scmp.eq.s32.totalorder %s19, 1
      %p84 = por %p82, %p83
      %p86 = scmp.ne.s32.totalorder %s71, %s85
      %p87 = scmp.eq.s32.totalorder %s19, 0
      %p88 = por %p86, %p87
      %s89 = ssub.s32 %s13, %s20
      %p90 = scmp.eq.s32.totalorder %s89, 0
      %s92 = sadd.s32 %s91, 1
      %s93 = scalar_select %p90, %s91, %s92
      %p96 = pneg %p90
      %p97 = scmp.eq.s32.totalorder %s13, 1
      %p98 = por %p96, %p97
      %p99 = scmp.ne.s32.totalorder %s91, %s94
      %p100 = scmp.eq.s32.totalorder %s13, 0
      %p101 = por %p99, %p100
      %p102 = scmp.ne.s32.totalorder %s91, %s94
      %p103 = scmp.eq.s32.totalorder %s18, 1
      %p104 = por %p102, %p103
      %p105 = scmp.ne.s32.totalorder %s94, %s95
      %p106 = scmp.eq.s32.totalorder %s18, 0
      %p107 = por %p105, %p106
      %p108 = scmp.ne.s32.totalorder %s94, %s95
      %p109 = scmp.eq.s32.totalorder %s19, 1
      %p110 = por %p108, %p109
      %p112 = scmp.ne.s32.totalorder %s95, %s111
      %p113 = scmp.eq.s32.totalorder %s19, 0
      %p114 = por %p112, %p113
      %s115 = ssub.s32 %s13, %s20
      %p116 = scmp.eq.s32.totalorder %s115, 0
      %s118 = sadd.s32 %s117, 1
      %s119 = scalar_select %p116, %s117, %s118
      %p122 = pneg %p116
      %p123 = scmp.eq.s32.totalorder %s13, 1
      %p124 = por %p122, %p123
      %p125 = scmp.ne.s32.totalorder %s117, %s120
      %p126 = scmp.eq.s32.totalorder %s13, 0
      %p127 = por %p125, %p126
      %p128 = scmp.ne.s32.totalorder %s117, %s120
      %p129 = scmp.eq.s32.totalorder %s18, 1
      %p130 = por %p128, %p129
      %p131 = scmp.ne.s32.totalorder %s120, %s121
      %p132 = scmp.eq.s32.totalorder %s18, 0
      %p133 = por %p131, %p132
      %p134 = scmp.ne.s32.totalorder %s120, %s121
      %p135 = scmp.eq.s32.totalorder %s19, 1
      %p136 = por %p134, %p135
      %p138 = scmp.ne.s32.totalorder %s121, %s137
      %p139 = scmp.eq.s32.totalorder %s19, 0
      %p140 = por %p138, %p139
      %p141 = scmp.le.s32.totalorder 1, %s13
      %p142 = scmp.lt.s32.totalorder %s13, 3
      %p143 = pnand %p141, %p142
      %p144 = pneg %p143
      // Predicated region
      $region9: #{discriminator_forward.4} parent=5 // pred_check
        _
      $region10: #{discriminator_forward.4} parent=5 // pred_check_branch
        %146 = sbr.rel (%p143) target = $region12
      $region11: #{discriminator_forward.4} parent=5 // pred_region
        %s147 = ssub.s32 %s13, 1
        // Predicated region
        $region13: #{discriminator_forward.4} parent=11 // pred_check
          %p148 = pneg %p60
        $region14: #{discriminator_forward.4} parent=11 // pred_check_branch
          %150 = sbr.rel (%p148) target = $region16
        $region15: #{discriminator_forward.4} parent=11 // pred_region
          %s152 = ssub.s32 8192, 8192
          %153 = vsyncadd [#allocation3], %s152
          %s154 = sshll.u32 [#allocation2], 4
          %s155 = int_to_ptr.vmem [resolvable:$true] %s154
          %160 = dma.hbm_to_vmem [thread:$0]  %s1, 8192, %s155, [#allocation3], 64, 64, 4
        $region16: #{discriminator_forward.4} parent=11 // pred_fallthru
          _
        // Predicated region
        $region17: #{discriminator_forward.4} parent=11 // pred_check
          %p161 = pneg %p81
        $region18: #{discriminator_forward.4} parent=11 // pred_check_branch
          %163 = sbr.rel (%p161) target = $region20
        $region19: #{discriminator_forward.4} parent=11 // pred_region
          %s165 = ssub.s32 16, 16
          %166 = vsyncadd [#allocation5], %s165
          %s168 = sshll.u32 [#allocation4], 4
          %s169 = int_to_ptr.vmem [resolvable:$true] %s168
          %171 = dma.hbm_to_vmem [thread:$0]  %s2, 16, %s169, [#allocation5]
        $region20: #{discriminator_forward.4} parent=11 // pred_fallthru
          _
      $region12: #{discriminator_forward.4} parent=5 // pred_fallthru
        _
      %p172 = scmp.lt.s32.totalorder %s13, 2
      // Predicated region
      $region21: #{discriminator_forward.4} parent=5 // pred_check
        %p173 = pneg %p172
      $region22: #{discriminator_forward.4} parent=5 // pred_check_branch
        %175 = sbr.rel (%p173) target = $region24
      $region23: #{discriminator_forward.4} parent=5 // pred_region
        // Predicated region
        $region25: #{discriminator_forward.4} parent=23 // pred_check
          %p176 = pneg %p33
        $region26: #{discriminator_forward.4} parent=23 // pred_check_branch
          %178 = sbr.rel (%p176) target = $region28
        $region27: #{discriminator_forward.4} parent=23 // pred_region
          %p179 = scmp.lt.s32.totalorder %s13, 1
          %s180 = scalar_select %p179, %s13, 1
          %s181 = smul.addr %s180, 72
          %s182 = smul.addr %s181, 4
          %s183 = scalar_lea.vmem %s0, %s182
        $region28: #{discriminator_forward.4} parent=23 // pred_fallthru
          _
      $region24: #{discriminator_forward.4} parent=5 // pred_fallthru
        _
      %p184 = scmp.le.s32.totalorder 1, %s13
      %p185 = scmp.lt.s32.totalorder %s13, 3
      %p186 = pnand %p184, %p185
      %p187 = pneg %p186
      // Predicated region
      $region29: #{discriminator_forward.4} parent=5 // pred_check
        _
      $region30: #{discriminator_forward.4} parent=5 // pred_check_branch
        %189 = sbr.rel (%p186) target = $region32
      $region31: #{discriminator_forward.4} parent=5 // pred_region
        %s190 = ssub.s32 %s13, 1
        // Predicated region
        $region33: #{discriminator_forward.4} parent=31 // pred_check
          %p191 = pneg %p60
        $region34: #{discriminator_forward.4} parent=31 // pred_check_branch
          %193 = sbr.rel (%p191) target = $region36
        $region35: #{discriminator_forward.4} parent=31 // pred_region
          %194 = dma.done [#allocation3], 8192
        $region36: #{discriminator_forward.4} parent=31 // pred_fallthru
          _
        // Predicated region
        $region37: #{discriminator_forward.4} parent=31 // pred_check
          %p195 = pneg %p81
        $region38: #{discriminator_forward.4} parent=31 // pred_check_branch
          %197 = sbr.rel (%p195) target = $region40
        $region39: #{discriminator_forward.4} parent=31 // pred_region
          %198 = dma.done [#allocation5], 16
        $region40: #{discriminator_forward.4} parent=31 // pred_fallthru
          _
        %p199 = scmp.lt.s32.totalorder %s18, 1
        %s200 = scalar_select %p199, %s18, 1
        %s201 = smul.addr %s200, 72
        %s202 = smul.addr %s201, 4
        %s203 = scalar_lea.vmem %s0, %s202
        %p204 = pneg %p39
        %p205 = pneg %p36
        %p206 = pneg %p60
        %p207 = pneg %p57
        %p208 = pneg %p81
        %p209 = pneg %p78
        %p210 = pneg %p107
        %p211 = pneg %p104
        %p212 = scmp.lt.s32.totalorder %s18, 1
        %s213 = scalar_select %p212, %s18, 1
        %s214 = smul.addr %s213, 8
        %s215 = smul.addr %s214, 4
        %s216 = scalar_lea.vmem %s3, %s215
        %p217 = pneg %p133
        %p218 = pneg %p130
        %p219 = scmp.lt.s32.totalorder %s18, 1
        %s220 = scalar_select %p219, %s18, 1
        %s221 = smul.addr %s220, 2
        %s222 = scalar_lea.vmem %s4, %s221
        %p223 = scmp.lt.s32.totalorder %s18, 1
        %s224 = scalar_select %p223, %s18, 1
        %s225 = smul.addr %s224, 72
        %s226 = smul.addr %s225, 4
        %s227 = scalar_lea.vmem %s0, %s226
        %p228 = scmp.lt.s32.totalorder %s18, 1
        %s229 = scalar_select %p228, %s18, 1
        %s230 = smul.addr %s229, 8
        %s231 = smul.addr %s230, 4
        %s232 = scalar_lea.vmem %s3, %s231
        %p233 = scmp.lt.s32.totalorder %s18, 1
        %s234 = scalar_select %p233, %s18, 1
        %s235 = smul.addr %s234, 2
        %s236 = scalar_lea.vmem %s4, %s235
        %v238 = vld [vmem:[%s227] sm:$0xf]
        %v239 = vld [vmem:[%s227 + $0x8] sm:$0xf]
        %v240 = vld [vmem:[%s227 + $0x10] sm:$0xf]
        %v241 = vld [vmem:[%s227 + $0x18] sm:$0xf]
        %v242 = vld [vmem:[%s227 + $0x20] sm:$0xf]
        %v243 = vld [vmem:[%s227 + $0x28] sm:$0xf]
        %v244 = vld [vmem:[%s227 + $0x30] sm:$0xf]
        %v245 = vld [vmem:[%s227 + $0x38] sm:$0xf]
        %v246 = vld [vmem:[#allocation2] sm:$0xf]
        %v247 = vld [vmem:[#allocation2 + $0x4] sm:$0xf]
        %v248 = vld [vmem:[#allocation2 + $0x8] sm:$0xf]
        %v249 = vld [vmem:[#allocation2 + $0xc] sm:$0xf]
        %v250 = vld [vmem:[#allocation2 + $0x10] sm:$0xf]
        %v251 = vld [vmem:[#allocation2 + $0x14] sm:$0xf]
        %v252 = vld [vmem:[#allocation2 + $0x18] sm:$0xf]
        %v253 = vld [vmem:[#allocation2 + $0x1c] sm:$0xf]
        %s254 = scalar_lea.vmem %s227, 72
        %v255 = vld [vmem:[%s254] sm:$0xf]
        %v256 = vld [vmem:[%s254 + $0x8] sm:$0xf]
        %v257 = vld [vmem:[%s254 + $0x10] sm:$0xf]
        %v258 = vld [vmem:[%s254 + $0x18] sm:$0xf]
        %v259 = vld [vmem:[%s254 + $0x20] sm:$0xf]
        %v260 = vld [vmem:[%s254 + $0x28] sm:$0xf]
        %v261 = vld [vmem:[%s254 + $0x30] sm:$0xf]
        %v262 = vld [vmem:[%s254 + $0x38] sm:$0xf]
        %v263 = vld [vmem:[#allocation2 + $0x20] sm:$0xf]
        %v264 = vld [vmem:[#allocation2 + $0x24] sm:$0xf]
        %v265 = vld [vmem:[#allocation2 + $0x28] sm:$0xf]
        %v266 = vld [vmem:[#allocation2 + $0x2c] sm:$0xf]
        %v267 = vld [vmem:[#allocation2 + $0x30] sm:$0xf]
        %v268 = vld [vmem:[#allocation2 + $0x34] sm:$0xf]
        %v269 = vld [vmem:[#allocation2 + $0x38] sm:$0xf]
        %v270 = vld [vmem:[#allocation2 + $0x3c] sm:$0xf]
        %v279 = vunpack.c.l.b16 %v255
        %v280 = vunpack.c.l.b16 %v256
        %v281 = vunpack.c.l.b16 %v257
        %v282 = vunpack.c.l.b16 %v258
        %v283 = vunpack.c.l.b16 %v259
        %v284 = vunpack.c.l.b16 %v260
        %v285 = vunpack.c.l.b16 %v261
        %v286 = vunpack.c.l.b16 %v262
        %v287 = vpack.c.b16 %v280, %v279
        %v288 = vpack.c.b16 %v282, %v281
        %v289 = vpack.c.b16 %v284, %v283
        %v290 = vpack.c.b16 %v286, %v285
        %v299 = vunpack.c.l.b16 %v263
        %v300 = vunpack.c.l.b16 %v264
        %v301 = vunpack.c.l.b16 %v265
        %v302 = vunpack.c.l.b16 %v266
        %v303 = vunpack.c.l.b16 %v267
        %v304 = vunpack.c.l.b16 %v268
        %v305 = vunpack.c.l.b16 %v269
        %v306 = vunpack.c.l.b16 %v270
        %v307 = vpack.c.b16 %v300, %v299
        %v308 = vpack.c.b16 %v302, %v301
        %v309 = vpack.c.b16 %v304, %v303
        %v310 = vpack.c.b16 %v306, %v305
        %vm315 = vcmask 523264
        %v317 = vsel %vm315, %v287, 0
        %v320 = vsel %vm315, %v288, 0
        %v323 = vsel %vm315, %v289, 0
        %v326 = vsel %vm315, %v290, 0
        %328 = vmatprep.subr.bf16.mxu0 0
        %329 = vmatpush1.bf16.msra.mxu0 0
        %330 = vmatprep.subr.bf16.mxu0 0
        %331 = vmatpush1.bf16.msra.mxu0 0
        %332 = vmatprep.subr.bf16.mxu0 0
        %333 = vmatpush1.bf16.msra.mxu0 0
        %334 = vmatprep.subr.bf16.mxu0 0
        %335 = vmatpush1.bf16.msra.mxu0 0
        %336 = vmatprep.subr.bf16.mxu0 0
        %337 = vmatpush1.bf16.msra.mxu0 %v310
        %338 = vmatprep.subr.bf16.mxu0 0
        %339 = vmatpush1.bf16.msra.mxu0 %v309
        %340 = vmatprep.subr.bf16.mxu0 0
        %341 = vmatpush1.bf16.msra.mxu0 %v308
        %342 = vmatprep.subr.bf16.mxu0 0
        %343 = vmatpush1.bf16.msra.mxu0 %v307
        %344 = vmatprep.subr.bf16.mxu0 0
        %345 = vmatpush2.bf16.msra.mxu0 0
        %346 = vmatprep.subr.bf16.mxu0 0
        %347 = vmatpush2.bf16.msra.mxu0 0
        %348 = vmatprep.subr.bf16.mxu0 0
        %349 = vmatpush2.bf16.msra.mxu0 0
        %350 = vmatprep.subr.bf16.mxu0 0
        %351 = vmatpush2.bf16.msra.mxu0 0
        %352 = vmatprep.subr.bf16.mxu0 0
        %353 = vmatpush2.bf16.msra.mxu0 0
        %354 = vmatprep.subr.bf16.mxu0 0
        %355 = vmatpush2.bf16.msra.mxu0 0
        %356 = vmatprep.subr.bf16.mxu0 0
        %357 = vmatpush2.bf16.msra.mxu0 0
        %358 = vmatprep.subr.bf16.mxu0 0
        %359 = vmatpush2.bf16.msra.mxu0 0
        %360 = vmatprep.mubr.bf16.mxu0 0
        %361 = vmatmul.mubr.bf16.gmra.mxu0 %v317
        %v362 = vpop.f32.mrf.mxu0
        %v363 = vadd.f32 0.0, %v362
        %v364 = vpop.f32.mrf.mxu0
        %v365 = vpop.f32.mrf.mxu0
        %v366 = vadd.f32 0.0, %v365
        %v367 = vpop.f32.mrf.mxu0
        %368 = vmatprep.mubr.bf16.mxu0 0
        %369 = vmatmul.mubr.bf16.gmra.mxu0 %v320
        %v370 = vpop.f32.mrf.mxu0
        %v371 = vadd.f32 0.0, %v370
        %v372 = vpop.f32.mrf.mxu0
        %v373 = vpop.f32.mrf.mxu0
        %v374 = vadd.f32 0.0, %v373
        %v375 = vpop.f32.mrf.mxu0
        %376 = vmatprep.mubr.bf16.mxu0 0
        %377 = vmatmul.mubr.bf16.gmra.mxu0 %v323
        %v378 = vpop.f32.mrf.mxu0
        %v379 = vadd.f32 0.0, %v378
        %v380 = vpop.f32.mrf.mxu0
        %v381 = vpop.f32.mrf.mxu0
        %v382 = vadd.f32 0.0, %v381
        %v383 = vpop.f32.mrf.mxu0
        %384 = vmatprep.mubr.bf16.mxu0 0
        %385 = vmatmul.mubr.bf16.gmra.mxu0 %v326
        %v386 = vpop.f32.mrf.mxu0
        %v387 = vadd.f32 0.0, %v386
        %v388 = vpop.f32.mrf.mxu0
        %v389 = vpop.f32.mrf.mxu0
        %v390 = vadd.f32 0.0, %v389
        %v391 = vpop.f32.mrf.mxu0
        %392 = vdwg.mxu0
        %v401 = vunpack.c.l.b16 %v238
        %v402 = vunpack.c.l.b16 %v239
        %v403 = vunpack.c.l.b16 %v240
        %v404 = vunpack.c.l.b16 %v241
        %v405 = vunpack.c.l.b16 %v242
        %v406 = vunpack.c.l.b16 %v243
        %v407 = vunpack.c.l.b16 %v244
        %v408 = vunpack.c.l.b16 %v245
        %v409 = vpack.c.b16 %v402, %v401
        %v410 = vpack.c.b16 %v404, %v403
        %v411 = vpack.c.b16 %v406, %v405
        %v412 = vpack.c.b16 %v408, %v407
        %v421 = vunpack.c.l.b16 %v246
        %v422 = vunpack.c.l.b16 %v247
        %v423 = vunpack.c.l.b16 %v248
        %v424 = vunpack.c.l.b16 %v249
        %v425 = vunpack.c.l.b16 %v250
        %v426 = vunpack.c.l.b16 %v251
        %v427 = vunpack.c.l.b16 %v252
        %v428 = vunpack.c.l.b16 %v253
        %v429 = vpack.c.b16 %v422, %v421
        %v430 = vpack.c.b16 %v424, %v423
        %v431 = vpack.c.b16 %v426, %v425
        %v432 = vpack.c.b16 %v428, %v427
        %v438 = vsel %vm315, %v409, 0
        %v441 = vsel %vm315, %v410, 0
        %v444 = vsel %vm315, %v411, 0
        %v447 = vsel %vm315, %v412, 0
        %449 = vmatprep.subr.bf16.mxu0 0
        %450 = vmatpush1.bf16.msra.mxu0 0
        %451 = vmatprep.subr.bf16.mxu0 0
        %452 = vmatpush1.bf16.msra.mxu0 0
        %453 = vmatprep.subr.bf16.mxu0 0
        %454 = vmatpush1.bf16.msra.mxu0 0
        %455 = vmatprep.subr.bf16.mxu0 0
        %456 = vmatpush1.bf16.msra.mxu0 0
        %457 = vmatprep.subr.bf16.mxu0 0
        %458 = vmatpush1.bf16.msra.mxu0 %v432
        %459 = vmatprep.subr.bf16.mxu0 0
        %460 = vmatpush1.bf16.msra.mxu0 %v431
        %461 = vmatprep.subr.bf16.mxu0 0
        %462 = vmatpush1.bf16.msra.mxu0 %v430
        %463 = vmatprep.subr.bf16.mxu0 0
        %464 = vmatpush1.bf16.msra.mxu0 %v429
        %465 = vmatprep.subr.bf16.mxu0 0
        %466 = vmatpush2.bf16.msra.mxu0 0
        %467 = vmatprep.subr.bf16.mxu0 0
        %468 = vmatpush2.bf16.msra.mxu0 0
        %469 = vmatprep.subr.bf16.mxu0 0
        %470 = vmatpush2.bf16.msra.mxu0 0
        %471 = vmatprep.subr.bf16.mxu0 0
        %472 = vmatpush2.bf16.msra.mxu0 0
        %473 = vmatprep.subr.bf16.mxu0 0
        %474 = vmatpush2.bf16.msra.mxu0 0
        %475 = vmatprep.subr.bf16.mxu0 0
        %476 = vmatpush2.bf16.msra.mxu0 0
        %477 = vmatprep.subr.bf16.mxu0 0
        %478 = vmatpush2.bf16.msra.mxu0 0
        %479 = vmatprep.subr.bf16.mxu0 0
        %480 = vmatpush2.bf16.msra.mxu0 0
        %481 = vmatprep.mubr.bf16.mxu0 0
        %482 = vmatmul.mubr.bf16.gmra.mxu0 %v438
        %v483 = vpop.f32.mrf.mxu0
        %v484 = vadd.f32 %v363, %v483
        %v485 = vpop.f32.mrf.mxu0
        %v486 = vpop.f32.mrf.mxu0
        %v487 = vadd.f32 %v366, %v486
        %v488 = vpop.f32.mrf.mxu0
        %489 = vmatprep.mubr.bf16.mxu0 0
        %490 = vmatmul.mubr.bf16.gmra.mxu0 %v441
        %v491 = vpop.f32.mrf.mxu0
        %v492 = vadd.f32 %v371, %v491
        %v493 = vpop.f32.mrf.mxu0
        %v494 = vpop.f32.mrf.mxu0
        %v495 = vadd.f32 %v374, %v494
        %v496 = vpop.f32.mrf.mxu0
        %497 = vmatprep.mubr.bf16.mxu0 0
        %498 = vmatmul.mubr.bf16.gmra.mxu0 %v444
        %v499 = vpop.f32.mrf.mxu0
        %v500 = vadd.f32 %v379, %v499
        %v501 = vpop.f32.mrf.mxu0
        %v502 = vpop.f32.mrf.mxu0
        %v503 = vadd.f32 %v382, %v502
        %v504 = vpop.f32.mrf.mxu0
        %505 = vmatprep.mubr.bf16.mxu0 0
        %506 = vmatmul.mubr.bf16.gmra.mxu0 %v447
        %v507 = vpop.f32.mrf.mxu0
        %v508 = vadd.f32 %v387, %v507
        %v509 = vpop.f32.mrf.mxu0
        %v510 = vpop.f32.mrf.mxu0
        %v511 = vadd.f32 %v390, %v510
        %v512 = vpop.f32.mrf.mxu0
        %513 = vdwg.mxu0
        %v514 = vld [vmem:[%s227] sm:$0xf]
        %v515 = vld [vmem:[%s227 + $0x4] sm:$0x1]
        %v516 = vld [vmem:[%s227 + $0x8] sm:$0xf]
        %v517 = vld [vmem:[%s227 + $0xc] sm:$0x1]
        %v518 = vld [vmem:[%s227 + $0x10] sm:$0xf]
        %v519 = vld [vmem:[%s227 + $0x14] sm:$0x1]
        %v520 = vld [vmem:[%s227 + $0x18] sm:$0xf]
        %v521 = vld [vmem:[%s227 + $0x1c] sm:$0x1]
        %v522 = vld [vmem:[%s227 + $0x20] sm:$0xf]
        %v523 = vld [vmem:[%s227 + $0x24] sm:$0x1]
        %v524 = vld [vmem:[%s227 + $0x28] sm:$0xf]
        %v525 = vld [vmem:[%s227 + $0x2c] sm:$0x1]
        %v526 = vld [vmem:[%s227 + $0x30] sm:$0xf]
        %v527 = vld [vmem:[%s227 + $0x34] sm:$0x1]
        %v528 = vld [vmem:[%s227 + $0x38] sm:$0xf]
        %v529 = vld [vmem:[%s227 + $0x3c] sm:$0x1]
        %vm530 = vsmask.f32 3328
        %vm531 = vsmask.f32 7440
        %vm532 = vmor %vm530, %vm531
        %v534 = vshrl.u32 %v514, 16
        %v536 = vrot.slane %v534, 4
        %v537 = vshll.u32 %v514, 16
        %v539 = vrot.slane %v537, 5
        %v540 = vor.u32 %v536, %v539
        %v541 = vrot.slane %v540, 4
        %v543 = vshll.u32 %v515, 16
        %v545 = vrot.slane %v543, 5
        %v546 = vsel %vm532, %v541, %v545
        %v548 = vshrl.u32 %v516, 16
        %v550 = vrot.slane %v548, 4
        %v551 = vshll.u32 %v516, 16
        %v553 = vrot.slane %v551, 5
        %v554 = vor.u32 %v550, %v553
        %v555 = vrot.slane %v554, 4
        %v557 = vshll.u32 %v517, 16
        %v559 = vrot.slane %v557, 5
        %v560 = vsel %vm532, %v555, %v559
        %v562 = vshrl.u32 %v518, 16
        %v564 = vrot.slane %v562, 4
        %v565 = vshll.u32 %v518, 16
        %v567 = vrot.slane %v565, 5
        %v568 = vor.u32 %v564, %v567
        %v569 = vrot.slane %v568, 4
        %v571 = vshll.u32 %v519, 16
        %v573 = vrot.slane %v571, 5
        %v574 = vsel %vm532, %v569, %v573
        %v576 = vshrl.u32 %v520, 16
        %v578 = vrot.slane %v576, 4
        %v579 = vshll.u32 %v520, 16
        %v581 = vrot.slane %v579, 5
        %v582 = vor.u32 %v578, %v581
        %v583 = vrot.slane %v582, 4
        %v585 = vshll.u32 %v521, 16
        %v587 = vrot.slane %v585, 5
        %v588 = vsel %vm532, %v583, %v587
        %v590 = vshrl.u32 %v522, 16
        %v592 = vrot.slane %v590, 4
        %v593 = vshll.u32 %v522, 16
        %v595 = vrot.slane %v593, 5
        %v596 = vor.u32 %v592, %v595
        %v597 = vrot.slane %v596, 4
        %v599 = vshll.u32 %v523, 16
        %v601 = vrot.slane %v599, 5
        %v602 = vsel %vm532, %v597, %v601
        %v604 = vshrl.u32 %v524, 16
        %v606 = vrot.slane %v604, 4
        %v607 = vshll.u32 %v524, 16
        %v609 = vrot.slane %v607, 5
        %v610 = vor.u32 %v606, %v609
        %v611 = vrot.slane %v610, 4
        %v613 = vshll.u32 %v525, 16
        %v615 = vrot.slane %v613, 5
        %v616 = vsel %vm532, %v611, %v615
        %v618 = vshrl.u32 %v526, 16
        %v620 = vrot.slane %v618, 4
        %v621 = vshll.u32 %v526, 16
        %v623 = vrot.slane %v621, 5
        %v624 = vor.u32 %v620, %v623
        %v625 = vrot.slane %v624, 4
        %v627 = vshll.u32 %v527, 16
        %v629 = vrot.slane %v627, 5
        %v630 = vsel %vm532, %v625, %v629
        %v632 = vshrl.u32 %v528, 16
        %v634 = vrot.slane %v632, 4
        %v635 = vshll.u32 %v528, 16
        %v637 = vrot.slane %v635, 5
        %v638 = vor.u32 %v634, %v637
        %v639 = vrot.slane %v638, 4
        %v641 = vshll.u32 %v529, 16
        %v643 = vrot.slane %v641, 5
        %v644 = vsel %vm532, %v639, %v643
        %v645 = vld [vmem:[#allocation2 + $0x40] sm:$0xf]
        %v646 = vld [vmem:[#allocation2 + $0x44] sm:$0xf]
        %v647 = vld [vmem:[#allocation2 + $0x48] sm:$0xf]
        %v648 = vld [vmem:[#allocation2 + $0x4c] sm:$0xf]
        %v649 = vld [vmem:[#allocation2 + $0x50] sm:$0xf]
        %v650 = vld [vmem:[#allocation2 + $0x54] sm:$0xf]
        %v651 = vld [vmem:[#allocation2 + $0x58] sm:$0xf]
        %v652 = vld [vmem:[#allocation2 + $0x5c] sm:$0xf]
        %v653 = vunpack.c.l.b16 %v546
        %v654 = vunpack.c.l.b16 %v560
        %v655 = vunpack.c.l.b16 %v574
        %v656 = vunpack.c.l.b16 %v588
        %v657 = vunpack.c.l.b16 %v602
        %v658 = vunpack.c.l.b16 %v616
        %v659 = vunpack.c.l.b16 %v630
        %v660 = vunpack.c.l.b16 %v644
        %v661 = vpack.c.b16 %v654, %v653
        %v662 = vpack.c.b16 %v656, %v655
        %v663 = vpack.c.b16 %v658, %v657
        %v664 = vpack.c.b16 %v660, %v659
        %v673 = vunpack.c.l.b16 %v645
        %v674 = vunpack.c.l.b16 %v646
        %v675 = vunpack.c.l.b16 %v647
        %v676 = vunpack.c.l.b16 %v648
        %v677 = vunpack.c.l.b16 %v649
        %v678 = vunpack.c.l.b16 %v650
        %v679 = vunpack.c.l.b16 %v651
        %v680 = vunpack.c.l.b16 %v652
        %v681 = vpack.c.b16 %v674, %v673
        %v682 = vpack.c.b16 %v676, %v675
        %v683 = vpack.c.b16 %v678, %v677
        %v684 = vpack.c.b16 %v680, %v679
        %v690 = vsel %vm315, %v661, 0
        %v693 = vsel %vm315, %v662, 0
        %v696 = vsel %vm315, %v663, 0
        %v699 = vsel %vm315, %v664, 0
        %701 = vmatprep.subr.bf16.mxu0 0
        %702 = vmatpush1.bf16.msra.mxu0 0
        %703 = vmatprep.subr.bf16.mxu0 0
        %704 = vmatpush1.bf16.msra.mxu0 0
        %705 = vmatprep.subr.bf16.mxu0 0
        %706 = vmatpush1.bf16.msra.mxu0 0
        %707 = vmatprep.subr.bf16.mxu0 0
        %708 = vmatpush1.bf16.msra.mxu0 0
        %709 = vmatprep.subr.bf16.mxu0 0
        %710 = vmatpush1.bf16.msra.mxu0 %v684
        %711 = vmatprep.subr.bf16.mxu0 0
        %712 = vmatpush1.bf16.msra.mxu0 %v683
        %713 = vmatprep.subr.bf16.mxu0 0
        %714 = vmatpush1.bf16.msra.mxu0 %v682
        %715 = vmatprep.subr.bf16.mxu0 0
        %716 = vmatpush1.bf16.msra.mxu0 %v681
        %717 = vmatprep.subr.bf16.mxu0 0
        %718 = vmatpush2.bf16.msra.mxu0 0
        %719 = vmatprep.subr.bf16.mxu0 0
        %720 = vmatpush2.bf16.msra.mxu0 0
        %721 = vmatprep.subr.bf16.mxu0 0
        %722 = vmatpush2.bf16.msra.mxu0 0
        %723 = vmatprep.subr.bf16.mxu0 0
        %724 = vmatpush2.bf16.msra.mxu0 0
        %725 = vmatprep.subr.bf16.mxu0 0
        %726 = vmatpush2.bf16.msra.mxu0 0
        %727 = vmatprep.subr.bf16.mxu0 0
        %728 = vmatpush2.bf16.msra.mxu0 0
        %729 = vmatprep.subr.bf16.mxu0 0
        %730 = vmatpush2.bf16.msra.mxu0 0
        %731 = vmatprep.subr.bf16.mxu0 0
        %732 = vmatpush2.bf16.msra.mxu0 0
        %733 = vmatprep.mubr.bf16.mxu0 0
        %734 = vmatmul.mubr.bf16.gmra.mxu0 %v690
        %v735 = vpop.f32.mrf.mxu0
        %v736 = vadd.f32 0.0, %v735
        %v737 = vpop.f32.mrf.mxu0
        %v738 = vpop.f32.mrf.mxu0
        %v739 = vadd.f32 0.0, %v738
        %v740 = vpop.f32.mrf.mxu0
        %741 = vmatprep.mubr.bf16.mxu0 0
        %742 = vmatmul.mubr.bf16.gmra.mxu0 %v693
        %v743 = vpop.f32.mrf.mxu0
        %v744 = vadd.f32 0.0, %v743
        %v745 = vpop.f32.mrf.mxu0
        %v746 = vpop.f32.mrf.mxu0
        %v747 = vadd.f32 0.0, %v746
        %v748 = vpop.f32.mrf.mxu0
        %749 = vmatprep.mubr.bf16.mxu0 0
        %750 = vmatmul.mubr.bf16.gmra.mxu0 %v696
        %v751 = vpop.f32.mrf.mxu0
        %v752 = vadd.f32 0.0, %v751
        %v753 = vpop.f32.mrf.mxu0
        %v754 = vpop.f32.mrf.mxu0
        %v755 = vadd.f32 0.0, %v754
        %v756 = vpop.f32.mrf.mxu0
        %757 = vmatprep.mubr.bf16.mxu0 0
        %758 = vmatmul.mubr.bf16.gmra.mxu0 %v699
        %v759 = vpop.f32.mrf.mxu0
        %v760 = vadd.f32 0.0, %v759
        %v761 = vpop.f32.mrf.mxu0
        %v762 = vpop.f32.mrf.mxu0
        %v763 = vadd.f32 0.0, %v762
        %v764 = vpop.f32.mrf.mxu0
        %765 = vdwg.mxu0
        %v766 = vadd.f32 %v484, %v736
        %v767 = vadd.f32 %v487, %v739
        %v768 = vadd.f32 %v492, %v744
        %v769 = vadd.f32 %v495, %v747
        %v770 = vadd.f32 %v500, %v752
        %v771 = vadd.f32 %v503, %v755
        %v772 = vadd.f32 %v508, %v760
        %v773 = vadd.f32 %v511, %v763
        %v774 = vld [vmem:[%s254] sm:$0xf]
        %v775 = vld [vmem:[%s254 + $0x4] sm:$0x1]
        %v776 = vld [vmem:[%s254 + $0x8] sm:$0xf]
        %v777 = vld [vmem:[%s254 + $0xc] sm:$0x1]
        %v778 = vld [vmem:[%s254 + $0x10] sm:$0xf]
        %v779 = vld [vmem:[%s254 + $0x14] sm:$0x1]
        %v780 = vld [vmem:[%s254 + $0x18] sm:$0xf]
        %v781 = vld [vmem:[%s254 + $0x1c] sm:$0x1]
        %v782 = vld [vmem:[%s254 + $0x20] sm:$0xf]
        %v783 = vld [vmem:[%s254 + $0x24] sm:$0x1]
        %v784 = vld [vmem:[%s254 + $0x28] sm:$0xf]
        %v785 = vld [vmem:[%s254 + $0x2c] sm:$0x1]
        %v786 = vld [vmem:[%s254 + $0x30] sm:$0xf]
        %v787 = vld [vmem:[%s254 + $0x34] sm:$0x1]
        %v788 = vld [vmem:[%s254 + $0x38] sm:$0xf]
        %v789 = vld [vmem:[%s254 + $0x3c] sm:$0x1]
        %v791 = vshrl.u32 %v774, 16
        %v793 = vrot.slane %v791, 4
        %v794 = vshll.u32 %v774, 16
        %v796 = vrot.slane %v794, 5
        %v797 = vor.u32 %v793, %v796
        %v798 = vrot.slane %v797, 4
        %v800 = vshll.u32 %v775, 16
        %v802 = vrot.slane %v800, 5
        %v803 = vsel %vm532, %v798, %v802
        %v805 = vshrl.u32 %v776, 16
        %v807 = vrot.slane %v805, 4
        %v808 = vshll.u32 %v776, 16
        %v810 = vrot.slane %v808, 5
        %v811 = vor.u32 %v807, %v810
        %v812 = vrot.slane %v811, 4
        %v814 = vshll.u32 %v777, 16
        %v816 = vrot.slane %v814, 5
        %v817 = vsel %vm532, %v812, %v816
        %v819 = vshrl.u32 %v778, 16
        %v821 = vrot.slane %v819, 4
        %v822 = vshll.u32 %v778, 16
        %v824 = vrot.slane %v822, 5
        %v825 = vor.u32 %v821, %v824
        %v826 = vrot.slane %v825, 4
        %v828 = vshll.u32 %v779, 16
        %v830 = vrot.slane %v828, 5
        %v831 = vsel %vm532, %v826, %v830
        %v833 = vshrl.u32 %v780, 16
        %v835 = vrot.slane %v833, 4
        %v836 = vshll.u32 %v780, 16
        %v838 = vrot.slane %v836, 5
        %v839 = vor.u32 %v835, %v838
        %v840 = vrot.slane %v839, 4
        %v842 = vshll.u32 %v781, 16
        %v844 = vrot.slane %v842, 5
        %v845 = vsel %vm532, %v840, %v844
        %v847 = vshrl.u32 %v782, 16
        %v849 = vrot.slane %v847, 4
        %v850 = vshll.u32 %v782, 16
        %v852 = vrot.slane %v850, 5
        %v853 = vor.u32 %v849, %v852
        %v854 = vrot.slane %v853, 4
        %v856 = vshll.u32 %v783, 16
        %v858 = vrot.slane %v856, 5
        %v859 = vsel %vm532, %v854, %v858
        %v861 = vshrl.u32 %v784, 16
        %v863 = vrot.slane %v861, 4
        %v864 = vshll.u32 %v784, 16
        %v866 = vrot.slane %v864, 5
        %v867 = vor.u32 %v863, %v866
        %v868 = vrot.slane %v867, 4
        %v870 = vshll.u32 %v785, 16
        %v872 = vrot.slane %v870, 5
        %v873 = vsel %vm532, %v868, %v872
        %v875 = vshrl.u32 %v786, 16
        %v877 = vrot.slane %v875, 4
        %v878 = vshll.u32 %v786, 16
        %v880 = vrot.slane %v878, 5
        %v881 = vor.u32 %v877, %v880
        %v882 = vrot.slane %v881, 4
        %v884 = vshll.u32 %v787, 16
        %v886 = vrot.slane %v884, 5
        %v887 = vsel %vm532, %v882, %v886
        %v889 = vshrl.u32 %v788, 16
        %v891 = vrot.slane %v889, 4
        %v892 = vshll.u32 %v788, 16
        %v894 = vrot.slane %v892, 5
        %v895 = vor.u32 %v891, %v894
        %v896 = vrot.slane %v895, 4
        %v898 = vshll.u32 %v789, 16
        %v900 = vrot.slane %v898, 5
        %v901 = vsel %vm532, %v896, %v900
        %v902 = vld [vmem:[#allocation2 + $0x60] sm:$0xf]
        %v903 = vld [vmem:[#allocation2 + $0x64] sm:$0xf]
        %v904 = vld [vmem:[#allocation2 + $0x68] sm:$0xf]
        %v905 = vld [vmem:[#allocation2 + $0x6c] sm:$0xf]
        %v906 = vld [vmem:[#allocation2 + $0x70] sm:$0xf]
        %v907 = vld [vmem:[#allocation2 + $0x74] sm:$0xf]
        %v908 = vld [vmem:[#allocation2 + $0x78] sm:$0xf]
        %v909 = vld [vmem:[#allocation2 + $0x7c] sm:$0xf]
        %v910 = vunpack.c.l.b16 %v803
        %v911 = vunpack.c.l.b16 %v817
        %v912 = vunpack.c.l.b16 %v831
        %v913 = vunpack.c.l.b16 %v845
        %v914 = vunpack.c.l.b16 %v859
        %v915 = vunpack.c.l.b16 %v873
        %v916 = vunpack.c.l.b16 %v887
        %v917 = vunpack.c.l.b16 %v901
        %v918 = vpack.c.b16 %v911, %v910
        %v919 = vpack.c.b16 %v913, %v912
        %v920 = vpack.c.b16 %v915, %v914
        %v921 = vpack.c.b16 %v917, %v916
        %v930 = vunpack.c.l.b16 %v902
        %v931 = vunpack.c.l.b16 %v903
        %v932 = vunpack.c.l.b16 %v904
        %v933 = vunpack.c.l.b16 %v905
        %v934 = vunpack.c.l.b16 %v906
        %v935 = vunpack.c.l.b16 %v907
        %v936 = vunpack.c.l.b16 %v908
        %v937 = vunpack.c.l.b16 %v909
        %v938 = vpack.c.b16 %v931, %v930
        %v939 = vpack.c.b16 %v933, %v932
        %v940 = vpack.c.b16 %v935, %v934
        %v941 = vpack.c.b16 %v937, %v936
        %v947 = vsel %vm315, %v918, 0
        %v950 = vsel %vm315, %v919, 0
        %v953 = vsel %vm315, %v920, 0
        %v956 = vsel %vm315, %v921, 0
        %958 = vmatprep.subr.bf16.mxu0 0
        %959 = vmatpush1.bf16.msra.mxu0 0
        %960 = vmatprep.subr.bf16.mxu0 0
        %961 = vmatpush1.bf16.msra.mxu0 0
        %962 = vmatprep.subr.bf16.mxu0 0
        %963 = vmatpush1.bf16.msra.mxu0 0
        %964 = vmatprep.subr.bf16.mxu0 0
        %965 = vmatpush1.bf16.msra.mxu0 0
        %966 = vmatprep.subr.bf16.mxu0 0
        %967 = vmatpush1.bf16.msra.mxu0 %v941
        %968 = vmatprep.subr.bf16.mxu0 0
        %969 = vmatpush1.bf16.msra.mxu0 %v940
        %970 = vmatprep.subr.bf16.mxu0 0
        %971 = vmatpush1.bf16.msra.mxu0 %v939
        %972 = vmatprep.subr.bf16.mxu0 0
        %973 = vmatpush1.bf16.msra.mxu0 %v938
        %974 = vmatprep.subr.bf16.mxu0 0
        %975 = vmatpush2.bf16.msra.mxu0 0
        %976 = vmatprep.subr.bf16.mxu0 0
        %977 = vmatpush2.bf16.msra.mxu0 0
        %978 = vmatprep.subr.bf16.mxu0 0
        %979 = vmatpush2.bf16.msra.mxu0 0
        %980 = vmatprep.subr.bf16.mxu0 0
        %981 = vmatpush2.bf16.msra.mxu0 0
        %982 = vmatprep.subr.bf16.mxu0 0
        %983 = vmatpush2.bf16.msra.mxu0 0
        %984 = vmatprep.subr.bf16.mxu0 0
        %985 = vmatpush2.bf16.msra.mxu0 0
        %986 = vmatprep.subr.bf16.mxu0 0
        %987 = vmatpush2.bf16.msra.mxu0 0
        %988 = vmatprep.subr.bf16.mxu0 0
        %989 = vmatpush2.bf16.msra.mxu0 0
        %990 = vmatprep.mubr.bf16.mxu0 0
        %991 = vmatmul.mubr.bf16.gmra.mxu0 %v947
        %v992 = vpop.f32.mrf.mxu0
        %v993 = vadd.f32 0.0, %v992
        %v994 = vpop.f32.mrf.mxu0
        %v995 = vpop.f32.mrf.mxu0
        %v996 = vadd.f32 0.0, %v995
        %v997 = vpop.f32.mrf.mxu0
        %998 = vmatprep.mubr.bf16.mxu0 0
        %999 = vmatmul.mubr.bf16.gmra.mxu0 %v950
        %v1000 = vpop.f32.mrf.mxu0
        %v1001 = vadd.f32 0.0, %v1000
        %v1002 = vpop.f32.mrf.mxu0
        %v1003 = vpop.f32.mrf.mxu0
        %v1004 = vadd.f32 0.0, %v1003
        %v1005 = vpop.f32.mrf.mxu0
        %1006 = vmatprep.mubr.bf16.mxu0 0
        %1007 = vmatmul.mubr.bf16.gmra.mxu0 %v953
        %v1008 = vpop.f32.mrf.mxu0
        %v1009 = vadd.f32 0.0, %v1008
        %v1010 = vpop.f32.mrf.mxu0
        %v1011 = vpop.f32.mrf.mxu0
        %v1012 = vadd.f32 0.0, %v1011
        %v1013 = vpop.f32.mrf.mxu0
        %1014 = vmatprep.mubr.bf16.mxu0 0
        %1015 = vmatmul.mubr.bf16.gmra.mxu0 %v956
        %v1016 = vpop.f32.mrf.mxu0
        %v1017 = vadd.f32 0.0, %v1016
        %v1018 = vpop.f32.mrf.mxu0
        %v1019 = vpop.f32.mrf.mxu0
        %v1020 = vadd.f32 0.0, %v1019
        %v1021 = vpop.f32.mrf.mxu0
        %1022 = vdwg.mxu0
        %v1023 = vadd.f32 %v766, %v993
        %v1024 = vadd.f32 %v767, %v996
        %v1025 = vadd.f32 %v768, %v1001
        %v1026 = vadd.f32 %v769, %v1004
        %v1027 = vadd.f32 %v770, %v1009
        %v1028 = vadd.f32 %v771, %v1012
        %v1029 = vadd.f32 %v772, %v1017
        %v1030 = vadd.f32 %v773, %v1020
        %s1031 = scalar_lea.vmem %s227, 144
        %v1032 = vld [vmem:[%s1031] sm:$0xf]
        %v1033 = vld [vmem:[%s1031 + $0x8] sm:$0xf]
        %v1034 = vld [vmem:[%s1031 + $0x10] sm:$0xf]
        %v1035 = vld [vmem:[%s1031 + $0x18] sm:$0xf]
        %v1036 = vld [vmem:[%s1031 + $0x20] sm:$0xf]
        %v1037 = vld [vmem:[%s1031 + $0x28] sm:$0xf]
        %v1038 = vld [vmem:[%s1031 + $0x30] sm:$0xf]
        %v1039 = vld [vmem:[%s1031 + $0x38] sm:$0xf]
        %v1040 = vld [vmem:[#allocation2 + $0x80] sm:$0xf]
        %v1041 = vld [vmem:[#allocation2 + $0x84] sm:$0xf]
        %v1042 = vld [vmem:[#allocation2 + $0x88] sm:$0xf]
        %v1043 = vld [vmem:[#allocation2 + $0x8c] sm:$0xf]
        %v1044 = vld [vmem:[#allocation2 + $0x90] sm:$0xf]
        %v1045 = vld [vmem:[#allocation2 + $0x94] sm:$0xf]
        %v1046 = vld [vmem:[#allocation2 + $0x98] sm:$0xf]
        %v1047 = vld [vmem:[#allocation2 + $0x9c] sm:$0xf]
        %v1056 = vunpack.c.l.b16 %v1032
        %v1057 = vunpack.c.l.b16 %v1033
        %v1058 = vunpack.c.l.b16 %v1034
        %v1059 = vunpack.c.l.b16 %v1035
        %v1060 = vunpack.c.l.b16 %v1036
        %v1061 = vunpack.c.l.b16 %v1037
        %v1062 = vunpack.c.l.b16 %v1038
        %v1063 = vunpack.c.l.b16 %v1039
        %v1064 = vpack.c.b16 %v1057, %v1056
        %v1065 = vpack.c.b16 %v1059, %v1058
        %v1066 = vpack.c.b16 %v1061, %v1060
        %v1067 = vpack.c.b16 %v1063, %v1062
        %v1076 = vunpack.c.l.b16 %v1040
        %v1077 = vunpack.c.l.b16 %v1041
        %v1078 = vunpack.c.l.b16 %v1042
        %v1079 = vunpack.c.l.b16 %v1043
        %v1080 = vunpack.c.l.b16 %v1044
        %v1081 = vunpack.c.l.b16 %v1045
        %v1082 = vunpack.c.l.b16 %v1046
        %v1083 = vunpack.c.l.b16 %v1047
        %v1084 = vpack.c.b16 %v1077, %v1076
        %v1085 = vpack.c.b16 %v1079, %v1078
        %v1086 = vpack.c.b16 %v1081, %v1080
        %v1087 = vpack.c.b16 %v1083, %v1082
        %v1093 = vsel %vm315, %v1064, 0
        %v1096 = vsel %vm315, %v1065, 0
        %v1099 = vsel %vm315, %v1066, 0
        %v1102 = vsel %vm315, %v1067, 0
        %1104 = vmatprep.subr.bf16.mxu0 0
        %1105 = vmatpush1.bf16.msra.mxu0 0
        %1106 = vmatprep.subr.bf16.mxu0 0
        %1107 = vmatpush1.bf16.msra.mxu0 0
        %1108 = vmatprep.subr.bf16.mxu0 0
        %1109 = vmatpush1.bf16.msra.mxu0 0
        %1110 = vmatprep.subr.bf16.mxu0 0
        %1111 = vmatpush1.bf16.msra.mxu0 0
        %1112 = vmatprep.subr.bf16.mxu0 0
        %1113 = vmatpush1.bf16.msra.mxu0 %v1087
        %1114 = vmatprep.subr.bf16.mxu0 0
        %1115 = vmatpush1.bf16.msra.mxu0 %v1086
        %1116 = vmatprep.subr.bf16.mxu0 0
        %1117 = vmatpush1.bf16.msra.mxu0 %v1085
        %1118 = vmatprep.subr.bf16.mxu0 0
        %1119 = vmatpush1.bf16.msra.mxu0 %v1084
        %1120 = vmatprep.subr.bf16.mxu0 0
        %1121 = vmatpush2.bf16.msra.mxu0 0
        %1122 = vmatprep.subr.bf16.mxu0 0
        %1123 = vmatpush2.bf16.msra.mxu0 0
        %1124 = vmatprep.subr.bf16.mxu0 0
        %1125 = vmatpush2.bf16.msra.mxu0 0
        %1126 = vmatprep.subr.bf16.mxu0 0
        %1127 = vmatpush2.bf16.msra.mxu0 0
        %1128 = vmatprep.subr.bf16.mxu0 0
        %1129 = vmatpush2.bf16.msra.mxu0 0
        %1130 = vmatprep.subr.bf16.mxu0 0
        %1131 = vmatpush2.bf16.msra.mxu0 0
        %1132 = vmatprep.subr.bf16.mxu0 0
        %1133 = vmatpush2.bf16.msra.mxu0 0
        %1134 = vmatprep.subr.bf16.mxu0 0
        %1135 = vmatpush2.bf16.msra.mxu0 0
        %1136 = vmatprep.mubr.bf16.mxu0 0
        %1137 = vmatmul.mubr.bf16.gmra.mxu0 %v1093
        %v1138 = vpop.f32.mrf.mxu0
        %v1139 = vadd.f32 0.0, %v1138
        %v1140 = vpop.f32.mrf.mxu0
        %v1141 = vpop.f32.mrf.mxu0
        %v1142 = vadd.f32 0.0, %v1141
        %v1143 = vpop.f32.mrf.mxu0
        %1144 = vmatprep.mubr.bf16.mxu0 0
        %1145 = vmatmul.mubr.bf16.gmra.mxu0 %v1096
        %v1146 = vpop.f32.mrf.mxu0
        %v1147 = vadd.f32 0.0, %v1146
        %v1148 = vpop.f32.mrf.mxu0
        %v1149 = vpop.f32.mrf.mxu0
        %v1150 = vadd.f32 0.0, %v1149
        %v1151 = vpop.f32.mrf.mxu0
        %1152 = vmatprep.mubr.bf16.mxu0 0
        %1153 = vmatmul.mubr.bf16.gmra.mxu0 %v1099
        %v1154 = vpop.f32.mrf.mxu0
        %v1155 = vadd.f32 0.0, %v1154
        %v1156 = vpop.f32.mrf.mxu0
        %v1157 = vpop.f32.mrf.mxu0
        %v1158 = vadd.f32 0.0, %v1157
        %v1159 = vpop.f32.mrf.mxu0
        %1160 = vmatprep.mubr.bf16.mxu0 0
        %1161 = vmatmul.mubr.bf16.gmra.mxu0 %v1102
        %v1162 = vpop.f32.mrf.mxu0
        %v1163 = vadd.f32 0.0, %v1162
        %v1164 = vpop.f32.mrf.mxu0
        %v1165 = vpop.f32.mrf.mxu0
        %v1166 = vadd.f32 0.0, %v1165
        %v1167 = vpop.f32.mrf.mxu0
        %1168 = vdwg.mxu0
        %v1169 = vadd.f32 %v1023, %v1139
        %v1170 = vadd.f32 %v1024, %v1142
        %v1171 = vadd.f32 %v1025, %v1147
        %v1172 = vadd.f32 %v1026, %v1150
        %v1173 = vadd.f32 %v1027, %v1155
        %v1174 = vadd.f32 %v1028, %v1158
        %v1175 = vadd.f32 %v1029, %v1163
        %v1176 = vadd.f32 %v1030, %v1166
        %s1177 = scalar_lea.vmem %s227, 216
        %v1178 = vld [vmem:[%s1177] sm:$0xf]
        %v1179 = vld [vmem:[%s1177 + $0x8] sm:$0xf]
        %v1180 = vld [vmem:[%s1177 + $0x10] sm:$0xf]
        %v1181 = vld [vmem:[%s1177 + $0x18] sm:$0xf]
        %v1182 = vld [vmem:[%s1177 + $0x20] sm:$0xf]
        %v1183 = vld [vmem:[%s1177 + $0x28] sm:$0xf]
        %v1184 = vld [vmem:[%s1177 + $0x30] sm:$0xf]
        %v1185 = vld [vmem:[%s1177 + $0x38] sm:$0xf]
        %v1186 = vld [vmem:[#allocation2 + $0xa0] sm:$0xf]
        %v1187 = vld [vmem:[#allocation2 + $0xa4] sm:$0xf]
        %v1188 = vld [vmem:[#allocation2 + $0xa8] sm:$0xf]
        %v1189 = vld [vmem:[#allocation2 + $0xac] sm:$0xf]
        %v1190 = vld [vmem:[#allocation2 + $0xb0] sm:$0xf]
        %v1191 = vld [vmem:[#allocation2 + $0xb4] sm:$0xf]
        %v1192 = vld [vmem:[#allocation2 + $0xb8] sm:$0xf]
        %v1193 = vld [vmem:[#allocation2 + $0xbc] sm:$0xf]
        %v1202 = vunpack.c.l.b16 %v1178
        %v1203 = vunpack.c.l.b16 %v1179
        %v1204 = vunpack.c.l.b16 %v1180
        %v1205 = vunpack.c.l.b16 %v1181
        %v1206 = vunpack.c.l.b16 %v1182
        %v1207 = vunpack.c.l.b16 %v1183
        %v1208 = vunpack.c.l.b16 %v1184
        %v1209 = vunpack.c.l.b16 %v1185
        %v1210 = vpack.c.b16 %v1203, %v1202
        %v1211 = vpack.c.b16 %v1205, %v1204
        %v1212 = vpack.c.b16 %v1207, %v1206
        %v1213 = vpack.c.b16 %v1209, %v1208
        %v1222 = vunpack.c.l.b16 %v1186
        %v1223 = vunpack.c.l.b16 %v1187
        %v1224 = vunpack.c.l.b16 %v1188
        %v1225 = vunpack.c.l.b16 %v1189
        %v1226 = vunpack.c.l.b16 %v1190
        %v1227 = vunpack.c.l.b16 %v1191
        %v1228 = vunpack.c.l.b16 %v1192
        %v1229 = vunpack.c.l.b16 %v1193
        %v1230 = vpack.c.b16 %v1223, %v1222
        %v1231 = vpack.c.b16 %v1225, %v1224
        %v1232 = vpack.c.b16 %v1227, %v1226
        %v1233 = vpack.c.b16 %v1229, %v1228
        %v1239 = vsel %vm315, %v1210, 0
        %v1242 = vsel %vm315, %v1211, 0
        %v1245 = vsel %vm315, %v1212, 0
        %v1248 = vsel %vm315, %v1213, 0
        %1250 = vmatprep.subr.bf16.mxu0 0
        %1251 = vmatpush1.bf16.msra.mxu0 0
        %1252 = vmatprep.subr.bf16.mxu0 0
        %1253 = vmatpush1.bf16.msra.mxu0 0
        %1254 = vmatprep.subr.bf16.mxu0 0
        %1255 = vmatpush1.bf16.msra.mxu0 0
        %1256 = vmatprep.subr.bf16.mxu0 0
        %1257 = vmatpush1.bf16.msra.mxu0 0
        %1258 = vmatprep.subr.bf16.mxu0 0
        %1259 = vmatpush1.bf16.msra.mxu0 %v1233
        %1260 = vmatprep.subr.bf16.mxu0 0
        %1261 = vmatpush1.bf16.msra.mxu0 %v1232
        %1262 = vmatprep.subr.bf16.mxu0 0
        %1263 = vmatpush1.bf16.msra.mxu0 %v1231
        %1264 = vmatprep.subr.bf16.mxu0 0
        %1265 = vmatpush1.bf16.msra.mxu0 %v1230
        %1266 = vmatprep.subr.bf16.mxu0 0
        %1267 = vmatpush2.bf16.msra.mxu0 0
        %1268 = vmatprep.subr.bf16.mxu0 0
        %1269 = vmatpush2.bf16.msra.mxu0 0
        %1270 = vmatprep.subr.bf16.mxu0 0
        %1271 = vmatpush2.bf16.msra.mxu0 0
        %1272 = vmatprep.subr.bf16.mxu0 0
        %1273 = vmatpush2.bf16.msra.mxu0 0
        %1274 = vmatprep.subr.bf16.mxu0 0
        %1275 = vmatpush2.bf16.msra.mxu0 0
        %1276 = vmatprep.subr.bf16.mxu0 0
        %1277 = vmatpush2.bf16.msra.mxu0 0
        %1278 = vmatprep.subr.bf16.mxu0 0
        %1279 = vmatpush2.bf16.msra.mxu0 0
        %1280 = vmatprep.subr.bf16.mxu0 0
        %1281 = vmatpush2.bf16.msra.mxu0 0
        %1282 = vmatprep.mubr.bf16.mxu0 0
        %1283 = vmatmul.mubr.bf16.gmra.mxu0 %v1239
        %v1284 = vpop.f32.mrf.mxu0
        %v1285 = vadd.f32 0.0, %v1284
        %v1286 = vpop.f32.mrf.mxu0
        %v1287 = vpop.f32.mrf.mxu0
        %v1288 = vadd.f32 0.0, %v1287
        %v1289 = vpop.f32.mrf.mxu0
        %1290 = vmatprep.mubr.bf16.mxu0 0
        %1291 = vmatmul.mubr.bf16.gmra.mxu0 %v1242
        %v1292 = vpop.f32.mrf.mxu0
        %v1293 = vadd.f32 0.0, %v1292
        %v1294 = vpop.f32.mrf.mxu0
        %v1295 = vpop.f32.mrf.mxu0
        %v1296 = vadd.f32 0.0, %v1295
        %v1297 = vpop.f32.mrf.mxu0
        %1298 = vmatprep.mubr.bf16.mxu0 0
        %1299 = vmatmul.mubr.bf16.gmra.mxu0 %v1245
        %v1300 = vpop.f32.mrf.mxu0
        %v1301 = vadd.f32 0.0, %v1300
        %v1302 = vpop.f32.mrf.mxu0
        %v1303 = vpop.f32.mrf.mxu0
        %v1304 = vadd.f32 0.0, %v1303
        %v1305 = vpop.f32.mrf.mxu0
        %1306 = vmatprep.mubr.bf16.mxu0 0
        %1307 = vmatmul.mubr.bf16.gmra.mxu0 %v1248
        %v1308 = vpop.f32.mrf.mxu0
        %v1309 = vadd.f32 0.0, %v1308
        %v1310 = vpop.f32.mrf.mxu0
        %v1311 = vpop.f32.mrf.mxu0
        %v1312 = vadd.f32 0.0, %v1311
        %v1313 = vpop.f32.mrf.mxu0
        %1314 = vdwg.mxu0
        %v1315 = vadd.f32 %v1169, %v1285
        %v1316 = vadd.f32 %v1170, %v1288
        %v1317 = vadd.f32 %v1171, %v1293
        %v1318 = vadd.f32 %v1172, %v1296
        %v1319 = vadd.f32 %v1173, %v1301
        %v1320 = vadd.f32 %v1174, %v1304
        %v1321 = vadd.f32 %v1175, %v1309
        %v1322 = vadd.f32 %v1176, %v1312
        %v1323 = vld [vmem:[%s1031] sm:$0xf]
        %v1324 = vld [vmem:[%s1031 + $0x4] sm:$0x1]
        %v1325 = vld [vmem:[%s1031 + $0x8] sm:$0xf]
        %v1326 = vld [vmem:[%s1031 + $0xc] sm:$0x1]
        %v1327 = vld [vmem:[%s1031 + $0x10] sm:$0xf]
        %v1328 = vld [vmem:[%s1031 + $0x14] sm:$0x1]
        %v1329 = vld [vmem:[%s1031 + $0x18] sm:$0xf]
        %v1330 = vld [vmem:[%s1031 + $0x1c] sm:$0x1]
        %v1331 = vld [vmem:[%s1031 + $0x20] sm:$0xf]
        %v1332 = vld [vmem:[%s1031 + $0x24] sm:$0x1]
        %v1333 = vld [vmem:[%s1031 + $0x28] sm:$0xf]
        %v1334 = vld [vmem:[%s1031 + $0x2c] sm:$0x1]
        %v1335 = vld [vmem:[%s1031 + $0x30] sm:$0xf]
        %v1336 = vld [vmem:[%s1031 + $0x34] sm:$0x1]
        %v1337 = vld [vmem:[%s1031 + $0x38] sm:$0xf]
        %v1338 = vld [vmem:[%s1031 + $0x3c] sm:$0x1]
        %v1340 = vshrl.u32 %v1323, 16
        %v1342 = vrot.slane %v1340, 4
        %v1343 = vshll.u32 %v1323, 16
        %v1345 = vrot.slane %v1343, 5
        %v1346 = vor.u32 %v1342, %v1345
        %v1347 = vrot.slane %v1346, 4
        %v1349 = vshll.u32 %v1324, 16
        %v1351 = vrot.slane %v1349, 5
        %v1352 = vsel %vm532, %v1347, %v1351
        %v1354 = vshrl.u32 %v1325, 16
        %v1356 = vrot.slane %v1354, 4
        %v1357 = vshll.u32 %v1325, 16
        %v1359 = vrot.slane %v1357, 5
        %v1360 = vor.u32 %v1356, %v1359
        %v1361 = vrot.slane %v1360, 4
        %v1363 = vshll.u32 %v1326, 16
        %v1365 = vrot.slane %v1363, 5
        %v1366 = vsel %vm532, %v1361, %v1365
        %v1368 = vshrl.u32 %v1327, 16
        %v1370 = vrot.slane %v1368, 4
        %v1371 = vshll.u32 %v1327, 16
        %v1373 = vrot.slane %v1371, 5
        %v1374 = vor.u32 %v1370, %v1373
        %v1375 = vrot.slane %v1374, 4
        %v1377 = vshll.u32 %v1328, 16
        %v1379 = vrot.slane %v1377, 5
        %v1380 = vsel %vm532, %v1375, %v1379
        %v1382 = vshrl.u32 %v1329, 16
        %v1384 = vrot.slane %v1382, 4
        %v1385 = vshll.u32 %v1329, 16
        %v1387 = vrot.slane %v1385, 5
        %v1388 = vor.u32 %v1384, %v1387
        %v1389 = vrot.slane %v1388, 4
        %v1391 = vshll.u32 %v1330, 16
        %v1393 = vrot.slane %v1391, 5
        %v1394 = vsel %vm532, %v1389, %v1393
        %v1396 = vshrl.u32 %v1331, 16
        %v1398 = vrot.slane %v1396, 4
        %v1399 = vshll.u32 %v1331, 16
        %v1401 = vrot.slane %v1399, 5
        %v1402 = vor.u32 %v1398, %v1401
        %v1403 = vrot.slane %v1402, 4
        %v1405 = vshll.u32 %v1332, 16
        %v1407 = vrot.slane %v1405, 5
        %v1408 = vsel %vm532, %v1403, %v1407
        %v1410 = vshrl.u32 %v1333, 16
        %v1412 = vrot.slane %v1410, 4
        %v1413 = vshll.u32 %v1333, 16
        %v1415 = vrot.slane %v1413, 5
        %v1416 = vor.u32 %v1412, %v1415
        %v1417 = vrot.slane %v1416, 4
        %v1419 = vshll.u32 %v1334, 16
        %v1421 = vrot.slane %v1419, 5
        %v1422 = vsel %vm532, %v1417, %v1421
        %v1424 = vshrl.u32 %v1335, 16
        %v1426 = vrot.slane %v1424, 4
        %v1427 = vshll.u32 %v1335, 16
        %v1429 = vrot.slane %v1427, 5
        %v1430 = vor.u32 %v1426, %v1429
        %v1431 = vrot.slane %v1430, 4
        %v1433 = vshll.u32 %v1336, 16
        %v1435 = vrot.slane %v1433, 5
        %v1436 = vsel %vm532, %v1431, %v1435
        %v1438 = vshrl.u32 %v1337, 16
        %v1440 = vrot.slane %v1438, 4
        %v1441 = vshll.u32 %v1337, 16
        %v1443 = vrot.slane %v1441, 5
        %v1444 = vor.u32 %v1440, %v1443
        %v1445 = vrot.slane %v1444, 4
        %v1447 = vshll.u32 %v1338, 16
        %v1449 = vrot.slane %v1447, 5
        %v1450 = vsel %vm532, %v1445, %v1449
        %v1451 = vld [vmem:[#allocation2 + $0xc0] sm:$0xf]
        %v1452 = vld [vmem:[#allocation2 + $0xc4] sm:$0xf]
        %v1453 = vld [vmem:[#allocation2 + $0xc8] sm:$0xf]
        %v1454 = vld [vmem:[#allocation2 + $0xcc] sm:$0xf]
        %v1455 = vld [vmem:[#allocation2 + $0xd0] sm:$0xf]
        %v1456 = vld [vmem:[#allocation2 + $0xd4] sm:$0xf]
        %v1457 = vld [vmem:[#allocation2 + $0xd8] sm:$0xf]
        %v1458 = vld [vmem:[#allocation2 + $0xdc] sm:$0xf]
        %v1459 = vunpack.c.l.b16 %v1352
        %v1460 = vunpack.c.l.b16 %v1366
        %v1461 = vunpack.c.l.b16 %v1380
        %v1462 = vunpack.c.l.b16 %v1394
        %v1463 = vunpack.c.l.b16 %v1408
        %v1464 = vunpack.c.l.b16 %v1422
        %v1465 = vunpack.c.l.b16 %v1436
        %v1466 = vunpack.c.l.b16 %v1450
        %v1467 = vpack.c.b16 %v1460, %v1459
        %v1468 = vpack.c.b16 %v1462, %v1461
        %v1469 = vpack.c.b16 %v1464, %v1463
        %v1470 = vpack.c.b16 %v1466, %v1465
        %v1479 = vunpack.c.l.b16 %v1451
        %v1480 = vunpack.c.l.b16 %v1452
        %v1481 = vunpack.c.l.b16 %v1453
        %v1482 = vunpack.c.l.b16 %v1454
        %v1483 = vunpack.c.l.b16 %v1455
        %v1484 = vunpack.c.l.b16 %v1456
        %v1485 = vunpack.c.l.b16 %v1457
        %v1486 = vunpack.c.l.b16 %v1458
        %v1487 = vpack.c.b16 %v1480, %v1479
        %v1488 = vpack.c.b16 %v1482, %v1481
        %v1489 = vpack.c.b16 %v1484, %v1483
        %v1490 = vpack.c.b16 %v1486, %v1485
        %v1496 = vsel %vm315, %v1467, 0
        %v1499 = vsel %vm315, %v1468, 0
        %v1502 = vsel %vm315, %v1469, 0
        %v1505 = vsel %vm315, %v1470, 0
        %1507 = vmatprep.subr.bf16.mxu0 0
        %1508 = vmatpush1.bf16.msra.mxu0 0
        %1509 = vmatprep.subr.bf16.mxu0 0
        %1510 = vmatpush1.bf16.msra.mxu0 0
        %1511 = vmatprep.subr.bf16.mxu0 0
        %1512 = vmatpush1.bf16.msra.mxu0 0
        %1513 = vmatprep.subr.bf16.mxu0 0
        %1514 = vmatpush1.bf16.msra.mxu0 0
        %1515 = vmatprep.subr.bf16.mxu0 0
        %1516 = vmatpush1.bf16.msra.mxu0 %v1490
        %1517 = vmatprep.subr.bf16.mxu0 0
        %1518 = vmatpush1.bf16.msra.mxu0 %v1489
        %1519 = vmatprep.subr.bf16.mxu0 0
        %1520 = vmatpush1.bf16.msra.mxu0 %v1488
        %1521 = vmatprep.subr.bf16.mxu0 0
        %1522 = vmatpush1.bf16.msra.mxu0 %v1487
        %1523 = vmatprep.subr.bf16.mxu0 0
        %1524 = vmatpush2.bf16.msra.mxu0 0
        %1525 = vmatprep.subr.bf16.mxu0 0
        %1526 = vmatpush2.bf16.msra.mxu0 0
        %1527 = vmatprep.subr.bf16.mxu0 0
        %1528 = vmatpush2.bf16.msra.mxu0 0
        %1529 = vmatprep.subr.bf16.mxu0 0
        %1530 = vmatpush2.bf16.msra.mxu0 0
        %1531 = vmatprep.subr.bf16.mxu0 0
        %1532 = vmatpush2.bf16.msra.mxu0 0
        %1533 = vmatprep.subr.bf16.mxu0 0
        %1534 = vmatpush2.bf16.msra.mxu0 0
        %1535 = vmatprep.subr.bf16.mxu0 0
        %1536 = vmatpush2.bf16.msra.mxu0 0
        %1537 = vmatprep.subr.bf16.mxu0 0
        %1538 = vmatpush2.bf16.msra.mxu0 0
        %1539 = vmatprep.mubr.bf16.mxu0 0
        %1540 = vmatmul.mubr.bf16.gmra.mxu0 %v1496
        %v1541 = vpop.f32.mrf.mxu0
        %v1542 = vadd.f32 0.0, %v1541
        %v1543 = vpop.f32.mrf.mxu0
        %v1544 = vpop.f32.mrf.mxu0
        %v1545 = vadd.f32 0.0, %v1544
        %v1546 = vpop.f32.mrf.mxu0
        %1547 = vmatprep.mubr.bf16.mxu0 0
        %1548 = vmatmul.mubr.bf16.gmra.mxu0 %v1499
        %v1549 = vpop.f32.mrf.mxu0
        %v1550 = vadd.f32 0.0, %v1549
        %v1551 = vpop.f32.mrf.mxu0
        %v1552 = vpop.f32.mrf.mxu0
        %v1553 = vadd.f32 0.0, %v1552
        %v1554 = vpop.f32.mrf.mxu0
        %1555 = vmatprep.mubr.bf16.mxu0 0
        %1556 = vmatmul.mubr.bf16.gmra.mxu0 %v1502
        %v1557 = vpop.f32.mrf.mxu0
        %v1558 = vadd.f32 0.0, %v1557
        %v1559 = vpop.f32.mrf.mxu0
        %v1560 = vpop.f32.mrf.mxu0
        %v1561 = vadd.f32 0.0, %v1560
        %v1562 = vpop.f32.mrf.mxu0
        %1563 = vmatprep.mubr.bf16.mxu0 0
        %1564 = vmatmul.mubr.bf16.gmra.mxu0 %v1505
        %v1565 = vpop.f32.mrf.mxu0
        %v1566 = vadd.f32 0.0, %v1565
        %v1567 = vpop.f32.mrf.mxu0
        %v1568 = vpop.f32.mrf.mxu0
        %v1569 = vadd.f32 0.0, %v1568
        %v1570 = vpop.f32.mrf.mxu0
        %1571 = vdwg.mxu0
        %v1572 = vadd.f32 %v1315, %v1542
        %v1573 = vadd.f32 %v1316, %v1545
        %v1574 = vadd.f32 %v1317, %v1550
        %v1575 = vadd.f32 %v1318, %v1553
        %v1576 = vadd.f32 %v1319, %v1558
        %v1577 = vadd.f32 %v1320, %v1561
        %v1578 = vadd.f32 %v1321, %v1566
        %v1579 = vadd.f32 %v1322, %v1569
        %v1580 = vld [vmem:[%s1177] sm:$0xf]
        %v1581 = vld [vmem:[%s1177 + $0x4] sm:$0x1]
        %v1582 = vld [vmem:[%s1177 + $0x8] sm:$0xf]
        %v1583 = vld [vmem:[%s1177 + $0xc] sm:$0x1]
        %v1584 = vld [vmem:[%s1177 + $0x10] sm:$0xf]
        %v1585 = vld [vmem:[%s1177 + $0x14] sm:$0x1]
        %v1586 = vld [vmem:[%s1177 + $0x18] sm:$0xf]
        %v1587 = vld [vmem:[%s1177 + $0x1c] sm:$0x1]
        %v1588 = vld [vmem:[%s1177 + $0x20] sm:$0xf]
        %v1589 = vld [vmem:[%s1177 + $0x24] sm:$0x1]
        %v1590 = vld [vmem:[%s1177 + $0x28] sm:$0xf]
        %v1591 = vld [vmem:[%s1177 + $0x2c] sm:$0x1]
        %v1592 = vld [vmem:[%s1177 + $0x30] sm:$0xf]
        %v1593 = vld [vmem:[%s1177 + $0x34] sm:$0x1]
        %v1594 = vld [vmem:[%s1177 + $0x38] sm:$0xf]
        %v1595 = vld [vmem:[%s1177 + $0x3c] sm:$0x1]
        %v1597 = vshrl.u32 %v1580, 16
        %v1599 = vrot.slane %v1597, 4
        %v1600 = vshll.u32 %v1580, 16
        %v1602 = vrot.slane %v1600, 5
        %v1603 = vor.u32 %v1599, %v1602
        %v1604 = vrot.slane %v1603, 4
        %v1606 = vshll.u32 %v1581, 16
        %v1608 = vrot.slane %v1606, 5
        %v1609 = vsel %vm532, %v1604, %v1608
        %v1611 = vshrl.u32 %v1582, 16
        %v1613 = vrot.slane %v1611, 4
        %v1614 = vshll.u32 %v1582, 16
        %v1616 = vrot.slane %v1614, 5
        %v1617 = vor.u32 %v1613, %v1616
        %v1618 = vrot.slane %v1617, 4
        %v1620 = vshll.u32 %v1583, 16
        %v1622 = vrot.slane %v1620, 5
        %v1623 = vsel %vm532, %v1618, %v1622
        %v1625 = vshrl.u32 %v1584, 16
        %v1627 = vrot.slane %v1625, 4
        %v1628 = vshll.u32 %v1584, 16
        %v1630 = vrot.slane %v1628, 5
        %v1631 = vor.u32 %v1627, %v1630
        %v1632 = vrot.slane %v1631, 4
        %v1634 = vshll.u32 %v1585, 16
        %v1636 = vrot.slane %v1634, 5
        %v1637 = vsel %vm532, %v1632, %v1636
        %v1639 = vshrl.u32 %v1586, 16
        %v1641 = vrot.slane %v1639, 4
        %v1642 = vshll.u32 %v1586, 16
        %v1644 = vrot.slane %v1642, 5
        %v1645 = vor.u32 %v1641, %v1644
        %v1646 = vrot.slane %v1645, 4
        %v1648 = vshll.u32 %v1587, 16
        %v1650 = vrot.slane %v1648, 5
        %v1651 = vsel %vm532, %v1646, %v1650
        %v1653 = vshrl.u32 %v1588, 16
        %v1655 = vrot.slane %v1653, 4
        %v1656 = vshll.u32 %v1588, 16
        %v1658 = vrot.slane %v1656, 5
        %v1659 = vor.u32 %v1655, %v1658
        %v1660 = vrot.slane %v1659, 4
        %v1662 = vshll.u32 %v1589, 16
        %v1664 = vrot.slane %v1662, 5
        %v1665 = vsel %vm532, %v1660, %v1664
        %v1667 = vshrl.u32 %v1590, 16
        %v1669 = vrot.slane %v1667, 4
        %v1670 = vshll.u32 %v1590, 16
        %v1672 = vrot.slane %v1670, 5
        %v1673 = vor.u32 %v1669, %v1672
        %v1674 = vrot.slane %v1673, 4
        %v1676 = vshll.u32 %v1591, 16
        %v1678 = vrot.slane %v1676, 5
        %v1679 = vsel %vm532, %v1674, %v1678
        %v1681 = vshrl.u32 %v1592, 16
        %v1683 = vrot.slane %v1681, 4
        %v1684 = vshll.u32 %v1592, 16
        %v1686 = vrot.slane %v1684, 5
        %v1687 = vor.u32 %v1683, %v1686
        %v1688 = vrot.slane %v1687, 4
        %v1690 = vshll.u32 %v1593, 16
        %v1692 = vrot.slane %v1690, 5
        %v1693 = vsel %vm532, %v1688, %v1692
        %v1695 = vshrl.u32 %v1594, 16
        %v1697 = vrot.slane %v1695, 4
        %v1698 = vshll.u32 %v1594, 16
        %v1700 = vrot.slane %v1698, 5
        %v1701 = vor.u32 %v1697, %v1700
        %v1702 = vrot.slane %v1701, 4
        %v1704 = vshll.u32 %v1595, 16
        %v1706 = vrot.slane %v1704, 5
        %v1707 = vsel %vm532, %v1702, %v1706
        %v1708 = vld [vmem:[#allocation2 + $0xe0] sm:$0xf]
        %v1709 = vld [vmem:[#allocation2 + $0xe4] sm:$0xf]
        %v1710 = vld [vmem:[#allocation2 + $0xe8] sm:$0xf]
        %v1711 = vld [vmem:[#allocation2 + $0xec] sm:$0xf]
        %v1712 = vld [vmem:[#allocation2 + $0xf0] sm:$0xf]
        %v1713 = vld [vmem:[#allocation2 + $0xf4] sm:$0xf]
        %v1714 = vld [vmem:[#allocation2 + $0xf8] sm:$0xf]
        %v1715 = vld [vmem:[#allocation2 + $0xfc] sm:$0xf]
        %v1716 = vunpack.c.l.b16 %v1609
        %v1717 = vunpack.c.l.b16 %v1623
        %v1718 = vunpack.c.l.b16 %v1637
        %v1719 = vunpack.c.l.b16 %v1651
        %v1720 = vunpack.c.l.b16 %v1665
        %v1721 = vunpack.c.l.b16 %v1679
        %v1722 = vunpack.c.l.b16 %v1693
        %v1723 = vunpack.c.l.b16 %v1707
        %v1724 = vpack.c.b16 %v1717, %v1716
        %v1725 = vpack.c.b16 %v1719, %v1718
        %v1726 = vpack.c.b16 %v1721, %v1720
        %v1727 = vpack.c.b16 %v1723, %v1722
        %v1736 = vunpack.c.l.b16 %v1708
        %v1737 = vunpack.c.l.b16 %v1709
        %v1738 = vunpack.c.l.b16 %v1710
        %v1739 = vunpack.c.l.b16 %v1711
        %v1740 = vunpack.c.l.b16 %v1712
        %v1741 = vunpack.c.l.b16 %v1713
        %v1742 = vunpack.c.l.b16 %v1714
        %v1743 = vunpack.c.l.b16 %v1715
        %v1744 = vpack.c.b16 %v1737, %v1736
        %v1745 = vpack.c.b16 %v1739, %v1738
        %v1746 = vpack.c.b16 %v1741, %v1740
        %v1747 = vpack.c.b16 %v1743, %v1742
        %v1753 = vsel %vm315, %v1724, 0
        %v1756 = vsel %vm315, %v1725, 0
        %v1759 = vsel %vm315, %v1726, 0
        %v1762 = vsel %vm315, %v1727, 0
        %1764 = vmatprep.subr.bf16.mxu0 0
        %1765 = vmatpush1.bf16.msra.mxu0 0
        %1766 = vmatprep.subr.bf16.mxu0 0
        %1767 = vmatpush1.bf16.msra.mxu0 0
        %1768 = vmatprep.subr.bf16.mxu0 0
        %1769 = vmatpush1.bf16.msra.mxu0 0
        %1770 = vmatprep.subr.bf16.mxu0 0
        %1771 = vmatpush1.bf16.msra.mxu0 0
        %1772 = vmatprep.subr.bf16.mxu0 0
        %1773 = vmatpush1.bf16.msra.mxu0 %v1747
        %1774 = vmatprep.subr.bf16.mxu0 0
        %1775 = vmatpush1.bf16.msra.mxu0 %v1746
        %1776 = vmatprep.subr.bf16.mxu0 0
        %1777 = vmatpush1.bf16.msra.mxu0 %v1745
        %1778 = vmatprep.subr.bf16.mxu0 0
        %1779 = vmatpush1.bf16.msra.mxu0 %v1744
        %1780 = vmatprep.subr.bf16.mxu0 0
        %1781 = vmatpush2.bf16.msra.mxu0 0
        %1782 = vmatprep.subr.bf16.mxu0 0
        %1783 = vmatpush2.bf16.msra.mxu0 0
        %1784 = vmatprep.subr.bf16.mxu0 0
        %1785 = vmatpush2.bf16.msra.mxu0 0
        %1786 = vmatprep.subr.bf16.mxu0 0
        %1787 = vmatpush2.bf16.msra.mxu0 0
        %1788 = vmatprep.subr.bf16.mxu0 0
        %1789 = vmatpush2.bf16.msra.mxu0 0
        %1790 = vmatprep.subr.bf16.mxu0 0
        %1791 = vmatpush2.bf16.msra.mxu0 0
        %1792 = vmatprep.subr.bf16.mxu0 0
        %1793 = vmatpush2.bf16.msra.mxu0 0
        %1794 = vmatprep.subr.bf16.mxu0 0
        %1795 = vmatpush2.bf16.msra.mxu0 0
        %1796 = vmatprep.mubr.bf16.mxu0 0
        %1797 = vmatmul.mubr.bf16.gmra.mxu0 %v1753
        %v1798 = vpop.f32.mrf.mxu0
        %v1799 = vadd.f32 0.0, %v1798
        %v1800 = vpop.f32.mrf.mxu0
        %v1801 = vpop.f32.mrf.mxu0
        %v1802 = vadd.f32 0.0, %v1801
        %v1803 = vpop.f32.mrf.mxu0
        %1804 = vmatprep.mubr.bf16.mxu0 0
        %1805 = vmatmul.mubr.bf16.gmra.mxu0 %v1756
        %v1806 = vpop.f32.mrf.mxu0
        %v1807 = vadd.f32 0.0, %v1806
        %v1808 = vpop.f32.mrf.mxu0
        %v1809 = vpop.f32.mrf.mxu0
        %v1810 = vadd.f32 0.0, %v1809
        %v1811 = vpop.f32.mrf.mxu0
        %1812 = vmatprep.mubr.bf16.mxu0 0
        %1813 = vmatmul.mubr.bf16.gmra.mxu0 %v1759
        %v1814 = vpop.f32.mrf.mxu0
        %v1815 = vadd.f32 0.0, %v1814
        %v1816 = vpop.f32.mrf.mxu0
        %v1817 = vpop.f32.mrf.mxu0
        %v1818 = vadd.f32 0.0, %v1817
        %v1819 = vpop.f32.mrf.mxu0
        %1820 = vmatprep.mubr.bf16.mxu0 0
        %1821 = vmatmul.mubr.bf16.gmra.mxu0 %v1762
        %v1822 = vpop.f32.mrf.mxu0
        %v1823 = vadd.f32 0.0, %v1822
        %v1824 = vpop.f32.mrf.mxu0
        %v1825 = vpop.f32.mrf.mxu0
        %v1826 = vadd.f32 0.0, %v1825
        %v1827 = vpop.f32.mrf.mxu0
        %1828 = vdwg.mxu0
        %v1829 = vadd.f32 %v1572, %v1799
        %v1830 = vadd.f32 %v1573, %v1802
        %v1831 = vadd.f32 %v1574, %v1807
        %v1832 = vadd.f32 %v1575, %v1810
        %v1833 = vadd.f32 %v1576, %v1815
        %v1834 = vadd.f32 %v1577, %v1818
        %v1835 = vadd.f32 %v1578, %v1823
        %v1836 = vadd.f32 %v1579, %v1826
        %s1837 = scalar_lea.vmem %s227, 8
        %v1838 = vld [vmem:[%s1837] sm:$0xf]
        %v1839 = vld [vmem:[%s1837 + $0x8] sm:$0xf]
        %v1840 = vld [vmem:[%s1837 + $0x10] sm:$0xf]
        %v1841 = vld [vmem:[%s1837 + $0x18] sm:$0xf]
        %v1842 = vld [vmem:[%s1837 + $0x20] sm:$0xf]
        %v1843 = vld [vmem:[%s1837 + $0x28] sm:$0xf]
        %v1844 = vld [vmem:[%s1837 + $0x30] sm:$0xf]
        %v1845 = vld [vmem:[%s1837 + $0x38] sm:$0xf]
        %v1846 = vld [vmem:[#allocation2 + $0x100] sm:$0xf]
        %v1847 = vld [vmem:[#allocation2 + $0x104] sm:$0xf]
        %v1848 = vld [vmem:[#allocation2 + $0x108] sm:$0xf]
        %v1849 = vld [vmem:[#allocation2 + $0x10c] sm:$0xf]
        %v1850 = vld [vmem:[#allocation2 + $0x110] sm:$0xf]
        %v1851 = vld [vmem:[#allocation2 + $0x114] sm:$0xf]
        %v1852 = vld [vmem:[#allocation2 + $0x118] sm:$0xf]
        %v1853 = vld [vmem:[#allocation2 + $0x11c] sm:$0xf]
        %v1862 = vunpack.c.l.b16 %v1838
        %v1863 = vunpack.c.l.b16 %v1839
        %v1864 = vunpack.c.l.b16 %v1840
        %v1865 = vunpack.c.l.b16 %v1841
        %v1866 = vunpack.c.l.b16 %v1842
        %v1867 = vunpack.c.l.b16 %v1843
        %v1868 = vunpack.c.l.b16 %v1844
        %v1869 = vunpack.c.l.b16 %v1845
        %v1870 = vpack.c.b16 %v1863, %v1862
        %v1871 = vpack.c.b16 %v1865, %v1864
        %v1872 = vpack.c.b16 %v1867, %v1866
        %v1873 = vpack.c.b16 %v1869, %v1868
        %v1882 = vunpack.c.l.b16 %v1846
        %v1883 = vunpack.c.l.b16 %v1847
        %v1884 = vunpack.c.l.b16 %v1848
        %v1885 = vunpack.c.l.b16 %v1849
        %v1886 = vunpack.c.l.b16 %v1850
        %v1887 = vunpack.c.l.b16 %v1851
        %v1888 = vunpack.c.l.b16 %v1852
        %v1889 = vunpack.c.l.b16 %v1853
        %v1890 = vpack.c.b16 %v1883, %v1882
        %v1891 = vpack.c.b16 %v1885, %v1884
        %v1892 = vpack.c.b16 %v1887, %v1886
        %v1893 = vpack.c.b16 %v1889, %v1888
        %v1899 = vsel %vm315, %v1870, 0
        %v1902 = vsel %vm315, %v1871, 0
        %v1905 = vsel %vm315, %v1872, 0
        %v1908 = vsel %vm315, %v1873, 0
        %1910 = vmatprep.subr.bf16.mxu0 0
        %1911 = vmatpush1.bf16.msra.mxu0 0
        %1912 = vmatprep.subr.bf16.mxu0 0
        %1913 = vmatpush1.bf16.msra.mxu0 0
        %1914 = vmatprep.subr.bf16.mxu0 0
        %1915 = vmatpush1.bf16.msra.mxu0 0
        %1916 = vmatprep.subr.bf16.mxu0 0
        %1917 = vmatpush1.bf16.msra.mxu0 0
        %1918 = vmatprep.subr.bf16.mxu0 0
        %1919 = vmatpush1.bf16.msra.mxu0 %v1893
        %1920 = vmatprep.subr.bf16.mxu0 0
        %1921 = vmatpush1.bf16.msra.mxu0 %v1892
        %1922 = vmatprep.subr.bf16.mxu0 0
        %1923 = vmatpush1.bf16.msra.mxu0 %v1891
        %1924 = vmatprep.subr.bf16.mxu0 0
        %1925 = vmatpush1.bf16.msra.mxu0 %v1890
        %1926 = vmatprep.subr.bf16.mxu0 0
        %1927 = vmatpush2.bf16.msra.mxu0 0
        %1928 = vmatprep.subr.bf16.mxu0 0
        %1929 = vmatpush2.bf16.msra.mxu0 0
        %1930 = vmatprep.subr.bf16.mxu0 0
        %1931 = vmatpush2.bf16.msra.mxu0 0
        %1932 = vmatprep.subr.bf16.mxu0 0
        %1933 = vmatpush2.bf16.msra.mxu0 0
        %1934 = vmatprep.subr.bf16.mxu0 0
        %1935 = vmatpush2.bf16.msra.mxu0 0
        %1936 = vmatprep.subr.bf16.mxu0 0
        %1937 = vmatpush2.bf16.msra.mxu0 0
        %1938 = vmatprep.subr.bf16.mxu0 0
        %1939 = vmatpush2.bf16.msra.mxu0 0
        %1940 = vmatprep.subr.bf16.mxu0 0
        %1941 = vmatpush2.bf16.msra.mxu0 0
        %1942 = vmatprep.mubr.bf16.mxu0 0
        %1943 = vmatmul.mubr.bf16.gmra.mxu0 %v1899
        %v1944 = vpop.f32.mrf.mxu0
        %v1945 = vadd.f32 0.0, %v1944
        %v1946 = vpop.f32.mrf.mxu0
        %v1947 = vpop.f32.mrf.mxu0
        %v1948 = vadd.f32 0.0, %v1947
        %v1949 = vpop.f32.mrf.mxu0
        %1950 = vmatprep.mubr.bf16.mxu0 0
        %1951 = vmatmul.mubr.bf16.gmra.mxu0 %v1902
        %v1952 = vpop.f32.mrf.mxu0
        %v1953 = vadd.f32 0.0, %v1952
        %v1954 = vpop.f32.mrf.mxu0
        %v1955 = vpop.f32.mrf.mxu0
        %v1956 = vadd.f32 0.0, %v1955
        %v1957 = vpop.f32.mrf.mxu0
        %1958 = vmatprep.mubr.bf16.mxu0 0
        %1959 = vmatmul.mubr.bf16.gmra.mxu0 %v1905
        %v1960 = vpop.f32.mrf.mxu0
        %v1961 = vadd.f32 0.0, %v1960
        %v1962 = vpop.f32.mrf.mxu0
        %v1963 = vpop.f32.mrf.mxu0
        %v1964 = vadd.f32 0.0, %v1963
        %v1965 = vpop.f32.mrf.mxu0
        %1966 = vmatprep.mubr.bf16.mxu0 0
        %1967 = vmatmul.mubr.bf16.gmra.mxu0 %v1908
        %v1968 = vpop.f32.mrf.mxu0
        %v1969 = vadd.f32 0.0, %v1968
        %v1970 = vpop.f32.mrf.mxu0
        %v1971 = vpop.f32.mrf.mxu0
        %v1972 = vadd.f32 0.0, %v1971
        %v1973 = vpop.f32.mrf.mxu0
        %1974 = vdwg.mxu0
        %v1975 = vadd.f32 %v1829, %v1945
        %v1976 = vadd.f32 %v1830, %v1948
        %v1977 = vadd.f32 %v1831, %v1953
        %v1978 = vadd.f32 %v1832, %v1956
        %v1979 = vadd.f32 %v1833, %v1961
        %v1980 = vadd.f32 %v1834, %v1964
        %v1981 = vadd.f32 %v1835, %v1969
        %v1982 = vadd.f32 %v1836, %v1972
        %s1983 = scalar_lea.vmem %s227, 80
        %v1984 = vld [vmem:[%s1983] sm:$0xf]
        %v1985 = vld [vmem:[%s1983 + $0x8] sm:$0xf]
        %v1986 = vld [vmem:[%s1983 + $0x10] sm:$0xf]
        %v1987 = vld [vmem:[%s1983 + $0x18] sm:$0xf]
        %v1988 = vld [vmem:[%s1983 + $0x20] sm:$0xf]
        %v1989 = vld [vmem:[%s1983 + $0x28] sm:$0xf]
        %v1990 = vld [vmem:[%s1983 + $0x30] sm:$0xf]
        %v1991 = vld [vmem:[%s1983 + $0x38] sm:$0xf]
        %v1992 = vld [vmem:[#allocation2 + $0x120] sm:$0xf]
        %v1993 = vld [vmem:[#allocation2 + $0x124] sm:$0xf]
        %v1994 = vld [vmem:[#allocation2 + $0x128] sm:$0xf]
        %v1995 = vld [vmem:[#allocation2 + $0x12c] sm:$0xf]
        %v1996 = vld [vmem:[#allocation2 + $0x130] sm:$0xf]
        %v1997 = vld [vmem:[#allocation2 + $0x134] sm:$0xf]
        %v1998 = vld [vmem:[#allocation2 + $0x138] sm:$0xf]
        %v1999 = vld [vmem:[#allocation2 + $0x13c] sm:$0xf]
        %v2008 = vunpack.c.l.b16 %v1984
        %v2009 = vunpack.c.l.b16 %v1985
        %v2010 = vunpack.c.l.b16 %v1986
        %v2011 = vunpack.c.l.b16 %v1987
        %v2012 = vunpack.c.l.b16 %v1988
        %v2013 = vunpack.c.l.b16 %v1989
        %v2014 = vunpack.c.l.b16 %v1990
        %v2015 = vunpack.c.l.b16 %v1991
        %v2016 = vpack.c.b16 %v2009, %v2008
        %v2017 = vpack.c.b16 %v2011, %v2010
        %v2018 = vpack.c.b16 %v2013, %v2012
        %v2019 = vpack.c.b16 %v2015, %v2014
        %v2028 = vunpack.c.l.b16 %v1992
        %v2029 = vunpack.c.l.b16 %v1993
        %v2030 = vunpack.c.l.b16 %v1994
        %v2031 = vunpack.c.l.b16 %v1995
        %v2032 = vunpack.c.l.b16 %v1996
        %v2033 = vunpack.c.l.b16 %v1997
        %v2034 = vunpack.c.l.b16 %v1998
        %v2035 = vunpack.c.l.b16 %v1999
        %v2036 = vpack.c.b16 %v2029, %v2028
        %v2037 = vpack.c.b16 %v2031, %v2030
        %v2038 = vpack.c.b16 %v2033, %v2032
        %v2039 = vpack.c.b16 %v2035, %v2034
        %v2045 = vsel %vm315, %v2016, 0
        %v2048 = vsel %vm315, %v2017, 0
        %v2051 = vsel %vm315, %v2018, 0
        %v2054 = vsel %vm315, %v2019, 0
        %2056 = vmatprep.subr.bf16.mxu0 0
        %2057 = vmatpush1.bf16.msra.mxu0 0
        %2058 = vmatprep.subr.bf16.mxu0 0
        %2059 = vmatpush1.bf16.msra.mxu0 0
        %2060 = vmatprep.subr.bf16.mxu0 0
        %2061 = vmatpush1.bf16.msra.mxu0 0
        %2062 = vmatprep.subr.bf16.mxu0 0
        %2063 = vmatpush1.bf16.msra.mxu0 0
        %2064 = vmatprep.subr.bf16.mxu0 0
        %2065 = vmatpush1.bf16.msra.mxu0 %v2039
        %2066 = vmatprep.subr.bf16.mxu0 0
        %2067 = vmatpush1.bf16.msra.mxu0 %v2038
        %2068 = vmatprep.subr.bf16.mxu0 0
        %2069 = vmatpush1.bf16.msra.mxu0 %v2037
        %2070 = vmatprep.subr.bf16.mxu0 0
        %2071 = vmatpush1.bf16.msra.mxu0 %v2036
        %2072 = vmatprep.subr.bf16.mxu0 0
        %2073 = vmatpush2.bf16.msra.mxu0 0
        %2074 = vmatprep.subr.bf16.mxu0 0
        %2075 = vmatpush2.bf16.msra.mxu0 0
        %2076 = vmatprep.subr.bf16.mxu0 0
        %2077 = vmatpush2.bf16.msra.mxu0 0
        %2078 = vmatprep.subr.bf16.mxu0 0
        %2079 = vmatpush2.bf16.msra.mxu0 0
        %2080 = vmatprep.subr.bf16.mxu0 0
        %2081 = vmatpush2.bf16.msra.mxu0 0
        %2082 = vmatprep.subr.bf16.mxu0 0
        %2083 = vmatpush2.bf16.msra.mxu0 0
        %2084 = vmatprep.subr.bf16.mxu0 0
        %2085 = vmatpush2.bf16.msra.mxu0 0
        %2086 = vmatprep.subr.bf16.mxu0 0
        %2087 = vmatpush2.bf16.msra.mxu0 0
        %2088 = vmatprep.mubr.bf16.mxu0 0
        %2089 = vmatmul.mubr.bf16.gmra.mxu0 %v2045
        %v2090 = vpop.f32.mrf.mxu0
        %v2091 = vadd.f32 0.0, %v2090
        %v2092 = vpop.f32.mrf.mxu0
        %v2093 = vpop.f32.mrf.mxu0
        %v2094 = vadd.f32 0.0, %v2093
        %v2095 = vpop.f32.mrf.mxu0
        %2096 = vmatprep.mubr.bf16.mxu0 0
        %2097 = vmatmul.mubr.bf16.gmra.mxu0 %v2048
        %v2098 = vpop.f32.mrf.mxu0
        %v2099 = vadd.f32 0.0, %v2098
        %v2100 = vpop.f32.mrf.mxu0
        %v2101 = vpop.f32.mrf.mxu0
        %v2102 = vadd.f32 0.0, %v2101
        %v2103 = vpop.f32.mrf.mxu0
        %2104 = vmatprep.mubr.bf16.mxu0 0
        %2105 = vmatmul.mubr.bf16.gmra.mxu0 %v2051
        %v2106 = vpop.f32.mrf.mxu0
        %v2107 = vadd.f32 0.0, %v2106
        %v2108 = vpop.f32.mrf.mxu0
        %v2109 = vpop.f32.mrf.mxu0
        %v2110 = vadd.f32 0.0, %v2109
        %v2111 = vpop.f32.mrf.mxu0
        %2112 = vmatprep.mubr.bf16.mxu0 0
        %2113 = vmatmul.mubr.bf16.gmra.mxu0 %v2054
        %v2114 = vpop.f32.mrf.mxu0
        %v2115 = vadd.f32 0.0, %v2114
        %v2116 = vpop.f32.mrf.mxu0
        %v2117 = vpop.f32.mrf.mxu0
        %v2118 = vadd.f32 0.0, %v2117
        %v2119 = vpop.f32.mrf.mxu0
        %2120 = vdwg.mxu0
        %v2121 = vadd.f32 %v1975, %v2091
        %v2122 = vadd.f32 %v1976, %v2094
        %v2123 = vadd.f32 %v1977, %v2099
        %v2124 = vadd.f32 %v1978, %v2102
        %v2125 = vadd.f32 %v1979, %v2107
        %v2126 = vadd.f32 %v1980, %v2110
        %v2127 = vadd.f32 %v1981, %v2115
        %v2128 = vadd.f32 %v1982, %v2118
        %v2129 = vld [vmem:[%s1837] sm:$0xf]
        %v2130 = vld [vmem:[%s1837 + $0x4] sm:$0x1]
        %v2131 = vld [vmem:[%s1837 + $0x8] sm:$0xf]
        %v2132 = vld [vmem:[%s1837 + $0xc] sm:$0x1]
        %v2133 = vld [vmem:[%s1837 + $0x10] sm:$0xf]
        %v2134 = vld [vmem:[%s1837 + $0x14] sm:$0x1]
        %v2135 = vld [vmem:[%s1837 + $0x18] sm:$0xf]
        %v2136 = vld [vmem:[%s1837 + $0x1c] sm:$0x1]
        %v2137 = vld [vmem:[%s1837 + $0x20] sm:$0xf]
        %v2138 = vld [vmem:[%s1837 + $0x24] sm:$0x1]
        %v2139 = vld [vmem:[%s1837 + $0x28] sm:$0xf]
        %v2140 = vld [vmem:[%s1837 + $0x2c] sm:$0x1]
        %v2141 = vld [vmem:[%s1837 + $0x30] sm:$0xf]
        %v2142 = vld [vmem:[%s1837 + $0x34] sm:$0x1]
        %v2143 = vld [vmem:[%s1837 + $0x38] sm:$0xf]
        %v2144 = vld [vmem:[%s1837 + $0x3c] sm:$0x1]
        %v2146 = vshrl.u32 %v2129, 16
        %v2148 = vrot.slane %v2146, 4
        %v2149 = vshll.u32 %v2129, 16
        %v2151 = vrot.slane %v2149, 5
        %v2152 = vor.u32 %v2148, %v2151
        %v2153 = vrot.slane %v2152, 4
        %v2155 = vshll.u32 %v2130, 16
        %v2157 = vrot.slane %v2155, 5
        %v2158 = vsel %vm532, %v2153, %v2157
        %v2160 = vshrl.u32 %v2131, 16
        %v2162 = vrot.slane %v2160, 4
        %v2163 = vshll.u32 %v2131, 16
        %v2165 = vrot.slane %v2163, 5
        %v2166 = vor.u32 %v2162, %v2165
        %v2167 = vrot.slane %v2166, 4
        %v2169 = vshll.u32 %v2132, 16
        %v2171 = vrot.slane %v2169, 5
        %v2172 = vsel %vm532, %v2167, %v2171
        %v2174 = vshrl.u32 %v2133, 16
        %v2176 = vrot.slane %v2174, 4
        %v2177 = vshll.u32 %v2133, 16
        %v2179 = vrot.slane %v2177, 5
        %v2180 = vor.u32 %v2176, %v2179
        %v2181 = vrot.slane %v2180, 4
        %v2183 = vshll.u32 %v2134, 16
        %v2185 = vrot.slane %v2183, 5
        %v2186 = vsel %vm532, %v2181, %v2185
        %v2188 = vshrl.u32 %v2135, 16
        %v2190 = vrot.slane %v2188, 4
        %v2191 = vshll.u32 %v2135, 16
        %v2193 = vrot.slane %v2191, 5
        %v2194 = vor.u32 %v2190, %v2193
        %v2195 = vrot.slane %v2194, 4
        %v2197 = vshll.u32 %v2136, 16
        %v2199 = vrot.slane %v2197, 5
        %v2200 = vsel %vm532, %v2195, %v2199
        %v2202 = vshrl.u32 %v2137, 16
        %v2204 = vrot.slane %v2202, 4
        %v2205 = vshll.u32 %v2137, 16
        %v2207 = vrot.slane %v2205, 5
        %v2208 = vor.u32 %v2204, %v2207
        %v2209 = vrot.slane %v2208, 4
        %v2211 = vshll.u32 %v2138, 16
        %v2213 = vrot.slane %v2211, 5
        %v2214 = vsel %vm532, %v2209, %v2213
        %v2216 = vshrl.u32 %v2139, 16
        %v2218 = vrot.slane %v2216, 4
        %v2219 = vshll.u32 %v2139, 16
        %v2221 = vrot.slane %v2219, 5
        %v2222 = vor.u32 %v2218, %v2221
        %v2223 = vrot.slane %v2222, 4
        %v2225 = vshll.u32 %v2140, 16
        %v2227 = vrot.slane %v2225, 5
        %v2228 = vsel %vm532, %v2223, %v2227
        %v2230 = vshrl.u32 %v2141, 16
        %v2232 = vrot.slane %v2230, 4
        %v2233 = vshll.u32 %v2141, 16
        %v2235 = vrot.slane %v2233, 5
        %v2236 = vor.u32 %v2232, %v2235
        %v2237 = vrot.slane %v2236, 4
        %v2239 = vshll.u32 %v2142, 16
        %v2241 = vrot.slane %v2239, 5
        %v2242 = vsel %vm532, %v2237, %v2241
        %v2244 = vshrl.u32 %v2143, 16
        %v2246 = vrot.slane %v2244, 4
        %v2247 = vshll.u32 %v2143, 16
        %v2249 = vrot.slane %v2247, 5
        %v2250 = vor.u32 %v2246, %v2249
        %v2251 = vrot.slane %v2250, 4
        %v2253 = vshll.u32 %v2144, 16
        %v2255 = vrot.slane %v2253, 5
        %v2256 = vsel %vm532, %v2251, %v2255
        %v2257 = vld [vmem:[#allocation2 + $0x140] sm:$0xf]
        %v2258 = vld [vmem:[#allocation2 + $0x144] sm:$0xf]
        %v2259 = vld [vmem:[#allocation2 + $0x148] sm:$0xf]
        %v2260 = vld [vmem:[#allocation2 + $0x14c] sm:$0xf]
        %v2261 = vld [vmem:[#allocation2 + $0x150] sm:$0xf]
        %v2262 = vld [vmem:[#allocation2 + $0x154] sm:$0xf]
        %v2263 = vld [vmem:[#allocation2 + $0x158] sm:$0xf]
        %v2264 = vld [vmem:[#allocation2 + $0x15c] sm:$0xf]
        %v2265 = vunpack.c.l.b16 %v2158
        %v2266 = vunpack.c.l.b16 %v2172
        %v2267 = vunpack.c.l.b16 %v2186
        %v2268 = vunpack.c.l.b16 %v2200
        %v2269 = vunpack.c.l.b16 %v2214
        %v2270 = vunpack.c.l.b16 %v2228
        %v2271 = vunpack.c.l.b16 %v2242
        %v2272 = vunpack.c.l.b16 %v2256
        %v2273 = vpack.c.b16 %v2266, %v2265
        %v2274 = vpack.c.b16 %v2268, %v2267
        %v2275 = vpack.c.b16 %v2270, %v2269
        %v2276 = vpack.c.b16 %v2272, %v2271
        %v2285 = vunpack.c.l.b16 %v2257
        %v2286 = vunpack.c.l.b16 %v2258
        %v2287 = vunpack.c.l.b16 %v2259
        %v2288 = vunpack.c.l.b16 %v2260
        %v2289 = vunpack.c.l.b16 %v2261
        %v2290 = vunpack.c.l.b16 %v2262
        %v2291 = vunpack.c.l.b16 %v2263
        %v2292 = vunpack.c.l.b16 %v2264
        %v2293 = vpack.c.b16 %v2286, %v2285
        %v2294 = vpack.c.b16 %v2288, %v2287
        %v2295 = vpack.c.b16 %v2290, %v2289
        %v2296 = vpack.c.b16 %v2292, %v2291
        %v2302 = vsel %vm315, %v2273, 0
        %v2305 = vsel %vm315, %v2274, 0
        %v2308 = vsel %vm315, %v2275, 0
        %v2311 = vsel %vm315, %v2276, 0
        %2313 = vmatprep.subr.bf16.mxu0 0
        %2314 = vmatpush1.bf16.msra.mxu0 0
        %2315 = vmatprep.subr.bf16.mxu0 0
        %2316 = vmatpush1.bf16.msra.mxu0 0
        %2317 = vmatprep.subr.bf16.mxu0 0
        %2318 = vmatpush1.bf16.msra.mxu0 0
        %2319 = vmatprep.subr.bf16.mxu0 0
        %2320 = vmatpush1.bf16.msra.mxu0 0
        %2321 = vmatprep.subr.bf16.mxu0 0
        %2322 = vmatpush1.bf16.msra.mxu0 %v2296
        %2323 = vmatprep.subr.bf16.mxu0 0
        %2324 = vmatpush1.bf16.msra.mxu0 %v2295
        %2325 = vmatprep.subr.bf16.mxu0 0
        %2326 = vmatpush1.bf16.msra.mxu0 %v2294
        %2327 = vmatprep.subr.bf16.mxu0 0
        %2328 = vmatpush1.bf16.msra.mxu0 %v2293
        %2329 = vmatprep.subr.bf16.mxu0 0
        %2330 = vmatpush2.bf16.msra.mxu0 0
        %2331 = vmatprep.subr.bf16.mxu0 0
        %2332 = vmatpush2.bf16.msra.mxu0 0
        %2333 = vmatprep.subr.bf16.mxu0 0
        %2334 = vmatpush2.bf16.msra.mxu0 0
        %2335 = vmatprep.subr.bf16.mxu0 0
        %2336 = vmatpush2.bf16.msra.mxu0 0
        %2337 = vmatprep.subr.bf16.mxu0 0
        %2338 = vmatpush2.bf16.msra.mxu0 0
        %2339 = vmatprep.subr.bf16.mxu0 0
        %2340 = vmatpush2.bf16.msra.mxu0 0
        %2341 = vmatprep.subr.bf16.mxu0 0
        %2342 = vmatpush2.bf16.msra.mxu0 0
        %2343 = vmatprep.subr.bf16.mxu0 0
        %2344 = vmatpush2.bf16.msra.mxu0 0
        %2345 = vmatprep.mubr.bf16.mxu0 0
        %2346 = vmatmul.mubr.bf16.gmra.mxu0 %v2302
        %v2347 = vpop.f32.mrf.mxu0
        %v2348 = vadd.f32 0.0, %v2347
        %v2349 = vpop.f32.mrf.mxu0
        %v2350 = vpop.f32.mrf.mxu0
        %v2351 = vadd.f32 0.0, %v2350
        %v2352 = vpop.f32.mrf.mxu0
        %2353 = vmatprep.mubr.bf16.mxu0 0
        %2354 = vmatmul.mubr.bf16.gmra.mxu0 %v2305
        %v2355 = vpop.f32.mrf.mxu0
        %v2356 = vadd.f32 0.0, %v2355
        %v2357 = vpop.f32.mrf.mxu0
        %v2358 = vpop.f32.mrf.mxu0
        %v2359 = vadd.f32 0.0, %v2358
        %v2360 = vpop.f32.mrf.mxu0
        %2361 = vmatprep.mubr.bf16.mxu0 0
        %2362 = vmatmul.mubr.bf16.gmra.mxu0 %v2308
        %v2363 = vpop.f32.mrf.mxu0
        %v2364 = vadd.f32 0.0, %v2363
        %v2365 = vpop.f32.mrf.mxu0
        %v2366 = vpop.f32.mrf.mxu0
        %v2367 = vadd.f32 0.0, %v2366
        %v2368 = vpop.f32.mrf.mxu0
        %2369 = vmatprep.mubr.bf16.mxu0 0
        %2370 = vmatmul.mubr.bf16.gmra.mxu0 %v2311
        %v2371 = vpop.f32.mrf.mxu0
        %v2372 = vadd.f32 0.0, %v2371
        %v2373 = vpop.f32.mrf.mxu0
        %v2374 = vpop.f32.mrf.mxu0
        %v2375 = vadd.f32 0.0, %v2374
        %v2376 = vpop.f32.mrf.mxu0
        %2377 = vdwg.mxu0
        %v2378 = vadd.f32 %v2121, %v2348
        %v2379 = vadd.f32 %v2122, %v2351
        %v2380 = vadd.f32 %v2123, %v2356
        %v2381 = vadd.f32 %v2124, %v2359
        %v2382 = vadd.f32 %v2125, %v2364
        %v2383 = vadd.f32 %v2126, %v2367
        %v2384 = vadd.f32 %v2127, %v2372
        %v2385 = vadd.f32 %v2128, %v2375
        %v2386 = vld [vmem:[%s1983] sm:$0xf]
        %v2387 = vld [vmem:[%s1983 + $0x4] sm:$0x1]
        %v2388 = vld [vmem:[%s1983 + $0x8] sm:$0xf]
        %v2389 = vld [vmem:[%s1983 + $0xc] sm:$0x1]
        %v2390 = vld [vmem:[%s1983 + $0x10] sm:$0xf]
        %v2391 = vld [vmem:[%s1983 + $0x14] sm:$0x1]
        %v2392 = vld [vmem:[%s1983 + $0x18] sm:$0xf]
        %v2393 = vld [vmem:[%s1983 + $0x1c] sm:$0x1]
        %v2394 = vld [vmem:[%s1983 + $0x20] sm:$0xf]
        %v2395 = vld [vmem:[%s1983 + $0x24] sm:$0x1]
        %v2396 = vld [vmem:[%s1983 + $0x28] sm:$0xf]
        %v2397 = vld [vmem:[%s1983 + $0x2c] sm:$0x1]
        %v2398 = vld [vmem:[%s1983 + $0x30] sm:$0xf]
        %v2399 = vld [vmem:[%s1983 + $0x34] sm:$0x1]
        %v2400 = vld [vmem:[%s1983 + $0x38] sm:$0xf]
        %v2401 = vld [vmem:[%s1983 + $0x3c] sm:$0x1]
        %v2403 = vshrl.u32 %v2386, 16
        %v2405 = vrot.slane %v2403, 4
        %v2406 = vshll.u32 %v2386, 16
        %v2408 = vrot.slane %v2406, 5
        %v2409 = vor.u32 %v2405, %v2408
        %v2410 = vrot.slane %v2409, 4
        %v2412 = vshll.u32 %v2387, 16
        %v2414 = vrot.slane %v2412, 5
        %v2415 = vsel %vm532, %v2410, %v2414
        %v2417 = vshrl.u32 %v2388, 16
        %v2419 = vrot.slane %v2417, 4
        %v2420 = vshll.u32 %v2388, 16
        %v2422 = vrot.slane %v2420, 5
        %v2423 = vor.u32 %v2419, %v2422
        %v2424 = vrot.slane %v2423, 4
        %v2426 = vshll.u32 %v2389, 16
        %v2428 = vrot.slane %v2426, 5
        %v2429 = vsel %vm532, %v2424, %v2428
        %v2431 = vshrl.u32 %v2390, 16
        %v2433 = vrot.slane %v2431, 4
        %v2434 = vshll.u32 %v2390, 16
        %v2436 = vrot.slane %v2434, 5
        %v2437 = vor.u32 %v2433, %v2436
        %v2438 = vrot.slane %v2437, 4
        %v2440 = vshll.u32 %v2391, 16
        %v2442 = vrot.slane %v2440, 5
        %v2443 = vsel %vm532, %v2438, %v2442
        %v2445 = vshrl.u32 %v2392, 16
        %v2447 = vrot.slane %v2445, 4
        %v2448 = vshll.u32 %v2392, 16
        %v2450 = vrot.slane %v2448, 5
        %v2451 = vor.u32 %v2447, %v2450
        %v2452 = vrot.slane %v2451, 4
        %v2454 = vshll.u32 %v2393, 16
        %v2456 = vrot.slane %v2454, 5
        %v2457 = vsel %vm532, %v2452, %v2456
        %v2459 = vshrl.u32 %v2394, 16
        %v2461 = vrot.slane %v2459, 4
        %v2462 = vshll.u32 %v2394, 16
        %v2464 = vrot.slane %v2462, 5
        %v2465 = vor.u32 %v2461, %v2464
        %v2466 = vrot.slane %v2465, 4
        %v2468 = vshll.u32 %v2395, 16
        %v2470 = vrot.slane %v2468, 5
        %v2471 = vsel %vm532, %v2466, %v2470
        %v2473 = vshrl.u32 %v2396, 16
        %v2475 = vrot.slane %v2473, 4
        %v2476 = vshll.u32 %v2396, 16
        %v2478 = vrot.slane %v2476, 5
        %v2479 = vor.u32 %v2475, %v2478
        %v2480 = vrot.slane %v2479, 4
        %v2482 = vshll.u32 %v2397, 16
        %v2484 = vrot.slane %v2482, 5
        %v2485 = vsel %vm532, %v2480, %v2484
        %v2487 = vshrl.u32 %v2398, 16
        %v2489 = vrot.slane %v2487, 4
        %v2490 = vshll.u32 %v2398, 16
        %v2492 = vrot.slane %v2490, 5
        %v2493 = vor.u32 %v2489, %v2492
        %v2494 = vrot.slane %v2493, 4
        %v2496 = vshll.u32 %v2399, 16
        %v2498 = vrot.slane %v2496, 5
        %v2499 = vsel %vm532, %v2494, %v2498
        %v2501 = vshrl.u32 %v2400, 16
        %v2503 = vrot.slane %v2501, 4
        %v2504 = vshll.u32 %v2400, 16
        %v2506 = vrot.slane %v2504, 5
        %v2507 = vor.u32 %v2503, %v2506
        %v2508 = vrot.slane %v2507, 4
        %v2510 = vshll.u32 %v2401, 16
        %v2512 = vrot.slane %v2510, 5
        %v2513 = vsel %vm532, %v2508, %v2512
        %v2514 = vld [vmem:[#allocation2 + $0x160] sm:$0xf]
        %v2515 = vld [vmem:[#allocation2 + $0x164] sm:$0xf]
        %v2516 = vld [vmem:[#allocation2 + $0x168] sm:$0xf]
        %v2517 = vld [vmem:[#allocation2 + $0x16c] sm:$0xf]
        %v2518 = vld [vmem:[#allocation2 + $0x170] sm:$0xf]
        %v2519 = vld [vmem:[#allocation2 + $0x174] sm:$0xf]
        %v2520 = vld [vmem:[#allocation2 + $0x178] sm:$0xf]
        %v2521 = vld [vmem:[#allocation2 + $0x17c] sm:$0xf]
        %v2522 = vunpack.c.l.b16 %v2415
        %v2523 = vunpack.c.l.b16 %v2429
        %v2524 = vunpack.c.l.b16 %v2443
        %v2525 = vunpack.c.l.b16 %v2457
        %v2526 = vunpack.c.l.b16 %v2471
        %v2527 = vunpack.c.l.b16 %v2485
        %v2528 = vunpack.c.l.b16 %v2499
        %v2529 = vunpack.c.l.b16 %v2513
        %v2530 = vpack.c.b16 %v2523, %v2522
        %v2531 = vpack.c.b16 %v2525, %v2524
        %v2532 = vpack.c.b16 %v2527, %v2526
        %v2533 = vpack.c.b16 %v2529, %v2528
        %v2542 = vunpack.c.l.b16 %v2514
        %v2543 = vunpack.c.l.b16 %v2515
        %v2544 = vunpack.c.l.b16 %v2516
        %v2545 = vunpack.c.l.b16 %v2517
        %v2546 = vunpack.c.l.b16 %v2518
        %v2547 = vunpack.c.l.b16 %v2519
        %v2548 = vunpack.c.l.b16 %v2520
        %v2549 = vunpack.c.l.b16 %v2521
        %v2550 = vpack.c.b16 %v2543, %v2542
        %v2551 = vpack.c.b16 %v2545, %v2544
        %v2552 = vpack.c.b16 %v2547, %v2546
        %v2553 = vpack.c.b16 %v2549, %v2548
        %v2559 = vsel %vm315, %v2530, 0
        %v2562 = vsel %vm315, %v2531, 0
        %v2565 = vsel %vm315, %v2532, 0
        %v2568 = vsel %vm315, %v2533, 0
        %2570 = vmatprep.subr.bf16.mxu0 0
        %2571 = vmatpush1.bf16.msra.mxu0 0
        %2572 = vmatprep.subr.bf16.mxu0 0
        %2573 = vmatpush1.bf16.msra.mxu0 0
        %2574 = vmatprep.subr.bf16.mxu0 0
        %2575 = vmatpush1.bf16.msra.mxu0 0
        %2576 = vmatprep.subr.bf16.mxu0 0
        %2577 = vmatpush1.bf16.msra.mxu0 0
        %2578 = vmatprep.subr.bf16.mxu0 0
        %2579 = vmatpush1.bf16.msra.mxu0 %v2553
        %2580 = vmatprep.subr.bf16.mxu0 0
        %2581 = vmatpush1.bf16.msra.mxu0 %v2552
        %2582 = vmatprep.subr.bf16.mxu0 0
        %2583 = vmatpush1.bf16.msra.mxu0 %v2551
        %2584 = vmatprep.subr.bf16.mxu0 0
        %2585 = vmatpush1.bf16.msra.mxu0 %v2550
        %2586 = vmatprep.subr.bf16.mxu0 0
        %2587 = vmatpush2.bf16.msra.mxu0 0
        %2588 = vmatprep.subr.bf16.mxu0 0
        %2589 = vmatpush2.bf16.msra.mxu0 0
        %2590 = vmatprep.subr.bf16.mxu0 0
        %2591 = vmatpush2.bf16.msra.mxu0 0
        %2592 = vmatprep.subr.bf16.mxu0 0
        %2593 = vmatpush2.bf16.msra.mxu0 0
        %2594 = vmatprep.subr.bf16.mxu0 0
        %2595 = vmatpush2.bf16.msra.mxu0 0
        %2596 = vmatprep.subr.bf16.mxu0 0
        %2597 = vmatpush2.bf16.msra.mxu0 0
        %2598 = vmatprep.subr.bf16.mxu0 0
        %2599 = vmatpush2.bf16.msra.mxu0 0
        %2600 = vmatprep.subr.bf16.mxu0 0
        %2601 = vmatpush2.bf16.msra.mxu0 0
        %2602 = vmatprep.mubr.bf16.mxu0 0
        %2603 = vmatmul.mubr.bf16.gmra.mxu0 %v2559
        %v2604 = vpop.f32.mrf.mxu0
        %v2605 = vadd.f32 0.0, %v2604
        %v2606 = vpop.f32.mrf.mxu0
        %v2607 = vpop.f32.mrf.mxu0
        %v2608 = vadd.f32 0.0, %v2607
        %v2609 = vpop.f32.mrf.mxu0
        %2610 = vmatprep.mubr.bf16.mxu0 0
        %2611 = vmatmul.mubr.bf16.gmra.mxu0 %v2562
        %v2612 = vpop.f32.mrf.mxu0
        %v2613 = vadd.f32 0.0, %v2612
        %v2614 = vpop.f32.mrf.mxu0
        %v2615 = vpop.f32.mrf.mxu0
        %v2616 = vadd.f32 0.0, %v2615
        %v2617 = vpop.f32.mrf.mxu0
        %2618 = vmatprep.mubr.bf16.mxu0 0
        %2619 = vmatmul.mubr.bf16.gmra.mxu0 %v2565
        %v2620 = vpop.f32.mrf.mxu0
        %v2621 = vadd.f32 0.0, %v2620
        %v2622 = vpop.f32.mrf.mxu0
        %v2623 = vpop.f32.mrf.mxu0
        %v2624 = vadd.f32 0.0, %v2623
        %v2625 = vpop.f32.mrf.mxu0
        %2626 = vmatprep.mubr.bf16.mxu0 0
        %2627 = vmatmul.mubr.bf16.gmra.mxu0 %v2568
        %v2628 = vpop.f32.mrf.mxu0
        %v2629 = vadd.f32 0.0, %v2628
        %v2630 = vpop.f32.mrf.mxu0
        %v2631 = vpop.f32.mrf.mxu0
        %v2632 = vadd.f32 0.0, %v2631
        %v2633 = vpop.f32.mrf.mxu0
        %2634 = vdwg.mxu0
        %v2635 = vadd.f32 %v2378, %v2605
        %v2636 = vadd.f32 %v2379, %v2608
        %v2637 = vadd.f32 %v2380, %v2613
        %v2638 = vadd.f32 %v2381, %v2616
        %v2639 = vadd.f32 %v2382, %v2621
        %v2640 = vadd.f32 %v2383, %v2624
        %v2641 = vadd.f32 %v2384, %v2629
        %v2642 = vadd.f32 %v2385, %v2632
        %s2643 = scalar_lea.vmem %s227, 152
        %v2644 = vld [vmem:[%s2643] sm:$0xf]
        %v2645 = vld [vmem:[%s2643 + $0x8] sm:$0xf]
        %v2646 = vld [vmem:[%s2643 + $0x10] sm:$0xf]
        %v2647 = vld [vmem:[%s2643 + $0x18] sm:$0xf]
        %v2648 = vld [vmem:[%s2643 + $0x20] sm:$0xf]
        %v2649 = vld [vmem:[%s2643 + $0x28] sm:$0xf]
        %v2650 = vld [vmem:[%s2643 + $0x30] sm:$0xf]
        %v2651 = vld [vmem:[%s2643 + $0x38] sm:$0xf]
        %v2652 = vld [vmem:[#allocation2 + $0x180] sm:$0xf]
        %v2653 = vld [vmem:[#allocation2 + $0x184] sm:$0xf]
        %v2654 = vld [vmem:[#allocation2 + $0x188] sm:$0xf]
        %v2655 = vld [vmem:[#allocation2 + $0x18c] sm:$0xf]
        %v2656 = vld [vmem:[#allocation2 + $0x190] sm:$0xf]
        %v2657 = vld [vmem:[#allocation2 + $0x194] sm:$0xf]
        %v2658 = vld [vmem:[#allocation2 + $0x198] sm:$0xf]
        %v2659 = vld [vmem:[#allocation2 + $0x19c] sm:$0xf]
        %v2668 = vunpack.c.l.b16 %v2644
        %v2669 = vunpack.c.l.b16 %v2645
        %v2670 = vunpack.c.l.b16 %v2646
        %v2671 = vunpack.c.l.b16 %v2647
        %v2672 = vunpack.c.l.b16 %v2648
        %v2673 = vunpack.c.l.b16 %v2649
        %v2674 = vunpack.c.l.b16 %v2650
        %v2675 = vunpack.c.l.b16 %v2651
        %v2676 = vpack.c.b16 %v2669, %v2668
        %v2677 = vpack.c.b16 %v2671, %v2670
        %v2678 = vpack.c.b16 %v2673, %v2672
        %v2679 = vpack.c.b16 %v2675, %v2674
        %v2688 = vunpack.c.l.b16 %v2652
        %v2689 = vunpack.c.l.b16 %v2653
        %v2690 = vunpack.c.l.b16 %v2654
        %v2691 = vunpack.c.l.b16 %v2655
        %v2692 = vunpack.c.l.b16 %v2656
        %v2693 = vunpack.c.l.b16 %v2657
        %v2694 = vunpack.c.l.b16 %v2658
        %v2695 = vunpack.c.l.b16 %v2659
        %v2696 = vpack.c.b16 %v2689, %v2688
        %v2697 = vpack.c.b16 %v2691, %v2690
        %v2698 = vpack.c.b16 %v2693, %v2692
        %v2699 = vpack.c.b16 %v2695, %v2694
        %v2705 = vsel %vm315, %v2676, 0
        %v2708 = vsel %vm315, %v2677, 0
        %v2711 = vsel %vm315, %v2678, 0
        %v2714 = vsel %vm315, %v2679, 0
        %2716 = vmatprep.subr.bf16.mxu0 0
        %2717 = vmatpush1.bf16.msra.mxu0 0
        %2718 = vmatprep.subr.bf16.mxu0 0
        %2719 = vmatpush1.bf16.msra.mxu0 0
        %2720 = vmatprep.subr.bf16.mxu0 0
        %2721 = vmatpush1.bf16.msra.mxu0 0
        %2722 = vmatprep.subr.bf16.mxu0 0
        %2723 = vmatpush1.bf16.msra.mxu0 0
        %2724 = vmatprep.subr.bf16.mxu0 0
        %2725 = vmatpush1.bf16.msra.mxu0 %v2699
        %2726 = vmatprep.subr.bf16.mxu0 0
        %2727 = vmatpush1.bf16.msra.mxu0 %v2698
        %2728 = vmatprep.subr.bf16.mxu0 0
        %2729 = vmatpush1.bf16.msra.mxu0 %v2697
        %2730 = vmatprep.subr.bf16.mxu0 0
        %2731 = vmatpush1.bf16.msra.mxu0 %v2696
        %2732 = vmatprep.subr.bf16.mxu0 0
        %2733 = vmatpush2.bf16.msra.mxu0 0
        %2734 = vmatprep.subr.bf16.mxu0 0
        %2735 = vmatpush2.bf16.msra.mxu0 0
        %2736 = vmatprep.subr.bf16.mxu0 0
        %2737 = vmatpush2.bf16.msra.mxu0 0
        %2738 = vmatprep.subr.bf16.mxu0 0
        %2739 = vmatpush2.bf16.msra.mxu0 0
        %2740 = vmatprep.subr.bf16.mxu0 0
        %2741 = vmatpush2.bf16.msra.mxu0 0
        %2742 = vmatprep.subr.bf16.mxu0 0
        %2743 = vmatpush2.bf16.msra.mxu0 0
        %2744 = vmatprep.subr.bf16.mxu0 0
        %2745 = vmatpush2.bf16.msra.mxu0 0
        %2746 = vmatprep.subr.bf16.mxu0 0
        %2747 = vmatpush2.bf16.msra.mxu0 0
        %2748 = vmatprep.mubr.bf16.mxu0 0
        %2749 = vmatmul.mubr.bf16.gmra.mxu0 %v2705
        %v2750 = vpop.f32.mrf.mxu0
        %v2751 = vadd.f32 0.0, %v2750
        %v2752 = vpop.f32.mrf.mxu0
        %v2753 = vpop.f32.mrf.mxu0
        %v2754 = vadd.f32 0.0, %v2753
        %v2755 = vpop.f32.mrf.mxu0
        %2756 = vmatprep.mubr.bf16.mxu0 0
        %2757 = vmatmul.mubr.bf16.gmra.mxu0 %v2708
        %v2758 = vpop.f32.mrf.mxu0
        %v2759 = vadd.f32 0.0, %v2758
        %v2760 = vpop.f32.mrf.mxu0
        %v2761 = vpop.f32.mrf.mxu0
        %v2762 = vadd.f32 0.0, %v2761
        %v2763 = vpop.f32.mrf.mxu0
        %2764 = vmatprep.mubr.bf16.mxu0 0
        %2765 = vmatmul.mubr.bf16.gmra.mxu0 %v2711
        %v2766 = vpop.f32.mrf.mxu0
        %v2767 = vadd.f32 0.0, %v2766
        %v2768 = vpop.f32.mrf.mxu0
        %v2769 = vpop.f32.mrf.mxu0
        %v2770 = vadd.f32 0.0, %v2769
        %v2771 = vpop.f32.mrf.mxu0
        %2772 = vmatprep.mubr.bf16.mxu0 0
        %2773 = vmatmul.mubr.bf16.gmra.mxu0 %v2714
        %v2774 = vpop.f32.mrf.mxu0
        %v2775 = vadd.f32 0.0, %v2774
        %v2776 = vpop.f32.mrf.mxu0
        %v2777 = vpop.f32.mrf.mxu0
        %v2778 = vadd.f32 0.0, %v2777
        %v2779 = vpop.f32.mrf.mxu0
        %2780 = vdwg.mxu0
        %v2781 = vadd.f32 %v2635, %v2751
        %v2782 = vadd.f32 %v2636, %v2754
        %v2783 = vadd.f32 %v2637, %v2759
        %v2784 = vadd.f32 %v2638, %v2762
        %v2785 = vadd.f32 %v2639, %v2767
        %v2786 = vadd.f32 %v2640, %v2770
        %v2787 = vadd.f32 %v2641, %v2775
        %v2788 = vadd.f32 %v2642, %v2778
        %s2789 = scalar_lea.vmem %s227, 224
        %v2790 = vld [vmem:[%s2789] sm:$0xf]
        %v2791 = vld [vmem:[%s2789 + $0x8] sm:$0xf]
        %v2792 = vld [vmem:[%s2789 + $0x10] sm:$0xf]
        %v2793 = vld [vmem:[%s2789 + $0x18] sm:$0xf]
        %v2794 = vld [vmem:[%s2789 + $0x20] sm:$0xf]
        %v2795 = vld [vmem:[%s2789 + $0x28] sm:$0xf]
        %v2796 = vld [vmem:[%s2789 + $0x30] sm:$0xf]
        %v2797 = vld [vmem:[%s2789 + $0x38] sm:$0xf]
        %v2798 = vld [vmem:[#allocation2 + $0x1a0] sm:$0xf]
        %v2799 = vld [vmem:[#allocation2 + $0x1a4] sm:$0xf]
        %v2800 = vld [vmem:[#allocation2 + $0x1a8] sm:$0xf]
        %v2801 = vld [vmem:[#allocation2 + $0x1ac] sm:$0xf]
        %v2802 = vld [vmem:[#allocation2 + $0x1b0] sm:$0xf]
        %v2803 = vld [vmem:[#allocation2 + $0x1b4] sm:$0xf]
        %v2804 = vld [vmem:[#allocation2 + $0x1b8] sm:$0xf]
        %v2805 = vld [vmem:[#allocation2 + $0x1bc] sm:$0xf]
        %v2814 = vunpack.c.l.b16 %v2790
        %v2815 = vunpack.c.l.b16 %v2791
        %v2816 = vunpack.c.l.b16 %v2792
        %v2817 = vunpack.c.l.b16 %v2793
        %v2818 = vunpack.c.l.b16 %v2794
        %v2819 = vunpack.c.l.b16 %v2795
        %v2820 = vunpack.c.l.b16 %v2796
        %v2821 = vunpack.c.l.b16 %v2797
        %v2822 = vpack.c.b16 %v2815, %v2814
        %v2823 = vpack.c.b16 %v2817, %v2816
        %v2824 = vpack.c.b16 %v2819, %v2818
        %v2825 = vpack.c.b16 %v2821, %v2820
        %v2834 = vunpack.c.l.b16 %v2798
        %v2835 = vunpack.c.l.b16 %v2799
        %v2836 = vunpack.c.l.b16 %v2800
        %v2837 = vunpack.c.l.b16 %v2801
        %v2838 = vunpack.c.l.b16 %v2802
        %v2839 = vunpack.c.l.b16 %v2803
        %v2840 = vunpack.c.l.b16 %v2804
        %v2841 = vunpack.c.l.b16 %v2805
        %v2842 = vpack.c.b16 %v2835, %v2834
        %v2843 = vpack.c.b16 %v2837, %v2836
        %v2844 = vpack.c.b16 %v2839, %v2838
        %v2845 = vpack.c.b16 %v2841, %v2840
        %v2851 = vsel %vm315, %v2822, 0
        %v2854 = vsel %vm315, %v2823, 0
        %v2857 = vsel %vm315, %v2824, 0
        %v2860 = vsel %vm315, %v2825, 0
        %2862 = vmatprep.subr.bf16.mxu0 0
        %2863 = vmatpush1.bf16.msra.mxu0 0
        %2864 = vmatprep.subr.bf16.mxu0 0
        %2865 = vmatpush1.bf16.msra.mxu0 0
        %2866 = vmatprep.subr.bf16.mxu0 0
        %2867 = vmatpush1.bf16.msra.mxu0 0
        %2868 = vmatprep.subr.bf16.mxu0 0
        %2869 = vmatpush1.bf16.msra.mxu0 0
        %2870 = vmatprep.subr.bf16.mxu0 0
        %2871 = vmatpush1.bf16.msra.mxu0 %v2845
        %2872 = vmatprep.subr.bf16.mxu0 0
        %2873 = vmatpush1.bf16.msra.mxu0 %v2844
        %2874 = vmatprep.subr.bf16.mxu0 0
        %2875 = vmatpush1.bf16.msra.mxu0 %v2843
        %2876 = vmatprep.subr.bf16.mxu0 0
        %2877 = vmatpush1.bf16.msra.mxu0 %v2842
        %2878 = vmatprep.subr.bf16.mxu0 0
        %2879 = vmatpush2.bf16.msra.mxu0 0
        %2880 = vmatprep.subr.bf16.mxu0 0
        %2881 = vmatpush2.bf16.msra.mxu0 0
        %2882 = vmatprep.subr.bf16.mxu0 0
        %2883 = vmatpush2.bf16.msra.mxu0 0
        %2884 = vmatprep.subr.bf16.mxu0 0
        %2885 = vmatpush2.bf16.msra.mxu0 0
        %2886 = vmatprep.subr.bf16.mxu0 0
        %2887 = vmatpush2.bf16.msra.mxu0 0
        %2888 = vmatprep.subr.bf16.mxu0 0
        %2889 = vmatpush2.bf16.msra.mxu0 0
        %2890 = vmatprep.subr.bf16.mxu0 0
        %2891 = vmatpush2.bf16.msra.mxu0 0
        %2892 = vmatprep.subr.bf16.mxu0 0
        %2893 = vmatpush2.bf16.msra.mxu0 0
        %2894 = vmatprep.mubr.bf16.mxu0 0
        %2895 = vmatmul.mubr.bf16.gmra.mxu0 %v2851
        %v2896 = vpop.f32.mrf.mxu0
        %v2897 = vadd.f32 0.0, %v2896
        %v2898 = vpop.f32.mrf.mxu0
        %v2899 = vpop.f32.mrf.mxu0
        %v2900 = vadd.f32 0.0, %v2899
        %v2901 = vpop.f32.mrf.mxu0
        %2902 = vmatprep.mubr.bf16.mxu0 0
        %2903 = vmatmul.mubr.bf16.gmra.mxu0 %v2854
        %v2904 = vpop.f32.mrf.mxu0
        %v2905 = vadd.f32 0.0, %v2904
        %v2906 = vpop.f32.mrf.mxu0
        %v2907 = vpop.f32.mrf.mxu0
        %v2908 = vadd.f32 0.0, %v2907
        %v2909 = vpop.f32.mrf.mxu0
        %2910 = vmatprep.mubr.bf16.mxu0 0
        %2911 = vmatmul.mubr.bf16.gmra.mxu0 %v2857
        %v2912 = vpop.f32.mrf.mxu0
        %v2913 = vadd.f32 0.0, %v2912
        %v2914 = vpop.f32.mrf.mxu0
        %v2915 = vpop.f32.mrf.mxu0
        %v2916 = vadd.f32 0.0, %v2915
        %v2917 = vpop.f32.mrf.mxu0
        %2918 = vmatprep.mubr.bf16.mxu0 0
        %2919 = vmatmul.mubr.bf16.gmra.mxu0 %v2860
        %v2920 = vpop.f32.mrf.mxu0
        %v2921 = vadd.f32 0.0, %v2920
        %v2922 = vpop.f32.mrf.mxu0
        %v2923 = vpop.f32.mrf.mxu0
        %v2924 = vadd.f32 0.0, %v2923
        %v2925 = vpop.f32.mrf.mxu0
        %2926 = vdwg.mxu0
        %v2927 = vadd.f32 %v2781, %v2897
        %v2928 = vadd.f32 %v2782, %v2900
        %v2929 = vadd.f32 %v2783, %v2905
        %v2930 = vadd.f32 %v2784, %v2908
        %v2931 = vadd.f32 %v2785, %v2913
        %v2932 = vadd.f32 %v2786, %v2916
        %v2933 = vadd.f32 %v2787, %v2921
        %v2934 = vadd.f32 %v2788, %v2924
        %v2935 = vld [vmem:[%s2643] sm:$0xf]
        %v2936 = vld [vmem:[%s2643 + $0x4] sm:$0x1]
        %v2937 = vld [vmem:[%s2643 + $0x8] sm:$0xf]
        %v2938 = vld [vmem:[%s2643 + $0xc] sm:$0x1]
        %v2939 = vld [vmem:[%s2643 + $0x10] sm:$0xf]
        %v2940 = vld [vmem:[%s2643 + $0x14] sm:$0x1]
        %v2941 = vld [vmem:[%s2643 + $0x18] sm:$0xf]
        %v2942 = vld [vmem:[%s2643 + $0x1c] sm:$0x1]
        %v2943 = vld [vmem:[%s2643 + $0x20] sm:$0xf]
        %v2944 = vld [vmem:[%s2643 + $0x24] sm:$0x1]
        %v2945 = vld [vmem:[%s2643 + $0x28] sm:$0xf]
        %v2946 = vld [vmem:[%s2643 + $0x2c] sm:$0x1]
        %v2947 = vld [vmem:[%s2643 + $0x30] sm:$0xf]
        %v2948 = vld [vmem:[%s2643 + $0x34] sm:$0x1]
        %v2949 = vld [vmem:[%s2643 + $0x38] sm:$0xf]
        %v2950 = vld [vmem:[%s2643 + $0x3c] sm:$0x1]
        %v2952 = vshrl.u32 %v2935, 16
        %v2954 = vrot.slane %v2952, 4
        %v2955 = vshll.u32 %v2935, 16
        %v2957 = vrot.slane %v2955, 5
        %v2958 = vor.u32 %v2954, %v2957
        %v2959 = vrot.slane %v2958, 4
        %v2961 = vshll.u32 %v2936, 16
        %v2963 = vrot.slane %v2961, 5
        %v2964 = vsel %vm532, %v2959, %v2963
        %v2966 = vshrl.u32 %v2937, 16
        %v2968 = vrot.slane %v2966, 4
        %v2969 = vshll.u32 %v2937, 16
        %v2971 = vrot.slane %v2969, 5
        %v2972 = vor.u32 %v2968, %v2971
        %v2973 = vrot.slane %v2972, 4
        %v2975 = vshll.u32 %v2938, 16
        %v2977 = vrot.slane %v2975, 5
        %v2978 = vsel %vm532, %v2973, %v2977
        %v2980 = vshrl.u32 %v2939, 16
        %v2982 = vrot.slane %v2980, 4
        %v2983 = vshll.u32 %v2939, 16
        %v2985 = vrot.slane %v2983, 5
        %v2986 = vor.u32 %v2982, %v2985
        %v2987 = vrot.slane %v2986, 4
        %v2989 = vshll.u32 %v2940, 16
        %v2991 = vrot.slane %v2989, 5
        %v2992 = vsel %vm532, %v2987, %v2991
        %v2994 = vshrl.u32 %v2941, 16
        %v2996 = vrot.slane %v2994, 4
        %v2997 = vshll.u32 %v2941, 16
        %v2999 = vrot.slane %v2997, 5
        %v3000 = vor.u32 %v2996, %v2999
        %v3001 = vrot.slane %v3000, 4
        %v3003 = vshll.u32 %v2942, 16
        %v3005 = vrot.slane %v3003, 5
        %v3006 = vsel %vm532, %v3001, %v3005
        %v3008 = vshrl.u32 %v2943, 16
        %v3010 = vrot.slane %v3008, 4
        %v3011 = vshll.u32 %v2943, 16
        %v3013 = vrot.slane %v3011, 5
        %v3014 = vor.u32 %v3010, %v3013
        %v3015 = vrot.slane %v3014, 4
        %v3017 = vshll.u32 %v2944, 16
        %v3019 = vrot.slane %v3017, 5
        %v3020 = vsel %vm532, %v3015, %v3019
        %v3022 = vshrl.u32 %v2945, 16
        %v3024 = vrot.slane %v3022, 4
        %v3025 = vshll.u32 %v2945, 16
        %v3027 = vrot.slane %v3025, 5
        %v3028 = vor.u32 %v3024, %v3027
        %v3029 = vrot.slane %v3028, 4
        %v3031 = vshll.u32 %v2946, 16
        %v3033 = vrot.slane %v3031, 5
        %v3034 = vsel %vm532, %v3029, %v3033
        %v3036 = vshrl.u32 %v2947, 16
        %v3038 = vrot.slane %v3036, 4
        %v3039 = vshll.u32 %v2947, 16
        %v3041 = vrot.slane %v3039, 5
        %v3042 = vor.u32 %v3038, %v3041
        %v3043 = vrot.slane %v3042, 4
        %v3045 = vshll.u32 %v2948, 16
        %v3047 = vrot.slane %v3045, 5
        %v3048 = vsel %vm532, %v3043, %v3047
        %v3050 = vshrl.u32 %v2949, 16
        %v3052 = vrot.slane %v3050, 4
        %v3053 = vshll.u32 %v2949, 16
        %v3055 = vrot.slane %v3053, 5
        %v3056 = vor.u32 %v3052, %v3055
        %v3057 = vrot.slane %v3056, 4
        %v3059 = vshll.u32 %v2950, 16
        %v3061 = vrot.slane %v3059, 5
        %v3062 = vsel %vm532, %v3057, %v3061
        %v3063 = vld [vmem:[#allocation2 + $0x1c0] sm:$0xf]
        %v3064 = vld [vmem:[#allocation2 + $0x1c4] sm:$0xf]
        %v3065 = vld [vmem:[#allocation2 + $0x1c8] sm:$0xf]
        %v3066 = vld [vmem:[#allocation2 + $0x1cc] sm:$0xf]
        %v3067 = vld [vmem:[#allocation2 + $0x1d0] sm:$0xf]
        %v3068 = vld [vmem:[#allocation2 + $0x1d4] sm:$0xf]
        %v3069 = vld [vmem:[#allocation2 + $0x1d8] sm:$0xf]
        %v3070 = vld [vmem:[#allocation2 + $0x1dc] sm:$0xf]
        %v3071 = vunpack.c.l.b16 %v2964
        %v3072 = vunpack.c.l.b16 %v2978
        %v3073 = vunpack.c.l.b16 %v2992
        %v3074 = vunpack.c.l.b16 %v3006
        %v3075 = vunpack.c.l.b16 %v3020
        %v3076 = vunpack.c.l.b16 %v3034
        %v3077 = vunpack.c.l.b16 %v3048
        %v3078 = vunpack.c.l.b16 %v3062
        %v3079 = vpack.c.b16 %v3072, %v3071
        %v3080 = vpack.c.b16 %v3074, %v3073
        %v3081 = vpack.c.b16 %v3076, %v3075
        %v3082 = vpack.c.b16 %v3078, %v3077
        %v3091 = vunpack.c.l.b16 %v3063
        %v3092 = vunpack.c.l.b16 %v3064
        %v3093 = vunpack.c.l.b16 %v3065
        %v3094 = vunpack.c.l.b16 %v3066
        %v3095 = vunpack.c.l.b16 %v3067
        %v3096 = vunpack.c.l.b16 %v3068
        %v3097 = vunpack.c.l.b16 %v3069
        %v3098 = vunpack.c.l.b16 %v3070
        %v3099 = vpack.c.b16 %v3092, %v3091
        %v3100 = vpack.c.b16 %v3094, %v3093
        %v3101 = vpack.c.b16 %v3096, %v3095
        %v3102 = vpack.c.b16 %v3098, %v3097
        %v3108 = vsel %vm315, %v3079, 0
        %v3111 = vsel %vm315, %v3080, 0
        %v3114 = vsel %vm315, %v3081, 0
        %v3117 = vsel %vm315, %v3082, 0
        %3119 = vmatprep.subr.bf16.mxu0 0
        %3120 = vmatpush1.bf16.msra.mxu0 0
        %3121 = vmatprep.subr.bf16.mxu0 0
        %3122 = vmatpush1.bf16.msra.mxu0 0
        %3123 = vmatprep.subr.bf16.mxu0 0
        %3124 = vmatpush1.bf16.msra.mxu0 0
        %3125 = vmatprep.subr.bf16.mxu0 0
        %3126 = vmatpush1.bf16.msra.mxu0 0
        %3127 = vmatprep.subr.bf16.mxu0 0
        %3128 = vmatpush1.bf16.msra.mxu0 %v3102
        %3129 = vmatprep.subr.bf16.mxu0 0
        %3130 = vmatpush1.bf16.msra.mxu0 %v3101
        %3131 = vmatprep.subr.bf16.mxu0 0
        %3132 = vmatpush1.bf16.msra.mxu0 %v3100
        %3133 = vmatprep.subr.bf16.mxu0 0
        %3134 = vmatpush1.bf16.msra.mxu0 %v3099
        %3135 = vmatprep.subr.bf16.mxu0 0
        %3136 = vmatpush2.bf16.msra.mxu0 0
        %3137 = vmatprep.subr.bf16.mxu0 0
        %3138 = vmatpush2.bf16.msra.mxu0 0
        %3139 = vmatprep.subr.bf16.mxu0 0
        %3140 = vmatpush2.bf16.msra.mxu0 0
        %3141 = vmatprep.subr.bf16.mxu0 0
        %3142 = vmatpush2.bf16.msra.mxu0 0
        %3143 = vmatprep.subr.bf16.mxu0 0
        %3144 = vmatpush2.bf16.msra.mxu0 0
        %3145 = vmatprep.subr.bf16.mxu0 0
        %3146 = vmatpush2.bf16.msra.mxu0 0
        %3147 = vmatprep.subr.bf16.mxu0 0
        %3148 = vmatpush2.bf16.msra.mxu0 0
        %3149 = vmatprep.subr.bf16.mxu0 0
        %3150 = vmatpush2.bf16.msra.mxu0 0
        %3151 = vmatprep.mubr.bf16.mxu0 0
        %3152 = vmatmul.mubr.bf16.gmra.mxu0 %v3108
        %v3153 = vpop.f32.mrf.mxu0
        %v3154 = vadd.f32 0.0, %v3153
        %v3155 = vpop.f32.mrf.mxu0
        %v3156 = vpop.f32.mrf.mxu0
        %v3157 = vadd.f32 0.0, %v3156
        %v3158 = vpop.f32.mrf.mxu0
        %3159 = vmatprep.mubr.bf16.mxu0 0
        %3160 = vmatmul.mubr.bf16.gmra.mxu0 %v3111
        %v3161 = vpop.f32.mrf.mxu0
        %v3162 = vadd.f32 0.0, %v3161
        %v3163 = vpop.f32.mrf.mxu0
        %v3164 = vpop.f32.mrf.mxu0
        %v3165 = vadd.f32 0.0, %v3164
        %v3166 = vpop.f32.mrf.mxu0
        %3167 = vmatprep.mubr.bf16.mxu0 0
        %3168 = vmatmul.mubr.bf16.gmra.mxu0 %v3114
        %v3169 = vpop.f32.mrf.mxu0
        %v3170 = vadd.f32 0.0, %v3169
        %v3171 = vpop.f32.mrf.mxu0
        %v3172 = vpop.f32.mrf.mxu0
        %v3173 = vadd.f32 0.0, %v3172
        %v3174 = vpop.f32.mrf.mxu0
        %3175 = vmatprep.mubr.bf16.mxu0 0
        %3176 = vmatmul.mubr.bf16.gmra.mxu0 %v3117
        %v3177 = vpop.f32.mrf.mxu0
        %v3178 = vadd.f32 0.0, %v3177
        %v3179 = vpop.f32.mrf.mxu0
        %v3180 = vpop.f32.mrf.mxu0
        %v3181 = vadd.f32 0.0, %v3180
        %v3182 = vpop.f32.mrf.mxu0
        %3183 = vdwg.mxu0
        %v3184 = vadd.f32 %v2927, %v3154
        %v3185 = vadd.f32 %v2928, %v3157
        %v3186 = vadd.f32 %v2929, %v3162
        %v3187 = vadd.f32 %v2930, %v3165
        %v3188 = vadd.f32 %v2931, %v3170
        %v3189 = vadd.f32 %v2932, %v3173
        %v3190 = vadd.f32 %v2933, %v3178
        %v3191 = vadd.f32 %v2934, %v3181
        %v3192 = vld [vmem:[%s2789] sm:$0xf]
        %v3193 = vld [vmem:[%s2789 + $0x4] sm:$0x1]
        %v3194 = vld [vmem:[%s2789 + $0x8] sm:$0xf]
        %v3195 = vld [vmem:[%s2789 + $0xc] sm:$0x1]
        %v3196 = vld [vmem:[%s2789 + $0x10] sm:$0xf]
        %v3197 = vld [vmem:[%s2789 + $0x14] sm:$0x1]
        %v3198 = vld [vmem:[%s2789 + $0x18] sm:$0xf]
        %v3199 = vld [vmem:[%s2789 + $0x1c] sm:$0x1]
        %v3200 = vld [vmem:[%s2789 + $0x20] sm:$0xf]
        %v3201 = vld [vmem:[%s2789 + $0x24] sm:$0x1]
        %v3202 = vld [vmem:[%s2789 + $0x28] sm:$0xf]
        %v3203 = vld [vmem:[%s2789 + $0x2c] sm:$0x1]
        %v3204 = vld [vmem:[%s2789 + $0x30] sm:$0xf]
        %v3205 = vld [vmem:[%s2789 + $0x34] sm:$0x1]
        %v3206 = vld [vmem:[%s2789 + $0x38] sm:$0xf]
        %v3207 = vld [vmem:[%s2789 + $0x3c] sm:$0x1]
        %v3209 = vshrl.u32 %v3192, 16
        %v3211 = vrot.slane %v3209, 4
        %v3212 = vshll.u32 %v3192, 16
        %v3214 = vrot.slane %v3212, 5
        %v3215 = vor.u32 %v3211, %v3214
        %v3216 = vrot.slane %v3215, 4
        %v3218 = vshll.u32 %v3193, 16
        %v3220 = vrot.slane %v3218, 5
        %v3221 = vsel %vm532, %v3216, %v3220
        %v3223 = vshrl.u32 %v3194, 16
        %v3225 = vrot.slane %v3223, 4
        %v3226 = vshll.u32 %v3194, 16
        %v3228 = vrot.slane %v3226, 5
        %v3229 = vor.u32 %v3225, %v3228
        %v3230 = vrot.slane %v3229, 4
        %v3232 = vshll.u32 %v3195, 16
        %v3234 = vrot.slane %v3232, 5
        %v3235 = vsel %vm532, %v3230, %v3234
        %v3237 = vshrl.u32 %v3196, 16
        %v3239 = vrot.slane %v3237, 4
        %v3240 = vshll.u32 %v3196, 16
        %v3242 = vrot.slane %v3240, 5
        %v3243 = vor.u32 %v3239, %v3242
        %v3244 = vrot.slane %v3243, 4
        %v3246 = vshll.u32 %v3197, 16
        %v3248 = vrot.slane %v3246, 5
        %v3249 = vsel %vm532, %v3244, %v3248
        %v3251 = vshrl.u32 %v3198, 16
        %v3253 = vrot.slane %v3251, 4
        %v3254 = vshll.u32 %v3198, 16
        %v3256 = vrot.slane %v3254, 5
        %v3257 = vor.u32 %v3253, %v3256
        %v3258 = vrot.slane %v3257, 4
        %v3260 = vshll.u32 %v3199, 16
        %v3262 = vrot.slane %v3260, 5
        %v3263 = vsel %vm532, %v3258, %v3262
        %v3265 = vshrl.u32 %v3200, 16
        %v3267 = vrot.slane %v3265, 4
        %v3268 = vshll.u32 %v3200, 16
        %v3270 = vrot.slane %v3268, 5
        %v3271 = vor.u32 %v3267, %v3270
        %v3272 = vrot.slane %v3271, 4
        %v3274 = vshll.u32 %v3201, 16
        %v3276 = vrot.slane %v3274, 5
        %v3277 = vsel %vm532, %v3272, %v3276
        %v3279 = vshrl.u32 %v3202, 16
        %v3281 = vrot.slane %v3279, 4
        %v3282 = vshll.u32 %v3202, 16
        %v3284 = vrot.slane %v3282, 5
        %v3285 = vor.u32 %v3281, %v3284
        %v3286 = vrot.slane %v3285, 4
        %v3288 = vshll.u32 %v3203, 16
        %v3290 = vrot.slane %v3288, 5
        %v3291 = vsel %vm532, %v3286, %v3290
        %v3293 = vshrl.u32 %v3204, 16
        %v3295 = vrot.slane %v3293, 4
        %v3296 = vshll.u32 %v3204, 16
        %v3298 = vrot.slane %v3296, 5
        %v3299 = vor.u32 %v3295, %v3298
        %v3300 = vrot.slane %v3299, 4
        %v3302 = vshll.u32 %v3205, 16
        %v3304 = vrot.slane %v3302, 5
        %v3305 = vsel %vm532, %v3300, %v3304
        %v3307 = vshrl.u32 %v3206, 16
        %v3309 = vrot.slane %v3307, 4
        %v3310 = vshll.u32 %v3206, 16
        %v3312 = vrot.slane %v3310, 5
        %v3313 = vor.u32 %v3309, %v3312
        %v3314 = vrot.slane %v3313, 4
        %v3316 = vshll.u32 %v3207, 16
        %v3318 = vrot.slane %v3316, 5
        %v3319 = vsel %vm532, %v3314, %v3318
        %v3320 = vld [vmem:[#allocation2 + $0x1e0] sm:$0xf]
        %v3321 = vld [vmem:[#allocation2 + $0x1e4] sm:$0xf]
        %v3322 = vld [vmem:[#allocation2 + $0x1e8] sm:$0xf]
        %v3323 = vld [vmem:[#allocation2 + $0x1ec] sm:$0xf]
        %v3324 = vld [vmem:[#allocation2 + $0x1f0] sm:$0xf]
        %v3325 = vld [vmem:[#allocation2 + $0x1f4] sm:$0xf]
        %v3326 = vld [vmem:[#allocation2 + $0x1f8] sm:$0xf]
        %v3327 = vld [vmem:[#allocation2 + $0x1fc] sm:$0xf]
        %v3328 = vunpack.c.l.b16 %v3221
        %v3329 = vunpack.c.l.b16 %v3235
        %v3330 = vunpack.c.l.b16 %v3249
        %v3331 = vunpack.c.l.b16 %v3263
        %v3332 = vunpack.c.l.b16 %v3277
        %v3333 = vunpack.c.l.b16 %v3291
        %v3334 = vunpack.c.l.b16 %v3305
        %v3335 = vunpack.c.l.b16 %v3319
        %v3336 = vpack.c.b16 %v3329, %v3328
        %v3337 = vpack.c.b16 %v3331, %v3330
        %v3338 = vpack.c.b16 %v3333, %v3332
        %v3339 = vpack.c.b16 %v3335, %v3334
        %v3348 = vunpack.c.l.b16 %v3320
        %v3349 = vunpack.c.l.b16 %v3321
        %v3350 = vunpack.c.l.b16 %v3322
        %v3351 = vunpack.c.l.b16 %v3323
        %v3352 = vunpack.c.l.b16 %v3324
        %v3353 = vunpack.c.l.b16 %v3325
        %v3354 = vunpack.c.l.b16 %v3326
        %v3355 = vunpack.c.l.b16 %v3327
        %v3356 = vpack.c.b16 %v3349, %v3348
        %v3357 = vpack.c.b16 %v3351, %v3350
        %v3358 = vpack.c.b16 %v3353, %v3352
        %v3359 = vpack.c.b16 %v3355, %v3354
        %v3365 = vsel %vm315, %v3336, 0
        %v3368 = vsel %vm315, %v3337, 0
        %v3371 = vsel %vm315, %v3338, 0
        %v3374 = vsel %vm315, %v3339, 0
        %3376 = vmatprep.subr.bf16.mxu0 0
        %3377 = vmatpush1.bf16.msra.mxu0 0
        %3378 = vmatprep.subr.bf16.mxu0 0
        %3379 = vmatpush1.bf16.msra.mxu0 0
        %3380 = vmatprep.subr.bf16.mxu0 0
        %3381 = vmatpush1.bf16.msra.mxu0 0
        %3382 = vmatprep.subr.bf16.mxu0 0
        %3383 = vmatpush1.bf16.msra.mxu0 0
        %3384 = vmatprep.subr.bf16.mxu0 0
        %3385 = vmatpush1.bf16.msra.mxu0 %v3359
        %3386 = vmatprep.subr.bf16.mxu0 0
        %3387 = vmatpush1.bf16.msra.mxu0 %v3358
        %3388 = vmatprep.subr.bf16.mxu0 0
        %3389 = vmatpush1.bf16.msra.mxu0 %v3357
        %3390 = vmatprep.subr.bf16.mxu0 0
        %3391 = vmatpush1.bf16.msra.mxu0 %v3356
        %3392 = vmatprep.subr.bf16.mxu0 0
        %3393 = vmatpush2.bf16.msra.mxu0 0
        %3394 = vmatprep.subr.bf16.mxu0 0
        %3395 = vmatpush2.bf16.msra.mxu0 0
        %3396 = vmatprep.subr.bf16.mxu0 0
        %3397 = vmatpush2.bf16.msra.mxu0 0
        %3398 = vmatprep.subr.bf16.mxu0 0
        %3399 = vmatpush2.bf16.msra.mxu0 0
        %3400 = vmatprep.subr.bf16.mxu0 0
        %3401 = vmatpush2.bf16.msra.mxu0 0
        %3402 = vmatprep.subr.bf16.mxu0 0
        %3403 = vmatpush2.bf16.msra.mxu0 0
        %3404 = vmatprep.subr.bf16.mxu0 0
        %3405 = vmatpush2.bf16.msra.mxu0 0
        %3406 = vmatprep.subr.bf16.mxu0 0
        %3407 = vmatpush2.bf16.msra.mxu0 0
        %3408 = vmatprep.mubr.bf16.mxu0 0
        %3409 = vmatmul.mubr.bf16.gmra.mxu0 %v3365
        %v3410 = vpop.f32.mrf.mxu0
        %v3411 = vadd.f32 0.0, %v3410
        %v3412 = vpop.f32.mrf.mxu0
        %v3413 = vpop.f32.mrf.mxu0
        %v3414 = vadd.f32 0.0, %v3413
        %v3415 = vpop.f32.mrf.mxu0
        %3416 = vmatprep.mubr.bf16.mxu0 0
        %3417 = vmatmul.mubr.bf16.gmra.mxu0 %v3368
        %v3418 = vpop.f32.mrf.mxu0
        %v3419 = vadd.f32 0.0, %v3418
        %v3420 = vpop.f32.mrf.mxu0
        %v3421 = vpop.f32.mrf.mxu0
        %v3422 = vadd.f32 0.0, %v3421
        %v3423 = vpop.f32.mrf.mxu0
        %3424 = vmatprep.mubr.bf16.mxu0 0
        %3425 = vmatmul.mubr.bf16.gmra.mxu0 %v3371
        %v3426 = vpop.f32.mrf.mxu0
        %v3427 = vadd.f32 0.0, %v3426
        %v3428 = vpop.f32.mrf.mxu0
        %v3429 = vpop.f32.mrf.mxu0
        %v3430 = vadd.f32 0.0, %v3429
        %v3431 = vpop.f32.mrf.mxu0
        %3432 = vmatprep.mubr.bf16.mxu0 0
        %3433 = vmatmul.mubr.bf16.gmra.mxu0 %v3374
        %v3434 = vpop.f32.mrf.mxu0
        %v3435 = vadd.f32 0.0, %v3434
        %v3436 = vpop.f32.mrf.mxu0
        %v3437 = vpop.f32.mrf.mxu0
        %v3438 = vadd.f32 0.0, %v3437
        %v3439 = vpop.f32.mrf.mxu0
        %3440 = vdwg.mxu0
        %v3441 = vadd.f32 %v3184, %v3411
        %v3442 = vadd.f32 %v3185, %v3414
        %v3443 = vadd.f32 %v3186, %v3419
        %v3444 = vadd.f32 %v3187, %v3422
        %v3445 = vadd.f32 %v3188, %v3427
        %v3446 = vadd.f32 %v3189, %v3430
        %v3447 = vadd.f32 %v3190, %v3435
        %v3448 = vadd.f32 %v3191, %v3438
        %v3449 = vld [vmem:[#allocation4] sm:$0x1]
        %v3451 = vlaneseq
        %v3452 = vshrl.u32 %v3451, 7
        %v3453 = vsub.s32 0, %v3452
        %v3454 = vrot.slane %v3449, %v3453
        %v3456 = vadd.f32 %v3441, %v3454
        %v3457 = vadd.f32 %v3442, %v3454
        %v3458 = vadd.f32 %v3443, %v3454
        %v3459 = vadd.f32 %v3444, %v3454
        %v3460 = vadd.f32 %v3445, %v3454
        %v3461 = vadd.f32 %v3446, %v3454
        %v3462 = vadd.f32 %v3447, %v3454
        %v3463 = vadd.f32 %v3448, %v3454
        %v3464 = vpack.c.bf16 %v3457, %v3456
        %v3465 = vpack.c.bf16 %v3459, %v3458
        %v3466 = vpack.c.bf16 %v3461, %v3460
        %v3467 = vpack.c.bf16 %v3463, %v3462
        %v3472 = vunpack.c.l.b16 %v3464
        %v3473 = vunpack.c.h.b16 %v3464
        %v3474 = vunpack.c.l.b16 %v3465
        %v3475 = vunpack.c.h.b16 %v3465
        %v3476 = vunpack.c.l.b16 %v3466
        %v3477 = vunpack.c.h.b16 %v3466
        %v3478 = vunpack.c.l.b16 %v3467
        %v3479 = vunpack.c.h.b16 %v3467
        %v3480 = vpack.c.b16 %v3472, %v3472
        %v3481 = vpack.c.b16 %v3473, %v3473
        %v3482 = vpack.c.b16 %v3474, %v3474
        %v3483 = vpack.c.b16 %v3475, %v3475
        %v3484 = vpack.c.b16 %v3476, %v3476
        %v3485 = vpack.c.b16 %v3477, %v3477
        %v3486 = vpack.c.b16 %v3478, %v3478
        %v3487 = vpack.c.b16 %v3479, %v3479
        %3496 = vst [vmem:[%s232] sm:$0xf] %v3480
        %3497 = vst [vmem:[%s232 + $0x4] sm:$0xf] %v3481
        %3498 = vst [vmem:[%s232 + $0x8] sm:$0xf] %v3482
        %3499 = vst [vmem:[%s232 + $0xc] sm:$0xf] %v3483
        %3500 = vst [vmem:[%s232 + $0x10] sm:$0xf] %v3484
        %3501 = vst [vmem:[%s232 + $0x14] sm:$0xf] %v3485
        %3502 = vst [vmem:[%s232 + $0x18] sm:$0xf] %v3486
        %3503 = vst [vmem:[%s232 + $0x1c] sm:$0xf] %v3487
        %v3504 = vadd.f32 %v3456, %v3457
        %v3505 = vadd.f32 %v3504, %v3458
        %v3506 = vadd.f32 %v3505, %v3459
        %v3507 = vadd.f32 %v3506, %v3460
        %v3508 = vadd.f32 %v3507, %v3461
        %v3509 = vadd.f32 %v3508, %v3462
        %v3510 = vadd.f32 %v3509, %v3463
        %v3511 = vrot.slane %v3510, 4
        %v3512 = vadd.f32 %v3510, %v3511
        %v3513 = vrot.slane %v3512, 2
        %v3514 = vadd.f32 %v3512, %v3513
        %v3515 = vrot.slane %v3514, 1
        %v3516 = vadd.f32 %v3514, %v3515
        %3517 = vst [vmem:[%s236] sm:$0x1] %v3516
        %v3518 = vmul.f32 %v3456, %v3456
        %v3519 = vmul.f32 %v3457, %v3457
        %v3520 = vmul.f32 %v3458, %v3458
        %v3521 = vmul.f32 %v3459, %v3459
        %v3522 = vmul.f32 %v3460, %v3460
        %v3523 = vmul.f32 %v3461, %v3461
        %v3524 = vmul.f32 %v3462, %v3462
        %v3525 = vmul.f32 %v3463, %v3463
        %v3526 = vadd.f32 %v3518, %v3519
        %v3527 = vadd.f32 %v3526, %v3520
        %v3528 = vadd.f32 %v3527, %v3521
        %v3529 = vadd.f32 %v3528, %v3522
        %v3530 = vadd.f32 %v3529, %v3523
        %v3531 = vadd.f32 %v3530, %v3524
        %v3532 = vadd.f32 %v3531, %v3525
        %v3533 = vrot.slane %v3532, 4
        %v3534 = vadd.f32 %v3532, %v3533
        %v3535 = vrot.slane %v3534, 2
        %v3536 = vadd.f32 %v3534, %v3535
        %v3537 = vrot.slane %v3536, 1
        %v3538 = vadd.f32 %v3536, %v3537
        %3539 = vst [vmem:[%s236 + $0x1] sm:$0x1] %v3538
        %p3540 = scmp.lt.s32.totalorder %s18, 1
        %s3541 = scalar_select %p3540, %s18, 1
        %s3542 = smul.addr %s3541, 8
        %s3543 = smul.addr %s3542, 4
        %s3544 = scalar_lea.vmem %s3, %s3543
        %p3545 = scmp.lt.s32.totalorder %s18, 1
        %s3546 = scalar_select %p3545, %s18, 1
        %s3547 = smul.addr %s3546, 2
        %s3548 = scalar_lea.vmem %s4, %s3547
        // Predicated region
        $region41: #{discriminator_forward.4} parent=31 // pred_check
          %p3549 = pneg %p104
        $region42: #{discriminator_forward.4} parent=31 // pred_check_branch
          %3551 = sbr.rel (%p3549) target = $region44
        $region43: #{discriminator_forward.4} parent=31 // pred_region
          _
        $region44: #{discriminator_forward.4} parent=31 // pred_fallthru
          _
        // Predicated region
        $region45: #{discriminator_forward.4} parent=31 // pred_check
          %p3552 = pneg %p130
        $region46: #{discriminator_forward.4} parent=31 // pred_check_branch
          %3554 = sbr.rel (%p3552) target = $region48
        $region47: #{discriminator_forward.4} parent=31 // pred_region
          _
        $region48: #{discriminator_forward.4} parent=31 // pred_fallthru
          _
      $region32: #{discriminator_forward.4} parent=5 // pred_fallthru
        _
      %p3555 = scmp.le.s32.totalorder 2, %s13
      // Predicated region
      $region49: #{discriminator_forward.4} parent=5 // pred_check
        %p3556 = pneg %p3555
      $region50: #{discriminator_forward.4} parent=5 // pred_check_branch
        %3558 = sbr.rel (%p3556) target = $region52
      $region51: #{discriminator_forward.4} parent=5 // pred_region
        %s3559 = ssub.s32 %s13, 2
        // Predicated region
        $region53: #{discriminator_forward.4} parent=51 // pred_check
          %p3560 = pneg %p110
        $region54: #{discriminator_forward.4} parent=51 // pred_check_branch
          %3562 = sbr.rel (%p3560) target = $region56
        $region55: #{discriminator_forward.4} parent=51 // pred_region
          %p3563 = scmp.lt.s32.totalorder %s19, 1
          %s3564 = scalar_select %p3563, %s19, 1
          %s3565 = smul.addr %s3564, 8
          %s3566 = smul.addr %s3565, 4
          %s3567 = scalar_lea.vmem %s3, %s3566
        $region56: #{discriminator_forward.4} parent=51 // pred_fallthru
          _
        // Predicated region
        $region57: #{discriminator_forward.4} parent=51 // pred_check
          %p3568 = pneg %p136
        $region58: #{discriminator_forward.4} parent=51 // pred_check_branch
          %3570 = sbr.rel (%p3568) target = $region60
        $region59: #{discriminator_forward.4} parent=51 // pred_region
          %p3571 = scmp.lt.s32.totalorder %s19, 1
          %s3572 = scalar_select %p3571, %s19, 1
          %s3573 = smul.addr %s3572, 2
          %s3574 = scalar_lea.vmem %s4, %s3573
        $region60: #{discriminator_forward.4} parent=51 // pred_fallthru
          _
      $region52: #{discriminator_forward.4} parent=5 // pred_fallthru
        _
    $region6: #{discriminator_forward.4} parent=1 // loop_footer
      %s17 = sadd.s32 1, %s13
    $region7: #{discriminator_forward.4} parent=1 // loop_footer_branch
      %12 = sbr.rel target = $region3
    $region8: #{discriminator_forward.4} parent=1 // loop_exit
      _
    %3575 = vsyncpa [#allocation3], 1
    %s3576 = scalar_lea.sflag [#allocation3], 1
    %3577 = vsyncpa %s3576, 1
    %3578 = vsyncpa [#allocation5], 1

// kernel: discriminator_forward.5
$region0: #{discriminator_forward.5}
  #allocation0 [shape = 'u32[]', space=smem, size = 0x4, offset = 0x4, fixed_abs, tag = 'smem constant byte address 0x4 - core index']
  #allocation1 [shape = 'u32[144,128]{1,0:T(1,128)}', space=vmem, size = 0x12000, scoped, tag = 'internal scratch']
  #allocation2 [shape = 'f32[2,1024]{1,0:T(2,128)}', space=vmem, size = 0x2000, scoped, tag = 'scratch operand']
  %s0 = inlined_call_operand.vmem [shape: bf16[2,8192], index: 0, kind: input, shape index: {}]
  %s1 = inlined_call_operand.vmem [shape: f32[1,8192], index: 1, kind: input, shape index: {}]
  %s2 = inlined_call_operand.vmem [shape: f32[1,8192], index: 2, kind: input, shape index: {}]
  %s3 = inlined_call_operand.hbm [shape: s8[8192,1024], index: 3, kind: input, shape index: {}]
  %s4 = inlined_call_operand.hbm [shape: f32[1,1024], index: 4, kind: input, shape index: {}]
  %s5 = inlined_call_operand.hbm [shape: f32[1,1024], index: 5, kind: input, shape index: {}]
  %s6 = inlined_call_operand.hbm [shape: f32[1,1024], index: 6, kind: input, shape index: {}]
  %s7 = inlined_call_operand.hbm [shape: f32[1,1024], index: 7, kind: input, shape index: {}]
  %s8 = inlined_call_operand.hbm [shape: bf16[1024,128], index: 8, kind: input, shape index: {}]
  %s9 = inlined_call_operand.hbm [shape: f32[1,128], index: 9, kind: input, shape index: {}]
  %s10 = inlined_call_operand.vmem [shape: f32[2,128], index: 10, kind: output, shape index: {}]
  %s11 = sld [smem:[#allocation0]]
  $region109: #{discriminator_forward.5} parent=0
    _
  %s13 = ssub.s32 1, %s11
  %s14 = scalar_select 0, %s13, %s11
  $region1: #{discriminator_forward.5} parent=0
    #allocation3 [shape = 'u8[4194304]{0}', space=vmem, size = 0x400000, scoped, tag = 'input window, operand 3']
    #allocation4 [shape = 's32[2]{0}', space=sflag, size = 0x8, scoped, tag = 'scoped memory for discriminator_forward.5']
    #allocation5 [shape = 'u8[4096]{0}', space=vmem, size = 0x1000, scoped, tag = 'input window, operand 4, single buffered']
    #allocation6 [shape = 's32[1]{0}', space=sflag, size = 0x4, scoped, tag = 'scoped memory for discriminator_forward.5']
    #allocation7 [shape = 'u8[4096]{0}', space=vmem, size = 0x1000, scoped, tag = 'input window, operand 5, single buffered']
    #allocation8 [shape = 'u8[4096]{0}', space=vmem, size = 0x1000, scoped, tag = 'input window, operand 6, single buffered']
    #allocation9 [shape = 's32[1]{0}', space=sflag, size = 0x4, scoped, tag = 'scoped memory for discriminator_forward.5']
    #allocation10 [shape = 'u8[4096]{0}', space=vmem, size = 0x1000, scoped, tag = 'input window, operand 7, single buffered']
    #allocation11 [shape = 'u8[262144]{0}', space=vmem, size = 0x40000, scoped, tag = 'input window, operand 8, single buffered']
    #allocation12 [shape = 's32[1]{0}', space=sflag, size = 0x4, scoped, tag = 'scoped memory for discriminator_forward.5']
    #allocation13 [shape = 'u8[512]{0}', space=vmem, size = 0x400, scoped, tag = 'input window, operand 9, single buffered']
    %15 = vsyncpa [#allocation4], 0
    %s16 = scalar_lea.sflag [#allocation4], 1
    %17 = vsyncpa %s16, 0
    %18 = vsyncpa [#allocation6], 0
    %19 = vsyncpa [#allocation9], 0
    %20 = vsyncpa [#allocation12], 0
    loop: start=0, step=1, limit=6
    $region2: #{discriminator_forward.5} parent=1 // loop_pre_header
      _
    $region3: #{discriminator_forward.5} parent=1 // loop_header
      %s22 = sphi 0, %s26
      %p23 = scmp.ge.s32.totalorder %s22, 6
      %s32 = sphi 0, %s34
      %s35 = sphi 0, %s32
      %s36 = sphi 0, %s35
      %s52 = sphi 0, %s36
      %s58 = sphi 0, %s60
      %s61 = sphi 0, %s58
      %s62 = sphi 0, %s61
      %s78 = sphi 0, %s62
      %s84 = sphi 0, %s86
      %s87 = sphi 0, %s84
      %s88 = sphi 0, %s87
      %s104 = sphi 0, %s88
      %s110 = sphi 0, %s112
      %s113 = sphi 0, %s110
      %s114 = sphi 0, %s113
      %s130 = sphi 0, %s114
      %s134 = sphi 0, %s134
      %s136 = sphi 0, %s134
      %s137 = sphi 0, %s136
      %s151 = sphi 0, %s137
      %s155 = sphi 0, %s155
      %s157 = sphi 0, %s155
      %s158 = sphi 0, %s157
      %s172 = sphi 0, %s158
      %s176 = sphi 0, %s176
      %s178 = sphi 0, %s176
      %s179 = sphi 0, %s178
      %s193 = sphi 0, %s179
      %s197 = sphi 0, %s197
      %s199 = sphi 0, %s197
      %s200 = sphi 0, %s199
      %s214 = sphi 0, %s200
      %s218 = sphi 0, %s218
      %s220 = sphi 0, %s218
      %s221 = sphi 0, %s220
      %s235 = sphi 0, %s221
      %s239 = sphi 0, %s239
      %s241 = sphi 0, %s239
      %s242 = sphi 0, %s241
      %s256 = sphi 0, %s242
      %s260 = sphi 0, %s260
      %s262 = sphi 0, %s260
      %s263 = sphi 0, %s262
      %s277 = sphi 0, %s263
    $region4: #{discriminator_forward.5} parent=1 // loop_header_branch
      %25 = sbr.rel (%p23) target = $region8
    $region5: #{discriminator_forward.5} parent=1 // loop_body
      %s27 = ssub.s32 %s22, 1
      %s28 = ssub.s32 %s22, 2
      %s29 = sadd.s32 %s22, 1
      %s30 = ssub.s32 %s22, %s29
      %p31 = scmp.eq.s32.totalorder %s30, 0
      %s33 = sadd.s32 %s32, 1
      %s34 = scalar_select %p31, %s32, %s33
      %p37 = pneg %p31
      %p38 = scmp.eq.s32.totalorder %s22, 3
      %p39 = por %p37, %p38
      %p40 = scmp.ne.s32.totalorder %s32, %s35
      %p41 = scmp.eq.s32.totalorder %s22, 0
      %p42 = por %p40, %p41
      %p43 = scmp.ne.s32.totalorder %s32, %s35
      %p44 = scmp.eq.s32.totalorder %s27, 3
      %p45 = por %p43, %p44
      %p46 = scmp.ne.s32.totalorder %s35, %s36
      %p47 = scmp.eq.s32.totalorder %s27, 0
      %p48 = por %p46, %p47
      %p49 = scmp.ne.s32.totalorder %s35, %s36
      %p50 = scmp.eq.s32.totalorder %s28, 3
      %p51 = por %p49, %p50
      %p53 = scmp.ne.s32.totalorder %s36, %s52
      %p54 = scmp.eq.s32.totalorder %s28, 0
      %p55 = por %p53, %p54
      %s56 = ssub.s32 %s22, %s29
      %p57 = scmp.eq.s32.totalorder %s56, 0
      %s59 = sadd.s32 %s58, 1
      %s60 = scalar_select %p57, %s58, %s59
      %p63 = pneg %p57
      %p64 = scmp.eq.s32.totalorder %s22, 3
      %p65 = por %p63, %p64
      %p66 = scmp.ne.s32.totalorder %s58, %s61
      %p67 = scmp.eq.s32.totalorder %s22, 0
      %p68 = por %p66, %p67
      %p69 = scmp.ne.s32.totalorder %s58, %s61
      %p70 = scmp.eq.s32.totalorder %s27, 3
      %p71 = por %p69, %p70
      %p72 = scmp.ne.s32.totalorder %s61, %s62
      %p73 = scmp.eq.s32.totalorder %s27, 0
      %p74 = por %p72, %p73
      %p75 = scmp.ne.s32.totalorder %s61, %s62
      %p76 = scmp.eq.s32.totalorder %s28, 3
      %p77 = por %p75, %p76
      %p79 = scmp.ne.s32.totalorder %s62, %s78
      %p80 = scmp.eq.s32.totalorder %s28, 0
      %p81 = por %p79, %p80
      %s82 = ssub.s32 %s22, %s29
      %p83 = scmp.eq.s32.totalorder %s82, 0
      %s85 = sadd.s32 %s84, 1
      %s86 = scalar_select %p83, %s84, %s85
      %p89 = pneg %p83
      %p90 = scmp.eq.s32.totalorder %s22, 3
      %p91 = por %p89, %p90
      %p92 = scmp.ne.s32.totalorder %s84, %s87
      %p93 = scmp.eq.s32.totalorder %s22, 0
      %p94 = por %p92, %p93
      %p95 = scmp.ne.s32.totalorder %s84, %s87
      %p96 = scmp.eq.s32.totalorder %s27, 3
      %p97 = por %p95, %p96
      %p98 = scmp.ne.s32.totalorder %s87, %s88
      %p99 = scmp.eq.s32.totalorder %s27, 0
      %p100 = por %p98, %p99
      %p101 = scmp.ne.s32.totalorder %s87, %s88
      %p102 = scmp.eq.s32.totalorder %s28, 3
      %p103 = por %p101, %p102
      %p105 = scmp.ne.s32.totalorder %s88, %s104
      %p106 = scmp.eq.s32.totalorder %s28, 0
      %p107 = por %p105, %p106
      %s108 = ssub.s32 %s22, %s29
      %p109 = scmp.eq.s32.totalorder %s108, 0
      %s111 = sadd.s32 %s110, 1
      %s112 = scalar_select %p109, %s110, %s111
      %p115 = pneg %p109
      %p116 = scmp.eq.s32.totalorder %s22, 3
      %p117 = por %p115, %p116
      %p118 = scmp.ne.s32.totalorder %s110, %s113
      %p119 = scmp.eq.s32.totalorder %s22, 0
      %p120 = por %p118, %p119
      %p121 = scmp.ne.s32.totalorder %s110, %s113
      %p122 = scmp.eq.s32.totalorder %s27, 3
      %p123 = por %p121, %p122
      %p124 = scmp.ne.s32.totalorder %s113, %s114
      %p125 = scmp.eq.s32.totalorder %s27, 0
      %p126 = por %p124, %p125
      %p127 = scmp.ne.s32.totalorder %s113, %s114
      %p128 = scmp.eq.s32.totalorder %s28, 3
      %p129 = por %p127, %p128
      %p131 = scmp.ne.s32.totalorder %s114, %s130
      %p132 = scmp.eq.s32.totalorder %s28, 0
      %p133 = por %p131, %p132
      %s135 = sadd.s32 %s134, 1
      %p138 = scmp.eq.s32.totalorder %s22, 3
      %p139 = scmp.ne.s32.totalorder %s134, %s136
      %p140 = scmp.eq.s32.totalorder %s22, 0
      %p141 = por %p139, %p140
      %p142 = scmp.ne.s32.totalorder %s134, %s136
      %p143 = scmp.eq.s32.totalorder %s27, 3
      %p144 = por %p142, %p143
      %p145 = scmp.ne.s32.totalorder %s136, %s137
      %p146 = scmp.eq.s32.totalorder %s27, 0
      %p147 = por %p145, %p146
      %p148 = scmp.ne.s32.totalorder %s136, %s137
      %p149 = scmp.eq.s32.totalorder %s28, 3
      %p150 = por %p148, %p149
      %p152 = scmp.ne.s32.totalorder %s137, %s151
      %p153 = scmp.eq.s32.totalorder %s28, 0
      %p154 = por %p152, %p153
      %s156 = sadd.s32 %s155, 1
      %p159 = scmp.eq.s32.totalorder %s22, 3
      %p160 = scmp.ne.s32.totalorder %s155, %s157
      %p161 = scmp.eq.s32.totalorder %s22, 0
      %p162 = por %p160, %p161
      %p163 = scmp.ne.s32.totalorder %s155, %s157
      %p164 = scmp.eq.s32.totalorder %s27, 3
      %p165 = por %p163, %p164
      %p166 = scmp.ne.s32.totalorder %s157, %s158
      %p167 = scmp.eq.s32.totalorder %s27, 0
      %p168 = por %p166, %p167
      %p169 = scmp.ne.s32.totalorder %s157, %s158
      %p170 = scmp.eq.s32.totalorder %s28, 3
      %p171 = por %p169, %p170
      %p173 = scmp.ne.s32.totalorder %s158, %s172
      %p174 = scmp.eq.s32.totalorder %s28, 0
      %p175 = por %p173, %p174
      %s177 = sadd.s32 %s176, 1
      %p180 = scmp.eq.s32.totalorder %s22, 3
      %p181 = scmp.ne.s32.totalorder %s176, %s178
      %p182 = scmp.eq.s32.totalorder %s22, 0
      %p183 = por %p181, %p182
      %p184 = scmp.ne.s32.totalorder %s176, %s178
      %p185 = scmp.eq.s32.totalorder %s27, 3
      %p186 = por %p184, %p185
      %p187 = scmp.ne.s32.totalorder %s178, %s179
      %p188 = scmp.eq.s32.totalorder %s27, 0
      %p189 = por %p187, %p188
      %p190 = scmp.ne.s32.totalorder %s178, %s179
      %p191 = scmp.eq.s32.totalorder %s28, 3
      %p192 = por %p190, %p191
      %p194 = scmp.ne.s32.totalorder %s179, %s193
      %p195 = scmp.eq.s32.totalorder %s28, 0
      %p196 = por %p194, %p195
      %s198 = sadd.s32 %s197, 1
      %p201 = scmp.eq.s32.totalorder %s22, 3
      %p202 = scmp.ne.s32.totalorder %s197, %s199
      %p203 = scmp.eq.s32.totalorder %s22, 0
      %p204 = por %p202, %p203
      %p205 = scmp.ne.s32.totalorder %s197, %s199
      %p206 = scmp.eq.s32.totalorder %s27, 3
      %p207 = por %p205, %p206
      %p208 = scmp.ne.s32.totalorder %s199, %s200
      %p209 = scmp.eq.s32.totalorder %s27, 0
      %p210 = por %p208, %p209
      %p211 = scmp.ne.s32.totalorder %s199, %s200
      %p212 = scmp.eq.s32.totalorder %s28, 3
      %p213 = por %p211, %p212
      %p215 = scmp.ne.s32.totalorder %s200, %s214
      %p216 = scmp.eq.s32.totalorder %s28, 0
      %p217 = por %p215, %p216
      %s219 = sadd.s32 %s218, 1
      %p222 = scmp.eq.s32.totalorder %s22, 3
      %p223 = scmp.ne.s32.totalorder %s218, %s220
      %p224 = scmp.eq.s32.totalorder %s22, 0
      %p225 = por %p223, %p224
      %p226 = scmp.ne.s32.totalorder %s218, %s220
      %p227 = scmp.eq.s32.totalorder %s27, 3
      %p228 = por %p226, %p227
      %p229 = scmp.ne.s32.totalorder %s220, %s221
      %p230 = scmp.eq.s32.totalorder %s27, 0
      %p231 = por %p229, %p230
      %p232 = scmp.ne.s32.totalorder %s220, %s221
      %p233 = scmp.eq.s32.totalorder %s28, 3
      %p234 = por %p232, %p233
      %p236 = scmp.ne.s32.totalorder %s221, %s235
      %p237 = scmp.eq.s32.totalorder %s28, 0
      %p238 = por %p236, %p237
      %s240 = sadd.s32 %s239, 1
      %p243 = scmp.eq.s32.totalorder %s22, 3
      %p244 = scmp.ne.s32.totalorder %s239, %s241
      %p245 = scmp.eq.s32.totalorder %s22, 0
      %p246 = por %p244, %p245
      %p247 = scmp.ne.s32.totalorder %s239, %s241
      %p248 = scmp.eq.s32.totalorder %s27, 3
      %p249 = por %p247, %p248
      %p250 = scmp.ne.s32.totalorder %s241, %s242
      %p251 = scmp.eq.s32.totalorder %s27, 0
      %p252 = por %p250, %p251
      %p253 = scmp.ne.s32.totalorder %s241, %s242
      %p254 = scmp.eq.s32.totalorder %s28, 3
      %p255 = por %p253, %p254
      %p257 = scmp.ne.s32.totalorder %s242, %s256
      %p258 = scmp.eq.s32.totalorder %s28, 0
      %p259 = por %p257, %p258
      %s261 = sadd.s32 %s260, 1
      %p264 = scmp.eq.s32.totalorder %s22, 3
      %p265 = scmp.ne.s32.totalorder %s260, %s262
      %p266 = scmp.eq.s32.totalorder %s22, 0
      %p267 = por %p265, %p266
      %p268 = scmp.ne.s32.totalorder %s260, %s262
      %p269 = scmp.eq.s32.totalorder %s27, 3
      %p270 = por %p268, %p269
      %p271 = scmp.ne.s32.totalorder %s262, %s263
      %p272 = scmp.eq.s32.totalorder %s27, 0
      %p273 = por %p271, %p272
      %p274 = scmp.ne.s32.totalorder %s262, %s263
      %p275 = scmp.eq.s32.totalorder %s28, 3
      %p276 = por %p274, %p275
      %p278 = scmp.ne.s32.totalorder %s263, %s277
      %p279 = scmp.eq.s32.totalorder %s28, 0
      %p280 = por %p278, %p279
      %p281 = scmp.le.s32.totalorder 1, %s22
      %p282 = scmp.lt.s32.totalorder %s22, 5
      %p283 = pnand %p281, %p282
      %p284 = pneg %p283
      // Predicated region
      $region9: #{discriminator_forward.5} parent=5 // pred_check
        _
      $region10: #{discriminator_forward.5} parent=5 // pred_check_branch
        %286 = sbr.rel (%p283) target = $region12
      $region11: #{discriminator_forward.5} parent=5 // pred_region
        %s287 = ssub.s32 %s22, 1
        // Predicated region
        $region13: #{discriminator_forward.5} parent=11 // pred_check
          %p288 = pneg %p147
        $region14: #{discriminator_forward.5} parent=11 // pred_check_branch
          %290 = sbr.rel (%p288) target = $region16
        $region15: #{discriminator_forward.5} parent=11 // pred_region
          %s292 = ssub.s32 128, 128
          %293 = vsyncadd [#allocation6], %s292
          %s295 = sshll.u32 [#allocation5], 4
          %s296 = int_to_ptr.vmem [resolvable:$true] %s295
          %298 = dma.hbm_to_vmem [thread:$0]  %s4, 128, %s296, [#allocation6]
        $region16: #{discriminator_forward.5} parent=11 // pred_fallthru
          _
        // Predicated region
        $region17: #{discriminator_forward.5} parent=11 // pred_check
          %p299 = pneg %p168
        $region18: #{discriminator_forward.5} parent=11 // pred_check_branch
          %301 = sbr.rel (%p299) target = $region20
        $region19: #{discriminator_forward.5} parent=11 // pred_region
          %s303 = ssub.s32 128, 128
          %304 = vsyncadd [#allocation6], %s303
          %s306 = sshll.u32 [#allocation7], 4
          %s307 = int_to_ptr.vmem [resolvable:$true] %s306
          %309 = dma.hbm_to_vmem [thread:$0]  %s5, 128, %s307, [#allocation6]
        $region20: #{discriminator_forward.5} parent=11 // pred_fallthru
          _
        // Predicated region
        $region21: #{discriminator_forward.5} parent=11 // pred_check
          %p310 = pneg %p189
        $region22: #{discriminator_forward.5} parent=11 // pred_check_branch
          %312 = sbr.rel (%p310) target = $region24
        $region23: #{discriminator_forward.5} parent=11 // pred_region
          %s314 = ssub.s32 128, 128
          %315 = vsyncadd [#allocation9], %s314
          %s317 = sshll.u32 [#allocation8], 4
          %s318 = int_to_ptr.vmem [resolvable:$true] %s317
          %320 = dma.hbm_to_vmem [thread:$0]  %s6, 128, %s318, [#allocation9]
        $region24: #{discriminator_forward.5} parent=11 // pred_fallthru
          _
        // Predicated region
        $region25: #{discriminator_forward.5} parent=11 // pred_check
          %p321 = pneg %p210
        $region26: #{discriminator_forward.5} parent=11 // pred_check_branch
          %323 = sbr.rel (%p321) target = $region28
        $region27: #{discriminator_forward.5} parent=11 // pred_region
          %s325 = ssub.s32 128, 128
          %326 = vsyncadd [#allocation9], %s325
          %s328 = sshll.u32 [#allocation10], 4
          %s329 = int_to_ptr.vmem [resolvable:$true] %s328
          %331 = dma.hbm_to_vmem [thread:$0]  %s7, 128, %s329, [#allocation9]
        $region28: #{discriminator_forward.5} parent=11 // pred_fallthru
          _
        // Predicated region
        $region29: #{discriminator_forward.5} parent=11 // pred_check
          %p332 = pneg %p231
        $region30: #{discriminator_forward.5} parent=11 // pred_check_branch
          %334 = sbr.rel (%p332) target = $region32
        $region31: #{discriminator_forward.5} parent=11 // pred_region
          %s336 = ssub.s32 8192, 8192
          %337 = vsyncadd [#allocation12], %s336
          %s338 = sshll.u32 [#allocation11], 4
          %s339 = int_to_ptr.vmem [resolvable:$true] %s338
          %344 = dma.hbm_to_vmem [thread:$0]  %s8, 8192, %s339, [#allocation12], 64, 64, 4
        $region32: #{discriminator_forward.5} parent=11 // pred_fallthru
          _
        // Predicated region
        $region33: #{discriminator_forward.5} parent=11 // pred_check
          %p345 = pneg %p252
        $region34: #{discriminator_forward.5} parent=11 // pred_check_branch
          %347 = sbr.rel (%p345) target = $region36
        $region35: #{discriminator_forward.5} parent=11 // pred_region
          %s349 = ssub.s32 16, 16
          %350 = vsyncadd [#allocation12], %s349
          %s352 = sshll.u32 [#allocation13], 4
          %s353 = int_to_ptr.vmem [resolvable:$true] %s352
          %355 = dma.hbm_to_vmem [thread:$0]  %s9, 16, %s353, [#allocation12]
        $region36: #{discriminator_forward.5} parent=11 // pred_fallthru
          _
      $region12: #{discriminator_forward.5} parent=5 // pred_fallthru
        _
      %p356 = scmp.lt.s32.totalorder %s22, 4
      // Predicated region
      $region37: #{discriminator_forward.5} parent=5 // pred_check
        %p357 = pneg %p356
      $region38: #{discriminator_forward.5} parent=5 // pred_check_branch
        %359 = sbr.rel (%p357) target = $region40
      $region39: #{discriminator_forward.5} parent=5 // pred_region
        // Predicated region
        $region41: #{discriminator_forward.5} parent=39 // pred_check
          %p360 = pneg %p42
        $region42: #{discriminator_forward.5} parent=39 // pred_check_branch
          %362 = sbr.rel (%p360) target = $region44
        $region43: #{discriminator_forward.5} parent=39 // pred_region
          %s363 = smul.u32 16, %s22
          %p364 = scmp.lt.s32.totalorder %s363, 63
          %s365 = scalar_select %p364, %s363, 63
          %s366 = scalar_lea.vmem %s0, %s365
          %s367 = smul.u32 16, %s22
        $region44: #{discriminator_forward.5} parent=39 // pred_fallthru
          _
        // Predicated region
        $region45: #{discriminator_forward.5} parent=39 // pred_check
          %p368 = pneg %p68
        $region46: #{discriminator_forward.5} parent=39 // pred_check_branch
          %370 = sbr.rel (%p368) target = $region48
        $region47: #{discriminator_forward.5} parent=39 // pred_region
          %s371 = smul.u32 16, %s22
          %p372 = scmp.lt.s32.totalorder %s371, 63
          %s373 = scalar_select %p372, %s371, 63
          %s374 = scalar_lea.vmem %s1, %s373
          %s375 = smul.u32 16, %s22
        $region48: #{discriminator_forward.5} parent=39 // pred_fallthru
          _
        // Predicated region
        $region49: #{discriminator_forward.5} parent=39 // pred_check
          %p376 = pneg %p94
        $region50: #{discriminator_forward.5} parent=39 // pred_check_branch
          %378 = sbr.rel (%p376) target = $region52
        $region51: #{discriminator_forward.5} parent=39 // pred_region
          %s379 = smul.u32 16, %s22
          %p380 = scmp.lt.s32.totalorder %s379, 63
          %s381 = scalar_select %p380, %s379, 63
          %s382 = scalar_lea.vmem %s2, %s381
          %s383 = smul.u32 16, %s22
        $region52: #{discriminator_forward.5} parent=39 // pred_fallthru
          _
        // Predicated region
        $region53: #{discriminator_forward.5} parent=39 // pred_check
          %p384 = pneg %p120
        $region54: #{discriminator_forward.5} parent=39 // pred_check_branch
          %386 = sbr.rel (%p384) target = $region56
        $region55: #{discriminator_forward.5} parent=39 // pred_region
          %s387 = sand.u32 %s110, 1
          %s388 = scalar_lea.sflag [#allocation4], %s387
          %s389 = sand.u32 %s110, 1
          %s390 = smul.addr %s389, 4096
          %s391 = scalar_lea.vmem [#allocation3], %s390
          %s392 = smul.u32 64, %s22
          %s394 = ssub.s32 65536, 65536
          %395 = vsyncadd %s388, %s394
          %s396 = smul.addr %s392, 8
          %s397 = smul.addr %s396, 128
          %s398 = scalar_lea.hbm %s3, %s397
          %s399 = sshll.u32 %s391, 4
          %s400 = int_to_ptr.vmem [resolvable:$true] %s399
          %405 = dma.hbm_to_vmem [thread:$0]  %s398, 65536, %s400, %s388, 1024, 1024, 64
        $region56: #{discriminator_forward.5} parent=39 // pred_fallthru
          _
      $region40: #{discriminator_forward.5} parent=5 // pred_fallthru
        _
      %p406 = scmp.le.s32.totalorder 1, %s22
      %p407 = scmp.lt.s32.totalorder %s22, 5
      %p408 = pnand %p406, %p407
      %p409 = pneg %p408
      // Predicated region
      $region57: #{discriminator_forward.5} parent=5 // pred_check
        _
      $region58: #{discriminator_forward.5} parent=5 // pred_check_branch
        %411 = sbr.rel (%p408) target = $region60
      $region59: #{discriminator_forward.5} parent=5 // pred_region
        %s412 = ssub.s32 %s22, 1
        %s413 = sand.u32 %s113, 1
        %s414 = scalar_lea.sflag [#allocation4], %s413
        %s415 = sand.u32 %s113, 1
        %s416 = smul.addr %s415, 4096
        %s417 = scalar_lea.vmem [#allocation3], %s416
        // Predicated region
        $region61: #{discriminator_forward.5} parent=59 // pred_check
          %p418 = pneg %p126
        $region62: #{discriminator_forward.5} parent=59 // pred_check_branch
          %420 = sbr.rel (%p418) target = $region64
        $region63: #{discriminator_forward.5} parent=59 // pred_region
          %421 = dma.done %s414, 65536
        $region64: #{discriminator_forward.5} parent=59 // pred_fallthru
          _
        // Predicated region
        $region65: #{discriminator_forward.5} parent=59 // pred_check
          %p422 = pneg %p147
        $region66: #{discriminator_forward.5} parent=59 // pred_check_branch
          %424 = sbr.rel (%p422) target = $region68
        $region67: #{discriminator_forward.5} parent=59 // pred_region
          %425 = dma.done [#allocation6], 128
        $region68: #{discriminator_forward.5} parent=59 // pred_fallthru
          _
        // Predicated region
        $region69: #{discriminator_forward.5} parent=59 // pred_check
          %p426 = pneg %p168
        $region70: #{discriminator_forward.5} parent=59 // pred_check_branch
          %428 = sbr.rel (%p426) target = $region72
        $region71: #{discriminator_forward.5} parent=59 // pred_region
          %429 = dma.done [#allocation6], 128
        $region72: #{discriminator_forward.5} parent=59 // pred_fallthru
          _
        // Predicated region
        $region73: #{discriminator_forward.5} parent=59 // pred_check
          %p430 = pneg %p189
        $region74: #{discriminator_forward.5} parent=59 // pred_check_branch
          %432 = sbr.rel (%p430) target = $region76
        $region75: #{discriminator_forward.5} parent=59 // pred_region
          %433 = dma.done [#allocation9], 128
        $region76: #{discriminator_forward.5} parent=59 // pred_fallthru
          _
        // Predicated region
        $region77: #{discriminator_forward.5} parent=59 // pred_check
          %p434 = pneg %p210
        $region78: #{discriminator_forward.5} parent=59 // pred_check_branch
          %436 = sbr.rel (%p434) target = $region80
        $region79: #{discriminator_forward.5} parent=59 // pred_region
          %437 = dma.done [#allocation9], 128
        $region80: #{discriminator_forward.5} parent=59 // pred_fallthru
          _
        // Predicated region
        $region81: #{discriminator_forward.5} parent=59 // pred_check
          %p438 = pneg %p231
        $region82: #{discriminator_forward.5} parent=59 // pred_check_branch
          %440 = sbr.rel (%p438) target = $region84
        $region83: #{discriminator_forward.5} parent=59 // pred_region
          %441 = dma.done [#allocation12], 8192
        $region84: #{discriminator_forward.5} parent=59 // pred_fallthru
          _
        // Predicated region
        $region85: #{discriminator_forward.5} parent=59 // pred_check
          %p442 = pneg %p252
        $region86: #{discriminator_forward.5} parent=59 // pred_check_branch
          %444 = sbr.rel (%p442) target = $region88
        $region87: #{discriminator_forward.5} parent=59 // pred_region
          %445 = dma.done [#allocation12], 16
        $region88: #{discriminator_forward.5} parent=59 // pred_fallthru
          _
        %s446 = smul.u32 16, %s27
        %p447 = scmp.lt.s32.totalorder %s446, 63
        %s448 = scalar_select %p447, %s446, 63
        %s449 = scalar_lea.vmem %s0, %s448
        %p450 = pneg %p48
        %p451 = pneg %p45
        %s452 = smul.u32 16, %s27
        %p453 = scmp.lt.s32.totalorder %s452, 63
        %s454 = scalar_select %p453, %s452, 63
        %s455 = scalar_lea.vmem %s1, %s454
        %p456 = pneg %p74
        %p457 = pneg %p71
        %s458 = smul.u32 16, %s27
        %p459 = scmp.lt.s32.totalorder %s458, 63
        %s460 = scalar_select %p459, %s458, 63
        %s461 = scalar_lea.vmem %s2, %s460
        %p462 = pneg %p100
        %p463 = pneg %p97
        %s464 = sand.u32 %s113, 1
        %s465 = scalar_lea.sflag [#allocation4], %s464
        %s466 = sand.u32 %s113, 1
        %s467 = smul.addr %s466, 4096
        %s468 = scalar_lea.vmem [#allocation3], %s467
        %p469 = pneg %p126
        %p470 = pneg %p123
        %p471 = pneg %p147
        %p472 = pneg %p144
        %p473 = pneg %p168
        %p474 = pneg %p165
        %p475 = pneg %p189
        %p476 = pneg %p186
        %p477 = pneg %p210
        %p478 = pneg %p207
        %p479 = pneg %p231
        %p480 = pneg %p228
        %p481 = pneg %p252
        %p482 = pneg %p249
        %p483 = pneg %p273
        %p484 = pneg %p270
        %s485 = smul.u32 16, %s27
        %p486 = scmp.lt.s32.totalorder %s485, 63
        %s487 = scalar_select %p486, %s485, 63
        %s488 = scalar_lea.vmem %s0, %s487
        %s489 = smul.u32 16, %s27
        %s490 = smul.u32 16, %s27
        %p491 = scmp.lt.s32.totalorder %s490, 63
        %s492 = scalar_select %p491, %s490, 63
        %s493 = scalar_lea.vmem %s1, %s492
        %s494 = smul.u32 16, %s27
        %s495 = smul.u32 16, %s27
        %p496 = scmp.lt.s32.totalorder %s495, 63
        %s497 = scalar_select %p496, %s495, 63
        %s498 = scalar_lea.vmem %s2, %s497
        %s499 = smul.u32 16, %s27
        %s500 = smul.u32 64, %s27
        %p502 = scmp.eq.s32.totalorder %s27, 0
        // Predicated region
        $region89: #{discriminator_forward.5} parent=59 // pred_check
          %p503 = pneg %p502
        $region90: #{discriminator_forward.5} parent=59 // pred_check_branch
          %505 = sbr.rel (%p503) target = $region92
        $region91: #{discriminator_forward.5} parent=59 // pred_region
          %506 = vst [vmem:[#allocation2] sm:$0xff] 0.0
          %507 = vst [vmem:[#allocation2 + $0x8] sm:$0xff] 0.0
        $region92: #{discriminator_forward.5} parent=59 // pred_fallthru
          _
        %v508 = vld [vmem:[%s488] sm:$0xff]
        %v509 = vld [vmem:[%s488 + $0x8] sm:$0xff]
        %v510 = vunpack.c.l.bf16 %v508
        %v511 = vunpack.c.h.bf16 %v508
        %v512 = vunpack.c.l.bf16 %v509
        %v513 = vunpack.c.h.bf16 %v509
        %v514 = vld [vmem:[%s493] sm:$0xff]
        %v515 = vld [vmem:[%s493 + $0x8] sm:$0xff]
        %v518 = vlaneseq
        %v519 = vshrl.u32 %v518, 7
        %v520 = vsub.s32 0, %v519
        %v521 = vrot.slane %v514, %v520
        %v522 = vlaneseq
        %v523 = vshrl.u32 %v522, 7
        %v524 = vsub.s32 1, %v523
        %v525 = vrot.slane %v514, %v524
        %v526 = vlaneseq
        %v527 = vshrl.u32 %v526, 7
        %v528 = vsub.s32 2, %v527
        %v529 = vrot.slane %v514, %v528
        %v530 = vlaneseq
        %v531 = vshrl.u32 %v530, 7
        %v532 = vsub.s32 3, %v531
        %v533 = vrot.slane %v514, %v532
        %v534 = vlaneseq
        %v535 = vshrl.u32 %v534, 7
        %v536 = vsub.s32 4, %v535
        %v537 = vrot.slane %v514, %v536
        %v538 = vlaneseq
        %v539 = vshrl.u32 %v538, 7
        %v540 = vsub.s32 5, %v539
        %v541 = vrot.slane %v514, %v540
        %v542 = vlaneseq
        %v543 = vshrl.u32 %v542, 7
        %v544 = vsub.s32 6, %v543
        %v545 = vrot.slane %v514, %v544
        %v546 = vlaneseq
        %v547 = vshrl.u32 %v546, 7
        %v548 = vsub.s32 7, %v547
        %v549 = vrot.slane %v514, %v548
        %v550 = vlaneseq
        %v551 = vshrl.u32 %v550, 7
        %v552 = vsub.s32 0, %v551
        %v553 = vrot.slane %v515, %v552
        %v554 = vlaneseq
        %v555 = vshrl.u32 %v554, 7
        %v556 = vsub.s32 1, %v555
        %v557 = vrot.slane %v515, %v556
        %v558 = vlaneseq
        %v559 = vshrl.u32 %v558, 7
        %v560 = vsub.s32 2, %v559
        %v561 = vrot.slane %v515, %v560
        %v562 = vlaneseq
        %v563 = vshrl.u32 %v562, 7
        %v564 = vsub.s32 3, %v563
        %v565 = vrot.slane %v515, %v564
        %v566 = vlaneseq
        %v567 = vshrl.u32 %v566, 7
        %v568 = vsub.s32 4, %v567
        %v569 = vrot.slane %v515, %v568
        %v570 = vlaneseq
        %v571 = vshrl.u32 %v570, 7
        %v572 = vsub.s32 5, %v571
        %v573 = vrot.slane %v515, %v572
        %v574 = vlaneseq
        %v575 = vshrl.u32 %v574, 7
        %v576 = vsub.s32 6, %v575
        %v577 = vrot.slane %v515, %v576
        %v578 = vlaneseq
        %v579 = vshrl.u32 %v578, 7
        %v580 = vsub.s32 7, %v579
        %v581 = vrot.slane %v515, %v580
        %v582 = vcombine.low %v521, %v525
        %v583 = vcombine.low %v529, %v533
        %v585 = vunpack.c.l.s4 1983009808
        %v586 = vunpack.c.0.s8 %v585
        %v587 = vlaneseq
        %v588 = vshrl.u32 %v587, 7
        %v589 = vsub.s32 %v586, %v588
        %v590 = vrot.slane %v582, %v589
        %v592 = vunpack.c.l.s4 1983009808
        %v593 = vunpack.c.0.s8 %v592
        %v594 = vlaneseq
        %v595 = vshrl.u32 %v594, 7
        %v596 = vsub.s32 %v593, %v595
        %v597 = vrot.slane %v583, %v596
        %v598 = vcombine.low %v590, %v597
        %v599 = vcombine.low %v537, %v541
        %v600 = vcombine.low %v545, %v549
        %v602 = vunpack.c.l.s4 1983009808
        %v603 = vunpack.c.0.s8 %v602
        %v604 = vlaneseq
        %v605 = vshrl.u32 %v604, 7
        %v606 = vsub.s32 %v603, %v605
        %v607 = vrot.slane %v599, %v606
        %v609 = vunpack.c.l.s4 1983009808
        %v610 = vunpack.c.0.s8 %v609
        %v611 = vlaneseq
        %v612 = vshrl.u32 %v611, 7
        %v613 = vsub.s32 %v610, %v612
        %v614 = vrot.slane %v600, %v613
        %v615 = vcombine.low %v607, %v614
        %v616 = vcombine.low %v553, %v557
        %v617 = vcombine.low %v561, %v565
        %v619 = vunpack.c.l.s4 1983009808
        %v620 = vunpack.c.0.s8 %v619
        %v621 = vlaneseq
        %v622 = vshrl.u32 %v621, 7
        %v623 = vsub.s32 %v620, %v622
        %v624 = vrot.slane %v616, %v623
        %v626 = vunpack.c.l.s4 1983009808
        %v627 = vunpack.c.0.s8 %v626
        %v628 = vlaneseq
        %v629 = vshrl.u32 %v628, 7
        %v630 = vsub.s32 %v627, %v629
        %v631 = vrot.slane %v617, %v630
        %v632 = vcombine.low %v624, %v631
        %v633 = vcombine.low %v569, %v573
        %v634 = vcombine.low %v577, %v581
        %v636 = vunpack.c.l.s4 1983009808
        %v637 = vunpack.c.0.s8 %v636
        %v638 = vlaneseq
        %v639 = vshrl.u32 %v638, 7
        %v640 = vsub.s32 %v637, %v639
        %v641 = vrot.slane %v633, %v640
        %v643 = vunpack.c.l.s4 1983009808
        %v644 = vunpack.c.0.s8 %v643
        %v645 = vlaneseq
        %v646 = vshrl.u32 %v645, 7
        %v647 = vsub.s32 %v644, %v646
        %v648 = vrot.slane %v634, %v647
        %v649 = vcombine.low %v641, %v648
        %v654 = vmul.f32 %v510, %v598
        %v655 = vmul.f32 %v511, %v615
        %v656 = vmul.f32 %v512, %v632
        %v657 = vmul.f32 %v513, %v649
        %v658 = vld [vmem:[%s498] sm:$0xff]
        %v659 = vld [vmem:[%s498 + $0x8] sm:$0xff]
        %v662 = vlaneseq
        %v663 = vshrl.u32 %v662, 7
        %v664 = vsub.s32 0, %v663
        %v665 = vrot.slane %v658, %v664
        %v666 = vlaneseq
        %v667 = vshrl.u32 %v666, 7
        %v668 = vsub.s32 1, %v667
        %v669 = vrot.slane %v658, %v668
        %v670 = vlaneseq
        %v671 = vshrl.u32 %v670, 7
        %v672 = vsub.s32 2, %v671
        %v673 = vrot.slane %v658, %v672
        %v674 = vlaneseq
        %v675 = vshrl.u32 %v674, 7
        %v676 = vsub.s32 3, %v675
        %v677 = vrot.slane %v658, %v676
        %v678 = vlaneseq
        %v679 = vshrl.u32 %v678, 7
        %v680 = vsub.s32 4, %v679
        %v681 = vrot.slane %v658, %v680
        %v682 = vlaneseq
        %v683 = vshrl.u32 %v682, 7
        %v684 = vsub.s32 5, %v683
        %v685 = vrot.slane %v658, %v684
        %v686 = vlaneseq
        %v687 = vshrl.u32 %v686, 7
        %v688 = vsub.s32 6, %v687
        %v689 = vrot.slane %v658, %v688
        %v690 = vlaneseq
        %v691 = vshrl.u32 %v690, 7
        %v692 = vsub.s32 7, %v691
        %v693 = vrot.slane %v658, %v692
        %v694 = vlaneseq
        %v695 = vshrl.u32 %v694, 7
        %v696 = vsub.s32 0, %v695
        %v697 = vrot.slane %v659, %v696
        %v698 = vlaneseq
        %v699 = vshrl.u32 %v698, 7
        %v700 = vsub.s32 1, %v699
        %v701 = vrot.slane %v659, %v700
        %v702 = vlaneseq
        %v703 = vshrl.u32 %v702, 7
        %v704 = vsub.s32 2, %v703
        %v705 = vrot.slane %v659, %v704
        %v706 = vlaneseq
        %v707 = vshrl.u32 %v706, 7
        %v708 = vsub.s32 3, %v707
        %v709 = vrot.slane %v659, %v708
        %v710 = vlaneseq
        %v711 = vshrl.u32 %v710, 7
        %v712 = vsub.s32 4, %v711
        %v713 = vrot.slane %v659, %v712
        %v714 = vlaneseq
        %v715 = vshrl.u32 %v714, 7
        %v716 = vsub.s32 5, %v715
        %v717 = vrot.slane %v659, %v716
        %v718 = vlaneseq
        %v719 = vshrl.u32 %v718, 7
        %v720 = vsub.s32 6, %v719
        %v721 = vrot.slane %v659, %v720
        %v722 = vlaneseq
        %v723 = vshrl.u32 %v722, 7
        %v724 = vsub.s32 7, %v723
        %v725 = vrot.slane %v659, %v724
        %v726 = vcombine.low %v665, %v669
        %v727 = vcombine.low %v673, %v677
        %v729 = vunpack.c.l.s4 1983009808
        %v730 = vunpack.c.0.s8 %v729
        %v731 = vlaneseq
        %v732 = vshrl.u32 %v731, 7
        %v733 = vsub.s32 %v730, %v732
        %v734 = vrot.slane %v726, %v733
        %v736 = vunpack.c.l.s4 1983009808
        %v737 = vunpack.c.0.s8 %v736
        %v738 = vlaneseq
        %v739 = vshrl.u32 %v738, 7
        %v740 = vsub.s32 %v737, %v739
        %v741 = vrot.slane %v727, %v740
        %v742 = vcombine.low %v734, %v741
        %v743 = vcombine.low %v681, %v685
        %v744 = vcombine.low %v689, %v693
        %v746 = vunpack.c.l.s4 1983009808
        %v747 = vunpack.c.0.s8 %v746
        %v748 = vlaneseq
        %v749 = vshrl.u32 %v748, 7
        %v750 = vsub.s32 %v747, %v749
        %v751 = vrot.slane %v743, %v750
        %v753 = vunpack.c.l.s4 1983009808
        %v754 = vunpack.c.0.s8 %v753
        %v755 = vlaneseq
        %v756 = vshrl.u32 %v755, 7
        %v757 = vsub.s32 %v754, %v756
        %v758 = vrot.slane %v744, %v757
        %v759 = vcombine.low %v751, %v758
        %v760 = vcombine.low %v697, %v701
        %v761 = vcombine.low %v705, %v709
        %v763 = vunpack.c.l.s4 1983009808
        %v764 = vunpack.c.0.s8 %v763
        %v765 = vlaneseq
        %v766 = vshrl.u32 %v765, 7
        %v767 = vsub.s32 %v764, %v766
        %v768 = vrot.slane %v760, %v767
        %v770 = vunpack.c.l.s4 1983009808
        %v771 = vunpack.c.0.s8 %v770
        %v772 = vlaneseq
        %v773 = vshrl.u32 %v772, 7
        %v774 = vsub.s32 %v771, %v773
        %v775 = vrot.slane %v761, %v774
        %v776 = vcombine.low %v768, %v775
        %v777 = vcombine.low %v713, %v717
        %v778 = vcombine.low %v721, %v725
        %v780 = vunpack.c.l.s4 1983009808
        %v781 = vunpack.c.0.s8 %v780
        %v782 = vlaneseq
        %v783 = vshrl.u32 %v782, 7
        %v784 = vsub.s32 %v781, %v783
        %v785 = vrot.slane %v777, %v784
        %v787 = vunpack.c.l.s4 1983009808
        %v788 = vunpack.c.0.s8 %v787
        %v789 = vlaneseq
        %v790 = vshrl.u32 %v789, 7
        %v791 = vsub.s32 %v788, %v790
        %v792 = vrot.slane %v778, %v791
        %v793 = vcombine.low %v785, %v792
        %v798 = vadd.f32 %v654, %v742
        %v799 = vadd.f32 %v655, %v759
        %v800 = vadd.f32 %v656, %v776
        %v801 = vadd.f32 %v657, %v793
        %vm802 = vcmp.gt.f32.partialorder %v798, 0.0
        %vm803 = vcmp.gt.f32.partialorder %v799, 0.0
        %vm804 = vcmp.gt.f32.partialorder %v800, 0.0
        %vm805 = vcmp.gt.f32.partialorder %v801, 0.0
        %v806 = vmul.f32 %v798, 0.2
        %v807 = vmul.f32 %v799, 0.2
        %v808 = vmul.f32 %v800, 0.2
        %v809 = vmul.f32 %v801, 0.2
        %v810 = vsel %vm802, %v798, %v806
        %v811 = vsel %vm803, %v799, %v807
        %v812 = vsel %vm804, %v800, %v808
        %v813 = vsel %vm805, %v801, %v809
        %v814 = vld [vmem:[%s417] sm:$0xff]
        %v815 = vld [vmem:[%s417 + $0x8] sm:$0xff]
        %v816 = vld [vmem:[%s417 + $0x10] sm:$0xff]
        %v817 = vld [vmem:[%s417 + $0x18] sm:$0xff]
        %v818 = vld [vmem:[%s417 + $0x20] sm:$0xff]
        %v819 = vld [vmem:[%s417 + $0x28] sm:$0xff]
        %v820 = vld [vmem:[%s417 + $0x30] sm:$0xff]
        %v821 = vld [vmem:[%s417 + $0x38] sm:$0xff]
        %v822 = vld [vmem:[%s417 + $0x40] sm:$0xff]
        %v823 = vld [vmem:[%s417 + $0x48] sm:$0xff]
        %v824 = vld [vmem:[%s417 + $0x50] sm:$0xff]
        %v825 = vld [vmem:[%s417 + $0x58] sm:$0xff]
        %v826 = vld [vmem:[%s417 + $0x60] sm:$0xff]
        %v827 = vld [vmem:[%s417 + $0x68] sm:$0xff]
        %v828 = vld [vmem:[%s417 + $0x70] sm:$0xff]
        %v829 = vld [vmem:[%s417 + $0x78] sm:$0xff]
        %v830 = vld [vmem:[%s417 + $0x80] sm:$0xff]
        %v831 = vld [vmem:[%s417 + $0x88] sm:$0xff]
        %v832 = vld [vmem:[%s417 + $0x90] sm:$0xff]
        %v833 = vld [vmem:[%s417 + $0x98] sm:$0xff]
        %v834 = vld [vmem:[%s417 + $0xa0] sm:$0xff]
        %v835 = vld [vmem:[%s417 + $0xa8] sm:$0xff]
        %v836 = vld [vmem:[%s417 + $0xb0] sm:$0xff]
        %v837 = vld [vmem:[%s417 + $0xb8] sm:$0xff]
        %v838 = vld [vmem:[%s417 + $0xc0] sm:$0xff]
        %v839 = vld [vmem:[%s417 + $0xc8] sm:$0xff]
        %v840 = vld [vmem:[%s417 + $0xd0] sm:$0xff]
        %v841 = vld [vmem:[%s417 + $0xd8] sm:$0xff]
        %v842 = vld [vmem:[%s417 + $0xe0] sm:$0xff]
        %v843 = vld [vmem:[%s417 + $0xe8] sm:$0xff]
        %v844 = vld [vmem:[%s417 + $0xf0] sm:$0xff]
        %v845 = vld [vmem:[%s417 + $0xf8] sm:$0xff]
        %v846 = vld [vmem:[%s417 + $0x100] sm:$0xff]
        %v847 = vld [vmem:[%s417 + $0x108] sm:$0xff]
        %v848 = vld [vmem:[%s417 + $0x110] sm:$0xff]
        %v849 = vld [vmem:[%s417 + $0x118] sm:$0xff]
        %v850 = vld [vmem:[%s417 + $0x120] sm:$0xff]
        %v851 = vld [vmem:[%s417 + $0x128] sm:$0xff]
        %v852 = vld [vmem:[%s417 + $0x130] sm:$0xff]
        %v853 = vld [vmem:[%s417 + $0x138] sm:$0xff]
        %v854 = vld [vmem:[%s417 + $0x140] sm:$0xff]
        %v855 = vld [vmem:[%s417 + $0x148] sm:$0xff]
        %v856 = vld [vmem:[%s417 + $0x150] sm:$0xff]
        %v857 = vld [vmem:[%s417 + $0x158] sm:$0xff]
        %v858 = vld [vmem:[%s417 + $0x160] sm:$0xff]
        %v859 = vld [vmem:[%s417 + $0x168] sm:$0xff]
        %v860 = vld [vmem:[%s417 + $0x170] sm:$0xff]
        %v861 = vld [vmem:[%s417 + $0x178] sm:$0xff]
        %v862 = vld [vmem:[%s417 + $0x180] sm:$0xff]
        %v863 = vld [vmem:[%s417 + $0x188] sm:$0xff]
        %v864 = vld [vmem:[%s417 + $0x190] sm:$0xff]
        %v865 = vld [vmem:[%s417 + $0x198] sm:$0xff]
        %v866 = vld [vmem:[%s417 + $0x1a0] sm:$0xff]
        %v867 = vld [vmem:[%s417 + $0x1a8] sm:$0xff]
        %v868 = vld [vmem:[%s417 + $0x1b0] sm:$0xff]
        %v869 = vld [vmem:[%s417 + $0x1b8] sm:$0xff]
        %v870 = vld [vmem:[%s417 + $0x1c0] sm:$0xff]
        %v871 = vld [vmem:[%s417 + $0x1c8] sm:$0xff]
        %v872 = vld [vmem:[%s417 + $0x1d0] sm:$0xff]
        %v873 = vld [vmem:[%s417 + $0x1d8] sm:$0xff]
        %v874 = vld [vmem:[%s417 + $0x1e0] sm:$0xff]
        %v875 = vld [vmem:[%s417 + $0x1e8] sm:$0xff]
        %v876 = vld [vmem:[%s417 + $0x1f0] sm:$0xff]
        %v877 = vld [vmem:[%s417 + $0x1f8] sm:$0xff]
        %v878 = vld [vmem:[%s417 + $0x200] sm:$0xff]
        %v879 = vld [vmem:[%s417 + $0x208] sm:$0xff]
        %v880 = vld [vmem:[%s417 + $0x210] sm:$0xff]
        %v881 = vld [vmem:[%s417 + $0x218] sm:$0xff]
        %v882 = vld [vmem:[%s417 + $0x220] sm:$0xff]
        %v883 = vld [vmem:[%s417 + $0x228] sm:$0xff]
        %v884 = vld [vmem:[%s417 + $0x230] sm:$0xff]
        %v885 = vld [vmem:[%s417 + $0x238] sm:$0xff]
        %v886 = vld [vmem:[%s417 + $0x240] sm:$0xff]
        %v887 = vld [vmem:[%s417 + $0x248] sm:$0xff]
        %v888 = vld [vmem:[%s417 + $0x250] sm:$0xff]
        %v889 = vld [vmem:[%s417 + $0x258] sm:$0xff]
        %v890 = vld [vmem:[%s417 + $0x260] sm:$0xff]
        %v891 = vld [vmem:[%s417 + $0x268] sm:$0xff]
        %v892 = vld [vmem:[%s417 + $0x270] sm:$0xff]
        %v893 = vld [vmem:[%s417 + $0x278] sm:$0xff]
        %v894 = vld [vmem:[%s417 + $0x280] sm:$0xff]
        %v895 = vld [vmem:[%s417 + $0x288] sm:$0xff]
        %v896 = vld [vmem:[%s417 + $0x290] sm:$0xff]
        %v897 = vld [vmem:[%s417 + $0x298] sm:$0xff]
        %v898 = vld [vmem:[%s417 + $0x2a0] sm:$0xff]
        %v899 = vld [vmem:[%s417 + $0x2a8] sm:$0xff]
        %v900 = vld [vmem:[%s417 + $0x2b0] sm:$0xff]
        %v901 = vld [vmem:[%s417 + $0x2b8] sm:$0xff]
        %v902 = vld [vmem:[%s417 + $0x2c0] sm:$0xff]
        %v903 = vld [vmem:[%s417 + $0x2c8] sm:$0xff]
        %v904 = vld [vmem:[%s417 + $0x2d0] sm:$0xff]
        %v905 = vld [vmem:[%s417 + $0x2d8] sm:$0xff]
        %v906 = vld [vmem:[%s417 + $0x2e0] sm:$0xff]
        %v907 = vld [vmem:[%s417 + $0x2e8] sm:$0xff]
        %v908 = vld [vmem:[%s417 + $0x2f0] sm:$0xff]
        %v909 = vld [vmem:[%s417 + $0x2f8] sm:$0xff]
        %v910 = vld [vmem:[%s417 + $0x300] sm:$0xff]
        %v911 = vld [vmem:[%s417 + $0x308] sm:$0xff]
        %v912 = vld [vmem:[%s417 + $0x310] sm:$0xff]
        %v913 = vld [vmem:[%s417 + $0x318] sm:$0xff]
        %v914 = vld [vmem:[%s417 + $0x320] sm:$0xff]
        %v915 = vld [vmem:[%s417 + $0x328] sm:$0xff]
        %v916 = vld [vmem:[%s417 + $0x330] sm:$0xff]
        %v917 = vld [vmem:[%s417 + $0x338] sm:$0xff]
        %v918 = vld [vmem:[%s417 + $0x340] sm:$0xff]
        %v919 = vld [vmem:[%s417 + $0x348] sm:$0xff]
        %v920 = vld [vmem:[%s417 + $0x350] sm:$0xff]
        %v921 = vld [vmem:[%s417 + $0x358] sm:$0xff]
        %v922 = vld [vmem:[%s417 + $0x360] sm:$0xff]
        %v923 = vld [vmem:[%s417 + $0x368] sm:$0xff]
        %v924 = vld [vmem:[%s417 + $0x370] sm:$0xff]
        %v925 = vld [vmem:[%s417 + $0x378] sm:$0xff]
        %v926 = vld [vmem:[%s417 + $0x380] sm:$0xff]
        %v927 = vld [vmem:[%s417 + $0x388] sm:$0xff]
        %v928 = vld [vmem:[%s417 + $0x390] sm:$0xff]
        %v929 = vld [vmem:[%s417 + $0x398] sm:$0xff]
        %v930 = vld [vmem:[%s417 + $0x3a0] sm:$0xff]
        %v931 = vld [vmem:[%s417 + $0x3a8] sm:$0xff]
        %v932 = vld [vmem:[%s417 + $0x3b0] sm:$0xff]
        %v933 = vld [vmem:[%s417 + $0x3b8] sm:$0xff]
        %v934 = vld [vmem:[%s417 + $0x3c0] sm:$0xff]
        %v935 = vld [vmem:[%s417 + $0x3c8] sm:$0xff]
        %v936 = vld [vmem:[%s417 + $0x3d0] sm:$0xff]
        %v937 = vld [vmem:[%s417 + $0x3d8] sm:$0xff]
        %v938 = vld [vmem:[%s417 + $0x3e0] sm:$0xff]
        %v939 = vld [vmem:[%s417 + $0x3e8] sm:$0xff]
        %v940 = vld [vmem:[%s417 + $0x3f0] sm:$0xff]
        %v941 = vld [vmem:[%s417 + $0x3f8] sm:$0xff]
        %v942 = vld [vmem:[%s417 + $0x400] sm:$0xff]
        %v943 = vld [vmem:[%s417 + $0x408] sm:$0xff]
        %v944 = vld [vmem:[%s417 + $0x410] sm:$0xff]
        %v945 = vld [vmem:[%s417 + $0x418] sm:$0xff]
        %v946 = vld [vmem:[%s417 + $0x420] sm:$0xff]
        %v947 = vld [vmem:[%s417 + $0x428] sm:$0xff]
        %v948 = vld [vmem:[%s417 + $0x430] sm:$0xff]
        %v949 = vld [vmem:[%s417 + $0x438] sm:$0xff]
        %v950 = vld [vmem:[%s417 + $0x440] sm:$0xff]
        %v951 = vld [vmem:[%s417 + $0x448] sm:$0xff]
        %v952 = vld [vmem:[%s417 + $0x450] sm:$0xff]
        %v953 = vld [vmem:[%s417 + $0x458] sm:$0xff]
        %v954 = vld [vmem:[%s417 + $0x460] sm:$0xff]
        %v955 = vld [vmem:[%s417 + $0x468] sm:$0xff]
        %v956 = vld [vmem:[%s417 + $0x470] sm:$0xff]
        %v957 = vld [vmem:[%s417 + $0x478] sm:$0xff]
        %v958 = vld [vmem:[%s417 + $0x480] sm:$0xff]
        %v959 = vld [vmem:[%s417 + $0x488] sm:$0xff]
        %v960 = vld [vmem:[%s417 + $0x490] sm:$0xff]
        %v961 = vld [vmem:[%s417 + $0x498] sm:$0xff]
        %v962 = vld [vmem:[%s417 + $0x4a0] sm:$0xff]
        %v963 = vld [vmem:[%s417 + $0x4a8] sm:$0xff]
        %v964 = vld [vmem:[%s417 + $0x4b0] sm:$0xff]
        %v965 = vld [vmem:[%s417 + $0x4b8] sm:$0xff]
        %v966 = vld [vmem:[%s417 + $0x4c0] sm:$0xff]
        %v967 = vld [vmem:[%s417 + $0x4c8] sm:$0xff]
        %v968 = vld [vmem:[%s417 + $0x4d0] sm:$0xff]
        %v969 = vld [vmem:[%s417 + $0x4d8] sm:$0xff]
        %v970 = vld [vmem:[%s417 + $0x4e0] sm:$0xff]
        %v971 = vld [vmem:[%s417 + $0x4e8] sm:$0xff]
        %v972 = vld [vmem:[%s417 + $0x4f0] sm:$0xff]
        %v973 = vld [vmem:[%s417 + $0x4f8] sm:$0xff]
        %v974 = vld [vmem:[%s417 + $0x500] sm:$0xff]
        %v975 = vld [vmem:[%s417 + $0x508] sm:$0xff]
        %v976 = vld [vmem:[%s417 + $0x510] sm:$0xff]
        %v977 = vld [vmem:[%s417 + $0x518] sm:$0xff]
        %v978 = vld [vmem:[%s417 + $0x520] sm:$0xff]
        %v979 = vld [vmem:[%s417 + $0x528] sm:$0xff]
        %v980 = vld [vmem:[%s417 + $0x530] sm:$0xff]
        %v981 = vld [vmem:[%s417 + $0x538] sm:$0xff]
        %v982 = vld [vmem:[%s417 + $0x540] sm:$0xff]
        %v983 = vld [vmem:[%s417 + $0x548] sm:$0xff]
        %v984 = vld [vmem:[%s417 + $0x550] sm:$0xff]
        %v985 = vld [vmem:[%s417 + $0x558] sm:$0xff]
        %v986 = vld [vmem:[%s417 + $0x560] sm:$0xff]
        %v987 = vld [vmem:[%s417 + $0x568] sm:$0xff]
        %v988 = vld [vmem:[%s417 + $0x570] sm:$0xff]
        %v989 = vld [vmem:[%s417 + $0x578] sm:$0xff]
        %v990 = vld [vmem:[%s417 + $0x580] sm:$0xff]
        %v991 = vld [vmem:[%s417 + $0x588] sm:$0xff]
        %v992 = vld [vmem:[%s417 + $0x590] sm:$0xff]
        %v993 = vld [vmem:[%s417 + $0x598] sm:$0xff]
        %v994 = vld [vmem:[%s417 + $0x5a0] sm:$0xff]
        %v995 = vld [vmem:[%s417 + $0x5a8] sm:$0xff]
        %v996 = vld [vmem:[%s417 + $0x5b0] sm:$0xff]
        %v997 = vld [vmem:[%s417 + $0x5b8] sm:$0xff]
        %v998 = vld [vmem:[%s417 + $0x5c0] sm:$0xff]
        %v999 = vld [vmem:[%s417 + $0x5c8] sm:$0xff]
        %v1000 = vld [vmem:[%s417 + $0x5d0] sm:$0xff]
        %v1001 = vld [vmem:[%s417 + $0x5d8] sm:$0xff]
        %v1002 = vld [vmem:[%s417 + $0x5e0] sm:$0xff]
        %v1003 = vld [vmem:[%s417 + $0x5e8] sm:$0xff]
        %v1004 = vld [vmem:[%s417 + $0x5f0] sm:$0xff]
        %v1005 = vld [vmem:[%s417 + $0x5f8] sm:$0xff]
        %v1006 = vld [vmem:[%s417 + $0x600] sm:$0xff]
        %v1007 = vld [vmem:[%s417 + $0x608] sm:$0xff]
        %v1008 = vld [vmem:[%s417 + $0x610] sm:$0xff]
        %v1009 = vld [vmem:[%s417 + $0x618] sm:$0xff]
        %v1010 = vld [vmem:[%s417 + $0x620] sm:$0xff]
        %v1011 = vld [vmem:[%s417 + $0x628] sm:$0xff]
        %v1012 = vld [vmem:[%s417 + $0x630] sm:$0xff]
        %v1013 = vld [vmem:[%s417 + $0x638] sm:$0xff]
        %v1014 = vld [vmem:[%s417 + $0x640] sm:$0xff]
        %v1015 = vld [vmem:[%s417 + $0x648] sm:$0xff]
        %v1016 = vld [vmem:[%s417 + $0x650] sm:$0xff]
        %v1017 = vld [vmem:[%s417 + $0x658] sm:$0xff]
        %v1018 = vld [vmem:[%s417 + $0x660] sm:$0xff]
        %v1019 = vld [vmem:[%s417 + $0x668] sm:$0xff]
        %v1020 = vld [vmem:[%s417 + $0x670] sm:$0xff]
        %v1021 = vld [vmem:[%s417 + $0x678] sm:$0xff]
        %v1022 = vld [vmem:[%s417 + $0x680] sm:$0xff]
        %v1023 = vld [vmem:[%s417 + $0x688] sm:$0xff]
        %v1024 = vld [vmem:[%s417 + $0x690] sm:$0xff]
        %v1025 = vld [vmem:[%s417 + $0x698] sm:$0xff]
        %v1026 = vld [vmem:[%s417 + $0x6a0] sm:$0xff]
        %v1027 = vld [vmem:[%s417 + $0x6a8] sm:$0xff]
        %v1028 = vld [vmem:[%s417 + $0x6b0] sm:$0xff]
        %v1029 = vld [vmem:[%s417 + $0x6b8] sm:$0xff]
        %v1030 = vld [vmem:[%s417 + $0x6c0] sm:$0xff]
        %v1031 = vld [vmem:[%s417 + $0x6c8] sm:$0xff]
        %v1032 = vld [vmem:[%s417 + $0x6d0] sm:$0xff]
        %v1033 = vld [vmem:[%s417 + $0x6d8] sm:$0xff]
        %v1034 = vld [vmem:[%s417 + $0x6e0] sm:$0xff]
        %v1035 = vld [vmem:[%s417 + $0x6e8] sm:$0xff]
        %v1036 = vld [vmem:[%s417 + $0x6f0] sm:$0xff]
        %v1037 = vld [vmem:[%s417 + $0x6f8] sm:$0xff]
        %v1038 = vld [vmem:[%s417 + $0x700] sm:$0xff]
        %v1039 = vld [vmem:[%s417 + $0x708] sm:$0xff]
        %v1040 = vld [vmem:[%s417 + $0x710] sm:$0xff]
        %v1041 = vld [vmem:[%s417 + $0x718] sm:$0xff]
        %v1042 = vld [vmem:[%s417 + $0x720] sm:$0xff]
        %v1043 = vld [vmem:[%s417 + $0x728] sm:$0xff]
        %v1044 = vld [vmem:[%s417 + $0x730] sm:$0xff]
        %v1045 = vld [vmem:[%s417 + $0x738] sm:$0xff]
        %v1046 = vld [vmem:[%s417 + $0x740] sm:$0xff]
        %v1047 = vld [vmem:[%s417 + $0x748] sm:$0xff]
        %v1048 = vld [vmem:[%s417 + $0x750] sm:$0xff]
        %v1049 = vld [vmem:[%s417 + $0x758] sm:$0xff]
        %v1050 = vld [vmem:[%s417 + $0x760] sm:$0xff]
        %v1051 = vld [vmem:[%s417 + $0x768] sm:$0xff]
        %v1052 = vld [vmem:[%s417 + $0x770] sm:$0xff]
        %v1053 = vld [vmem:[%s417 + $0x778] sm:$0xff]
        %v1054 = vld [vmem:[%s417 + $0x780] sm:$0xff]
        %v1055 = vld [vmem:[%s417 + $0x788] sm:$0xff]
        %v1056 = vld [vmem:[%s417 + $0x790] sm:$0xff]
        %v1057 = vld [vmem:[%s417 + $0x798] sm:$0xff]
        %v1058 = vld [vmem:[%s417 + $0x7a0] sm:$0xff]
        %v1059 = vld [vmem:[%s417 + $0x7a8] sm:$0xff]
        %v1060 = vld [vmem:[%s417 + $0x7b0] sm:$0xff]
        %v1061 = vld [vmem:[%s417 + $0x7b8] sm:$0xff]
        %v1062 = vld [vmem:[%s417 + $0x7c0] sm:$0xff]
        %v1063 = vld [vmem:[%s417 + $0x7c8] sm:$0xff]
        %v1064 = vld [vmem:[%s417 + $0x7d0] sm:$0xff]
        %v1065 = vld [vmem:[%s417 + $0x7d8] sm:$0xff]
        %v1066 = vld [vmem:[%s417 + $0x7e0] sm:$0xff]
        %v1067 = vld [vmem:[%s417 + $0x7e8] sm:$0xff]
        %v1068 = vld [vmem:[%s417 + $0x7f0] sm:$0xff]
        %v1069 = vld [vmem:[%s417 + $0x7f8] sm:$0xff]
        %v1070 = vld [vmem:[%s417 + $0x800] sm:$0xff]
        %v1071 = vld [vmem:[%s417 + $0x808] sm:$0xff]
        %v1072 = vld [vmem:[%s417 + $0x810] sm:$0xff]
        %v1073 = vld [vmem:[%s417 + $0x818] sm:$0xff]
        %v1074 = vld [vmem:[%s417 + $0x820] sm:$0xff]
        %v1075 = vld [vmem:[%s417 + $0x828] sm:$0xff]
        %v1076 = vld [vmem:[%s417 + $0x830] sm:$0xff]
        %v1077 = vld [vmem:[%s417 + $0x838] sm:$0xff]
        %v1078 = vld [vmem:[%s417 + $0x840] sm:$0xff]
        %v1079 = vld [vmem:[%s417 + $0x848] sm:$0xff]
        %v1080 = vld [vmem:[%s417 + $0x850] sm:$0xff]
        %v1081 = vld [vmem:[%s417 + $0x858] sm:$0xff]
        %v1082 = vld [vmem:[%s417 + $0x860] sm:$0xff]
        %v1083 = vld [vmem:[%s417 + $0x868] sm:$0xff]
        %v1084 = vld [vmem:[%s417 + $0x870] sm:$0xff]
        %v1085 = vld [vmem:[%s417 + $0x878] sm:$0xff]
        %v1086 = vld [vmem:[%s417 + $0x880] sm:$0xff]
        %v1087 = vld [vmem:[%s417 + $0x888] sm:$0xff]
        %v1088 = vld [vmem:[%s417 + $0x890] sm:$0xff]
        %v1089 = vld [vmem:[%s417 + $0x898] sm:$0xff]
        %v1090 = vld [vmem:[%s417 + $0x8a0] sm:$0xff]
        %v1091 = vld [vmem:[%s417 + $0x8a8] sm:$0xff]
        %v1092 = vld [vmem:[%s417 + $0x8b0] sm:$0xff]
        %v1093 = vld [vmem:[%s417 + $0x8b8] sm:$0xff]
        %v1094 = vld [vmem:[%s417 + $0x8c0] sm:$0xff]
        %v1095 = vld [vmem:[%s417 + $0x8c8] sm:$0xff]
        %v1096 = vld [vmem:[%s417 + $0x8d0] sm:$0xff]
        %v1097 = vld [vmem:[%s417 + $0x8d8] sm:$0xff]
        %v1098 = vld [vmem:[%s417 + $0x8e0] sm:$0xff]
        %v1099 = vld [vmem:[%s417 + $0x8e8] sm:$0xff]
        %v1100 = vld [vmem:[%s417 + $0x8f0] sm:$0xff]
        %v1101 = vld [vmem:[%s417 + $0x8f8] sm:$0xff]
        %v1102 = vld [vmem:[%s417 + $0x900] sm:$0xff]
        %v1103 = vld [vmem:[%s417 + $0x908] sm:$0xff]
        %v1104 = vld [vmem:[%s417 + $0x910] sm:$0xff]
        %v1105 = vld [vmem:[%s417 + $0x918] sm:$0xff]
        %v1106 = vld [vmem:[%s417 + $0x920] sm:$0xff]
        %v1107 = vld [vmem:[%s417 + $0x928] sm:$0xff]
        %v1108 = vld [vmem:[%s417 + $0x930] sm:$0xff]
        %v1109 = vld [vmem:[%s417 + $0x938] sm:$0xff]
        %v1110 = vld [vmem:[%s417 + $0x940] sm:$0xff]
        %v1111 = vld [vmem:[%s417 + $0x948] sm:$0xff]
        %v1112 = vld [vmem:[%s417 + $0x950] sm:$0xff]
        %v1113 = vld [vmem:[%s417 + $0x958] sm:$0xff]
        %v1114 = vld [vmem:[%s417 + $0x960] sm:$0xff]
        %v1115 = vld [vmem:[%s417 + $0x968] sm:$0xff]
        %v1116 = vld [vmem:[%s417 + $0x970] sm:$0xff]
        %v1117 = vld [vmem:[%s417 + $0x978] sm:$0xff]
        %v1118 = vld [vmem:[%s417 + $0x980] sm:$0xff]
        %v1119 = vld [vmem:[%s417 + $0x988] sm:$0xff]
        %v1120 = vld [vmem:[%s417 + $0x990] sm:$0xff]
        %v1121 = vld [vmem:[%s417 + $0x998] sm:$0xff]
        %v1122 = vld [vmem:[%s417 + $0x9a0] sm:$0xff]
        %v1123 = vld [vmem:[%s417 + $0x9a8] sm:$0xff]
        %v1124 = vld [vmem:[%s417 + $0x9b0] sm:$0xff]
        %v1125 = vld [vmem:[%s417 + $0x9b8] sm:$0xff]
        %v1126 = vld [vmem:[%s417 + $0x9c0] sm:$0xff]
        %v1127 = vld [vmem:[%s417 + $0x9c8] sm:$0xff]
        %v1128 = vld [vmem:[%s417 + $0x9d0] sm:$0xff]
        %v1129 = vld [vmem:[%s417 + $0x9d8] sm:$0xff]
        %v1130 = vld [vmem:[%s417 + $0x9e0] sm:$0xff]
        %v1131 = vld [vmem:[%s417 + $0x9e8] sm:$0xff]
        %v1132 = vld [vmem:[%s417 + $0x9f0] sm:$0xff]
        %v1133 = vld [vmem:[%s417 + $0x9f8] sm:$0xff]
        %v1134 = vld [vmem:[%s417 + $0xa00] sm:$0xff]
        %v1135 = vld [vmem:[%s417 + $0xa08] sm:$0xff]
        %v1136 = vld [vmem:[%s417 + $0xa10] sm:$0xff]
        %v1137 = vld [vmem:[%s417 + $0xa18] sm:$0xff]
        %v1138 = vld [vmem:[%s417 + $0xa20] sm:$0xff]
        %v1139 = vld [vmem:[%s417 + $0xa28] sm:$0xff]
        %v1140 = vld [vmem:[%s417 + $0xa30] sm:$0xff]
        %v1141 = vld [vmem:[%s417 + $0xa38] sm:$0xff]
        %v1142 = vld [vmem:[%s417 + $0xa40] sm:$0xff]
        %v1143 = vld [vmem:[%s417 + $0xa48] sm:$0xff]
        %v1144 = vld [vmem:[%s417 + $0xa50] sm:$0xff]
        %v1145 = vld [vmem:[%s417 + $0xa58] sm:$0xff]
        %v1146 = vld [vmem:[%s417 + $0xa60] sm:$0xff]
        %v1147 = vld [vmem:[%s417 + $0xa68] sm:$0xff]
        %v1148 = vld [vmem:[%s417 + $0xa70] sm:$0xff]
        %v1149 = vld [vmem:[%s417 + $0xa78] sm:$0xff]
        %v1150 = vld [vmem:[%s417 + $0xa80] sm:$0xff]
        %v1151 = vld [vmem:[%s417 + $0xa88] sm:$0xff]
        %v1152 = vld [vmem:[%s417 + $0xa90] sm:$0xff]
        %v1153 = vld [vmem:[%s417 + $0xa98] sm:$0xff]
        %v1154 = vld [vmem:[%s417 + $0xaa0] sm:$0xff]
        %v1155 = vld [vmem:[%s417 + $0xaa8] sm:$0xff]
        %v1156 = vld [vmem:[%s417 + $0xab0] sm:$0xff]
        %v1157 = vld [vmem:[%s417 + $0xab8] sm:$0xff]
        %v1158 = vld [vmem:[%s417 + $0xac0] sm:$0xff]
        %v1159 = vld [vmem:[%s417 + $0xac8] sm:$0xff]
        %v1160 = vld [vmem:[%s417 + $0xad0] sm:$0xff]
        %v1161 = vld [vmem:[%s417 + $0xad8] sm:$0xff]
        %v1162 = vld [vmem:[%s417 + $0xae0] sm:$0xff]
        %v1163 = vld [vmem:[%s417 + $0xae8] sm:$0xff]
        %v1164 = vld [vmem:[%s417 + $0xaf0] sm:$0xff]
        %v1165 = vld [vmem:[%s417 + $0xaf8] sm:$0xff]
        %v1166 = vld [vmem:[%s417 + $0xb00] sm:$0xff]
        %v1167 = vld [vmem:[%s417 + $0xb08] sm:$0xff]
        %v1168 = vld [vmem:[%s417 + $0xb10] sm:$0xff]
        %v1169 = vld [vmem:[%s417 + $0xb18] sm:$0xff]
        %v1170 = vld [vmem:[%s417 + $0xb20] sm:$0xff]
        %v1171 = vld [vmem:[%s417 + $0xb28] sm:$0xff]
        %v1172 = vld [vmem:[%s417 + $0xb30] sm:$0xff]
        %v1173 = vld [vmem:[%s417 + $0xb38] sm:$0xff]
        %v1174 = vld [vmem:[%s417 + $0xb40] sm:$0xff]
        %v1175 = vld [vmem:[%s417 + $0xb48] sm:$0xff]
        %v1176 = vld [vmem:[%s417 + $0xb50] sm:$0xff]
        %v1177 = vld [vmem:[%s417 + $0xb58] sm:$0xff]
        %v1178 = vld [vmem:[%s417 + $0xb60] sm:$0xff]
        %v1179 = vld [vmem:[%s417 + $0xb68] sm:$0xff]
        %v1180 = vld [vmem:[%s417 + $0xb70] sm:$0xff]
        %v1181 = vld [vmem:[%s417 + $0xb78] sm:$0xff]
        %v1182 = vld [vmem:[%s417 + $0xb80] sm:$0xff]
        %v1183 = vld [vmem:[%s417 + $0xb88] sm:$0xff]
        %v1184 = vld [vmem:[%s417 + $0xb90] sm:$0xff]
        %v1185 = vld [vmem:[%s417 + $0xb98] sm:$0xff]
        %v1186 = vld [vmem:[%s417 + $0xba0] sm:$0xff]
        %v1187 = vld [vmem:[%s417 + $0xba8] sm:$0xff]
        %v1188 = vld [vmem:[%s417 + $0xbb0] sm:$0xff]
        %v1189 = vld [vmem:[%s417 + $0xbb8] sm:$0xff]
        %v1190 = vld [vmem:[%s417 + $0xbc0] sm:$0xff]
        %v1191 = vld [vmem:[%s417 + $0xbc8] sm:$0xff]
        %v1192 = vld [vmem:[%s417 + $0xbd0] sm:$0xff]
        %v1193 = vld [vmem:[%s417 + $0xbd8] sm:$0xff]
        %v1194 = vld [vmem:[%s417 + $0xbe0] sm:$0xff]
        %v1195 = vld [vmem:[%s417 + $0xbe8] sm:$0xff]
        %v1196 = vld [vmem:[%s417 + $0xbf0] sm:$0xff]
        %v1197 = vld [vmem:[%s417 + $0xbf8] sm:$0xff]
        %v1198 = vld [vmem:[%s417 + $0xc00] sm:$0xff]
        %v1199 = vld [vmem:[%s417 + $0xc08] sm:$0xff]
        %v1200 = vld [vmem:[%s417 + $0xc10] sm:$0xff]
        %v1201 = vld [vmem:[%s417 + $0xc18] sm:$0xff]
        %v1202 = vld [vmem:[%s417 + $0xc20] sm:$0xff]
        %v1203 = vld [vmem:[%s417 + $0xc28] sm:$0xff]
        %v1204 = vld [vmem:[%s417 + $0xc30] sm:$0xff]
        %v1205 = vld [vmem:[%s417 + $0xc38] sm:$0xff]
        %v1206 = vld [vmem:[%s417 + $0xc40] sm:$0xff]
        %v1207 = vld [vmem:[%s417 + $0xc48] sm:$0xff]
        %v1208 = vld [vmem:[%s417 + $0xc50] sm:$0xff]
        %v1209 = vld [vmem:[%s417 + $0xc58] sm:$0xff]
        %v1210 = vld [vmem:[%s417 + $0xc60] sm:$0xff]
        %v1211 = vld [vmem:[%s417 + $0xc68] sm:$0xff]
        %v1212 = vld [vmem:[%s417 + $0xc70] sm:$0xff]
        %v1213 = vld [vmem:[%s417 + $0xc78] sm:$0xff]
        %v1214 = vld [vmem:[%s417 + $0xc80] sm:$0xff]
        %v1215 = vld [vmem:[%s417 + $0xc88] sm:$0xff]
        %v1216 = vld [vmem:[%s417 + $0xc90] sm:$0xff]
        %v1217 = vld [vmem:[%s417 + $0xc98] sm:$0xff]
        %v1218 = vld [vmem:[%s417 + $0xca0] sm:$0xff]
        %v1219 = vld [vmem:[%s417 + $0xca8] sm:$0xff]
        %v1220 = vld [vmem:[%s417 + $0xcb0] sm:$0xff]
        %v1221 = vld [vmem:[%s417 + $0xcb8] sm:$0xff]
        %v1222 = vld [vmem:[%s417 + $0xcc0] sm:$0xff]
        %v1223 = vld [vmem:[%s417 + $0xcc8] sm:$0xff]
        %v1224 = vld [vmem:[%s417 + $0xcd0] sm:$0xff]
        %v1225 = vld [vmem:[%s417 + $0xcd8] sm:$0xff]
        %v1226 = vld [vmem:[%s417 + $0xce0] sm:$0xff]
        %v1227 = vld [vmem:[%s417 + $0xce8] sm:$0xff]
        %v1228 = vld [vmem:[%s417 + $0xcf0] sm:$0xff]
        %v1229 = vld [vmem:[%s417 + $0xcf8] sm:$0xff]
        %v1230 = vld [vmem:[%s417 + $0xd00] sm:$0xff]
        %v1231 = vld [vmem:[%s417 + $0xd08] sm:$0xff]
        %v1232 = vld [vmem:[%s417 + $0xd10] sm:$0xff]
        %v1233 = vld [vmem:[%s417 + $0xd18] sm:$0xff]
        %v1234 = vld [vmem:[%s417 + $0xd20] sm:$0xff]
        %v1235 = vld [vmem:[%s417 + $0xd28] sm:$0xff]
        %v1236 = vld [vmem:[%s417 + $0xd30] sm:$0xff]
        %v1237 = vld [vmem:[%s417 + $0xd38] sm:$0xff]
        %v1238 = vld [vmem:[%s417 + $0xd40] sm:$0xff]
        %v1239 = vld [vmem:[%s417 + $0xd48] sm:$0xff]
        %v1240 = vld [vmem:[%s417 + $0xd50] sm:$0xff]
        %v1241 = vld [vmem:[%s417 + $0xd58] sm:$0xff]
        %v1242 = vld [vmem:[%s417 + $0xd60] sm:$0xff]
        %v1243 = vld [vmem:[%s417 + $0xd68] sm:$0xff]
        %v1244 = vld [vmem:[%s417 + $0xd70] sm:$0xff]
        %v1245 = vld [vmem:[%s417 + $0xd78] sm:$0xff]
        %v1246 = vld [vmem:[%s417 + $0xd80] sm:$0xff]
        %v1247 = vld [vmem:[%s417 + $0xd88] sm:$0xff]
        %v1248 = vld [vmem:[%s417 + $0xd90] sm:$0xff]
        %v1249 = vld [vmem:[%s417 + $0xd98] sm:$0xff]
        %v1250 = vld [vmem:[%s417 + $0xda0] sm:$0xff]
        %v1251 = vld [vmem:[%s417 + $0xda8] sm:$0xff]
        %v1252 = vld [vmem:[%s417 + $0xdb0] sm:$0xff]
        %v1253 = vld [vmem:[%s417 + $0xdb8] sm:$0xff]
        %v1254 = vld [vmem:[%s417 + $0xdc0] sm:$0xff]
        %v1255 = vld [vmem:[%s417 + $0xdc8] sm:$0xff]
        %v1256 = vld [vmem:[%s417 + $0xdd0] sm:$0xff]
        %v1257 = vld [vmem:[%s417 + $0xdd8] sm:$0xff]
        %v1258 = vld [vmem:[%s417 + $0xde0] sm:$0xff]
        %v1259 = vld [vmem:[%s417 + $0xde8] sm:$0xff]
        %v1260 = vld [vmem:[%s417 + $0xdf0] sm:$0xff]
        %v1261 = vld [vmem:[%s417 + $0xdf8] sm:$0xff]
        %v1262 = vld [vmem:[%s417 + $0xe00] sm:$0xff]
        %v1263 = vld [vmem:[%s417 + $0xe08] sm:$0xff]
        %v1264 = vld [vmem:[%s417 + $0xe10] sm:$0xff]
        %v1265 = vld [vmem:[%s417 + $0xe18] sm:$0xff]
        %v1266 = vld [vmem:[%s417 + $0xe20] sm:$0xff]
        %v1267 = vld [vmem:[%s417 + $0xe28] sm:$0xff]
        %v1268 = vld [vmem:[%s417 + $0xe30] sm:$0xff]
        %v1269 = vld [vmem:[%s417 + $0xe38] sm:$0xff]
        %v1270 = vld [vmem:[%s417 + $0xe40] sm:$0xff]
        %v1271 = vld [vmem:[%s417 + $0xe48] sm:$0xff]
        %v1272 = vld [vmem:[%s417 + $0xe50] sm:$0xff]
        %v1273 = vld [vmem:[%s417 + $0xe58] sm:$0xff]
        %v1274 = vld [vmem:[%s417 + $0xe60] sm:$0xff]
        %v1275 = vld [vmem:[%s417 + $0xe68] sm:$0xff]
        %v1276 = vld [vmem:[%s417 + $0xe70] sm:$0xff]
        %v1277 = vld [vmem:[%s417 + $0xe78] sm:$0xff]
        %v1278 = vld [vmem:[%s417 + $0xe80] sm:$0xff]
        %v1279 = vld [vmem:[%s417 + $0xe88] sm:$0xff]
        %v1280 = vld [vmem:[%s417 + $0xe90] sm:$0xff]
        %v1281 = vld [vmem:[%s417 + $0xe98] sm:$0xff]
        %v1282 = vld [vmem:[%s417 + $0xea0] sm:$0xff]
        %v1283 = vld [vmem:[%s417 + $0xea8] sm:$0xff]
        %v1284 = vld [vmem:[%s417 + $0xeb0] sm:$0xff]
        %v1285 = vld [vmem:[%s417 + $0xeb8] sm:$0xff]
        %v1286 = vld [vmem:[%s417 + $0xec0] sm:$0xff]
        %v1287 = vld [vmem:[%s417 + $0xec8] sm:$0xff]
        %v1288 = vld [vmem:[%s417 + $0xed0] sm:$0xff]
        %v1289 = vld [vmem:[%s417 + $0xed8] sm:$0xff]
        %v1290 = vld [vmem:[%s417 + $0xee0] sm:$0xff]
        %v1291 = vld [vmem:[%s417 + $0xee8] sm:$0xff]
        %v1292 = vld [vmem:[%s417 + $0xef0] sm:$0xff]
        %v1293 = vld [vmem:[%s417 + $0xef8] sm:$0xff]
        %v1294 = vld [vmem:[%s417 + $0xf00] sm:$0xff]
        %v1295 = vld [vmem:[%s417 + $0xf08] sm:$0xff]
        %v1296 = vld [vmem:[%s417 + $0xf10] sm:$0xff]
        %v1297 = vld [vmem:[%s417 + $0xf18] sm:$0xff]
        %v1298 = vld [vmem:[%s417 + $0xf20] sm:$0xff]
        %v1299 = vld [vmem:[%s417 + $0xf28] sm:$0xff]
        %v1300 = vld [vmem:[%s417 + $0xf30] sm:$0xff]
        %v1301 = vld [vmem:[%s417 + $0xf38] sm:$0xff]
        %v1302 = vld [vmem:[%s417 + $0xf40] sm:$0xff]
        %v1303 = vld [vmem:[%s417 + $0xf48] sm:$0xff]
        %v1304 = vld [vmem:[%s417 + $0xf50] sm:$0xff]
        %v1305 = vld [vmem:[%s417 + $0xf58] sm:$0xff]
        %v1306 = vld [vmem:[%s417 + $0xf60] sm:$0xff]
        %v1307 = vld [vmem:[%s417 + $0xf68] sm:$0xff]
        %v1308 = vld [vmem:[%s417 + $0xf70] sm:$0xff]
        %v1309 = vld [vmem:[%s417 + $0xf78] sm:$0xff]
        %v1310 = vld [vmem:[%s417 + $0xf80] sm:$0xff]
        %v1311 = vld [vmem:[%s417 + $0xf88] sm:$0xff]
        %v1312 = vld [vmem:[%s417 + $0xf90] sm:$0xff]
        %v1313 = vld [vmem:[%s417 + $0xf98] sm:$0xff]
        %v1314 = vld [vmem:[%s417 + $0xfa0] sm:$0xff]
        %v1315 = vld [vmem:[%s417 + $0xfa8] sm:$0xff]
        %v1316 = vld [vmem:[%s417 + $0xfb0] sm:$0xff]
        %v1317 = vld [vmem:[%s417 + $0xfb8] sm:$0xff]
        %v1318 = vld [vmem:[%s417 + $0xfc0] sm:$0xff]
        %v1319 = vld [vmem:[%s417 + $0xfc8] sm:$0xff]
        %v1320 = vld [vmem:[%s417 + $0xfd0] sm:$0xff]
        %v1321 = vld [vmem:[%s417 + $0xfd8] sm:$0xff]
        %v1322 = vld [vmem:[%s417 + $0xfe0] sm:$0xff]
        %v1323 = vld [vmem:[%s417 + $0xfe8] sm:$0xff]
        %v1324 = vld [vmem:[%s417 + $0xff0] sm:$0xff]
        %v1325 = vld [vmem:[%s417 + $0xff8] sm:$0xff]
        %v1326 = vunpack.c.l.s8.bf16 %v814
        %v1327 = vunpack.c.l.s8.bf16 %v815
        %v1328 = vunpack.c.l.s8.bf16 %v816
        %v1329 = vunpack.c.l.s8.bf16 %v817
        %v1330 = vunpack.c.l.s8.bf16 %v818
        %v1331 = vunpack.c.l.s8.bf16 %v819
        %v1332 = vunpack.c.l.s8.bf16 %v820
        %v1333 = vunpack.c.l.s8.bf16 %v821
        %v1334 = vunpack.c.h.s8.bf16 %v814
        %v1335 = vunpack.c.h.s8.bf16 %v815
        %v1336 = vunpack.c.h.s8.bf16 %v816
        %v1337 = vunpack.c.h.s8.bf16 %v817
        %v1338 = vunpack.c.h.s8.bf16 %v818
        %v1339 = vunpack.c.h.s8.bf16 %v819
        %v1340 = vunpack.c.h.s8.bf16 %v820
        %v1341 = vunpack.c.h.s8.bf16 %v821
        %v1342 = vunpack.c.l.s8.bf16 %v822
        %v1343 = vunpack.c.l.s8.bf16 %v823
        %v1344 = vunpack.c.l.s8.bf16 %v824
        %v1345 = vunpack.c.l.s8.bf16 %v825
        %v1346 = vunpack.c.l.s8.bf16 %v826
        %v1347 = vunpack.c.l.s8.bf16 %v827
        %v1348 = vunpack.c.l.s8.bf16 %v828
        %v1349 = vunpack.c.l.s8.bf16 %v829
        %v1350 = vunpack.c.h.s8.bf16 %v822
        %v1351 = vunpack.c.h.s8.bf16 %v823
        %v1352 = vunpack.c.h.s8.bf16 %v824
        %v1353 = vunpack.c.h.s8.bf16 %v825
        %v1354 = vunpack.c.h.s8.bf16 %v826
        %v1355 = vunpack.c.h.s8.bf16 %v827
        %v1356 = vunpack.c.h.s8.bf16 %v828
        %v1357 = vunpack.c.h.s8.bf16 %v829
        %v1358 = vunpack.c.l.s8.bf16 %v830
        %v1359 = vunpack.c.l.s8.bf16 %v831
        %v1360 = vunpack.c.l.s8.bf16 %v832
        %v1361 = vunpack.c.l.s8.bf16 %v833
        %v1362 = vunpack.c.l.s8.bf16 %v834
        %v1363 = vunpack.c.l.s8.bf16 %v835
        %v1364 = vunpack.c.l.s8.bf16 %v836
        %v1365 = vunpack.c.l.s8.bf16 %v837
        %v1366 = vunpack.c.h.s8.bf16 %v830
        %v1367 = vunpack.c.h.s8.bf16 %v831
        %v1368 = vunpack.c.h.s8.bf16 %v832
        %v1369 = vunpack.c.h.s8.bf16 %v833
        %v1370 = vunpack.c.h.s8.bf16 %v834
        %v1371 = vunpack.c.h.s8.bf16 %v835
        %v1372 = vunpack.c.h.s8.bf16 %v836
        %v1373 = vunpack.c.h.s8.bf16 %v837
        %v1374 = vunpack.c.l.s8.bf16 %v838
        %v1375 = vunpack.c.l.s8.bf16 %v839
        %v1376 = vunpack.c.l.s8.bf16 %v840
        %v1377 = vunpack.c.l.s8.bf16 %v841
        %v1378 = vunpack.c.l.s8.bf16 %v842
        %v1379 = vunpack.c.l.s8.bf16 %v843
        %v1380 = vunpack.c.l.s8.bf16 %v844
        %v1381 = vunpack.c.l.s8.bf16 %v845
        %v1382 = vunpack.c.h.s8.bf16 %v838
        %v1383 = vunpack.c.h.s8.bf16 %v839
        %v1384 = vunpack.c.h.s8.bf16 %v840
        %v1385 = vunpack.c.h.s8.bf16 %v841
        %v1386 = vunpack.c.h.s8.bf16 %v842
        %v1387 = vunpack.c.h.s8.bf16 %v843
        %v1388 = vunpack.c.h.s8.bf16 %v844
        %v1389 = vunpack.c.h.s8.bf16 %v845
        %v1390 = vunpack.c.l.s8.bf16 %v846
        %v1391 = vunpack.c.l.s8.bf16 %v847
        %v1392 = vunpack.c.l.s8.bf16 %v848
        %v1393 = vunpack.c.l.s8.bf16 %v849
        %v1394 = vunpack.c.l.s8.bf16 %v850
        %v1395 = vunpack.c.l.s8.bf16 %v851
        %v1396 = vunpack.c.l.s8.bf16 %v852
        %v1397 = vunpack.c.l.s8.bf16 %v853
        %v1398 = vunpack.c.h.s8.bf16 %v846
        %v1399 = vunpack.c.h.s8.bf16 %v847
        %v1400 = vunpack.c.h.s8.bf16 %v848
        %v1401 = vunpack.c.h.s8.bf16 %v849
        %v1402 = vunpack.c.h.s8.bf16 %v850
        %v1403 = vunpack.c.h.s8.bf16 %v851
        %v1404 = vunpack.c.h.s8.bf16 %v852
        %v1405 = vunpack.c.h.s8.bf16 %v853
        %v1406 = vunpack.c.l.s8.bf16 %v854
        %v1407 = vunpack.c.l.s8.bf16 %v855
        %v1408 = vunpack.c.l.s8.bf16 %v856
        %v1409 = vunpack.c.l.s8.bf16 %v857
        %v1410 = vunpack.c.l.s8.bf16 %v858
        %v1411 = vunpack.c.l.s8.bf16 %v859
        %v1412 = vunpack.c.l.s8.bf16 %v860
        %v1413 = vunpack.c.l.s8.bf16 %v861
        %v1414 = vunpack.c.h.s8.bf16 %v854
        %v1415 = vunpack.c.h.s8.bf16 %v855
        %v1416 = vunpack.c.h.s8.bf16 %v856
        %v1417 = vunpack.c.h.s8.bf16 %v857
        %v1418 = vunpack.c.h.s8.bf16 %v858
        %v1419 = vunpack.c.h.s8.bf16 %v859
        %v1420 = vunpack.c.h.s8.bf16 %v860
        %v1421 = vunpack.c.h.s8.bf16 %v861
        %v1422 = vunpack.c.l.s8.bf16 %v862
        %v1423 = vunpack.c.l.s8.bf16 %v863
        %v1424 = vunpack.c.l.s8.bf16 %v864
        %v1425 = vunpack.c.l.s8.bf16 %v865
        %v1426 = vunpack.c.l.s8.bf16 %v866
        %v1427 = vunpack.c.l.s8.bf16 %v867
        %v1428 = vunpack.c.l.s8.bf16 %v868
        %v1429 = vunpack.c.l.s8.bf16 %v869
        %v1430 = vunpack.c.h.s8.bf16 %v862
        %v1431 = vunpack.c.h.s8.bf16 %v863
        %v1432 = vunpack.c.h.s8.bf16 %v864
        %v1433 = vunpack.c.h.s8.bf16 %v865
        %v1434 = vunpack.c.h.s8.bf16 %v866
        %v1435 = vunpack.c.h.s8.bf16 %v867
        %v1436 = vunpack.c.h.s8.bf16 %v868
        %v1437 = vunpack.c.h.s8.bf16 %v869
        %v1438 = vunpack.c.l.s8.bf16 %v870
        %v1439 = vunpack.c.l.s8.bf16 %v871
        %v1440 = vunpack.c.l.s8.bf16 %v872
        %v1441 = vunpack.c.l.s8.bf16 %v873
        %v1442 = vunpack.c.l.s8.bf16 %v874
        %v1443 = vunpack.c.l.s8.bf16 %v875
        %v1444 = vunpack.c.l.s8.bf16 %v876
        %v1445 = vunpack.c.l.s8.bf16 %v877
        %v1446 = vunpack.c.h.s8.bf16 %v870
        %v1447 = vunpack.c.h.s8.bf16 %v871
        %v1448 = vunpack.c.h.s8.bf16 %v872
        %v1449 = vunpack.c.h.s8.bf16 %v873
        %v1450 = vunpack.c.h.s8.bf16 %v874
        %v1451 = vunpack.c.h.s8.bf16 %v875
        %v1452 = vunpack.c.h.s8.bf16 %v876
        %v1453 = vunpack.c.h.s8.bf16 %v877
        %v1454 = vunpack.c.l.s8.bf16 %v878
        %v1455 = vunpack.c.l.s8.bf16 %v879
        %v1456 = vunpack.c.l.s8.bf16 %v880
        %v1457 = vunpack.c.l.s8.bf16 %v881
        %v1458 = vunpack.c.l.s8.bf16 %v882
        %v1459 = vunpack.c.l.s8.bf16 %v883
        %v1460 = vunpack.c.l.s8.bf16 %v884
        %v1461 = vunpack.c.l.s8.bf16 %v885
        %v1462 = vunpack.c.h.s8.bf16 %v878
        %v1463 = vunpack.c.h.s8.bf16 %v879
        %v1464 = vunpack.c.h.s8.bf16 %v880
        %v1465 = vunpack.c.h.s8.bf16 %v881
        %v1466 = vunpack.c.h.s8.bf16 %v882
        %v1467 = vunpack.c.h.s8.bf16 %v883
        %v1468 = vunpack.c.h.s8.bf16 %v884
        %v1469 = vunpack.c.h.s8.bf16 %v885
        %v1470 = vunpack.c.l.s8.bf16 %v886
        %v1471 = vunpack.c.l.s8.bf16 %v887
        %v1472 = vunpack.c.l.s8.bf16 %v888
        %v1473 = vunpack.c.l.s8.bf16 %v889
        %v1474 = vunpack.c.l.s8.bf16 %v890
        %v1475 = vunpack.c.l.s8.bf16 %v891
        %v1476 = vunpack.c.l.s8.bf16 %v892
        %v1477 = vunpack.c.l.s8.bf16 %v893
        %v1478 = vunpack.c.h.s8.bf16 %v886
        %v1479 = vunpack.c.h.s8.bf16 %v887
        %v1480 = vunpack.c.h.s8.bf16 %v888
        %v1481 = vunpack.c.h.s8.bf16 %v889
        %v1482 = vunpack.c.h.s8.bf16 %v890
        %v1483 = vunpack.c.h.s8.bf16 %v891
        %v1484 = vunpack.c.h.s8.bf16 %v892
        %v1485 = vunpack.c.h.s8.bf16 %v893
        %v1486 = vunpack.c.l.s8.bf16 %v894
        %v1487 = vunpack.c.l.s8.bf16 %v895
        %v1488 = vunpack.c.l.s8.bf16 %v896
        %v1489 = vunpack.c.l.s8.bf16 %v897
        %v1490 = vunpack.c.l.s8.bf16 %v898
        %v1491 = vunpack.c.l.s8.bf16 %v899
        %v1492 = vunpack.c.l.s8.bf16 %v900
        %v1493 = vunpack.c.l.s8.bf16 %v901
        %v1494 = vunpack.c.h.s8.bf16 %v894
        %v1495 = vunpack.c.h.s8.bf16 %v895
        %v1496 = vunpack.c.h.s8.bf16 %v896
        %v1497 = vunpack.c.h.s8.bf16 %v897
        %v1498 = vunpack.c.h.s8.bf16 %v898
        %v1499 = vunpack.c.h.s8.bf16 %v899
        %v1500 = vunpack.c.h.s8.bf16 %v900
        %v1501 = vunpack.c.h.s8.bf16 %v901
        %v1502 = vunpack.c.l.s8.bf16 %v902
        %v1503 = vunpack.c.l.s8.bf16 %v903
        %v1504 = vunpack.c.l.s8.bf16 %v904
        %v1505 = vunpack.c.l.s8.bf16 %v905
        %v1506 = vunpack.c.l.s8.bf16 %v906
        %v1507 = vunpack.c.l.s8.bf16 %v907
        %v1508 = vunpack.c.l.s8.bf16 %v908
        %v1509 = vunpack.c.l.s8.bf16 %v909
        %v1510 = vunpack.c.h.s8.bf16 %v902
        %v1511 = vunpack.c.h.s8.bf16 %v903
        %v1512 = vunpack.c.h.s8.bf16 %v904
        %v1513 = vunpack.c.h.s8.bf16 %v905
        %v1514 = vunpack.c.h.s8.bf16 %v906
        %v1515 = vunpack.c.h.s8.bf16 %v907
        %v1516 = vunpack.c.h.s8.bf16 %v908
        %v1517 = vunpack.c.h.s8.bf16 %v909
        %v1518 = vunpack.c.l.s8.bf16 %v910
        %v1519 = vunpack.c.l.s8.bf16 %v911
        %v1520 = vunpack.c.l.s8.bf16 %v912
        %v1521 = vunpack.c.l.s8.bf16 %v913
        %v1522 = vunpack.c.l.s8.bf16 %v914
        %v1523 = vunpack.c.l.s8.bf16 %v915
        %v1524 = vunpack.c.l.s8.bf16 %v916
        %v1525 = vunpack.c.l.s8.bf16 %v917
        %v1526 = vunpack.c.h.s8.bf16 %v910
        %v1527 = vunpack.c.h.s8.bf16 %v911
        %v1528 = vunpack.c.h.s8.bf16 %v912
        %v1529 = vunpack.c.h.s8.bf16 %v913
        %v1530 = vunpack.c.h.s8.bf16 %v914
        %v1531 = vunpack.c.h.s8.bf16 %v915
        %v1532 = vunpack.c.h.s8.bf16 %v916
        %v1533 = vunpack.c.h.s8.bf16 %v917
        %v1534 = vunpack.c.l.s8.bf16 %v918
        %v1535 = vunpack.c.l.s8.bf16 %v919
        %v1536 = vunpack.c.l.s8.bf16 %v920
        %v1537 = vunpack.c.l.s8.bf16 %v921
        %v1538 = vunpack.c.l.s8.bf16 %v922
        %v1539 = vunpack.c.l.s8.bf16 %v923
        %v1540 = vunpack.c.l.s8.bf16 %v924
        %v1541 = vunpack.c.l.s8.bf16 %v925
        %v1542 = vunpack.c.h.s8.bf16 %v918
        %v1543 = vunpack.c.h.s8.bf16 %v919
        %v1544 = vunpack.c.h.s8.bf16 %v920
        %v1545 = vunpack.c.h.s8.bf16 %v921
        %v1546 = vunpack.c.h.s8.bf16 %v922
        %v1547 = vunpack.c.h.s8.bf16 %v923
        %v1548 = vunpack.c.h.s8.bf16 %v924
        %v1549 = vunpack.c.h.s8.bf16 %v925
        %v1550 = vunpack.c.l.s8.bf16 %v926
        %v1551 = vunpack.c.l.s8.bf16 %v927
        %v1552 = vunpack.c.l.s8.bf16 %v928
        %v1553 = vunpack.c.l.s8.bf16 %v929
        %v1554 = vunpack.c.l.s8.bf16 %v930
        %v1555 = vunpack.c.l.s8.bf16 %v931
        %v1556 = vunpack.c.l.s8.bf16 %v932
        %v1557 = vunpack.c.l.s8.bf16 %v933
        %v1558 = vunpack.c.h.s8.bf16 %v926
        %v1559 = vunpack.c.h.s8.bf16 %v927
        %v1560 = vunpack.c.h.s8.bf16 %v928
        %v1561 = vunpack.c.h.s8.bf16 %v929
        %v1562 = vunpack.c.h.s8.bf16 %v930
        %v1563 = vunpack.c.h.s8.bf16 %v931
        %v1564 = vunpack.c.h.s8.bf16 %v932
        %v1565 = vunpack.c.h.s8.bf16 %v933
        %v1566 = vunpack.c.l.s8.bf16 %v934
        %v1567 = vunpack.c.l.s8.bf16 %v935
        %v1568 = vunpack.c.l.s8.bf16 %v936
        %v1569 = vunpack.c.l.s8.bf16 %v937
        %v1570 = vunpack.c.l.s8.bf16 %v938
        %v1571 = vunpack.c.l.s8.bf16 %v939
        %v1572 = vunpack.c.l.s8.bf16 %v940
        %v1573 = vunpack.c.l.s8.bf16 %v941
        %v1574 = vunpack.c.h.s8.bf16 %v934
        %v1575 = vunpack.c.h.s8.bf16 %v935
        %v1576 = vunpack.c.h.s8.bf16 %v936
        %v1577 = vunpack.c.h.s8.bf16 %v937
        %v1578 = vunpack.c.h.s8.bf16 %v938
        %v1579 = vunpack.c.h.s8.bf16 %v939
        %v1580 = vunpack.c.h.s8.bf16 %v940
        %v1581 = vunpack.c.h.s8.bf16 %v941
        %v1582 = vunpack.c.l.s8.bf16 %v942
        %v1583 = vunpack.c.l.s8.bf16 %v943
        %v1584 = vunpack.c.l.s8.bf16 %v944
        %v1585 = vunpack.c.l.s8.bf16 %v945
        %v1586 = vunpack.c.l.s8.bf16 %v946
        %v1587 = vunpack.c.l.s8.bf16 %v947
        %v1588 = vunpack.c.l.s8.bf16 %v948
        %v1589 = vunpack.c.l.s8.bf16 %v949
        %v1590 = vunpack.c.h.s8.bf16 %v942
        %v1591 = vunpack.c.h.s8.bf16 %v943
        %v1592 = vunpack.c.h.s8.bf16 %v944
        %v1593 = vunpack.c.h.s8.bf16 %v945
        %v1594 = vunpack.c.h.s8.bf16 %v946
        %v1595 = vunpack.c.h.s8.bf16 %v947
        %v1596 = vunpack.c.h.s8.bf16 %v948
        %v1597 = vunpack.c.h.s8.bf16 %v949
        %v1598 = vunpack.c.l.s8.bf16 %v950
        %v1599 = vunpack.c.l.s8.bf16 %v951
        %v1600 = vunpack.c.l.s8.bf16 %v952
        %v1601 = vunpack.c.l.s8.bf16 %v953
        %v1602 = vunpack.c.l.s8.bf16 %v954
        %v1603 = vunpack.c.l.s8.bf16 %v955
        %v1604 = vunpack.c.l.s8.bf16 %v956
        %v1605 = vunpack.c.l.s8.bf16 %v957
        %v1606 = vunpack.c.h.s8.bf16 %v950
        %v1607 = vunpack.c.h.s8.bf16 %v951
        %v1608 = vunpack.c.h.s8.bf16 %v952
        %v1609 = vunpack.c.h.s8.bf16 %v953
        %v1610 = vunpack.c.h.s8.bf16 %v954
        %v1611 = vunpack.c.h.s8.bf16 %v955
        %v1612 = vunpack.c.h.s8.bf16 %v956
        %v1613 = vunpack.c.h.s8.bf16 %v957
        %v1614 = vunpack.c.l.s8.bf16 %v958
        %v1615 = vunpack.c.l.s8.bf16 %v959
        %v1616 = vunpack.c.l.s8.bf16 %v960
        %v1617 = vunpack.c.l.s8.bf16 %v961
        %v1618 = vunpack.c.l.s8.bf16 %v962
        %v1619 = vunpack.c.l.s8.bf16 %v963
        %v1620 = vunpack.c.l.s8.bf16 %v964
        %v1621 = vunpack.c.l.s8.bf16 %v965
        %v1622 = vunpack.c.h.s8.bf16 %v958
        %v1623 = vunpack.c.h.s8.bf16 %v959
        %v1624 = vunpack.c.h.s8.bf16 %v960
        %v1625 = vunpack.c.h.s8.bf16 %v961
        %v1626 = vunpack.c.h.s8.bf16 %v962
        %v1627 = vunpack.c.h.s8.bf16 %v963
        %v1628 = vunpack.c.h.s8.bf16 %v964
        %v1629 = vunpack.c.h.s8.bf16 %v965
        %v1630 = vunpack.c.l.s8.bf16 %v966
        %v1631 = vunpack.c.l.s8.bf16 %v967
        %v1632 = vunpack.c.l.s8.bf16 %v968
        %v1633 = vunpack.c.l.s8.bf16 %v969
        %v1634 = vunpack.c.l.s8.bf16 %v970
        %v1635 = vunpack.c.l.s8.bf16 %v971
        %v1636 = vunpack.c.l.s8.bf16 %v972
        %v1637 = vunpack.c.l.s8.bf16 %v973
        %v1638 = vunpack.c.h.s8.bf16 %v966
        %v1639 = vunpack.c.h.s8.bf16 %v967
        %v1640 = vunpack.c.h.s8.bf16 %v968
        %v1641 = vunpack.c.h.s8.bf16 %v969
        %v1642 = vunpack.c.h.s8.bf16 %v970
        %v1643 = vunpack.c.h.s8.bf16 %v971
        %v1644 = vunpack.c.h.s8.bf16 %v972
        %v1645 = vunpack.c.h.s8.bf16 %v973
        %v1646 = vunpack.c.l.s8.bf16 %v974
        %v1647 = vunpack.c.l.s8.bf16 %v975
        %v1648 = vunpack.c.l.s8.bf16 %v976
        %v1649 = vunpack.c.l.s8.bf16 %v977
        %v1650 = vunpack.c.l.s8.bf16 %v978
        %v1651 = vunpack.c.l.s8.bf16 %v979
        %v1652 = vunpack.c.l.s8.bf16 %v980
        %v1653 = vunpack.c.l.s8.bf16 %v981
        %v1654 = vunpack.c.h.s8.bf16 %v974
        %v1655 = vunpack.c.h.s8.bf16 %v975
        %v1656 = vunpack.c.h.s8.bf16 %v976
        %v1657 = vunpack.c.h.s8.bf16 %v977
        %v1658 = vunpack.c.h.s8.bf16 %v978
        %v1659 = vunpack.c.h.s8.bf16 %v979
        %v1660 = vunpack.c.h.s8.bf16 %v980
        %v1661 = vunpack.c.h.s8.bf16 %v981
        %v1662 = vunpack.c.l.s8.bf16 %v982
        %v1663 = vunpack.c.l.s8.bf16 %v983
        %v1664 = vunpack.c.l.s8.bf16 %v984
        %v1665 = vunpack.c.l.s8.bf16 %v985
        %v1666 = vunpack.c.l.s8.bf16 %v986
        %v1667 = vunpack.c.l.s8.bf16 %v987
        %v1668 = vunpack.c.l.s8.bf16 %v988
        %v1669 = vunpack.c.l.s8.bf16 %v989
        %v1670 = vunpack.c.h.s8.bf16 %v982
        %v1671 = vunpack.c.h.s8.bf16 %v983
        %v1672 = vunpack.c.h.s8.bf16 %v984
        %v1673 = vunpack.c.h.s8.bf16 %v985
        %v1674 = vunpack.c.h.s8.bf16 %v986
        %v1675 = vunpack.c.h.s8.bf16 %v987
        %v1676 = vunpack.c.h.s8.bf16 %v988
        %v1677 = vunpack.c.h.s8.bf16 %v989
        %v1678 = vunpack.c.l.s8.bf16 %v990
        %v1679 = vunpack.c.l.s8.bf16 %v991
        %v1680 = vunpack.c.l.s8.bf16 %v992
        %v1681 = vunpack.c.l.s8.bf16 %v993
        %v1682 = vunpack.c.l.s8.bf16 %v994
        %v1683 = vunpack.c.l.s8.bf16 %v995
        %v1684 = vunpack.c.l.s8.bf16 %v996
        %v1685 = vunpack.c.l.s8.bf16 %v997
        %v1686 = vunpack.c.h.s8.bf16 %v990
        %v1687 = vunpack.c.h.s8.bf16 %v991
        %v1688 = vunpack.c.h.s8.bf16 %v992
        %v1689 = vunpack.c.h.s8.bf16 %v993
        %v1690 = vunpack.c.h.s8.bf16 %v994
        %v1691 = vunpack.c.h.s8.bf16 %v995
        %v1692 = vunpack.c.h.s8.bf16 %v996
        %v1693 = vunpack.c.h.s8.bf16 %v997
        %v1694 = vunpack.c.l.s8.bf16 %v998
        %v1695 = vunpack.c.l.s8.bf16 %v999
        %v1696 = vunpack.c.l.s8.bf16 %v1000
        %v1697 = vunpack.c.l.s8.bf16 %v1001
        %v1698 = vunpack.c.l.s8.bf16 %v1002
        %v1699 = vunpack.c.l.s8.bf16 %v1003
        %v1700 = vunpack.c.l.s8.bf16 %v1004
        %v1701 = vunpack.c.l.s8.bf16 %v1005
        %v1702 = vunpack.c.h.s8.bf16 %v998
        %v1703 = vunpack.c.h.s8.bf16 %v999
        %v1704 = vunpack.c.h.s8.bf16 %v1000
        %v1705 = vunpack.c.h.s8.bf16 %v1001
        %v1706 = vunpack.c.h.s8.bf16 %v1002
        %v1707 = vunpack.c.h.s8.bf16 %v1003
        %v1708 = vunpack.c.h.s8.bf16 %v1004
        %v1709 = vunpack.c.h.s8.bf16 %v1005
        %v1710 = vunpack.c.l.s8.bf16 %v1006
        %v1711 = vunpack.c.l.s8.bf16 %v1007
        %v1712 = vunpack.c.l.s8.bf16 %v1008
        %v1713 = vunpack.c.l.s8.bf16 %v1009
        %v1714 = vunpack.c.l.s8.bf16 %v1010
        %v1715 = vunpack.c.l.s8.bf16 %v1011
        %v1716 = vunpack.c.l.s8.bf16 %v1012
        %v1717 = vunpack.c.l.s8.bf16 %v1013
        %v1718 = vunpack.c.h.s8.bf16 %v1006
        %v1719 = vunpack.c.h.s8.bf16 %v1007
        %v1720 = vunpack.c.h.s8.bf16 %v1008
        %v1721 = vunpack.c.h.s8.bf16 %v1009
        %v1722 = vunpack.c.h.s8.bf16 %v1010
        %v1723 = vunpack.c.h.s8.bf16 %v1011
        %v1724 = vunpack.c.h.s8.bf16 %v1012
        %v1725 = vunpack.c.h.s8.bf16 %v1013
        %v1726 = vunpack.c.l.s8.bf16 %v1014
        %v1727 = vunpack.c.l.s8.bf16 %v1015
        %v1728 = vunpack.c.l.s8.bf16 %v1016
        %v1729 = vunpack.c.l.s8.bf16 %v1017
        %v1730 = vunpack.c.l.s8.bf16 %v1018
        %v1731 = vunpack.c.l.s8.bf16 %v1019
        %v1732 = vunpack.c.l.s8.bf16 %v1020
        %v1733 = vunpack.c.l.s8.bf16 %v1021
        %v1734 = vunpack.c.h.s8.bf16 %v1014
        %v1735 = vunpack.c.h.s8.bf16 %v1015
        %v1736 = vunpack.c.h.s8.bf16 %v1016
        %v1737 = vunpack.c.h.s8.bf16 %v1017
        %v1738 = vunpack.c.h.s8.bf16 %v1018
        %v1739 = vunpack.c.h.s8.bf16 %v1019
        %v1740 = vunpack.c.h.s8.bf16 %v1020
        %v1741 = vunpack.c.h.s8.bf16 %v1021
        %v1742 = vunpack.c.l.s8.bf16 %v1022
        %v1743 = vunpack.c.l.s8.bf16 %v1023
        %v1744 = vunpack.c.l.s8.bf16 %v1024
        %v1745 = vunpack.c.l.s8.bf16 %v1025
        %v1746 = vunpack.c.l.s8.bf16 %v1026
        %v1747 = vunpack.c.l.s8.bf16 %v1027
        %v1748 = vunpack.c.l.s8.bf16 %v1028
        %v1749 = vunpack.c.l.s8.bf16 %v1029
        %v1750 = vunpack.c.h.s8.bf16 %v1022
        %v1751 = vunpack.c.h.s8.bf16 %v1023
        %v1752 = vunpack.c.h.s8.bf16 %v1024
        %v1753 = vunpack.c.h.s8.bf16 %v1025
        %v1754 = vunpack.c.h.s8.bf16 %v1026
        %v1755 = vunpack.c.h.s8.bf16 %v1027
        %v1756 = vunpack.c.h.s8.bf16 %v1028
        %v1757 = vunpack.c.h.s8.bf16 %v1029
        %v1758 = vunpack.c.l.s8.bf16 %v1030
        %v1759 = vunpack.c.l.s8.bf16 %v1031
        %v1760 = vunpack.c.l.s8.bf16 %v1032
        %v1761 = vunpack.c.l.s8.bf16 %v1033
        %v1762 = vunpack.c.l.s8.bf16 %v1034
        %v1763 = vunpack.c.l.s8.bf16 %v1035
        %v1764 = vunpack.c.l.s8.bf16 %v1036
        %v1765 = vunpack.c.l.s8.bf16 %v1037
        %v1766 = vunpack.c.h.s8.bf16 %v1030
        %v1767 = vunpack.c.h.s8.bf16 %v1031
        %v1768 = vunpack.c.h.s8.bf16 %v1032
        %v1769 = vunpack.c.h.s8.bf16 %v1033
        %v1770 = vunpack.c.h.s8.bf16 %v1034
        %v1771 = vunpack.c.h.s8.bf16 %v1035
        %v1772 = vunpack.c.h.s8.bf16 %v1036
        %v1773 = vunpack.c.h.s8.bf16 %v1037
        %v1774 = vunpack.c.l.s8.bf16 %v1038
        %v1775 = vunpack.c.l.s8.bf16 %v1039
        %v1776 = vunpack.c.l.s8.bf16 %v1040
        %v1777 = vunpack.c.l.s8.bf16 %v1041
        %v1778 = vunpack.c.l.s8.bf16 %v1042
        %v1779 = vunpack.c.l.s8.bf16 %v1043
        %v1780 = vunpack.c.l.s8.bf16 %v1044
        %v1781 = vunpack.c.l.s8.bf16 %v1045
        %v1782 = vunpack.c.h.s8.bf16 %v1038
        %v1783 = vunpack.c.h.s8.bf16 %v1039
        %v1784 = vunpack.c.h.s8.bf16 %v1040
        %v1785 = vunpack.c.h.s8.bf16 %v1041
        %v1786 = vunpack.c.h.s8.bf16 %v1042
        %v1787 = vunpack.c.h.s8.bf16 %v1043
        %v1788 = vunpack.c.h.s8.bf16 %v1044
        %v1789 = vunpack.c.h.s8.bf16 %v1045
        %v1790 = vunpack.c.l.s8.bf16 %v1046
        %v1791 = vunpack.c.l.s8.bf16 %v1047
        %v1792 = vunpack.c.l.s8.bf16 %v1048
        %v1793 = vunpack.c.l.s8.bf16 %v1049
        %v1794 = vunpack.c.l.s8.bf16 %v1050
        %v1795 = vunpack.c.l.s8.bf16 %v1051
        %v1796 = vunpack.c.l.s8.bf16 %v1052
        %v1797 = vunpack.c.l.s8.bf16 %v1053
        %v1798 = vunpack.c.h.s8.bf16 %v1046
        %v1799 = vunpack.c.h.s8.bf16 %v1047
        %v1800 = vunpack.c.h.s8.bf16 %v1048
        %v1801 = vunpack.c.h.s8.bf16 %v1049
        %v1802 = vunpack.c.h.s8.bf16 %v1050
        %v1803 = vunpack.c.h.s8.bf16 %v1051
        %v1804 = vunpack.c.h.s8.bf16 %v1052
        %v1805 = vunpack.c.h.s8.bf16 %v1053
        %v1806 = vunpack.c.l.s8.bf16 %v1054
        %v1807 = vunpack.c.l.s8.bf16 %v1055
        %v1808 = vunpack.c.l.s8.bf16 %v1056
        %v1809 = vunpack.c.l.s8.bf16 %v1057
        %v1810 = vunpack.c.l.s8.bf16 %v1058
        %v1811 = vunpack.c.l.s8.bf16 %v1059
        %v1812 = vunpack.c.l.s8.bf16 %v1060
        %v1813 = vunpack.c.l.s8.bf16 %v1061
        %v1814 = vunpack.c.h.s8.bf16 %v1054
        %v1815 = vunpack.c.h.s8.bf16 %v1055
        %v1816 = vunpack.c.h.s8.bf16 %v1056
        %v1817 = vunpack.c.h.s8.bf16 %v1057
        %v1818 = vunpack.c.h.s8.bf16 %v1058
        %v1819 = vunpack.c.h.s8.bf16 %v1059
        %v1820 = vunpack.c.h.s8.bf16 %v1060
        %v1821 = vunpack.c.h.s8.bf16 %v1061
        %v1822 = vunpack.c.l.s8.bf16 %v1062
        %v1823 = vunpack.c.l.s8.bf16 %v1063
        %v1824 = vunpack.c.l.s8.bf16 %v1064
        %v1825 = vunpack.c.l.s8.bf16 %v1065
        %v1826 = vunpack.c.l.s8.bf16 %v1066
        %v1827 = vunpack.c.l.s8.bf16 %v1067
        %v1828 = vunpack.c.l.s8.bf16 %v1068
        %v1829 = vunpack.c.l.s8.bf16 %v1069
        %v1830 = vunpack.c.h.s8.bf16 %v1062
        %v1831 = vunpack.c.h.s8.bf16 %v1063
        %v1832 = vunpack.c.h.s8.bf16 %v1064
        %v1833 = vunpack.c.h.s8.bf16 %v1065
        %v1834 = vunpack.c.h.s8.bf16 %v1066
        %v1835 = vunpack.c.h.s8.bf16 %v1067
        %v1836 = vunpack.c.h.s8.bf16 %v1068
        %v1837 = vunpack.c.h.s8.bf16 %v1069
        %v1838 = vunpack.c.l.s8.bf16 %v1070
        %v1839 = vunpack.c.l.s8.bf16 %v1071
        %v1840 = vunpack.c.l.s8.bf16 %v1072
        %v1841 = vunpack.c.l.s8.bf16 %v1073
        %v1842 = vunpack.c.l.s8.bf16 %v1074
        %v1843 = vunpack.c.l.s8.bf16 %v1075
        %v1844 = vunpack.c.l.s8.bf16 %v1076
        %v1845 = vunpack.c.l.s8.bf16 %v1077
        %v1846 = vunpack.c.h.s8.bf16 %v1070
        %v1847 = vunpack.c.h.s8.bf16 %v1071
        %v1848 = vunpack.c.h.s8.bf16 %v1072
        %v1849 = vunpack.c.h.s8.bf16 %v1073
        %v1850 = vunpack.c.h.s8.bf16 %v1074
        %v1851 = vunpack.c.h.s8.bf16 %v1075
        %v1852 = vunpack.c.h.s8.bf16 %v1076
        %v1853 = vunpack.c.h.s8.bf16 %v1077
        %v1854 = vunpack.c.l.s8.bf16 %v1078
        %v1855 = vunpack.c.l.s8.bf16 %v1079
        %v1856 = vunpack.c.l.s8.bf16 %v1080
        %v1857 = vunpack.c.l.s8.bf16 %v1081
        %v1858 = vunpack.c.l.s8.bf16 %v1082
        %v1859 = vunpack.c.l.s8.bf16 %v1083
        %v1860 = vunpack.c.l.s8.bf16 %v1084
        %v1861 = vunpack.c.l.s8.bf16 %v1085
        %v1862 = vunpack.c.h.s8.bf16 %v1078
        %v1863 = vunpack.c.h.s8.bf16 %v1079
        %v1864 = vunpack.c.h.s8.bf16 %v1080
        %v1865 = vunpack.c.h.s8.bf16 %v1081
        %v1866 = vunpack.c.h.s8.bf16 %v1082
        %v1867 = vunpack.c.h.s8.bf16 %v1083
        %v1868 = vunpack.c.h.s8.bf16 %v1084
        %v1869 = vunpack.c.h.s8.bf16 %v1085
        %v1870 = vunpack.c.l.s8.bf16 %v1086
        %v1871 = vunpack.c.l.s8.bf16 %v1087
        %v1872 = vunpack.c.l.s8.bf16 %v1088
        %v1873 = vunpack.c.l.s8.bf16 %v1089
        %v1874 = vunpack.c.l.s8.bf16 %v1090
        %v1875 = vunpack.c.l.s8.bf16 %v1091
        %v1876 = vunpack.c.l.s8.bf16 %v1092
        %v1877 = vunpack.c.l.s8.bf16 %v1093
        %v1878 = vunpack.c.h.s8.bf16 %v1086
        %v1879 = vunpack.c.h.s8.bf16 %v1087
        %v1880 = vunpack.c.h.s8.bf16 %v1088
        %v1881 = vunpack.c.h.s8.bf16 %v1089
        %v1882 = vunpack.c.h.s8.bf16 %v1090
        %v1883 = vunpack.c.h.s8.bf16 %v1091
        %v1884 = vunpack.c.h.s8.bf16 %v1092
        %v1885 = vunpack.c.h.s8.bf16 %v1093
        %v1886 = vunpack.c.l.s8.bf16 %v1094
        %v1887 = vunpack.c.l.s8.bf16 %v1095
        %v1888 = vunpack.c.l.s8.bf16 %v1096
        %v1889 = vunpack.c.l.s8.bf16 %v1097
        %v1890 = vunpack.c.l.s8.bf16 %v1098
        %v1891 = vunpack.c.l.s8.bf16 %v1099
        %v1892 = vunpack.c.l.s8.bf16 %v1100
        %v1893 = vunpack.c.l.s8.bf16 %v1101
        %v1894 = vunpack.c.h.s8.bf16 %v1094
        %v1895 = vunpack.c.h.s8.bf16 %v1095
        %v1896 = vunpack.c.h.s8.bf16 %v1096
        %v1897 = vunpack.c.h.s8.bf16 %v1097
        %v1898 = vunpack.c.h.s8.bf16 %v1098
        %v1899 = vunpack.c.h.s8.bf16 %v1099
        %v1900 = vunpack.c.h.s8.bf16 %v1100
        %v1901 = vunpack.c.h.s8.bf16 %v1101
        %v1902 = vunpack.c.l.s8.bf16 %v1102
        %v1903 = vunpack.c.l.s8.bf16 %v1103
        %v1904 = vunpack.c.l.s8.bf16 %v1104
        %v1905 = vunpack.c.l.s8.bf16 %v1105
        %v1906 = vunpack.c.l.s8.bf16 %v1106
        %v1907 = vunpack.c.l.s8.bf16 %v1107
        %v1908 = vunpack.c.l.s8.bf16 %v1108
        %v1909 = vunpack.c.l.s8.bf16 %v1109
        %v1910 = vunpack.c.h.s8.bf16 %v1102
        %v1911 = vunpack.c.h.s8.bf16 %v1103
        %v1912 = vunpack.c.h.s8.bf16 %v1104
        %v1913 = vunpack.c.h.s8.bf16 %v1105
        %v1914 = vunpack.c.h.s8.bf16 %v1106
        %v1915 = vunpack.c.h.s8.bf16 %v1107
        %v1916 = vunpack.c.h.s8.bf16 %v1108
        %v1917 = vunpack.c.h.s8.bf16 %v1109
        %v1918 = vunpack.c.l.s8.bf16 %v1110
        %v1919 = vunpack.c.l.s8.bf16 %v1111
        %v1920 = vunpack.c.l.s8.bf16 %v1112
        %v1921 = vunpack.c.l.s8.bf16 %v1113
        %v1922 = vunpack.c.l.s8.bf16 %v1114
        %v1923 = vunpack.c.l.s8.bf16 %v1115
        %v1924 = vunpack.c.l.s8.bf16 %v1116
        %v1925 = vunpack.c.l.s8.bf16 %v1117
        %v1926 = vunpack.c.h.s8.bf16 %v1110
        %v1927 = vunpack.c.h.s8.bf16 %v1111
        %v1928 = vunpack.c.h.s8.bf16 %v1112
        %v1929 = vunpack.c.h.s8.bf16 %v1113
        %v1930 = vunpack.c.h.s8.bf16 %v1114
        %v1931 = vunpack.c.h.s8.bf16 %v1115
        %v1932 = vunpack.c.h.s8.bf16 %v1116
        %v1933 = vunpack.c.h.s8.bf16 %v1117
        %v1934 = vunpack.c.l.s8.bf16 %v1118
        %v1935 = vunpack.c.l.s8.bf16 %v1119
        %v1936 = vunpack.c.l.s8.bf16 %v1120
        %v1937 = vunpack.c.l.s8.bf16 %v1121
        %v1938 = vunpack.c.l.s8.bf16 %v1122
        %v1939 = vunpack.c.l.s8.bf16 %v1123
        %v1940 = vunpack.c.l.s8.bf16 %v1124
        %v1941 = vunpack.c.l.s8.bf16 %v1125
        %v1942 = vunpack.c.h.s8.bf16 %v1118
        %v1943 = vunpack.c.h.s8.bf16 %v1119
        %v1944 = vunpack.c.h.s8.bf16 %v1120
        %v1945 = vunpack.c.h.s8.bf16 %v1121
        %v1946 = vunpack.c.h.s8.bf16 %v1122
        %v1947 = vunpack.c.h.s8.bf16 %v1123
        %v1948 = vunpack.c.h.s8.bf16 %v1124
        %v1949 = vunpack.c.h.s8.bf16 %v1125
        %v1950 = vunpack.c.l.s8.bf16 %v1126
        %v1951 = vunpack.c.l.s8.bf16 %v1127
        %v1952 = vunpack.c.l.s8.bf16 %v1128
        %v1953 = vunpack.c.l.s8.bf16 %v1129
        %v1954 = vunpack.c.l.s8.bf16 %v1130
        %v1955 = vunpack.c.l.s8.bf16 %v1131
        %v1956 = vunpack.c.l.s8.bf16 %v1132
        %v1957 = vunpack.c.l.s8.bf16 %v1133
        %v1958 = vunpack.c.h.s8.bf16 %v1126
        %v1959 = vunpack.c.h.s8.bf16 %v1127
        %v1960 = vunpack.c.h.s8.bf16 %v1128
        %v1961 = vunpack.c.h.s8.bf16 %v1129
        %v1962 = vunpack.c.h.s8.bf16 %v1130
        %v1963 = vunpack.c.h.s8.bf16 %v1131
        %v1964 = vunpack.c.h.s8.bf16 %v1132
        %v1965 = vunpack.c.h.s8.bf16 %v1133
        %v1966 = vunpack.c.l.s8.bf16 %v1134
        %v1967 = vunpack.c.l.s8.bf16 %v1135
        %v1968 = vunpack.c.l.s8.bf16 %v1136
        %v1969 = vunpack.c.l.s8.bf16 %v1137
        %v1970 = vunpack.c.l.s8.bf16 %v1138
        %v1971 = vunpack.c.l.s8.bf16 %v1139
        %v1972 = vunpack.c.l.s8.bf16 %v1140
        %v1973 = vunpack.c.l.s8.bf16 %v1141
        %v1974 = vunpack.c.h.s8.bf16 %v1134
        %v1975 = vunpack.c.h.s8.bf16 %v1135
        %v1976 = vunpack.c.h.s8.bf16 %v1136
        %v1977 = vunpack.c.h.s8.bf16 %v1137
        %v1978 = vunpack.c.h.s8.bf16 %v1138
        %v1979 = vunpack.c.h.s8.bf16 %v1139
        %v1980 = vunpack.c.h.s8.bf16 %v1140
        %v1981 = vunpack.c.h.s8.bf16 %v1141
        %v1982 = vunpack.c.l.s8.bf16 %v1142
        %v1983 = vunpack.c.l.s8.bf16 %v1143
        %v1984 = vunpack.c.l.s8.bf16 %v1144
        %v1985 = vunpack.c.l.s8.bf16 %v1145
        %v1986 = vunpack.c.l.s8.bf16 %v1146
        %v1987 = vunpack.c.l.s8.bf16 %v1147
        %v1988 = vunpack.c.l.s8.bf16 %v1148
        %v1989 = vunpack.c.l.s8.bf16 %v1149
        %v1990 = vunpack.c.h.s8.bf16 %v1142
        %v1991 = vunpack.c.h.s8.bf16 %v1143
        %v1992 = vunpack.c.h.s8.bf16 %v1144
        %v1993 = vunpack.c.h.s8.bf16 %v1145
        %v1994 = vunpack.c.h.s8.bf16 %v1146
        %v1995 = vunpack.c.h.s8.bf16 %v1147
        %v1996 = vunpack.c.h.s8.bf16 %v1148
        %v1997 = vunpack.c.h.s8.bf16 %v1149
        %v1998 = vunpack.c.l.s8.bf16 %v1150
        %v1999 = vunpack.c.l.s8.bf16 %v1151
        %v2000 = vunpack.c.l.s8.bf16 %v1152
        %v2001 = vunpack.c.l.s8.bf16 %v1153
        %v2002 = vunpack.c.l.s8.bf16 %v1154
        %v2003 = vunpack.c.l.s8.bf16 %v1155
        %v2004 = vunpack.c.l.s8.bf16 %v1156
        %v2005 = vunpack.c.l.s8.bf16 %v1157
        %v2006 = vunpack.c.h.s8.bf16 %v1150
        %v2007 = vunpack.c.h.s8.bf16 %v1151
        %v2008 = vunpack.c.h.s8.bf16 %v1152
        %v2009 = vunpack.c.h.s8.bf16 %v1153
        %v2010 = vunpack.c.h.s8.bf16 %v1154
        %v2011 = vunpack.c.h.s8.bf16 %v1155
        %v2012 = vunpack.c.h.s8.bf16 %v1156
        %v2013 = vunpack.c.h.s8.bf16 %v1157
        %v2014 = vunpack.c.l.s8.bf16 %v1158
        %v2015 = vunpack.c.l.s8.bf16 %v1159
        %v2016 = vunpack.c.l.s8.bf16 %v1160
        %v2017 = vunpack.c.l.s8.bf16 %v1161
        %v2018 = vunpack.c.l.s8.bf16 %v1162
        %v2019 = vunpack.c.l.s8.bf16 %v1163
        %v2020 = vunpack.c.l.s8.bf16 %v1164
        %v2021 = vunpack.c.l.s8.bf16 %v1165
        %v2022 = vunpack.c.h.s8.bf16 %v1158
        %v2023 = vunpack.c.h.s8.bf16 %v1159
        %v2024 = vunpack.c.h.s8.bf16 %v1160
        %v2025 = vunpack.c.h.s8.bf16 %v1161
        %v2026 = vunpack.c.h.s8.bf16 %v1162
        %v2027 = vunpack.c.h.s8.bf16 %v1163
        %v2028 = vunpack.c.h.s8.bf16 %v1164
        %v2029 = vunpack.c.h.s8.bf16 %v1165
        %v2030 = vunpack.c.l.s8.bf16 %v1166
        %v2031 = vunpack.c.l.s8.bf16 %v1167
        %v2032 = vunpack.c.l.s8.bf16 %v1168
        %v2033 = vunpack.c.l.s8.bf16 %v1169
        %v2034 = vunpack.c.l.s8.bf16 %v1170
        %v2035 = vunpack.c.l.s8.bf16 %v1171
        %v2036 = vunpack.c.l.s8.bf16 %v1172
        %v2037 = vunpack.c.l.s8.bf16 %v1173
        %v2038 = vunpack.c.h.s8.bf16 %v1166
        %v2039 = vunpack.c.h.s8.bf16 %v1167
        %v2040 = vunpack.c.h.s8.bf16 %v1168
        %v2041 = vunpack.c.h.s8.bf16 %v1169
        %v2042 = vunpack.c.h.s8.bf16 %v1170
        %v2043 = vunpack.c.h.s8.bf16 %v1171
        %v2044 = vunpack.c.h.s8.bf16 %v1172
        %v2045 = vunpack.c.h.s8.bf16 %v1173
        %v2046 = vunpack.c.l.s8.bf16 %v1174
        %v2047 = vunpack.c.l.s8.bf16 %v1175
        %v2048 = vunpack.c.l.s8.bf16 %v1176
        %v2049 = vunpack.c.l.s8.bf16 %v1177
        %v2050 = vunpack.c.l.s8.bf16 %v1178
        %v2051 = vunpack.c.l.s8.bf16 %v1179
        %v2052 = vunpack.c.l.s8.bf16 %v1180
        %v2053 = vunpack.c.l.s8.bf16 %v1181
        %v2054 = vunpack.c.h.s8.bf16 %v1174
        %v2055 = vunpack.c.h.s8.bf16 %v1175
        %v2056 = vunpack.c.h.s8.bf16 %v1176
        %v2057 = vunpack.c.h.s8.bf16 %v1177
        %v2058 = vunpack.c.h.s8.bf16 %v1178
        %v2059 = vunpack.c.h.s8.bf16 %v1179
        %v2060 = vunpack.c.h.s8.bf16 %v1180
        %v2061 = vunpack.c.h.s8.bf16 %v1181
        %v2062 = vunpack.c.l.s8.bf16 %v1182
        %v2063 = vunpack.c.l.s8.bf16 %v1183
        %v2064 = vunpack.c.l.s8.bf16 %v1184
        %v2065 = vunpack.c.l.s8.bf16 %v1185
        %v2066 = vunpack.c.l.s8.bf16 %v1186
        %v2067 = vunpack.c.l.s8.bf16 %v1187
        %v2068 = vunpack.c.l.s8.bf16 %v1188
        %v2069 = vunpack.c.l.s8.bf16 %v1189
        %v2070 = vunpack.c.h.s8.bf16 %v1182
        %v2071 = vunpack.c.h.s8.bf16 %v1183
        %v2072 = vunpack.c.h.s8.bf16 %v1184
        %v2073 = vunpack.c.h.s8.bf16 %v1185
        %v2074 = vunpack.c.h.s8.bf16 %v1186
        %v2075 = vunpack.c.h.s8.bf16 %v1187
        %v2076 = vunpack.c.h.s8.bf16 %v1188
        %v2077 = vunpack.c.h.s8.bf16 %v1189
        %v2078 = vunpack.c.l.s8.bf16 %v1190
        %v2079 = vunpack.c.l.s8.bf16 %v1191
        %v2080 = vunpack.c.l.s8.bf16 %v1192
        %v2081 = vunpack.c.l.s8.bf16 %v1193
        %v2082 = vunpack.c.l.s8.bf16 %v1194
        %v2083 = vunpack.c.l.s8.bf16 %v1195
        %v2084 = vunpack.c.l.s8.bf16 %v1196
        %v2085 = vunpack.c.l.s8.bf16 %v1197
        %v2086 = vunpack.c.h.s8.bf16 %v1190
        %v2087 = vunpack.c.h.s8.bf16 %v1191
        %v2088 = vunpack.c.h.s8.bf16 %v1192
        %v2089 = vunpack.c.h.s8.bf16 %v1193
        %v2090 = vunpack.c.h.s8.bf16 %v1194
        %v2091 = vunpack.c.h.s8.bf16 %v1195
        %v2092 = vunpack.c.h.s8.bf16 %v1196
        %v2093 = vunpack.c.h.s8.bf16 %v1197
        %v2094 = vunpack.c.l.s8.bf16 %v1198
        %v2095 = vunpack.c.l.s8.bf16 %v1199
        %v2096 = vunpack.c.l.s8.bf16 %v1200
        %v2097 = vunpack.c.l.s8.bf16 %v1201
        %v2098 = vunpack.c.l.s8.bf16 %v1202
        %v2099 = vunpack.c.l.s8.bf16 %v1203
        %v2100 = vunpack.c.l.s8.bf16 %v1204
        %v2101 = vunpack.c.l.s8.bf16 %v1205
        %v2102 = vunpack.c.h.s8.bf16 %v1198
        %v2103 = vunpack.c.h.s8.bf16 %v1199
        %v2104 = vunpack.c.h.s8.bf16 %v1200
        %v2105 = vunpack.c.h.s8.bf16 %v1201
        %v2106 = vunpack.c.h.s8.bf16 %v1202
        %v2107 = vunpack.c.h.s8.bf16 %v1203
        %v2108 = vunpack.c.h.s8.bf16 %v1204
        %v2109 = vunpack.c.h.s8.bf16 %v1205
        %v2110 = vunpack.c.l.s8.bf16 %v1206
        %v2111 = vunpack.c.l.s8.bf16 %v1207
        %v2112 = vunpack.c.l.s8.bf16 %v1208
        %v2113 = vunpack.c.l.s8.bf16 %v1209
        %v2114 = vunpack.c.l.s8.bf16 %v1210
        %v2115 = vunpack.c.l.s8.bf16 %v1211
        %v2116 = vunpack.c.l.s8.bf16 %v1212
        %v2117 = vunpack.c.l.s8.bf16 %v1213
        %v2118 = vunpack.c.h.s8.bf16 %v1206
        %v2119 = vunpack.c.h.s8.bf16 %v1207
        %v2120 = vunpack.c.h.s8.bf16 %v1208
        %v2121 = vunpack.c.h.s8.bf16 %v1209
        %v2122 = vunpack.c.h.s8.bf16 %v1210
        %v2123 = vunpack.c.h.s8.bf16 %v1211
        %v2124 = vunpack.c.h.s8.bf16 %v1212
        %v2125 = vunpack.c.h.s8.bf16 %v1213
        %v2126 = vunpack.c.l.s8.bf16 %v1214
        %v2127 = vunpack.c.l.s8.bf16 %v1215
        %v2128 = vunpack.c.l.s8.bf16 %v1216
        %v2129 = vunpack.c.l.s8.bf16 %v1217
        %v2130 = vunpack.c.l.s8.bf16 %v1218
        %v2131 = vunpack.c.l.s8.bf16 %v1219
        %v2132 = vunpack.c.l.s8.bf16 %v1220
        %v2133 = vunpack.c.l.s8.bf16 %v1221
        %v2134 = vunpack.c.h.s8.bf16 %v1214
        %v2135 = vunpack.c.h.s8.bf16 %v1215
        %v2136 = vunpack.c.h.s8.bf16 %v1216
        %v2137 = vunpack.c.h.s8.bf16 %v1217
        %v2138 = vunpack.c.h.s8.bf16 %v1218
        %v2139 = vunpack.c.h.s8.bf16 %v1219
        %v2140 = vunpack.c.h.s8.bf16 %v1220
        %v2141 = vunpack.c.h.s8.bf16 %v1221
        %v2142 = vunpack.c.l.s8.bf16 %v1222
        %v2143 = vunpack.c.l.s8.bf16 %v1223
        %v2144 = vunpack.c.l.s8.bf16 %v1224
        %v2145 = vunpack.c.l.s8.bf16 %v1225
        %v2146 = vunpack.c.l.s8.bf16 %v1226
        %v2147 = vunpack.c.l.s8.bf16 %v1227
        %v2148 = vunpack.c.l.s8.bf16 %v1228
        %v2149 = vunpack.c.l.s8.bf16 %v1229
        %v2150 = vunpack.c.h.s8.bf16 %v1222
        %v2151 = vunpack.c.h.s8.bf16 %v1223
        %v2152 = vunpack.c.h.s8.bf16 %v1224
        %v2153 = vunpack.c.h.s8.bf16 %v1225
        %v2154 = vunpack.c.h.s8.bf16 %v1226
        %v2155 = vunpack.c.h.s8.bf16 %v1227
        %v2156 = vunpack.c.h.s8.bf16 %v1228
        %v2157 = vunpack.c.h.s8.bf16 %v1229
        %v2158 = vunpack.c.l.s8.bf16 %v1230
        %v2159 = vunpack.c.l.s8.bf16 %v1231
        %v2160 = vunpack.c.l.s8.bf16 %v1232
        %v2161 = vunpack.c.l.s8.bf16 %v1233
        %v2162 = vunpack.c.l.s8.bf16 %v1234
        %v2163 = vunpack.c.l.s8.bf16 %v1235
        %v2164 = vunpack.c.l.s8.bf16 %v1236
        %v2165 = vunpack.c.l.s8.bf16 %v1237
        %v2166 = vunpack.c.h.s8.bf16 %v1230
        %v2167 = vunpack.c.h.s8.bf16 %v1231
        %v2168 = vunpack.c.h.s8.bf16 %v1232
        %v2169 = vunpack.c.h.s8.bf16 %v1233
        %v2170 = vunpack.c.h.s8.bf16 %v1234
        %v2171 = vunpack.c.h.s8.bf16 %v1235
        %v2172 = vunpack.c.h.s8.bf16 %v1236
        %v2173 = vunpack.c.h.s8.bf16 %v1237
        %v2174 = vunpack.c.l.s8.bf16 %v1238
        %v2175 = vunpack.c.l.s8.bf16 %v1239
        %v2176 = vunpack.c.l.s8.bf16 %v1240
        %v2177 = vunpack.c.l.s8.bf16 %v1241
        %v2178 = vunpack.c.l.s8.bf16 %v1242
        %v2179 = vunpack.c.l.s8.bf16 %v1243
        %v2180 = vunpack.c.l.s8.bf16 %v1244
        %v2181 = vunpack.c.l.s8.bf16 %v1245
        %v2182 = vunpack.c.h.s8.bf16 %v1238
        %v2183 = vunpack.c.h.s8.bf16 %v1239
        %v2184 = vunpack.c.h.s8.bf16 %v1240
        %v2185 = vunpack.c.h.s8.bf16 %v1241
        %v2186 = vunpack.c.h.s8.bf16 %v1242
        %v2187 = vunpack.c.h.s8.bf16 %v1243
        %v2188 = vunpack.c.h.s8.bf16 %v1244
        %v2189 = vunpack.c.h.s8.bf16 %v1245
        %v2190 = vunpack.c.l.s8.bf16 %v1246
        %v2191 = vunpack.c.l.s8.bf16 %v1247
        %v2192 = vunpack.c.l.s8.bf16 %v1248
        %v2193 = vunpack.c.l.s8.bf16 %v1249
        %v2194 = vunpack.c.l.s8.bf16 %v1250
        %v2195 = vunpack.c.l.s8.bf16 %v1251
        %v2196 = vunpack.c.l.s8.bf16 %v1252
        %v2197 = vunpack.c.l.s8.bf16 %v1253
        %v2198 = vunpack.c.h.s8.bf16 %v1246
        %v2199 = vunpack.c.h.s8.bf16 %v1247
        %v2200 = vunpack.c.h.s8.bf16 %v1248
        %v2201 = vunpack.c.h.s8.bf16 %v1249
        %v2202 = vunpack.c.h.s8.bf16 %v1250
        %v2203 = vunpack.c.h.s8.bf16 %v1251
        %v2204 = vunpack.c.h.s8.bf16 %v1252
        %v2205 = vunpack.c.h.s8.bf16 %v1253
        %v2206 = vunpack.c.l.s8.bf16 %v1254
        %v2207 = vunpack.c.l.s8.bf16 %v1255
        %v2208 = vunpack.c.l.s8.bf16 %v1256
        %v2209 = vunpack.c.l.s8.bf16 %v1257
        %v2210 = vunpack.c.l.s8.bf16 %v1258
        %v2211 = vunpack.c.l.s8.bf16 %v1259
        %v2212 = vunpack.c.l.s8.bf16 %v1260
        %v2213 = vunpack.c.l.s8.bf16 %v1261
        %v2214 = vunpack.c.h.s8.bf16 %v1254
        %v2215 = vunpack.c.h.s8.bf16 %v1255
        %v2216 = vunpack.c.h.s8.bf16 %v1256
        %v2217 = vunpack.c.h.s8.bf16 %v1257
        %v2218 = vunpack.c.h.s8.bf16 %v1258
        %v2219 = vunpack.c.h.s8.bf16 %v1259
        %v2220 = vunpack.c.h.s8.bf16 %v1260
        %v2221 = vunpack.c.h.s8.bf16 %v1261
        %v2222 = vunpack.c.l.s8.bf16 %v1262
        %v2223 = vunpack.c.l.s8.bf16 %v1263
        %v2224 = vunpack.c.l.s8.bf16 %v1264
        %v2225 = vunpack.c.l.s8.bf16 %v1265
        %v2226 = vunpack.c.l.s8.bf16 %v1266
        %v2227 = vunpack.c.l.s8.bf16 %v1267
        %v2228 = vunpack.c.l.s8.bf16 %v1268
        %v2229 = vunpack.c.l.s8.bf16 %v1269
        %v2230 = vunpack.c.h.s8.bf16 %v1262
        %v2231 = vunpack.c.h.s8.bf16 %v1263
        %v2232 = vunpack.c.h.s8.bf16 %v1264
        %v2233 = vunpack.c.h.s8.bf16 %v1265
        %v2234 = vunpack.c.h.s8.bf16 %v1266
        %v2235 = vunpack.c.h.s8.bf16 %v1267
        %v2236 = vunpack.c.h.s8.bf16 %v1268
        %v2237 = vunpack.c.h.s8.bf16 %v1269
        %v2238 = vunpack.c.l.s8.bf16 %v1270
        %v2239 = vunpack.c.l.s8.bf16 %v1271
        %v2240 = vunpack.c.l.s8.bf16 %v1272
        %v2241 = vunpack.c.l.s8.bf16 %v1273
        %v2242 = vunpack.c.l.s8.bf16 %v1274
        %v2243 = vunpack.c.l.s8.bf16 %v1275
        %v2244 = vunpack.c.l.s8.bf16 %v1276
        %v2245 = vunpack.c.l.s8.bf16 %v1277
        %v2246 = vunpack.c.h.s8.bf16 %v1270
        %v2247 = vunpack.c.h.s8.bf16 %v1271
        %v2248 = vunpack.c.h.s8.bf16 %v1272
        %v2249 = vunpack.c.h.s8.bf16 %v1273
        %v2250 = vunpack.c.h.s8.bf16 %v1274
        %v2251 = vunpack.c.h.s8.bf16 %v1275
        %v2252 = vunpack.c.h.s8.bf16 %v1276
        %v2253 = vunpack.c.h.s8.bf16 %v1277
        %v2254 = vunpack.c.l.s8.bf16 %v1278
        %v2255 = vunpack.c.l.s8.bf16 %v1279
        %v2256 = vunpack.c.l.s8.bf16 %v1280
        %v2257 = vunpack.c.l.s8.bf16 %v1281
        %v2258 = vunpack.c.l.s8.bf16 %v1282
        %v2259 = vunpack.c.l.s8.bf16 %v1283
        %v2260 = vunpack.c.l.s8.bf16 %v1284
        %v2261 = vunpack.c.l.s8.bf16 %v1285
        %v2262 = vunpack.c.h.s8.bf16 %v1278
        %v2263 = vunpack.c.h.s8.bf16 %v1279
        %v2264 = vunpack.c.h.s8.bf16 %v1280
        %v2265 = vunpack.c.h.s8.bf16 %v1281
        %v2266 = vunpack.c.h.s8.bf16 %v1282
        %v2267 = vunpack.c.h.s8.bf16 %v1283
        %v2268 = vunpack.c.h.s8.bf16 %v1284
        %v2269 = vunpack.c.h.s8.bf16 %v1285
        %v2270 = vunpack.c.l.s8.bf16 %v1286
        %v2271 = vunpack.c.l.s8.bf16 %v1287
        %v2272 = vunpack.c.l.s8.bf16 %v1288
        %v2273 = vunpack.c.l.s8.bf16 %v1289
        %v2274 = vunpack.c.l.s8.bf16 %v1290
        %v2275 = vunpack.c.l.s8.bf16 %v1291
        %v2276 = vunpack.c.l.s8.bf16 %v1292
        %v2277 = vunpack.c.l.s8.bf16 %v1293
        %v2278 = vunpack.c.h.s8.bf16 %v1286
        %v2279 = vunpack.c.h.s8.bf16 %v1287
        %v2280 = vunpack.c.h.s8.bf16 %v1288
        %v2281 = vunpack.c.h.s8.bf16 %v1289
        %v2282 = vunpack.c.h.s8.bf16 %v1290
        %v2283 = vunpack.c.h.s8.bf16 %v1291
        %v2284 = vunpack.c.h.s8.bf16 %v1292
        %v2285 = vunpack.c.h.s8.bf16 %v1293
        %v2286 = vunpack.c.l.s8.bf16 %v1294
        %v2287 = vunpack.c.l.s8.bf16 %v1295
        %v2288 = vunpack.c.l.s8.bf16 %v1296
        %v2289 = vunpack.c.l.s8.bf16 %v1297
        %v2290 = vunpack.c.l.s8.bf16 %v1298
        %v2291 = vunpack.c.l.s8.bf16 %v1299
        %v2292 = vunpack.c.l.s8.bf16 %v1300
        %v2293 = vunpack.c.l.s8.bf16 %v1301
        %v2294 = vunpack.c.h.s8.bf16 %v1294
        %v2295 = vunpack.c.h.s8.bf16 %v1295
        %v2296 = vunpack.c.h.s8.bf16 %v1296
        %v2297 = vunpack.c.h.s8.bf16 %v1297
        %v2298 = vunpack.c.h.s8.bf16 %v1298
        %v2299 = vunpack.c.h.s8.bf16 %v1299
        %v2300 = vunpack.c.h.s8.bf16 %v1300
        %v2301 = vunpack.c.h.s8.bf16 %v1301
        %v2302 = vunpack.c.l.s8.bf16 %v1302
        %v2303 = vunpack.c.l.s8.bf16 %v1303
        %v2304 = vunpack.c.l.s8.bf16 %v1304
        %v2305 = vunpack.c.l.s8.bf16 %v1305
        %v2306 = vunpack.c.l.s8.bf16 %v1306
        %v2307 = vunpack.c.l.s8.bf16 %v1307
        %v2308 = vunpack.c.l.s8.bf16 %v1308
        %v2309 = vunpack.c.l.s8.bf16 %v1309
        %v2310 = vunpack.c.h.s8.bf16 %v1302
        %v2311 = vunpack.c.h.s8.bf16 %v1303
        %v2312 = vunpack.c.h.s8.bf16 %v1304
        %v2313 = vunpack.c.h.s8.bf16 %v1305
        %v2314 = vunpack.c.h.s8.bf16 %v1306
        %v2315 = vunpack.c.h.s8.bf16 %v1307
        %v2316 = vunpack.c.h.s8.bf16 %v1308
        %v2317 = vunpack.c.h.s8.bf16 %v1309
        %v2318 = vunpack.c.l.s8.bf16 %v1310
        %v2319 = vunpack.c.l.s8.bf16 %v1311
        %v2320 = vunpack.c.l.s8.bf16 %v1312
        %v2321 = vunpack.c.l.s8.bf16 %v1313
        %v2322 = vunpack.c.l.s8.bf16 %v1314
        %v2323 = vunpack.c.l.s8.bf16 %v1315
        %v2324 = vunpack.c.l.s8.bf16 %v1316
        %v2325 = vunpack.c.l.s8.bf16 %v1317
        %v2326 = vunpack.c.h.s8.bf16 %v1310
        %v2327 = vunpack.c.h.s8.bf16 %v1311
        %v2328 = vunpack.c.h.s8.bf16 %v1312
        %v2329 = vunpack.c.h.s8.bf16 %v1313
        %v2330 = vunpack.c.h.s8.bf16 %v1314
        %v2331 = vunpack.c.h.s8.bf16 %v1315
        %v2332 = vunpack.c.h.s8.bf16 %v1316
        %v2333 = vunpack.c.h.s8.bf16 %v1317
        %v2334 = vunpack.c.l.s8.bf16 %v1318
        %v2335 = vunpack.c.l.s8.bf16 %v1319
        %v2336 = vunpack.c.l.s8.bf16 %v1320
        %v2337 = vunpack.c.l.s8.bf16 %v1321
        %v2338 = vunpack.c.l.s8.bf16 %v1322
        %v2339 = vunpack.c.l.s8.bf16 %v1323
        %v2340 = vunpack.c.l.s8.bf16 %v1324
        %v2341 = vunpack.c.l.s8.bf16 %v1325
        %v2342 = vunpack.c.h.s8.bf16 %v1318
        %v2343 = vunpack.c.h.s8.bf16 %v1319
        %v2344 = vunpack.c.h.s8.bf16 %v1320
        %v2345 = vunpack.c.h.s8.bf16 %v1321
        %v2346 = vunpack.c.h.s8.bf16 %v1322
        %v2347 = vunpack.c.h.s8.bf16 %v1323
        %v2348 = vunpack.c.h.s8.bf16 %v1324
        %v2349 = vunpack.c.h.s8.bf16 %v1325
        %v2350 = vld [vmem:[#allocation2] sm:$0xff]
        %v2351 = vld [vmem:[#allocation2 + $0x8] sm:$0xff]
        %v2356 = vcombine.high %v810, %v810
        %v2358 = vunpack.c.l.s4 1983009808
        %v2359 = vunpack.c.0.s8 %v2358
        %v2360 = vlaneseq
        %v2361 = vshrl.u32 %v2360, 7
        %v2362 = vsub.s32 %v2359, %v2361
        %v2363 = vrot.slane %v810, %v2362
        %v2365 = vunpack.c.l.s4 1983009808
        %v2366 = vunpack.c.0.s8 %v2365
        %v2367 = vlaneseq
        %v2368 = vshrl.u32 %v2367, 7
        %v2369 = vsub.s32 %v2366, %v2368
        %v2370 = vrot.slane %v2356, %v2369
        %v2371 = vcombine.high %v2363, %v2363
        %v2372 = vcombine.high %v2370, %v2370
        %v2373 = vcombine.high %v811, %v811
        %v2375 = vunpack.c.l.s4 1983009808
        %v2376 = vunpack.c.0.s8 %v2375
        %v2377 = vlaneseq
        %v2378 = vshrl.u32 %v2377, 7
        %v2379 = vsub.s32 %v2376, %v2378
        %v2380 = vrot.slane %v811, %v2379
        %v2382 = vunpack.c.l.s4 1983009808
        %v2383 = vunpack.c.0.s8 %v2382
        %v2384 = vlaneseq
        %v2385 = vshrl.u32 %v2384, 7
        %v2386 = vsub.s32 %v2383, %v2385
        %v2387 = vrot.slane %v2373, %v2386
        %v2388 = vcombine.high %v2380, %v2380
        %v2389 = vcombine.high %v2387, %v2387
        %v2390 = vcombine.high %v812, %v812
        %v2392 = vunpack.c.l.s4 1983009808
        %v2393 = vunpack.c.0.s8 %v2392
        %v2394 = vlaneseq
        %v2395 = vshrl.u32 %v2394, 7
        %v2396 = vsub.s32 %v2393, %v2395
        %v2397 = vrot.slane %v812, %v2396
        %v2399 = vunpack.c.l.s4 1983009808
        %v2400 = vunpack.c.0.s8 %v2399
        %v2401 = vlaneseq
        %v2402 = vshrl.u32 %v2401, 7
        %v2403 = vsub.s32 %v2400, %v2402
        %v2404 = vrot.slane %v2390, %v2403
        %v2405 = vcombine.high %v2397, %v2397
        %v2406 = vcombine.high %v2404, %v2404
        %v2407 = vcombine.high %v813, %v813
        %v2409 = vunpack.c.l.s4 1983009808
        %v2410 = vunpack.c.0.s8 %v2409
        %v2411 = vlaneseq
        %v2412 = vshrl.u32 %v2411, 7
        %v2413 = vsub.s32 %v2410, %v2412
        %v2414 = vrot.slane %v813, %v2413
        %v2416 = vunpack.c.l.s4 1983009808
        %v2417 = vunpack.c.0.s8 %v2416
        %v2418 = vlaneseq
        %v2419 = vshrl.u32 %v2418, 7
        %v2420 = vsub.s32 %v2417, %v2419
        %v2421 = vrot.slane %v2407, %v2420
        %v2422 = vcombine.high %v2414, %v2414
        %v2423 = vcombine.high %v2421, %v2421
        %v2440 = vpack.c.bf16 %v2363, %v2363
        %v2441 = vpack.c.bf16 %v2371, %v2371
        %v2442 = vpack.c.bf16 %v2370, %v2370
        %v2443 = vpack.c.bf16 %v2372, %v2372
        %v2444 = vpack.c.bf16 %v2380, %v2380
        %v2445 = vpack.c.bf16 %v2388, %v2388
        %v2446 = vpack.c.bf16 %v2387, %v2387
        %v2447 = vpack.c.bf16 %v2389, %v2389
        %v2448 = vpack.c.bf16 %v2397, %v2397
        %v2449 = vpack.c.bf16 %v2405, %v2405
        %v2450 = vpack.c.bf16 %v2404, %v2404
        %v2451 = vpack.c.bf16 %v2406, %v2406
        %v2452 = vpack.c.bf16 %v2414, %v2414
        %v2453 = vpack.c.bf16 %v2422, %v2422
        %v2454 = vpack.c.bf16 %v2421, %v2421
        %v2455 = vpack.c.bf16 %v2423, %v2423
        %2456 = vmatprep.subr.bf16.mxu0 %v1383
        %2457 = vmatpush1.bf16.msra.mxu0 %v1382
        %2458 = vmatprep.subr.bf16.mxu0 %v1375
        %2459 = vmatpush1.bf16.msra.mxu0 %v1374
        %2460 = vmatprep.subr.bf16.mxu0 %v1367
        %2461 = vmatpush1.bf16.msra.mxu0 %v1366
        %2462 = vmatprep.subr.bf16.mxu0 %v1359
        %2463 = vmatpush1.bf16.msra.mxu0 %v1358
        %2464 = vmatprep.subr.bf16.mxu0 %v1351
        %2465 = vmatpush1.bf16.msra.mxu0 %v1350
        %2466 = vmatprep.subr.bf16.mxu0 %v1343
        %2467 = vmatpush1.bf16.msra.mxu0 %v1342
        %2468 = vmatprep.subr.bf16.mxu0 %v1335
        %2469 = vmatpush1.bf16.msra.mxu0 %v1334
        %2470 = vmatprep.subr.bf16.mxu0 %v1327
        %2471 = vmatpush1.bf16.msra.mxu0 %v1326
        %2472 = vmatprep.subr.bf16.mxu0 %v1447
        %2473 = vmatpush2.bf16.msra.mxu0 %v1446
        %2474 = vmatprep.subr.bf16.mxu0 %v1439
        %2475 = vmatpush2.bf16.msra.mxu0 %v1438
        %2476 = vmatprep.subr.bf16.mxu0 %v1431
        %2477 = vmatpush2.bf16.msra.mxu0 %v1430
        %2478 = vmatprep.subr.bf16.mxu0 %v1423
        %2479 = vmatpush2.bf16.msra.mxu0 %v1422
        %2480 = vmatprep.subr.bf16.mxu0 %v1415
        %2481 = vmatpush2.bf16.msra.mxu0 %v1414
        %2482 = vmatprep.subr.bf16.mxu0 %v1407
        %2483 = vmatpush2.bf16.msra.mxu0 %v1406
        %2484 = vmatprep.subr.bf16.mxu0 %v1399
        %2485 = vmatpush2.bf16.msra.mxu0 %v1398
        %2486 = vmatprep.subr.bf16.mxu0 %v1391
        %2487 = vmatpush2.bf16.msra.mxu0 %v1390
        %2488 = vmatprep.mubr.bf16.mxu0 %v2441
        %2489 = vmatmul.mubr.bf16.gmra.mxu0 %v2440
        %v2490 = vpop.f32.mrf.mxu0
        %v2491 = vadd.f32 0.0, %v2490
        %v2492 = vpop.f32.mrf.mxu0
        %v2493 = vadd.f32 0.0, %v2492
        %v2494 = vpop.f32.mrf.mxu0
        %v2495 = vpop.f32.mrf.mxu0
        %2496 = vdwg.mxu0
        %2497 = vmatprep.subr.bf16.mxu0 %v1511
        %2498 = vmatpush1.bf16.msra.mxu0 %v1510
        %2499 = vmatprep.subr.bf16.mxu0 %v1503
        %2500 = vmatpush1.bf16.msra.mxu0 %v1502
        %2501 = vmatprep.subr.bf16.mxu0 %v1495
        %2502 = vmatpush1.bf16.msra.mxu0 %v1494
        %2503 = vmatprep.subr.bf16.mxu0 %v1487
        %2504 = vmatpush1.bf16.msra.mxu0 %v1486
        %2505 = vmatprep.subr.bf16.mxu0 %v1479
        %2506 = vmatpush1.bf16.msra.mxu0 %v1478
        %2507 = vmatprep.subr.bf16.mxu0 %v1471
        %2508 = vmatpush1.bf16.msra.mxu0 %v1470
        %2509 = vmatprep.subr.bf16.mxu0 %v1463
        %2510 = vmatpush1.bf16.msra.mxu0 %v1462
        %2511 = vmatprep.subr.bf16.mxu0 %v1455
        %2512 = vmatpush1.bf16.msra.mxu0 %v1454
        %2513 = vmatprep.subr.bf16.mxu0 %v1575
        %2514 = vmatpush2.bf16.msra.mxu0 %v1574
        %2515 = vmatprep.subr.bf16.mxu0 %v1567
        %2516 = vmatpush2.bf16.msra.mxu0 %v1566
        %2517 = vmatprep.subr.bf16.mxu0 %v1559
        %2518 = vmatpush2.bf16.msra.mxu0 %v1558
        %2519 = vmatprep.subr.bf16.mxu0 %v1551
        %2520 = vmatpush2.bf16.msra.mxu0 %v1550
        %2521 = vmatprep.subr.bf16.mxu0 %v1543
        %2522 = vmatpush2.bf16.msra.mxu0 %v1542
        %2523 = vmatprep.subr.bf16.mxu0 %v1535
        %2524 = vmatpush2.bf16.msra.mxu0 %v1534
        %2525 = vmatprep.subr.bf16.mxu0 %v1527
        %2526 = vmatpush2.bf16.msra.mxu0 %v1526
        %2527 = vmatprep.subr.bf16.mxu0 %v1519
        %2528 = vmatpush2.bf16.msra.mxu0 %v1518
        %2529 = vmatprep.mubr.bf16.mxu0 %v2443
        %2530 = vmatmul.mubr.bf16.gmra.mxu0 %v2442
        %v2531 = vpop.f32.mrf.mxu0
        %v2532 = vadd.f32 %v2491, %v2531
        %v2533 = vpop.f32.mrf.mxu0
        %v2534 = vadd.f32 %v2493, %v2533
        %v2535 = vpop.f32.mrf.mxu0
        %v2536 = vpop.f32.mrf.mxu0
        %2537 = vdwg.mxu0
        %2538 = vmatprep.subr.bf16.mxu0 %v1639
        %2539 = vmatpush1.bf16.msra.mxu0 %v1638
        %2540 = vmatprep.subr.bf16.mxu0 %v1631
        %2541 = vmatpush1.bf16.msra.mxu0 %v1630
        %2542 = vmatprep.subr.bf16.mxu0 %v1623
        %2543 = vmatpush1.bf16.msra.mxu0 %v1622
        %2544 = vmatprep.subr.bf16.mxu0 %v1615
        %2545 = vmatpush1.bf16.msra.mxu0 %v1614
        %2546 = vmatprep.subr.bf16.mxu0 %v1607
        %2547 = vmatpush1.bf16.msra.mxu0 %v1606
        %2548 = vmatprep.subr.bf16.mxu0 %v1599
        %2549 = vmatpush1.bf16.msra.mxu0 %v1598
        %2550 = vmatprep.subr.bf16.mxu0 %v1591
        %2551 = vmatpush1.bf16.msra.mxu0 %v1590
        %2552 = vmatprep.subr.bf16.mxu0 %v1583
        %2553 = vmatpush1.bf16.msra.mxu0 %v1582
        %2554 = vmatprep.subr.bf16.mxu0 %v1703
        %2555 = vmatpush2.bf16.msra.mxu0 %v1702
        %2556 = vmatprep.subr.bf16.mxu0 %v1695
        %2557 = vmatpush2.bf16.msra.mxu0 %v1694
        %2558 = vmatprep.subr.bf16.mxu0 %v1687
        %2559 = vmatpush2.bf16.msra.mxu0 %v1686
        %2560 = vmatprep.subr.bf16.mxu0 %v1679
        %2561 = vmatpush2.bf16.msra.mxu0 %v1678
        %2562 = vmatprep.subr.bf16.mxu0 %v1671
        %2563 = vmatpush2.bf16.msra.mxu0 %v1670
        %2564 = vmatprep.subr.bf16.mxu0 %v1663
        %2565 = vmatpush2.bf16.msra.mxu0 %v1662
        %2566 = vmatprep.subr.bf16.mxu0 %v1655
        %2567 = vmatpush2.bf16.msra.mxu0 %v1654
        %2568 = vmatprep.subr.bf16.mxu0 %v1647
        %2569 = vmatpush2.bf16.msra.mxu0 %v1646
        %2570 = vmatprep.mubr.bf16.mxu0 %v2445
        %2571 = vmatmul.mubr.bf16.gmra.mxu0 %v2444
        %v2572 = vpop.f32.mrf.mxu0
        %v2573 = vadd.f32 %v2532, %v2572
        %v2574 = vpop.f32.mrf.mxu0
        %v2575 = vadd.f32 %v2534, %v2574
        %v2576 = vpop.f32.mrf.mxu0
        %v2577 = vpop.f32.mrf.mxu0
        %2578 = vdwg.mxu0
        %2579 = vmatprep.subr.bf16.mxu0 %v1767
        %2580 = vmatpush1.bf16.msra.mxu0 %v1766
        %2581 = vmatprep.subr.bf16.mxu0 %v1759
        %2582 = vmatpush1.bf16.msra.mxu0 %v1758
        %2583 = vmatprep.subr.bf16.mxu0 %v1751
        %2584 = vmatpush1.bf16.msra.mxu0 %v1750
        %2585 = vmatprep.subr.bf16.mxu0 %v1743
        %2586 = vmatpush1.bf16.msra.mxu0 %v1742
        %2587 = vmatprep.subr.bf16.mxu0 %v1735
        %2588 = vmatpush1.bf16.msra.mxu0 %v1734
        %2589 = vmatprep.subr.bf16.mxu0 %v1727
        %2590 = vmatpush1.bf16.msra.mxu0 %v1726
        %2591 = vmatprep.subr.bf16.mxu0 %v1719
        %2592 = vmatpush1.bf16.msra.mxu0 %v1718
        %2593 = vmatprep.subr.bf16.mxu0 %v1711
        %2594 = vmatpush1.bf16.msra.mxu0 %v1710
        %2595 = vmatprep.subr.bf16.mxu0 %v1831
        %2596 = vmatpush2.bf16.msra.mxu0 %v1830
        %2597 = vmatprep.subr.bf16.mxu0 %v1823
        %2598 = vmatpush2.bf16.msra.mxu0 %v1822
        %2599 = vmatprep.subr.bf16.mxu0 %v1815
        %2600 = vmatpush2.bf16.msra.mxu0 %v1814
        %2601 = vmatprep.subr.bf16.mxu0 %v1807
        %2602 = vmatpush2.bf16.msra.mxu0 %v1806
        %2603 = vmatprep.subr.bf16.mxu0 %v1799
        %2604 = vmatpush2.bf16.msra.mxu0 %v1798
        %2605 = vmatprep.subr.bf16.mxu0 %v1791
        %2606 = vmatpush2.bf16.msra.mxu0 %v1790
        %2607 = vmatprep.subr.bf16.mxu0 %v1783
        %2608 = vmatpush2.bf16.msra.mxu0 %v1782
        %2609 = vmatprep.subr.bf16.mxu0 %v1775
        %2610 = vmatpush2.bf16.msra.mxu0 %v1774
        %2611 = vmatprep.mubr.bf16.mxu0 %v2447
        %2612 = vmatmul.mubr.bf16.gmra.mxu0 %v2446
        %v2613 = vpop.f32.mrf.mxu0
        %v2614 = vadd.f32 %v2573, %v2613
        %v2615 = vpop.f32.mrf.mxu0
        %v2616 = vadd.f32 %v2575, %v2615
        %v2617 = vpop.f32.mrf.mxu0
        %v2618 = vpop.f32.mrf.mxu0
        %2619 = vdwg.mxu0
        %2620 = vmatprep.subr.bf16.mxu0 %v1895
        %2621 = vmatpush1.bf16.msra.mxu0 %v1894
        %2622 = vmatprep.subr.bf16.mxu0 %v1887
        %2623 = vmatpush1.bf16.msra.mxu0 %v1886
        %2624 = vmatprep.subr.bf16.mxu0 %v1879
        %2625 = vmatpush1.bf16.msra.mxu0 %v1878
        %2626 = vmatprep.subr.bf16.mxu0 %v1871
        %2627 = vmatpush1.bf16.msra.mxu0 %v1870
        %2628 = vmatprep.subr.bf16.mxu0 %v1863
        %2629 = vmatpush1.bf16.msra.mxu0 %v1862
        %2630 = vmatprep.subr.bf16.mxu0 %v1855
        %2631 = vmatpush1.bf16.msra.mxu0 %v1854
        %2632 = vmatprep.subr.bf16.mxu0 %v1847
        %2633 = vmatpush1.bf16.msra.mxu0 %v1846
        %2634 = vmatprep.subr.bf16.mxu0 %v1839
        %2635 = vmatpush1.bf16.msra.mxu0 %v1838
        %2636 = vmatprep.subr.bf16.mxu0 %v1959
        %2637 = vmatpush2.bf16.msra.mxu0 %v1958
        %2638 = vmatprep.subr.bf16.mxu0 %v1951
        %2639 = vmatpush2.bf16.msra.mxu0 %v1950
        %2640 = vmatprep.subr.bf16.mxu0 %v1943
        %2641 = vmatpush2.bf16.msra.mxu0 %v1942
        %2642 = vmatprep.subr.bf16.mxu0 %v1935
        %2643 = vmatpush2.bf16.msra.mxu0 %v1934
        %2644 = vmatprep.subr.bf16.mxu0 %v1927
        %2645 = vmatpush2.bf16.msra.mxu0 %v1926
        %2646 = vmatprep.subr.bf16.mxu0 %v1919
        %2647 = vmatpush2.bf16.msra.mxu0 %v1918
        %2648 = vmatprep.subr.bf16.mxu0 %v1911
        %2649 = vmatpush2.bf16.msra.mxu0 %v1910
        %2650 = vmatprep.subr.bf16.mxu0 %v1903
        %2651 = vmatpush2.bf16.msra.mxu0 %v1902
        %2652 = vmatprep.mubr.bf16.mxu0 %v2449
        %2653 = vmatmul.mubr.bf16.gmra.mxu0 %v2448
        %v2654 = vpop.f32.mrf.mxu0
        %v2655 = vadd.f32 %v2614, %v2654
        %v2656 = vpop.f32.mrf.mxu0
        %v2657 = vadd.f32 %v2616, %v2656
        %v2658 = vpop.f32.mrf.mxu0
        %v2659 = vpop.f32.mrf.mxu0
        %2660 = vdwg.mxu0
        %2661 = vmatprep.subr.bf16.mxu0 %v2023
        %2662 = vmatpush1.bf16.msra.mxu0 %v2022
        %2663 = vmatprep.subr.bf16.mxu0 %v2015
        %2664 = vmatpush1.bf16.msra.mxu0 %v2014
        %2665 = vmatprep.subr.bf16.mxu0 %v2007
        %2666 = vmatpush1.bf16.msra.mxu0 %v2006
        %2667 = vmatprep.subr.bf16.mxu0 %v1999
        %2668 = vmatpush1.bf16.msra.mxu0 %v1998
        %2669 = vmatprep.subr.bf16.mxu0 %v1991
        %2670 = vmatpush1.bf16.msra.mxu0 %v1990
        %2671 = vmatprep.subr.bf16.mxu0 %v1983
        %2672 = vmatpush1.bf16.msra.mxu0 %v1982
        %2673 = vmatprep.subr.bf16.mxu0 %v1975
        %2674 = vmatpush1.bf16.msra.mxu0 %v1974
        %2675 = vmatprep.subr.bf16.mxu0 %v1967
        %2676 = vmatpush1.bf16.msra.mxu0 %v1966
        %2677 = vmatprep.subr.bf16.mxu0 %v2087
        %2678 = vmatpush2.bf16.msra.mxu0 %v2086
        %2679 = vmatprep.subr.bf16.mxu0 %v2079
        %2680 = vmatpush2.bf16.msra.mxu0 %v2078
        %2681 = vmatprep.subr.bf16.mxu0 %v2071
        %2682 = vmatpush2.bf16.msra.mxu0 %v2070
        %2683 = vmatprep.subr.bf16.mxu0 %v2063
        %2684 = vmatpush2.bf16.msra.mxu0 %v2062
        %2685 = vmatprep.subr.bf16.mxu0 %v2055
        %2686 = vmatpush2.bf16.msra.mxu0 %v2054
        %2687 = vmatprep.subr.bf16.mxu0 %v2047
        %2688 = vmatpush2.bf16.msra.mxu0 %v2046
        %2689 = vmatprep.subr.bf16.mxu0 %v2039
        %2690 = vmatpush2.bf16.msra.mxu0 %v2038
        %2691 = vmatprep.subr.bf16.mxu0 %v2031
        %2692 = vmatpush2.bf16.msra.mxu0 %v2030
        %2693 = vmatprep.mubr.bf16.mxu0 %v2451
        %2694 = vmatmul.mubr.bf16.gmra.mxu0 %v2450
        %v2695 = vpop.f32.mrf.mxu0
        %v2696 = vadd.f32 %v2655, %v2695
        %v2697 = vpop.f32.mrf.mxu0
        %v2698 = vadd.f32 %v2657, %v2697
        %v2699 = vpop.f32.mrf.mxu0
        %v2700 = vpop.f32.mrf.mxu0
        %2701 = vdwg.mxu0
        %2702 = vmatprep.subr.bf16.mxu0 %v2151
        %2703 = vmatpush1.bf16.msra.mxu0 %v2150
        %2704 = vmatprep.subr.bf16.mxu0 %v2143
        %2705 = vmatpush1.bf16.msra.mxu0 %v2142
        %2706 = vmatprep.subr.bf16.mxu0 %v2135
        %2707 = vmatpush1.bf16.msra.mxu0 %v2134
        %2708 = vmatprep.subr.bf16.mxu0 %v2127
        %2709 = vmatpush1.bf16.msra.mxu0 %v2126
        %2710 = vmatprep.subr.bf16.mxu0 %v2119
        %2711 = vmatpush1.bf16.msra.mxu0 %v2118
        %2712 = vmatprep.subr.bf16.mxu0 %v2111
        %2713 = vmatpush1.bf16.msra.mxu0 %v2110
        %2714 = vmatprep.subr.bf16.mxu0 %v2103
        %2715 = vmatpush1.bf16.msra.mxu0 %v2102
        %2716 = vmatprep.subr.bf16.mxu0 %v2095
        %2717 = vmatpush1.bf16.msra.mxu0 %v2094
        %2718 = vmatprep.subr.bf16.mxu0 %v2215
        %2719 = vmatpush2.bf16.msra.mxu0 %v2214
        %2720 = vmatprep.subr.bf16.mxu0 %v2207
        %2721 = vmatpush2.bf16.msra.mxu0 %v2206
        %2722 = vmatprep.subr.bf16.mxu0 %v2199
        %2723 = vmatpush2.bf16.msra.mxu0 %v2198
        %2724 = vmatprep.subr.bf16.mxu0 %v2191
        %2725 = vmatpush2.bf16.msra.mxu0 %v2190
        %2726 = vmatprep.subr.bf16.mxu0 %v2183
        %2727 = vmatpush2.bf16.msra.mxu0 %v2182
        %2728 = vmatprep.subr.bf16.mxu0 %v2175
        %2729 = vmatpush2.bf16.msra.mxu0 %v2174
        %2730 = vmatprep.subr.bf16.mxu0 %v2167
        %2731 = vmatpush2.bf16.msra.mxu0 %v2166
        %2732 = vmatprep.subr.bf16.mxu0 %v2159
        %2733 = vmatpush2.bf16.msra.mxu0 %v2158
        %2734 = vmatprep.mubr.bf16.mxu0 %v2453
        %2735 = vmatmul.mubr.bf16.gmra.mxu0 %v2452
        %v2736 = vpop.f32.mrf.mxu0
        %v2737 = vadd.f32 %v2696, %v2736
        %v2738 = vpop.f32.mrf.mxu0
        %v2739 = vadd.f32 %v2698, %v2738
        %v2740 = vpop.f32.mrf.mxu0
        %v2741 = vpop.f32.mrf.mxu0
        %2742 = vdwg.mxu0
        %2743 = vmatprep.subr.bf16.mxu0 %v2279
        %2744 = vmatpush1.bf16.msra.mxu0 %v2278
        %2745 = vmatprep.subr.bf16.mxu0 %v2271
        %2746 = vmatpush1.bf16.msra.mxu0 %v2270
        %2747 = vmatprep.subr.bf16.mxu0 %v2263
        %2748 = vmatpush1.bf16.msra.mxu0 %v2262
        %2749 = vmatprep.subr.bf16.mxu0 %v2255
        %2750 = vmatpush1.bf16.msra.mxu0 %v2254
        %2751 = vmatprep.subr.bf16.mxu0 %v2247
        %2752 = vmatpush1.bf16.msra.mxu0 %v2246
        %2753 = vmatprep.subr.bf16.mxu0 %v2239
        %2754 = vmatpush1.bf16.msra.mxu0 %v2238
        %2755 = vmatprep.subr.bf16.mxu0 %v2231
        %2756 = vmatpush1.bf16.msra.mxu0 %v2230
        %2757 = vmatprep.subr.bf16.mxu0 %v2223
        %2758 = vmatpush1.bf16.msra.mxu0 %v2222
        %2759 = vmatprep.subr.bf16.mxu0 %v2343
        %2760 = vmatpush2.bf16.msra.mxu0 %v2342
        %2761 = vmatprep.subr.bf16.mxu0 %v2335
        %2762 = vmatpush2.bf16.msra.mxu0 %v2334
        %2763 = vmatprep.subr.bf16.mxu0 %v2327
        %2764 = vmatpush2.bf16.msra.mxu0 %v2326
        %2765 = vmatprep.subr.bf16.mxu0 %v2319
        %2766 = vmatpush2.bf16.msra.mxu0 %v2318
        %2767 = vmatprep.subr.bf16.mxu0 %v2311
        %2768 = vmatpush2.bf16.msra.mxu0 %v2310
        %2769 = vmatprep.subr.bf16.mxu0 %v2303
        %2770 = vmatpush2.bf16.msra.mxu0 %v2302
        %2771 = vmatprep.subr.bf16.mxu0 %v2295
        %2772 = vmatpush2.bf16.msra.mxu0 %v2294
        %2773 = vmatprep.subr.bf16.mxu0 %v2287
        %2774 = vmatpush2.bf16.msra.mxu0 %v2286
        %2775 = vmatprep.mubr.bf16.mxu0 %v2455
        %2776 = vmatmul.mubr.bf16.gmra.mxu0 %v2454
        %v2777 = vpop.f32.mrf.mxu0
        %v2778 = vadd.f32 %v2737, %v2777
        %v2779 = vpop.f32.mrf.mxu0
        %v2780 = vadd.f32 %v2739, %v2779
        %v2781 = vpop.f32.mrf.mxu0
        %v2782 = vpop.f32.mrf.mxu0
        %2783 = vdwg.mxu0
        %2784 = vmatprep.subr.bf16.mxu0 %v1385
        %2785 = vmatpush1.bf16.msra.mxu0 %v1384
        %2786 = vmatprep.subr.bf16.mxu0 %v1377
        %2787 = vmatpush1.bf16.msra.mxu0 %v1376
        %2788 = vmatprep.subr.bf16.mxu0 %v1369
        %2789 = vmatpush1.bf16.msra.mxu0 %v1368
        %2790 = vmatprep.subr.bf16.mxu0 %v1361
        %2791 = vmatpush1.bf16.msra.mxu0 %v1360
        %2792 = vmatprep.subr.bf16.mxu0 %v1353
        %2793 = vmatpush1.bf16.msra.mxu0 %v1352
        %2794 = vmatprep.subr.bf16.mxu0 %v1345
        %2795 = vmatpush1.bf16.msra.mxu0 %v1344
        %2796 = vmatprep.subr.bf16.mxu0 %v1337
        %2797 = vmatpush1.bf16.msra.mxu0 %v1336
        %2798 = vmatprep.subr.bf16.mxu0 %v1329
        %2799 = vmatpush1.bf16.msra.mxu0 %v1328
        %2800 = vmatprep.subr.bf16.mxu0 %v1449
        %2801 = vmatpush2.bf16.msra.mxu0 %v1448
        %2802 = vmatprep.subr.bf16.mxu0 %v1441
        %2803 = vmatpush2.bf16.msra.mxu0 %v1440
        %2804 = vmatprep.subr.bf16.mxu0 %v1433
        %2805 = vmatpush2.bf16.msra.mxu0 %v1432
        %2806 = vmatprep.subr.bf16.mxu0 %v1425
        %2807 = vmatpush2.bf16.msra.mxu0 %v1424
        %2808 = vmatprep.subr.bf16.mxu0 %v1417
        %2809 = vmatpush2.bf16.msra.mxu0 %v1416
        %2810 = vmatprep.subr.bf16.mxu0 %v1409
        %2811 = vmatpush2.bf16.msra.mxu0 %v1408
        %2812 = vmatprep.subr.bf16.mxu0 %v1401
        %2813 = vmatpush2.bf16.msra.mxu0 %v1400
        %2814 = vmatprep.subr.bf16.mxu0 %v1393
        %2815 = vmatpush2.bf16.msra.mxu0 %v1392
        %2816 = vmatprep.mubr.bf16.mxu0 %v2441
        %2817 = vmatmul.mubr.bf16.gmra.mxu0 %v2440
        %v2818 = vpop.f32.mrf.mxu0
        %v2819 = vadd.f32 0.0, %v2818
        %v2820 = vpop.f32.mrf.mxu0
        %v2821 = vadd.f32 0.0, %v2820
        %v2822 = vpop.f32.mrf.mxu0
        %v2823 = vpop.f32.mrf.mxu0
        %2824 = vdwg.mxu0
        %2825 = vmatprep.subr.bf16.mxu0 %v1513
        %2826 = vmatpush1.bf16.msra.mxu0 %v1512
        %2827 = vmatprep.subr.bf16.mxu0 %v1505
        %2828 = vmatpush1.bf16.msra.mxu0 %v1504
        %2829 = vmatprep.subr.bf16.mxu0 %v1497
        %2830 = vmatpush1.bf16.msra.mxu0 %v1496
        %2831 = vmatprep.subr.bf16.mxu0 %v1489
        %2832 = vmatpush1.bf16.msra.mxu0 %v1488
        %2833 = vmatprep.subr.bf16.mxu0 %v1481
        %2834 = vmatpush1.bf16.msra.mxu0 %v1480
        %2835 = vmatprep.subr.bf16.mxu0 %v1473
        %2836 = vmatpush1.bf16.msra.mxu0 %v1472
        %2837 = vmatprep.subr.bf16.mxu0 %v1465
        %2838 = vmatpush1.bf16.msra.mxu0 %v1464
        %2839 = vmatprep.subr.bf16.mxu0 %v1457
        %2840 = vmatpush1.bf16.msra.mxu0 %v1456
        %2841 = vmatprep.subr.bf16.mxu0 %v1577
        %2842 = vmatpush2.bf16.msra.mxu0 %v1576
        %2843 = vmatprep.subr.bf16.mxu0 %v1569
        %2844 = vmatpush2.bf16.msra.mxu0 %v1568
        %2845 = vmatprep.subr.bf16.mxu0 %v1561
        %2846 = vmatpush2.bf16.msra.mxu0 %v1560
        %2847 = vmatprep.subr.bf16.mxu0 %v1553
        %2848 = vmatpush2.bf16.msra.mxu0 %v1552
        %2849 = vmatprep.subr.bf16.mxu0 %v1545
        %2850 = vmatpush2.bf16.msra.mxu0 %v1544
        %2851 = vmatprep.subr.bf16.mxu0 %v1537
        %2852 = vmatpush2.bf16.msra.mxu0 %v1536
        %2853 = vmatprep.subr.bf16.mxu0 %v1529
        %2854 = vmatpush2.bf16.msra.mxu0 %v1528
        %2855 = vmatprep.subr.bf16.mxu0 %v1521
        %2856 = vmatpush2.bf16.msra.mxu0 %v1520
        %2857 = vmatprep.mubr.bf16.mxu0 %v2443
        %2858 = vmatmul.mubr.bf16.gmra.mxu0 %v2442
        %v2859 = vpop.f32.mrf.mxu0
        %v2860 = vadd.f32 %v2819, %v2859
        %v2861 = vpop.f32.mrf.mxu0
        %v2862 = vadd.f32 %v2821, %v2861
        %v2863 = vpop.f32.mrf.mxu0
        %v2864 = vpop.f32.mrf.mxu0
        %2865 = vdwg.mxu0
        %2866 = vmatprep.subr.bf16.mxu0 %v1641
        %2867 = vmatpush1.bf16.msra.mxu0 %v1640
        %2868 = vmatprep.subr.bf16.mxu0 %v1633
        %2869 = vmatpush1.bf16.msra.mxu0 %v1632
        %2870 = vmatprep.subr.bf16.mxu0 %v1625
        %2871 = vmatpush1.bf16.msra.mxu0 %v1624
        %2872 = vmatprep.subr.bf16.mxu0 %v1617
        %2873 = vmatpush1.bf16.msra.mxu0 %v1616
        %2874 = vmatprep.subr.bf16.mxu0 %v1609
        %2875 = vmatpush1.bf16.msra.mxu0 %v1608
        %2876 = vmatprep.subr.bf16.mxu0 %v1601
        %2877 = vmatpush1.bf16.msra.mxu0 %v1600
        %2878 = vmatprep.subr.bf16.mxu0 %v1593
        %2879 = vmatpush1.bf16.msra.mxu0 %v1592
        %2880 = vmatprep.subr.bf16.mxu0 %v1585
        %2881 = vmatpush1.bf16.msra.mxu0 %v1584
        %2882 = vmatprep.subr.bf16.mxu0 %v1705
        %2883 = vmatpush2.bf16.msra.mxu0 %v1704
        %2884 = vmatprep.subr.bf16.mxu0 %v1697
        %2885 = vmatpush2.bf16.msra.mxu0 %v1696
        %2886 = vmatprep.subr.bf16.mxu0 %v1689
        %2887 = vmatpush2.bf16.msra.mxu0 %v1688
        %2888 = vmatprep.subr.bf16.mxu0 %v1681
        %2889 = vmatpush2.bf16.msra.mxu0 %v1680
        %2890 = vmatprep.subr.bf16.mxu0 %v1673
        %2891 = vmatpush2.bf16.msra.mxu0 %v1672
        %2892 = vmatprep.subr.bf16.mxu0 %v1665
        %2893 = vmatpush2.bf16.msra.mxu0 %v1664
        %2894 = vmatprep.subr.bf16.mxu0 %v1657
        %2895 = vmatpush2.bf16.msra.mxu0 %v1656
        %2896 = vmatprep.subr.bf16.mxu0 %v1649
        %2897 = vmatpush2.bf16.msra.mxu0 %v1648
        %2898 = vmatprep.mubr.bf16.mxu0 %v2445
        %2899 = vmatmul.mubr.bf16.gmra.mxu0 %v2444
        %v2900 = vpop.f32.mrf.mxu0
        %v2901 = vadd.f32 %v2860, %v2900
        %v2902 = vpop.f32.mrf.mxu0
        %v2903 = vadd.f32 %v2862, %v2902
        %v2904 = vpop.f32.mrf.mxu0
        %v2905 = vpop.f32.mrf.mxu0
        %2906 = vdwg.mxu0
        %2907 = vmatprep.subr.bf16.mxu0 %v1769
        %2908 = vmatpush1.bf16.msra.mxu0 %v1768
        %2909 = vmatprep.subr.bf16.mxu0 %v1761
        %2910 = vmatpush1.bf16.msra.mxu0 %v1760
        %2911 = vmatprep.subr.bf16.mxu0 %v1753
        %2912 = vmatpush1.bf16.msra.mxu0 %v1752
        %2913 = vmatprep.subr.bf16.mxu0 %v1745
        %2914 = vmatpush1.bf16.msra.mxu0 %v1744
        %2915 = vmatprep.subr.bf16.mxu0 %v1737
        %2916 = vmatpush1.bf16.msra.mxu0 %v1736
        %2917 = vmatprep.subr.bf16.mxu0 %v1729
        %2918 = vmatpush1.bf16.msra.mxu0 %v1728
        %2919 = vmatprep.subr.bf16.mxu0 %v1721
        %2920 = vmatpush1.bf16.msra.mxu0 %v1720
        %2921 = vmatprep.subr.bf16.mxu0 %v1713
        %2922 = vmatpush1.bf16.msra.mxu0 %v1712
        %2923 = vmatprep.subr.bf16.mxu0 %v1833
        %2924 = vmatpush2.bf16.msra.mxu0 %v1832
        %2925 = vmatprep.subr.bf16.mxu0 %v1825
        %2926 = vmatpush2.bf16.msra.mxu0 %v1824
        %2927 = vmatprep.subr.bf16.mxu0 %v1817
        %2928 = vmatpush2.bf16.msra.mxu0 %v1816
        %2929 = vmatprep.subr.bf16.mxu0 %v1809
        %2930 = vmatpush2.bf16.msra.mxu0 %v1808
        %2931 = vmatprep.subr.bf16.mxu0 %v1801
        %2932 = vmatpush2.bf16.msra.mxu0 %v1800
        %2933 = vmatprep.subr.bf16.mxu0 %v1793
        %2934 = vmatpush2.bf16.msra.mxu0 %v1792
        %2935 = vmatprep.subr.bf16.mxu0 %v1785
        %2936 = vmatpush2.bf16.msra.mxu0 %v1784
        %2937 = vmatprep.subr.bf16.mxu0 %v1777
        %2938 = vmatpush2.bf16.msra.mxu0 %v1776
        %2939 = vmatprep.mubr.bf16.mxu0 %v2447
        %2940 = vmatmul.mubr.bf16.gmra.mxu0 %v2446
        %v2941 = vpop.f32.mrf.mxu0
        %v2942 = vadd.f32 %v2901, %v2941
        %v2943 = vpop.f32.mrf.mxu0
        %v2944 = vadd.f32 %v2903, %v2943
        %v2945 = vpop.f32.mrf.mxu0
        %v2946 = vpop.f32.mrf.mxu0
        %2947 = vdwg.mxu0
        %2948 = vmatprep.subr.bf16.mxu0 %v1897
        %2949 = vmatpush1.bf16.msra.mxu0 %v1896
        %2950 = vmatprep.subr.bf16.mxu0 %v1889
        %2951 = vmatpush1.bf16.msra.mxu0 %v1888
        %2952 = vmatprep.subr.bf16.mxu0 %v1881
        %2953 = vmatpush1.bf16.msra.mxu0 %v1880
        %2954 = vmatprep.subr.bf16.mxu0 %v1873
        %2955 = vmatpush1.bf16.msra.mxu0 %v1872
        %2956 = vmatprep.subr.bf16.mxu0 %v1865
        %2957 = vmatpush1.bf16.msra.mxu0 %v1864
        %2958 = vmatprep.subr.bf16.mxu0 %v1857
        %2959 = vmatpush1.bf16.msra.mxu0 %v1856
        %2960 = vmatprep.subr.bf16.mxu0 %v1849
        %2961 = vmatpush1.bf16.msra.mxu0 %v1848
        %2962 = vmatprep.subr.bf16.mxu0 %v1841
        %2963 = vmatpush1.bf16.msra.mxu0 %v1840
        %2964 = vmatprep.subr.bf16.mxu0 %v1961
        %2965 = vmatpush2.bf16.msra.mxu0 %v1960
        %2966 = vmatprep.subr.bf16.mxu0 %v1953
        %2967 = vmatpush2.bf16.msra.mxu0 %v1952
        %2968 = vmatprep.subr.bf16.mxu0 %v1945
        %2969 = vmatpush2.bf16.msra.mxu0 %v1944
        %2970 = vmatprep.subr.bf16.mxu0 %v1937
        %2971 = vmatpush2.bf16.msra.mxu0 %v1936
        %2972 = vmatprep.subr.bf16.mxu0 %v1929
        %2973 = vmatpush2.bf16.msra.mxu0 %v1928
        %2974 = vmatprep.subr.bf16.mxu0 %v1921
        %2975 = vmatpush2.bf16.msra.mxu0 %v1920
        %2976 = vmatprep.subr.bf16.mxu0 %v1913
        %2977 = vmatpush2.bf16.msra.mxu0 %v1912
        %2978 = vmatprep.subr.bf16.mxu0 %v1905
        %2979 = vmatpush2.bf16.msra.mxu0 %v1904
        %2980 = vmatprep.mubr.bf16.mxu0 %v2449
        %2981 = vmatmul.mubr.bf16.gmra.mxu0 %v2448
        %v2982 = vpop.f32.mrf.mxu0
        %v2983 = vadd.f32 %v2942, %v2982
        %v2984 = vpop.f32.mrf.mxu0
        %v2985 = vadd.f32 %v2944, %v2984
        %v2986 = vpop.f32.mrf.mxu0
        %v2987 = vpop.f32.mrf.mxu0
        %2988 = vdwg.mxu0
        %2989 = vmatprep.subr.bf16.mxu0 %v2025
        %2990 = vmatpush1.bf16.msra.mxu0 %v2024
        %2991 = vmatprep.subr.bf16.mxu0 %v2017
        %2992 = vmatpush1.bf16.msra.mxu0 %v2016
        %2993 = vmatprep.subr.bf16.mxu0 %v2009
        %2994 = vmatpush1.bf16.msra.mxu0 %v2008
        %2995 = vmatprep.subr.bf16.mxu0 %v2001
        %2996 = vmatpush1.bf16.msra.mxu0 %v2000
        %2997 = vmatprep.subr.bf16.mxu0 %v1993
        %2998 = vmatpush1.bf16.msra.mxu0 %v1992
        %2999 = vmatprep.subr.bf16.mxu0 %v1985
        %3000 = vmatpush1.bf16.msra.mxu0 %v1984
        %3001 = vmatprep.subr.bf16.mxu0 %v1977
        %3002 = vmatpush1.bf16.msra.mxu0 %v1976
        %3003 = vmatprep.subr.bf16.mxu0 %v1969
        %3004 = vmatpush1.bf16.msra.mxu0 %v1968
        %3005 = vmatprep.subr.bf16.mxu0 %v2089
        %3006 = vmatpush2.bf16.msra.mxu0 %v2088
        %3007 = vmatprep.subr.bf16.mxu0 %v2081
        %3008 = vmatpush2.bf16.msra.mxu0 %v2080
        %3009 = vmatprep.subr.bf16.mxu0 %v2073
        %3010 = vmatpush2.bf16.msra.mxu0 %v2072
        %3011 = vmatprep.subr.bf16.mxu0 %v2065
        %3012 = vmatpush2.bf16.msra.mxu0 %v2064
        %3013 = vmatprep.subr.bf16.mxu0 %v2057
        %3014 = vmatpush2.bf16.msra.mxu0 %v2056
        %3015 = vmatprep.subr.bf16.mxu0 %v2049
        %3016 = vmatpush2.bf16.msra.mxu0 %v2048
        %3017 = vmatprep.subr.bf16.mxu0 %v2041
        %3018 = vmatpush2.bf16.msra.mxu0 %v2040
        %3019 = vmatprep.subr.bf16.mxu0 %v2033
        %3020 = vmatpush2.bf16.msra.mxu0 %v2032
        %3021 = vmatprep.mubr.bf16.mxu0 %v2451
        %3022 = vmatmul.mubr.bf16.gmra.mxu0 %v2450
        %v3023 = vpop.f32.mrf.mxu0
        %v3024 = vadd.f32 %v2983, %v3023
        %v3025 = vpop.f32.mrf.mxu0
        %v3026 = vadd.f32 %v2985, %v3025
        %v3027 = vpop.f32.mrf.mxu0
        %v3028 = vpop.f32.mrf.mxu0
        %3029 = vdwg.mxu0
        %3030 = vmatprep.subr.bf16.mxu0 %v2153
        %3031 = vmatpush1.bf16.msra.mxu0 %v2152
        %3032 = vmatprep.subr.bf16.mxu0 %v2145
        %3033 = vmatpush1.bf16.msra.mxu0 %v2144
        %3034 = vmatprep.subr.bf16.mxu0 %v2137
        %3035 = vmatpush1.bf16.msra.mxu0 %v2136
        %3036 = vmatprep.subr.bf16.mxu0 %v2129
        %3037 = vmatpush1.bf16.msra.mxu0 %v2128
        %3038 = vmatprep.subr.bf16.mxu0 %v2121
        %3039 = vmatpush1.bf16.msra.mxu0 %v2120
        %3040 = vmatprep.subr.bf16.mxu0 %v2113
        %3041 = vmatpush1.bf16.msra.mxu0 %v2112
        %3042 = vmatprep.subr.bf16.mxu0 %v2105
        %3043 = vmatpush1.bf16.msra.mxu0 %v2104
        %3044 = vmatprep.subr.bf16.mxu0 %v2097
        %3045 = vmatpush1.bf16.msra.mxu0 %v2096
        %3046 = vmatprep.subr.bf16.mxu0 %v2217
        %3047 = vmatpush2.bf16.msra.mxu0 %v2216
        %3048 = vmatprep.subr.bf16.mxu0 %v2209
        %3049 = vmatpush2.bf16.msra.mxu0 %v2208
        %3050 = vmatprep.subr.bf16.mxu0 %v2201
        %3051 = vmatpush2.bf16.msra.mxu0 %v2200
        %3052 = vmatprep.subr.bf16.mxu0 %v2193
        %3053 = vmatpush2.bf16.msra.mxu0 %v2192
        %3054 = vmatprep.subr.bf16.mxu0 %v2185
        %3055 = vmatpush2.bf16.msra.mxu0 %v2184
        %3056 = vmatprep.subr.bf16.mxu0 %v2177
        %3057 = vmatpush2.bf16.msra.mxu0 %v2176
        %3058 = vmatprep.subr.bf16.mxu0 %v2169
        %3059 = vmatpush2.bf16.msra.mxu0 %v2168
        %3060 = vmatprep.subr.bf16.mxu0 %v2161
        %3061 = vmatpush2.bf16.msra.mxu0 %v2160
        %3062 = vmatprep.mubr.bf16.mxu0 %v2453
        %3063 = vmatmul.mubr.bf16.gmra.mxu0 %v2452
        %v3064 = vpop.f32.mrf.mxu0
        %v3065 = vadd.f32 %v3024, %v3064
        %v3066 = vpop.f32.mrf.mxu0
        %v3067 = vadd.f32 %v3026, %v3066
        %v3068 = vpop.f32.mrf.mxu0
        %v3069 = vpop.f32.mrf.mxu0
        %3070 = vdwg.mxu0
        %3071 = vmatprep.subr.bf16.mxu0 %v2281
        %3072 = vmatpush1.bf16.msra.mxu0 %v2280
        %3073 = vmatprep.subr.bf16.mxu0 %v2273
        %3074 = vmatpush1.bf16.msra.mxu0 %v2272
        %3075 = vmatprep.subr.bf16.mxu0 %v2265
        %3076 = vmatpush1.bf16.msra.mxu0 %v2264
        %3077 = vmatprep.subr.bf16.mxu0 %v2257
        %3078 = vmatpush1.bf16.msra.mxu0 %v2256
        %3079 = vmatprep.subr.bf16.mxu0 %v2249
        %3080 = vmatpush1.bf16.msra.mxu0 %v2248
        %3081 = vmatprep.subr.bf16.mxu0 %v2241
        %3082 = vmatpush1.bf16.msra.mxu0 %v2240
        %3083 = vmatprep.subr.bf16.mxu0 %v2233
        %3084 = vmatpush1.bf16.msra.mxu0 %v2232
        %3085 = vmatprep.subr.bf16.mxu0 %v2225
        %3086 = vmatpush1.bf16.msra.mxu0 %v2224
        %3087 = vmatprep.subr.bf16.mxu0 %v2345
        %3088 = vmatpush2.bf16.msra.mxu0 %v2344
        %3089 = vmatprep.subr.bf16.mxu0 %v2337
        %3090 = vmatpush2.bf16.msra.mxu0 %v2336
        %3091 = vmatprep.subr.bf16.mxu0 %v2329
        %3092 = vmatpush2.bf16.msra.mxu0 %v2328
        %3093 = vmatprep.subr.bf16.mxu0 %v2321
        %3094 = vmatpush2.bf16.msra.mxu0 %v2320
        %3095 = vmatprep.subr.bf16.mxu0 %v2313
        %3096 = vmatpush2.bf16.msra.mxu0 %v2312
        %3097 = vmatprep.subr.bf16.mxu0 %v2305
        %3098 = vmatpush2.bf16.msra.mxu0 %v2304
        %3099 = vmatprep.subr.bf16.mxu0 %v2297
        %3100 = vmatpush2.bf16.msra.mxu0 %v2296
        %3101 = vmatprep.subr.bf16.mxu0 %v2289
        %3102 = vmatpush2.bf16.msra.mxu0 %v2288
        %3103 = vmatprep.mubr.bf16.mxu0 %v2455
        %3104 = vmatmul.mubr.bf16.gmra.mxu0 %v2454
        %v3105 = vpop.f32.mrf.mxu0
        %v3106 = vadd.f32 %v3065, %v3105
        %v3107 = vpop.f32.mrf.mxu0
        %v3108 = vadd.f32 %v3067, %v3107
        %v3109 = vpop.f32.mrf.mxu0
        %v3110 = vpop.f32.mrf.mxu0
        %3111 = vdwg.mxu0
        %3112 = vmatprep.subr.bf16.mxu0 %v1387
        %3113 = vmatpush1.bf16.msra.mxu0 %v1386
        %3114 = vmatprep.subr.bf16.mxu0 %v1379
        %3115 = vmatpush1.bf16.msra.mxu0 %v1378
        %3116 = vmatprep.subr.bf16.mxu0 %v1371
        %3117 = vmatpush1.bf16.msra.mxu0 %v1370
        %3118 = vmatprep.subr.bf16.mxu0 %v1363
        %3119 = vmatpush1.bf16.msra.mxu0 %v1362
        %3120 = vmatprep.subr.bf16.mxu0 %v1355
        %3121 = vmatpush1.bf16.msra.mxu0 %v1354
        %3122 = vmatprep.subr.bf16.mxu0 %v1347
        %3123 = vmatpush1.bf16.msra.mxu0 %v1346
        %3124 = vmatprep.subr.bf16.mxu0 %v1339
        %3125 = vmatpush1.bf16.msra.mxu0 %v1338
        %3126 = vmatprep.subr.bf16.mxu0 %v1331
        %3127 = vmatpush1.bf16.msra.mxu0 %v1330
        %3128 = vmatprep.subr.bf16.mxu0 %v1451
        %3129 = vmatpush2.bf16.msra.mxu0 %v1450
        %3130 = vmatprep.subr.bf16.mxu0 %v1443
        %3131 = vmatpush2.bf16.msra.mxu0 %v1442
        %3132 = vmatprep.subr.bf16.mxu0 %v1435
        %3133 = vmatpush2.bf16.msra.mxu0 %v1434
        %3134 = vmatprep.subr.bf16.mxu0 %v1427
        %3135 = vmatpush2.bf16.msra.mxu0 %v1426
        %3136 = vmatprep.subr.bf16.mxu0 %v1419
        %3137 = vmatpush2.bf16.msra.mxu0 %v1418
        %3138 = vmatprep.subr.bf16.mxu0 %v1411
        %3139 = vmatpush2.bf16.msra.mxu0 %v1410
        %3140 = vmatprep.subr.bf16.mxu0 %v1403
        %3141 = vmatpush2.bf16.msra.mxu0 %v1402
        %3142 = vmatprep.subr.bf16.mxu0 %v1395
        %3143 = vmatpush2.bf16.msra.mxu0 %v1394
        %3144 = vmatprep.mubr.bf16.mxu0 %v2441
        %3145 = vmatmul.mubr.bf16.gmra.mxu0 %v2440
        %v3146 = vpop.f32.mrf.mxu0
        %v3147 = vadd.f32 0.0, %v3146
        %v3148 = vpop.f32.mrf.mxu0
        %v3149 = vadd.f32 0.0, %v3148
        %v3150 = vpop.f32.mrf.mxu0
        %v3151 = vpop.f32.mrf.mxu0
        %3152 = vdwg.mxu0
        %3153 = vmatprep.subr.bf16.mxu0 %v1515
        %3154 = vmatpush1.bf16.msra.mxu0 %v1514
        %3155 = vmatprep.subr.bf16.mxu0 %v1507
        %3156 = vmatpush1.bf16.msra.mxu0 %v1506
        %3157 = vmatprep.subr.bf16.mxu0 %v1499
        %3158 = vmatpush1.bf16.msra.mxu0 %v1498
        %3159 = vmatprep.subr.bf16.mxu0 %v1491
        %3160 = vmatpush1.bf16.msra.mxu0 %v1490
        %3161 = vmatprep.subr.bf16.mxu0 %v1483
        %3162 = vmatpush1.bf16.msra.mxu0 %v1482
        %3163 = vmatprep.subr.bf16.mxu0 %v1475
        %3164 = vmatpush1.bf16.msra.mxu0 %v1474
        %3165 = vmatprep.subr.bf16.mxu0 %v1467
        %3166 = vmatpush1.bf16.msra.mxu0 %v1466
        %3167 = vmatprep.subr.bf16.mxu0 %v1459
        %3168 = vmatpush1.bf16.msra.mxu0 %v1458
        %3169 = vmatprep.subr.bf16.mxu0 %v1579
        %3170 = vmatpush2.bf16.msra.mxu0 %v1578
        %3171 = vmatprep.subr.bf16.mxu0 %v1571
        %3172 = vmatpush2.bf16.msra.mxu0 %v1570
        %3173 = vmatprep.subr.bf16.mxu0 %v1563
        %3174 = vmatpush2.bf16.msra.mxu0 %v1562
        %3175 = vmatprep.subr.bf16.mxu0 %v1555
        %3176 = vmatpush2.bf16.msra.mxu0 %v1554
        %3177 = vmatprep.subr.bf16.mxu0 %v1547
        %3178 = vmatpush2.bf16.msra.mxu0 %v1546
        %3179 = vmatprep.subr.bf16.mxu0 %v1539
        %3180 = vmatpush2.bf16.msra.mxu0 %v1538
        %3181 = vmatprep.subr.bf16.mxu0 %v1531
        %3182 = vmatpush2.bf16.msra.mxu0 %v1530
        %3183 = vmatprep.subr.bf16.mxu0 %v1523
        %3184 = vmatpush2.bf16.msra.mxu0 %v1522
        %3185 = vmatprep.mubr.bf16.mxu0 %v2443
        %3186 = vmatmul.mubr.bf16.gmra.mxu0 %v2442
        %v3187 = vpop.f32.mrf.mxu0
        %v3188 = vadd.f32 %v3147, %v3187
        %v3189 = vpop.f32.mrf.mxu0
        %v3190 = vadd.f32 %v3149, %v3189
        %v3191 = vpop.f32.mrf.mxu0
        %v3192 = vpop.f32.mrf.mxu0
        %3193 = vdwg.mxu0
        %3194 = vmatprep.subr.bf16.mxu0 %v1643
        %3195 = vmatpush1.bf16.msra.mxu0 %v1642
        %3196 = vmatprep.subr.bf16.mxu0 %v1635
        %3197 = vmatpush1.bf16.msra.mxu0 %v1634
        %3198 = vmatprep.subr.bf16.mxu0 %v1627
        %3199 = vmatpush1.bf16.msra.mxu0 %v1626
        %3200 = vmatprep.subr.bf16.mxu0 %v1619
        %3201 = vmatpush1.bf16.msra.mxu0 %v1618
        %3202 = vmatprep.subr.bf16.mxu0 %v1611
        %3203 = vmatpush1.bf16.msra.mxu0 %v1610
        %3204 = vmatprep.subr.bf16.mxu0 %v1603
        %3205 = vmatpush1.bf16.msra.mxu0 %v1602
        %3206 = vmatprep.subr.bf16.mxu0 %v1595
        %3207 = vmatpush1.bf16.msra.mxu0 %v1594
        %3208 = vmatprep.subr.bf16.mxu0 %v1587
        %3209 = vmatpush1.bf16.msra.mxu0 %v1586
        %3210 = vmatprep.subr.bf16.mxu0 %v1707
        %3211 = vmatpush2.bf16.msra.mxu0 %v1706
        %3212 = vmatprep.subr.bf16.mxu0 %v1699
        %3213 = vmatpush2.bf16.msra.mxu0 %v1698
        %3214 = vmatprep.subr.bf16.mxu0 %v1691
        %3215 = vmatpush2.bf16.msra.mxu0 %v1690
        %3216 = vmatprep.subr.bf16.mxu0 %v1683
        %3217 = vmatpush2.bf16.msra.mxu0 %v1682
        %3218 = vmatprep.subr.bf16.mxu0 %v1675
        %3219 = vmatpush2.bf16.msra.mxu0 %v1674
        %3220 = vmatprep.subr.bf16.mxu0 %v1667
        %3221 = vmatpush2.bf16.msra.mxu0 %v1666
        %3222 = vmatprep.subr.bf16.mxu0 %v1659
        %3223 = vmatpush2.bf16.msra.mxu0 %v1658
        %3224 = vmatprep.subr.bf16.mxu0 %v1651
        %3225 = vmatpush2.bf16.msra.mxu0 %v1650
        %3226 = vmatprep.mubr.bf16.mxu0 %v2445
        %3227 = vmatmul.mubr.bf16.gmra.mxu0 %v2444
        %v3228 = vpop.f32.mrf.mxu0
        %v3229 = vadd.f32 %v3188, %v3228
        %v3230 = vpop.f32.mrf.mxu0
        %v3231 = vadd.f32 %v3190, %v3230
        %v3232 = vpop.f32.mrf.mxu0
        %v3233 = vpop.f32.mrf.mxu0
        %3234 = vdwg.mxu0
        %3235 = vmatprep.subr.bf16.mxu0 %v1771
        %3236 = vmatpush1.bf16.msra.mxu0 %v1770
        %3237 = vmatprep.subr.bf16.mxu0 %v1763
        %3238 = vmatpush1.bf16.msra.mxu0 %v1762
        %3239 = vmatprep.subr.bf16.mxu0 %v1755
        %3240 = vmatpush1.bf16.msra.mxu0 %v1754
        %3241 = vmatprep.subr.bf16.mxu0 %v1747
        %3242 = vmatpush1.bf16.msra.mxu0 %v1746
        %3243 = vmatprep.subr.bf16.mxu0 %v1739
        %3244 = vmatpush1.bf16.msra.mxu0 %v1738
        %3245 = vmatprep.subr.bf16.mxu0 %v1731
        %3246 = vmatpush1.bf16.msra.mxu0 %v1730
        %3247 = vmatprep.subr.bf16.mxu0 %v1723
        %3248 = vmatpush1.bf16.msra.mxu0 %v1722
        %3249 = vmatprep.subr.bf16.mxu0 %v1715
        %3250 = vmatpush1.bf16.msra.mxu0 %v1714
        %3251 = vmatprep.subr.bf16.mxu0 %v1835
        %3252 = vmatpush2.bf16.msra.mxu0 %v1834
        %3253 = vmatprep.subr.bf16.mxu0 %v1827
        %3254 = vmatpush2.bf16.msra.mxu0 %v1826
        %3255 = vmatprep.subr.bf16.mxu0 %v1819
        %3256 = vmatpush2.bf16.msra.mxu0 %v1818
        %3257 = vmatprep.subr.bf16.mxu0 %v1811
        %3258 = vmatpush2.bf16.msra.mxu0 %v1810
        %3259 = vmatprep.subr.bf16.mxu0 %v1803
        %3260 = vmatpush2.bf16.msra.mxu0 %v1802
        %3261 = vmatprep.subr.bf16.mxu0 %v1795
        %3262 = vmatpush2.bf16.msra.mxu0 %v1794
        %3263 = vmatprep.subr.bf16.mxu0 %v1787
        %3264 = vmatpush2.bf16.msra.mxu0 %v1786
        %3265 = vmatprep.subr.bf16.mxu0 %v1779
        %3266 = vmatpush2.bf16.msra.mxu0 %v1778
        %3267 = vmatprep.mubr.bf16.mxu0 %v2447
        %3268 = vmatmul.mubr.bf16.gmra.mxu0 %v2446
        %v3269 = vpop.f32.mrf.mxu0
        %v3270 = vadd.f32 %v3229, %v3269
        %v3271 = vpop.f32.mrf.mxu0
        %v3272 = vadd.f32 %v3231, %v3271
        %v3273 = vpop.f32.mrf.mxu0
        %v3274 = vpop.f32.mrf.mxu0
        %3275 = vdwg.mxu0
        %3276 = vmatprep.subr.bf16.mxu0 %v1899
        %3277 = vmatpush1.bf16.msra.mxu0 %v1898
        %3278 = vmatprep.subr.bf16.mxu0 %v1891
        %3279 = vmatpush1.bf16.msra.mxu0 %v1890
        %3280 = vmatprep.subr.bf16.mxu0 %v1883
        %3281 = vmatpush1.bf16.msra.mxu0 %v1882
        %3282 = vmatprep.subr.bf16.mxu0 %v1875
        %3283 = vmatpush1.bf16.msra.mxu0 %v1874
        %3284 = vmatprep.subr.bf16.mxu0 %v1867
        %3285 = vmatpush1.bf16.msra.mxu0 %v1866
        %3286 = vmatprep.subr.bf16.mxu0 %v1859
        %3287 = vmatpush1.bf16.msra.mxu0 %v1858
        %3288 = vmatprep.subr.bf16.mxu0 %v1851
        %3289 = vmatpush1.bf16.msra.mxu0 %v1850
        %3290 = vmatprep.subr.bf16.mxu0 %v1843
        %3291 = vmatpush1.bf16.msra.mxu0 %v1842
        %3292 = vmatprep.subr.bf16.mxu0 %v1963
        %3293 = vmatpush2.bf16.msra.mxu0 %v1962
        %3294 = vmatprep.subr.bf16.mxu0 %v1955
        %3295 = vmatpush2.bf16.msra.mxu0 %v1954
        %3296 = vmatprep.subr.bf16.mxu0 %v1947
        %3297 = vmatpush2.bf16.msra.mxu0 %v1946
        %3298 = vmatprep.subr.bf16.mxu0 %v1939
        %3299 = vmatpush2.bf16.msra.mxu0 %v1938
        %3300 = vmatprep.subr.bf16.mxu0 %v1931
        %3301 = vmatpush2.bf16.msra.mxu0 %v1930
        %3302 = vmatprep.subr.bf16.mxu0 %v1923
        %3303 = vmatpush2.bf16.msra.mxu0 %v1922
        %3304 = vmatprep.subr.bf16.mxu0 %v1915
        %3305 = vmatpush2.bf16.msra.mxu0 %v1914
        %3306 = vmatprep.subr.bf16.mxu0 %v1907
        %3307 = vmatpush2.bf16.msra.mxu0 %v1906
        %3308 = vmatprep.mubr.bf16.mxu0 %v2449
        %3309 = vmatmul.mubr.bf16.gmra.mxu0 %v2448
        %v3310 = vpop.f32.mrf.mxu0
        %v3311 = vadd.f32 %v3270, %v3310
        %v3312 = vpop.f32.mrf.mxu0
        %v3313 = vadd.f32 %v3272, %v3312
        %v3314 = vpop.f32.mrf.mxu0
        %v3315 = vpop.f32.mrf.mxu0
        %3316 = vdwg.mxu0
        %3317 = vmatprep.subr.bf16.mxu0 %v2027
        %3318 = vmatpush1.bf16.msra.mxu0 %v2026
        %3319 = vmatprep.subr.bf16.mxu0 %v2019
        %3320 = vmatpush1.bf16.msra.mxu0 %v2018
        %3321 = vmatprep.subr.bf16.mxu0 %v2011
        %3322 = vmatpush1.bf16.msra.mxu0 %v2010
        %3323 = vmatprep.subr.bf16.mxu0 %v2003
        %3324 = vmatpush1.bf16.msra.mxu0 %v2002
        %3325 = vmatprep.subr.bf16.mxu0 %v1995
        %3326 = vmatpush1.bf16.msra.mxu0 %v1994
        %3327 = vmatprep.subr.bf16.mxu0 %v1987
        %3328 = vmatpush1.bf16.msra.mxu0 %v1986
        %3329 = vmatprep.subr.bf16.mxu0 %v1979
        %3330 = vmatpush1.bf16.msra.mxu0 %v1978
        %3331 = vmatprep.subr.bf16.mxu0 %v1971
        %3332 = vmatpush1.bf16.msra.mxu0 %v1970
        %3333 = vmatprep.subr.bf16.mxu0 %v2091
        %3334 = vmatpush2.bf16.msra.mxu0 %v2090
        %3335 = vmatprep.subr.bf16.mxu0 %v2083
        %3336 = vmatpush2.bf16.msra.mxu0 %v2082
        %3337 = vmatprep.subr.bf16.mxu0 %v2075
        %3338 = vmatpush2.bf16.msra.mxu0 %v2074
        %3339 = vmatprep.subr.bf16.mxu0 %v2067
        %3340 = vmatpush2.bf16.msra.mxu0 %v2066
        %3341 = vmatprep.subr.bf16.mxu0 %v2059
        %3342 = vmatpush2.bf16.msra.mxu0 %v2058
        %3343 = vmatprep.subr.bf16.mxu0 %v2051
        %3344 = vmatpush2.bf16.msra.mxu0 %v2050
        %3345 = vmatprep.subr.bf16.mxu0 %v2043
        %3346 = vmatpush2.bf16.msra.mxu0 %v2042
        %3347 = vmatprep.subr.bf16.mxu0 %v2035
        %3348 = vmatpush2.bf16.msra.mxu0 %v2034
        %3349 = vmatprep.mubr.bf16.mxu0 %v2451
        %3350 = vmatmul.mubr.bf16.gmra.mxu0 %v2450
        %v3351 = vpop.f32.mrf.mxu0
        %v3352 = vadd.f32 %v3311, %v3351
        %v3353 = vpop.f32.mrf.mxu0
        %v3354 = vadd.f32 %v3313, %v3353
        %v3355 = vpop.f32.mrf.mxu0
        %v3356 = vpop.f32.mrf.mxu0
        %3357 = vdwg.mxu0
        %3358 = vmatprep.subr.bf16.mxu0 %v2155
        %3359 = vmatpush1.bf16.msra.mxu0 %v2154
        %3360 = vmatprep.subr.bf16.mxu0 %v2147
        %3361 = vmatpush1.bf16.msra.mxu0 %v2146
        %3362 = vmatprep.subr.bf16.mxu0 %v2139
        %3363 = vmatpush1.bf16.msra.mxu0 %v2138
        %3364 = vmatprep.subr.bf16.mxu0 %v2131
        %3365 = vmatpush1.bf16.msra.mxu0 %v2130
        %3366 = vmatprep.subr.bf16.mxu0 %v2123
        %3367 = vmatpush1.bf16.msra.mxu0 %v2122
        %3368 = vmatprep.subr.bf16.mxu0 %v2115
        %3369 = vmatpush1.bf16.msra.mxu0 %v2114
        %3370 = vmatprep.subr.bf16.mxu0 %v2107
        %3371 = vmatpush1.bf16.msra.mxu0 %v2106
        %3372 = vmatprep.subr.bf16.mxu0 %v2099
        %3373 = vmatpush1.bf16.msra.mxu0 %v2098
        %3374 = vmatprep.subr.bf16.mxu0 %v2219
        %3375 = vmatpush2.bf16.msra.mxu0 %v2218
        %3376 = vmatprep.subr.bf16.mxu0 %v2211
        %3377 = vmatpush2.bf16.msra.mxu0 %v2210
        %3378 = vmatprep.subr.bf16.mxu0 %v2203
        %3379 = vmatpush2.bf16.msra.mxu0 %v2202
        %3380 = vmatprep.subr.bf16.mxu0 %v2195
        %3381 = vmatpush2.bf16.msra.mxu0 %v2194
        %3382 = vmatprep.subr.bf16.mxu0 %v2187
        %3383 = vmatpush2.bf16.msra.mxu0 %v2186
        %3384 = vmatprep.subr.bf16.mxu0 %v2179
        %3385 = vmatpush2.bf16.msra.mxu0 %v2178
        %3386 = vmatprep.subr.bf16.mxu0 %v2171
        %3387 = vmatpush2.bf16.msra.mxu0 %v2170
        %3388 = vmatprep.subr.bf16.mxu0 %v2163
        %3389 = vmatpush2.bf16.msra.mxu0 %v2162
        %3390 = vmatprep.mubr.bf16.mxu0 %v2453
        %3391 = vmatmul.mubr.bf16.gmra.mxu0 %v2452
        %v3392 = vpop.f32.mrf.mxu0
        %v3393 = vadd.f32 %v3352, %v3392
        %v3394 = vpop.f32.mrf.mxu0
        %v3395 = vadd.f32 %v3354, %v3394
        %v3396 = vpop.f32.mrf.mxu0
        %v3397 = vpop.f32.mrf.mxu0
        %3398 = vdwg.mxu0
        %3399 = vmatprep.subr.bf16.mxu0 %v2283
        %3400 = vmatpush1.bf16.msra.mxu0 %v2282
        %3401 = vmatprep.subr.bf16.mxu0 %v2275
        %3402 = vmatpush1.bf16.msra.mxu0 %v2274
        %3403 = vmatprep.subr.bf16.mxu0 %v2267
        %3404 = vmatpush1.bf16.msra.mxu0 %v2266
        %3405 = vmatprep.subr.bf16.mxu0 %v2259
        %3406 = vmatpush1.bf16.msra.mxu0 %v2258
        %3407 = vmatprep.subr.bf16.mxu0 %v2251
        %3408 = vmatpush1.bf16.msra.mxu0 %v2250
        %3409 = vmatprep.subr.bf16.mxu0 %v2243
        %3410 = vmatpush1.bf16.msra.mxu0 %v2242
        %3411 = vmatprep.subr.bf16.mxu0 %v2235
        %3412 = vmatpush1.bf16.msra.mxu0 %v2234
        %3413 = vmatprep.subr.bf16.mxu0 %v2227
        %3414 = vmatpush1.bf16.msra.mxu0 %v2226
        %3415 = vmatprep.subr.bf16.mxu0 %v2347
        %3416 = vmatpush2.bf16.msra.mxu0 %v2346
        %3417 = vmatprep.subr.bf16.mxu0 %v2339
        %3418 = vmatpush2.bf16.msra.mxu0 %v2338
        %3419 = vmatprep.subr.bf16.mxu0 %v2331
        %3420 = vmatpush2.bf16.msra.mxu0 %v2330
        %3421 = vmatprep.subr.bf16.mxu0 %v2323
        %3422 = vmatpush2.bf16.msra.mxu0 %v2322
        %3423 = vmatprep.subr.bf16.mxu0 %v2315
        %3424 = vmatpush2.bf16.msra.mxu0 %v2314
        %3425 = vmatprep.subr.bf16.mxu0 %v2307
        %3426 = vmatpush2.bf16.msra.mxu0 %v2306
        %3427 = vmatprep.subr.bf16.mxu0 %v2299
        %3428 = vmatpush2.bf16.msra.mxu0 %v2298
        %3429 = vmatprep.subr.bf16.mxu0 %v2291
        %3430 = vmatpush2.bf16.msra.mxu0 %v2290
        %3431 = vmatprep.mubr.bf16.mxu0 %v2455
        %3432 = vmatmul.mubr.bf16.gmra.mxu0 %v2454
        %v3433 = vpop.f32.mrf.mxu0
        %v3434 = vadd.f32 %v3393, %v3433
        %v3435 = vpop.f32.mrf.mxu0
        %v3436 = vadd.f32 %v3395, %v3435
        %v3437 = vpop.f32.mrf.mxu0
        %v3438 = vpop.f32.mrf.mxu0
        %3439 = vdwg.mxu0
        %3440 = vmatprep.subr.bf16.mxu0 %v1389
        %3441 = vmatpush1.bf16.msra.mxu0 %v1388
        %3442 = vmatprep.subr.bf16.mxu0 %v1381
        %3443 = vmatpush1.bf16.msra.mxu0 %v1380
        %3444 = vmatprep.subr.bf16.mxu0 %v1373
        %3445 = vmatpush1.bf16.msra.mxu0 %v1372
        %3446 = vmatprep.subr.bf16.mxu0 %v1365
        %3447 = vmatpush1.bf16.msra.mxu0 %v1364
        %3448 = vmatprep.subr.bf16.mxu0 %v1357
        %3449 = vmatpush1.bf16.msra.mxu0 %v1356
        %3450 = vmatprep.subr.bf16.mxu0 %v1349
        %3451 = vmatpush1.bf16.msra.mxu0 %v1348
        %3452 = vmatprep.subr.bf16.mxu0 %v1341
        %3453 = vmatpush1.bf16.msra.mxu0 %v1340
        %3454 = vmatprep.subr.bf16.mxu0 %v1333
        %3455 = vmatpush1.bf16.msra.mxu0 %v1332
        %3456 = vmatprep.subr.bf16.mxu0 %v1453
        %3457 = vmatpush2.bf16.msra.mxu0 %v1452
        %3458 = vmatprep.subr.bf16.mxu0 %v1445
        %3459 = vmatpush2.bf16.msra.mxu0 %v1444
        %3460 = vmatprep.subr.bf16.mxu0 %v1437
        %3461 = vmatpush2.bf16.msra.mxu0 %v1436
        %3462 = vmatprep.subr.bf16.mxu0 %v1429
        %3463 = vmatpush2.bf16.msra.mxu0 %v1428
        %3464 = vmatprep.subr.bf16.mxu0 %v1421
        %3465 = vmatpush2.bf16.msra.mxu0 %v1420
        %3466 = vmatprep.subr.bf16.mxu0 %v1413
        %3467 = vmatpush2.bf16.msra.mxu0 %v1412
        %3468 = vmatprep.subr.bf16.mxu0 %v1405
        %3469 = vmatpush2.bf16.msra.mxu0 %v1404
        %3470 = vmatprep.subr.bf16.mxu0 %v1397
        %3471 = vmatpush2.bf16.msra.mxu0 %v1396
        %3472 = vmatprep.mubr.bf16.mxu0 %v2441
        %3473 = vmatmul.mubr.bf16.gmra.mxu0 %v2440
        %v3474 = vpop.f32.mrf.mxu0
        %v3475 = vadd.f32 0.0, %v3474
        %v3476 = vpop.f32.mrf.mxu0
        %v3477 = vadd.f32 0.0, %v3476
        %v3478 = vpop.f32.mrf.mxu0
        %v3479 = vpop.f32.mrf.mxu0
        %3480 = vdwg.mxu0
        %3481 = vmatprep.subr.bf16.mxu0 %v1517
        %3482 = vmatpush1.bf16.msra.mxu0 %v1516
        %3483 = vmatprep.subr.bf16.mxu0 %v1509
        %3484 = vmatpush1.bf16.msra.mxu0 %v1508
        %3485 = vmatprep.subr.bf16.mxu0 %v1501
        %3486 = vmatpush1.bf16.msra.mxu0 %v1500
        %3487 = vmatprep.subr.bf16.mxu0 %v1493
        %3488 = vmatpush1.bf16.msra.mxu0 %v1492
        %3489 = vmatprep.subr.bf16.mxu0 %v1485
        %3490 = vmatpush1.bf16.msra.mxu0 %v1484
        %3491 = vmatprep.subr.bf16.mxu0 %v1477
        %3492 = vmatpush1.bf16.msra.mxu0 %v1476
        %3493 = vmatprep.subr.bf16.mxu0 %v1469
        %3494 = vmatpush1.bf16.msra.mxu0 %v1468
        %3495 = vmatprep.subr.bf16.mxu0 %v1461
        %3496 = vmatpush1.bf16.msra.mxu0 %v1460
        %3497 = vmatprep.subr.bf16.mxu0 %v1581
        %3498 = vmatpush2.bf16.msra.mxu0 %v1580
        %3499 = vmatprep.subr.bf16.mxu0 %v1573
        %3500 = vmatpush2.bf16.msra.mxu0 %v1572
        %3501 = vmatprep.subr.bf16.mxu0 %v1565
        %3502 = vmatpush2.bf16.msra.mxu0 %v1564
        %3503 = vmatprep.subr.bf16.mxu0 %v1557
        %3504 = vmatpush2.bf16.msra.mxu0 %v1556
        %3505 = vmatprep.subr.bf16.mxu0 %v1549
        %3506 = vmatpush2.bf16.msra.mxu0 %v1548
        %3507 = vmatprep.subr.bf16.mxu0 %v1541
        %3508 = vmatpush2.bf16.msra.mxu0 %v1540
        %3509 = vmatprep.subr.bf16.mxu0 %v1533
        %3510 = vmatpush2.bf16.msra.mxu0 %v1532
        %3511 = vmatprep.subr.bf16.mxu0 %v1525
        %3512 = vmatpush2.bf16.msra.mxu0 %v1524
        %3513 = vmatprep.mubr.bf16.mxu0 %v2443
        %3514 = vmatmul.mubr.bf16.gmra.mxu0 %v2442
        %v3515 = vpop.f32.mrf.mxu0
        %v3516 = vadd.f32 %v3475, %v3515
        %v3517 = vpop.f32.mrf.mxu0
        %v3518 = vadd.f32 %v3477, %v3517
        %v3519 = vpop.f32.mrf.mxu0
        %v3520 = vpop.f32.mrf.mxu0
        %3521 = vdwg.mxu0
        %3522 = vmatprep.subr.bf16.mxu0 %v1645
        %3523 = vmatpush1.bf16.msra.mxu0 %v1644
        %3524 = vmatprep.subr.bf16.mxu0 %v1637
        %3525 = vmatpush1.bf16.msra.mxu0 %v1636
        %3526 = vmatprep.subr.bf16.mxu0 %v1629
        %3527 = vmatpush1.bf16.msra.mxu0 %v1628
        %3528 = vmatprep.subr.bf16.mxu0 %v1621
        %3529 = vmatpush1.bf16.msra.mxu0 %v1620
        %3530 = vmatprep.subr.bf16.mxu0 %v1613
        %3531 = vmatpush1.bf16.msra.mxu0 %v1612
        %3532 = vmatprep.subr.bf16.mxu0 %v1605
        %3533 = vmatpush1.bf16.msra.mxu0 %v1604
        %3534 = vmatprep.subr.bf16.mxu0 %v1597
        %3535 = vmatpush1.bf16.msra.mxu0 %v1596
        %3536 = vmatprep.subr.bf16.mxu0 %v1589
        %3537 = vmatpush1.bf16.msra.mxu0 %v1588
        %3538 = vmatprep.subr.bf16.mxu0 %v1709
        %3539 = vmatpush2.bf16.msra.mxu0 %v1708
        %3540 = vmatprep.subr.bf16.mxu0 %v1701
        %3541 = vmatpush2.bf16.msra.mxu0 %v1700
        %3542 = vmatprep.subr.bf16.mxu0 %v1693
        %3543 = vmatpush2.bf16.msra.mxu0 %v1692
        %3544 = vmatprep.subr.bf16.mxu0 %v1685
        %3545 = vmatpush2.bf16.msra.mxu0 %v1684
        %3546 = vmatprep.subr.bf16.mxu0 %v1677
        %3547 = vmatpush2.bf16.msra.mxu0 %v1676
        %3548 = vmatprep.subr.bf16.mxu0 %v1669
        %3549 = vmatpush2.bf16.msra.mxu0 %v1668
        %3550 = vmatprep.subr.bf16.mxu0 %v1661
        %3551 = vmatpush2.bf16.msra.mxu0 %v1660
        %3552 = vmatprep.subr.bf16.mxu0 %v1653
        %3553 = vmatpush2.bf16.msra.mxu0 %v1652
        %3554 = vmatprep.mubr.bf16.mxu0 %v2445
        %3555 = vmatmul.mubr.bf16.gmra.mxu0 %v2444
        %v3556 = vpop.f32.mrf.mxu0
        %v3557 = vadd.f32 %v3516, %v3556
        %v3558 = vpop.f32.mrf.mxu0
        %v3559 = vadd.f32 %v3518, %v3558
        %v3560 = vpop.f32.mrf.mxu0
        %v3561 = vpop.f32.mrf.mxu0
        %3562 = vdwg.mxu0
        %3563 = vmatprep.subr.bf16.mxu0 %v1773
        %3564 = vmatpush1.bf16.msra.mxu0 %v1772
        %3565 = vmatprep.subr.bf16.mxu0 %v1765
        %3566 = vmatpush1.bf16.msra.mxu0 %v1764
        %3567 = vmatprep.subr.bf16.mxu0 %v1757
        %3568 = vmatpush1.bf16.msra.mxu0 %v1756
        %3569 = vmatprep.subr.bf16.mxu0 %v1749
        %3570 = vmatpush1.bf16.msra.mxu0 %v1748
        %3571 = vmatprep.subr.bf16.mxu0 %v1741
        %3572 = vmatpush1.bf16.msra.mxu0 %v1740
        %3573 = vmatprep.subr.bf16.mxu0 %v1733
        %3574 = vmatpush1.bf16.msra.mxu0 %v1732
        %3575 = vmatprep.subr.bf16.mxu0 %v1725
        %3576 = vmatpush1.bf16.msra.mxu0 %v1724
        %3577 = vmatprep.subr.bf16.mxu0 %v1717
        %3578 = vmatpush1.bf16.msra.mxu0 %v1716
        %3579 = vmatprep.subr.bf16.mxu0 %v1837
        %3580 = vmatpush2.bf16.msra.mxu0 %v1836
        %3581 = vmatprep.subr.bf16.mxu0 %v1829
        %3582 = vmatpush2.bf16.msra.mxu0 %v1828
        %3583 = vmatprep.subr.bf16.mxu0 %v1821
        %3584 = vmatpush2.bf16.msra.mxu0 %v1820
        %3585 = vmatprep.subr.bf16.mxu0 %v1813
        %3586 = vmatpush2.bf16.msra.mxu0 %v1812
        %3587 = vmatprep.subr.bf16.mxu0 %v1805
        %3588 = vmatpush2.bf16.msra.mxu0 %v1804
        %3589 = vmatprep.subr.bf16.mxu0 %v1797
        %3590 = vmatpush2.bf16.msra.mxu0 %v1796
        %3591 = vmatprep.subr.bf16.mxu0 %v1789
        %3592 = vmatpush2.bf16.msra.mxu0 %v1788
        %3593 = vmatprep.subr.bf16.mxu0 %v1781
        %3594 = vmatpush2.bf16.msra.mxu0 %v1780
        %3595 = vmatprep.mubr.bf16.mxu0 %v2447
        %3596 = vmatmul.mubr.bf16.gmra.mxu0 %v2446
        %v3597 = vpop.f32.mrf.mxu0
        %v3598 = vadd.f32 %v3557, %v3597
        %v3599 = vpop.f32.mrf.mxu0
        %v3600 = vadd.f32 %v3559, %v3599
        %v3601 = vpop.f32.mrf.mxu0
        %v3602 = vpop.f32.mrf.mxu0
        %3603 = vdwg.mxu0
        %3604 = vmatprep.subr.bf16.mxu0 %v1901
        %3605 = vmatpush1.bf16.msra.mxu0 %v1900
        %3606 = vmatprep.subr.bf16.mxu0 %v1893
        %3607 = vmatpush1.bf16.msra.mxu0 %v1892
        %3608 = vmatprep.subr.bf16.mxu0 %v1885
        %3609 = vmatpush1.bf16.msra.mxu0 %v1884
        %3610 = vmatprep.subr.bf16.mxu0 %v1877
        %3611 = vmatpush1.bf16.msra.mxu0 %v1876
        %3612 = vmatprep.subr.bf16.mxu0 %v1869
        %3613 = vmatpush1.bf16.msra.mxu0 %v1868
        %3614 = vmatprep.subr.bf16.mxu0 %v1861
        %3615 = vmatpush1.bf16.msra.mxu0 %v1860
        %3616 = vmatprep.subr.bf16.mxu0 %v1853
        %3617 = vmatpush1.bf16.msra.mxu0 %v1852
        %3618 = vmatprep.subr.bf16.mxu0 %v1845
        %3619 = vmatpush1.bf16.msra.mxu0 %v1844
        %3620 = vmatprep.subr.bf16.mxu0 %v1965
        %3621 = vmatpush2.bf16.msra.mxu0 %v1964
        %3622 = vmatprep.subr.bf16.mxu0 %v1957
        %3623 = vmatpush2.bf16.msra.mxu0 %v1956
        %3624 = vmatprep.subr.bf16.mxu0 %v1949
        %3625 = vmatpush2.bf16.msra.mxu0 %v1948
        %3626 = vmatprep.subr.bf16.mxu0 %v1941
        %3627 = vmatpush2.bf16.msra.mxu0 %v1940
        %3628 = vmatprep.subr.bf16.mxu0 %v1933
        %3629 = vmatpush2.bf16.msra.mxu0 %v1932
        %3630 = vmatprep.subr.bf16.mxu0 %v1925
        %3631 = vmatpush2.bf16.msra.mxu0 %v1924
        %3632 = vmatprep.subr.bf16.mxu0 %v1917
        %3633 = vmatpush2.bf16.msra.mxu0 %v1916
        %3634 = vmatprep.subr.bf16.mxu0 %v1909
        %3635 = vmatpush2.bf16.msra.mxu0 %v1908
        %3636 = vmatprep.mubr.bf16.mxu0 %v2449
        %3637 = vmatmul.mubr.bf16.gmra.mxu0 %v2448
        %v3638 = vpop.f32.mrf.mxu0
        %v3639 = vadd.f32 %v3598, %v3638
        %v3640 = vpop.f32.mrf.mxu0
        %v3641 = vadd.f32 %v3600, %v3640
        %v3642 = vpop.f32.mrf.mxu0
        %v3643 = vpop.f32.mrf.mxu0
        %3644 = vdwg.mxu0
        %3645 = vmatprep.subr.bf16.mxu0 %v2029
        %3646 = vmatpush1.bf16.msra.mxu0 %v2028
        %3647 = vmatprep.subr.bf16.mxu0 %v2021
        %3648 = vmatpush1.bf16.msra.mxu0 %v2020
        %3649 = vmatprep.subr.bf16.mxu0 %v2013
        %3650 = vmatpush1.bf16.msra.mxu0 %v2012
        %3651 = vmatprep.subr.bf16.mxu0 %v2005
        %3652 = vmatpush1.bf16.msra.mxu0 %v2004
        %3653 = vmatprep.subr.bf16.mxu0 %v1997
        %3654 = vmatpush1.bf16.msra.mxu0 %v1996
        %3655 = vmatprep.subr.bf16.mxu0 %v1989
        %3656 = vmatpush1.bf16.msra.mxu0 %v1988
        %3657 = vmatprep.subr.bf16.mxu0 %v1981
        %3658 = vmatpush1.bf16.msra.mxu0 %v1980
        %3659 = vmatprep.subr.bf16.mxu0 %v1973
        %3660 = vmatpush1.bf16.msra.mxu0 %v1972
        %3661 = vmatprep.subr.bf16.mxu0 %v2093
        %3662 = vmatpush2.bf16.msra.mxu0 %v2092
        %3663 = vmatprep.subr.bf16.mxu0 %v2085
        %3664 = vmatpush2.bf16.msra.mxu0 %v2084
        %3665 = vmatprep.subr.bf16.mxu0 %v2077
        %3666 = vmatpush2.bf16.msra.mxu0 %v2076
        %3667 = vmatprep.subr.bf16.mxu0 %v2069
        %3668 = vmatpush2.bf16.msra.mxu0 %v2068
        %3669 = vmatprep.subr.bf16.mxu0 %v2061
        %3670 = vmatpush2.bf16.msra.mxu0 %v2060
        %3671 = vmatprep.subr.bf16.mxu0 %v2053
        %3672 = vmatpush2.bf16.msra.mxu0 %v2052
        %3673 = vmatprep.subr.bf16.mxu0 %v2045
        %3674 = vmatpush2.bf16.msra.mxu0 %v2044
        %3675 = vmatprep.subr.bf16.mxu0 %v2037
        %3676 = vmatpush2.bf16.msra.mxu0 %v2036
        %3677 = vmatprep.mubr.bf16.mxu0 %v2451
        %3678 = vmatmul.mubr.bf16.gmra.mxu0 %v2450
        %v3679 = vpop.f32.mrf.mxu0
        %v3680 = vadd.f32 %v3639, %v3679
        %v3681 = vpop.f32.mrf.mxu0
        %v3682 = vadd.f32 %v3641, %v3681
        %v3683 = vpop.f32.mrf.mxu0
        %v3684 = vpop.f32.mrf.mxu0
        %3685 = vdwg.mxu0
        %3686 = vmatprep.subr.bf16.mxu0 %v2157
        %3687 = vmatpush1.bf16.msra.mxu0 %v2156
        %3688 = vmatprep.subr.bf16.mxu0 %v2149
        %3689 = vmatpush1.bf16.msra.mxu0 %v2148
        %3690 = vmatprep.subr.bf16.mxu0 %v2141
        %3691 = vmatpush1.bf16.msra.mxu0 %v2140
        %3692 = vmatprep.subr.bf16.mxu0 %v2133
        %3693 = vmatpush1.bf16.msra.mxu0 %v2132
        %3694 = vmatprep.subr.bf16.mxu0 %v2125
        %3695 = vmatpush1.bf16.msra.mxu0 %v2124
        %3696 = vmatprep.subr.bf16.mxu0 %v2117
        %3697 = vmatpush1.bf16.msra.mxu0 %v2116
        %3698 = vmatprep.subr.bf16.mxu0 %v2109
        %3699 = vmatpush1.bf16.msra.mxu0 %v2108
        %3700 = vmatprep.subr.bf16.mxu0 %v2101
        %3701 = vmatpush1.bf16.msra.mxu0 %v2100
        %3702 = vmatprep.subr.bf16.mxu0 %v2221
        %3703 = vmatpush2.bf16.msra.mxu0 %v2220
        %3704 = vmatprep.subr.bf16.mxu0 %v2213
        %3705 = vmatpush2.bf16.msra.mxu0 %v2212
        %3706 = vmatprep.subr.bf16.mxu0 %v2205
        %3707 = vmatpush2.bf16.msra.mxu0 %v2204
        %3708 = vmatprep.subr.bf16.mxu0 %v2197
        %3709 = vmatpush2.bf16.msra.mxu0 %v2196
        %3710 = vmatprep.subr.bf16.mxu0 %v2189
        %3711 = vmatpush2.bf16.msra.mxu0 %v2188
        %3712 = vmatprep.subr.bf16.mxu0 %v2181
        %3713 = vmatpush2.bf16.msra.mxu0 %v2180
        %3714 = vmatprep.subr.bf16.mxu0 %v2173
        %3715 = vmatpush2.bf16.msra.mxu0 %v2172
        %3716 = vmatprep.subr.bf16.mxu0 %v2165
        %3717 = vmatpush2.bf16.msra.mxu0 %v2164
        %3718 = vmatprep.mubr.bf16.mxu0 %v2453
        %3719 = vmatmul.mubr.bf16.gmra.mxu0 %v2452
        %v3720 = vpop.f32.mrf.mxu0
        %v3721 = vadd.f32 %v3680, %v3720
        %v3722 = vpop.f32.mrf.mxu0
        %v3723 = vadd.f32 %v3682, %v3722
        %v3724 = vpop.f32.mrf.mxu0
        %v3725 = vpop.f32.mrf.mxu0
        %3726 = vdwg.mxu0
        %3727 = vmatprep.subr.bf16.mxu0 %v2285
        %3728 = vmatpush1.bf16.msra.mxu0 %v2284
        %3729 = vmatprep.subr.bf16.mxu0 %v2277
        %3730 = vmatpush1.bf16.msra.mxu0 %v2276
        %3731 = vmatprep.subr.bf16.mxu0 %v2269
        %3732 = vmatpush1.bf16.msra.mxu0 %v2268
        %3733 = vmatprep.subr.bf16.mxu0 %v2261
        %3734 = vmatpush1.bf16.msra.mxu0 %v2260
        %3735 = vmatprep.subr.bf16.mxu0 %v2253
        %3736 = vmatpush1.bf16.msra.mxu0 %v2252
        %3737 = vmatprep.subr.bf16.mxu0 %v2245
        %3738 = vmatpush1.bf16.msra.mxu0 %v2244
        %3739 = vmatprep.subr.bf16.mxu0 %v2237
        %3740 = vmatpush1.bf16.msra.mxu0 %v2236
        %3741 = vmatprep.subr.bf16.mxu0 %v2229
        %3742 = vmatpush1.bf16.msra.mxu0 %v2228
        %3743 = vmatprep.subr.bf16.mxu0 %v2349
        %3744 = vmatpush2.bf16.msra.mxu0 %v2348
        %3745 = vmatprep.subr.bf16.mxu0 %v2341
        %3746 = vmatpush2.bf16.msra.mxu0 %v2340
        %3747 = vmatprep.subr.bf16.mxu0 %v2333
        %3748 = vmatpush2.bf16.msra.mxu0 %v2332
        %3749 = vmatprep.subr.bf16.mxu0 %v2325
        %3750 = vmatpush2.bf16.msra.mxu0 %v2324
        %3751 = vmatprep.subr.bf16.mxu0 %v2317
        %3752 = vmatpush2.bf16.msra.mxu0 %v2316
        %3753 = vmatprep.subr.bf16.mxu0 %v2309
        %3754 = vmatpush2.bf16.msra.mxu0 %v2308
        %3755 = vmatprep.subr.bf16.mxu0 %v2301
        %3756 = vmatpush2.bf16.msra.mxu0 %v2300
        %3757 = vmatprep.subr.bf16.mxu0 %v2293
        %3758 = vmatpush2.bf16.msra.mxu0 %v2292
        %3759 = vmatprep.mubr.bf16.mxu0 %v2455
        %3760 = vmatmul.mubr.bf16.gmra.mxu0 %v2454
        %v3761 = vpop.f32.mrf.mxu0
        %v3762 = vadd.f32 %v3721, %v3761
        %v3763 = vpop.f32.mrf.mxu0
        %v3764 = vadd.f32 %v3723, %v3763
        %v3765 = vpop.f32.mrf.mxu0
        %v3766 = vpop.f32.mrf.mxu0
        %3767 = vdwg.mxu0
        %v3776 = vcombine.low %v2778, %v2780
        %v3777 = vcombine.low %v3106, %v3108
        %v3779 = vunpack.c.l.s4 1983009808
        %v3780 = vunpack.c.0.s8 %v3779
        %v3781 = vlaneseq
        %v3782 = vshrl.u32 %v3781, 7
        %v3783 = vsub.s32 %v3780, %v3782
        %v3784 = vrot.slane %v3776, %v3783
        %v3786 = vunpack.c.l.s4 1983009808
        %v3787 = vunpack.c.0.s8 %v3786
        %v3788 = vlaneseq
        %v3789 = vshrl.u32 %v3788, 7
        %v3790 = vsub.s32 %v3787, %v3789
        %v3791 = vrot.slane %v3777, %v3790
        %v3792 = vcombine.low %v3784, %v3791
        %v3793 = vcombine.low %v3434, %v3436
        %v3794 = vcombine.low %v3762, %v3764
        %v3796 = vunpack.c.l.s4 1983009808
        %v3797 = vunpack.c.0.s8 %v3796
        %v3798 = vlaneseq
        %v3799 = vshrl.u32 %v3798, 7
        %v3800 = vsub.s32 %v3797, %v3799
        %v3801 = vrot.slane %v3793, %v3800
        %v3803 = vunpack.c.l.s4 1983009808
        %v3804 = vunpack.c.0.s8 %v3803
        %v3805 = vlaneseq
        %v3806 = vshrl.u32 %v3805, 7
        %v3807 = vsub.s32 %v3804, %v3806
        %v3808 = vrot.slane %v3794, %v3807
        %v3809 = vcombine.low %v3801, %v3808
        %v3812 = vadd.f32 %v2350, %v3792
        %v3813 = vadd.f32 %v2351, %v3809
        %3814 = vst [vmem:[#allocation2] sm:$0xff] %v3812
        %3815 = vst [vmem:[#allocation2 + $0x8] sm:$0xff] %v3813
        %p3816 = scmp.eq.s32.totalorder %s27, 3
        // Predicated region
        $region93: #{discriminator_forward.5} parent=59 // pred_check
          %p3817 = pneg %p3816
        $region94: #{discriminator_forward.5} parent=59 // pred_check_branch
          %3819 = sbr.rel (%p3817) target = $region96
        $region95: #{discriminator_forward.5} parent=59 // pred_region
          %v3820 = vld [vmem:[#allocation2] sm:$0xff]
          %v3821 = vld [vmem:[#allocation2 + $0x8] sm:$0xff]
          %v3822 = vld [vmem:[#allocation5] sm:$0xff]
          %v3824 = vlaneseq
          %v3825 = vshrl.u32 %v3824, 7
          %v3826 = vsub.s32 0, %v3825
          %v3827 = vrot.slane %v3822, %v3826
          %v3828 = vlaneseq
          %v3829 = vshrl.u32 %v3828, 7
          %v3830 = vsub.s32 1, %v3829
          %v3831 = vrot.slane %v3822, %v3830
          %v3832 = vlaneseq
          %v3833 = vshrl.u32 %v3832, 7
          %v3834 = vsub.s32 2, %v3833
          %v3835 = vrot.slane %v3822, %v3834
          %v3836 = vlaneseq
          %v3837 = vshrl.u32 %v3836, 7
          %v3838 = vsub.s32 3, %v3837
          %v3839 = vrot.slane %v3822, %v3838
          %v3840 = vlaneseq
          %v3841 = vshrl.u32 %v3840, 7
          %v3842 = vsub.s32 4, %v3841
          %v3843 = vrot.slane %v3822, %v3842
          %v3844 = vlaneseq
          %v3845 = vshrl.u32 %v3844, 7
          %v3846 = vsub.s32 5, %v3845
          %v3847 = vrot.slane %v3822, %v3846
          %v3848 = vlaneseq
          %v3849 = vshrl.u32 %v3848, 7
          %v3850 = vsub.s32 6, %v3849
          %v3851 = vrot.slane %v3822, %v3850
          %v3852 = vlaneseq
          %v3853 = vshrl.u32 %v3852, 7
          %v3854 = vsub.s32 7, %v3853
          %v3855 = vrot.slane %v3822, %v3854
          %v3856 = vcombine.low %v3827, %v3831
          %v3857 = vcombine.low %v3835, %v3839
          %v3859 = vunpack.c.l.s4 1983009808
          %v3860 = vunpack.c.0.s8 %v3859
          %v3861 = vlaneseq
          %v3862 = vshrl.u32 %v3861, 7
          %v3863 = vsub.s32 %v3860, %v3862
          %v3864 = vrot.slane %v3856, %v3863
          %v3866 = vunpack.c.l.s4 1983009808
          %v3867 = vunpack.c.0.s8 %v3866
          %v3868 = vlaneseq
          %v3869 = vshrl.u32 %v3868, 7
          %v3870 = vsub.s32 %v3867, %v3869
          %v3871 = vrot.slane %v3857, %v3870
          %v3872 = vcombine.low %v3864, %v3871
          %v3873 = vcombine.low %v3843, %v3847
          %v3874 = vcombine.low %v3851, %v3855
          %v3876 = vunpack.c.l.s4 1983009808
          %v3877 = vunpack.c.0.s8 %v3876
          %v3878 = vlaneseq
          %v3879 = vshrl.u32 %v3878, 7
          %v3880 = vsub.s32 %v3877, %v3879
          %v3881 = vrot.slane %v3873, %v3880
          %v3883 = vunpack.c.l.s4 1983009808
          %v3884 = vunpack.c.0.s8 %v3883
          %v3885 = vlaneseq
          %v3886 = vshrl.u32 %v3885, 7
          %v3887 = vsub.s32 %v3884, %v3886
          %v3888 = vrot.slane %v3874, %v3887
          %v3889 = vcombine.low %v3881, %v3888
          %v3892 = vmul.f32 %v3820, %v3872
          %v3893 = vmul.f32 %v3821, %v3889
          %v3894 = vld [vmem:[#allocation7] sm:$0xff]
          %v3896 = vlaneseq
          %v3897 = vshrl.u32 %v3896, 7
          %v3898 = vsub.s32 0, %v3897
          %v3899 = vrot.slane %v3894, %v3898
          %v3900 = vlaneseq
          %v3901 = vshrl.u32 %v3900, 7
          %v3902 = vsub.s32 1, %v3901
          %v3903 = vrot.slane %v3894, %v3902
          %v3904 = vlaneseq
          %v3905 = vshrl.u32 %v3904, 7
          %v3906 = vsub.s32 2, %v3905
          %v3907 = vrot.slane %v3894, %v3906
          %v3908 = vlaneseq
          %v3909 = vshrl.u32 %v3908, 7
          %v3910 = vsub.s32 3, %v3909
          %v3911 = vrot.slane %v3894, %v3910
          %v3912 = vlaneseq
          %v3913 = vshrl.u32 %v3912, 7
          %v3914 = vsub.s32 4, %v3913
          %v3915 = vrot.slane %v3894, %v3914
          %v3916 = vlaneseq
          %v3917 = vshrl.u32 %v3916, 7
          %v3918 = vsub.s32 5, %v3917
          %v3919 = vrot.slane %v3894, %v3918
          %v3920 = vlaneseq
          %v3921 = vshrl.u32 %v3920, 7
          %v3922 = vsub.s32 6, %v3921
          %v3923 = vrot.slane %v3894, %v3922
          %v3924 = vlaneseq
          %v3925 = vshrl.u32 %v3924, 7
          %v3926 = vsub.s32 7, %v3925
          %v3927 = vrot.slane %v3894, %v3926
          %v3928 = vcombine.low %v3899, %v3903
          %v3929 = vcombine.low %v3907, %v3911
          %v3931 = vunpack.c.l.s4 1983009808
          %v3932 = vunpack.c.0.s8 %v3931
          %v3933 = vlaneseq
          %v3934 = vshrl.u32 %v3933, 7
          %v3935 = vsub.s32 %v3932, %v3934
          %v3936 = vrot.slane %v3928, %v3935
          %v3938 = vunpack.c.l.s4 1983009808
          %v3939 = vunpack.c.0.s8 %v3938
          %v3940 = vlaneseq
          %v3941 = vshrl.u32 %v3940, 7
          %v3942 = vsub.s32 %v3939, %v3941
          %v3943 = vrot.slane %v3929, %v3942
          %v3944 = vcombine.low %v3936, %v3943
          %v3945 = vcombine.low %v3915, %v3919
          %v3946 = vcombine.low %v3923, %v3927
          %v3948 = vunpack.c.l.s4 1983009808
          %v3949 = vunpack.c.0.s8 %v3948
          %v3950 = vlaneseq
          %v3951 = vshrl.u32 %v3950, 7
          %v3952 = vsub.s32 %v3949, %v3951
          %v3953 = vrot.slane %v3945, %v3952
          %v3955 = vunpack.c.l.s4 1983009808
          %v3956 = vunpack.c.0.s8 %v3955
          %v3957 = vlaneseq
          %v3958 = vshrl.u32 %v3957, 7
          %v3959 = vsub.s32 %v3956, %v3958
          %v3960 = vrot.slane %v3946, %v3959
          %v3961 = vcombine.low %v3953, %v3960
          %v3964 = vadd.f32 %v3892, %v3944
          %v3965 = vadd.f32 %v3893, %v3961
          %v3966 = vld [vmem:[#allocation8] sm:$0xff]
          %v3967 = vld [vmem:[#allocation10] sm:$0xff]
          %v3970 = vcombine.high %v3964, %v3964
          %v3972 = vunpack.c.l.s4 1983009808
          %v3973 = vunpack.c.0.s8 %v3972
          %v3974 = vlaneseq
          %v3975 = vshrl.u32 %v3974, 7
          %v3976 = vsub.s32 %v3973, %v3975
          %v3977 = vrot.slane %v3964, %v3976
          %v3979 = vunpack.c.l.s4 1983009808
          %v3980 = vunpack.c.0.s8 %v3979
          %v3981 = vlaneseq
          %v3982 = vshrl.u32 %v3981, 7
          %v3983 = vsub.s32 %v3980, %v3982
          %v3984 = vrot.slane %v3970, %v3983
          %v3985 = vcombine.high %v3977, %v3977
          %v3986 = vcombine.high %v3984, %v3984
          %v3987 = vcombine.high %v3965, %v3965
          %v3989 = vunpack.c.l.s4 1983009808
          %v3990 = vunpack.c.0.s8 %v3989
          %v3991 = vlaneseq
          %v3992 = vshrl.u32 %v3991, 7
          %v3993 = vsub.s32 %v3990, %v3992
          %v3994 = vrot.slane %v3965, %v3993
          %v3996 = vunpack.c.l.s4 1983009808
          %v3997 = vunpack.c.0.s8 %v3996
          %v3998 = vlaneseq
          %v3999 = vshrl.u32 %v3998, 7
          %v4000 = vsub.s32 %v3997, %v3999
          %v4001 = vrot.slane %v3987, %v4000
          %v4002 = vcombine.high %v3994, %v3994
          %v4003 = vcombine.high %v4001, %v4001
          %vm4012 = vcmask 1041408
          %v4013 = vsel %vm4012, %v3977, 0.0
          %v4014 = vrot.slane %v4013, 4
          %v4015 = vadd.f32 %v4013, %v4014
          %v4016 = vrot.slane %v4015, 2
          %v4017 = vadd.f32 %v4015, %v4016
          %v4018 = vrot.slane %v4017, 1
          %v4019 = vadd.f32 %v4017, %v4018
          %v4020 = vsel %vm4012, %v3985, 0.0
          %v4021 = vrot.slane %v4020, 4
          %v4022 = vadd.f32 %v4020, %v4021
          %v4023 = vrot.slane %v4022, 2
          %v4024 = vadd.f32 %v4022, %v4023
          %v4025 = vrot.slane %v4024, 1
          %v4026 = vadd.f32 %v4024, %v4025
          %v4027 = vsel %vm4012, %v3984, 0.0
          %v4028 = vrot.slane %v4027, 4
          %v4029 = vadd.f32 %v4027, %v4028
          %v4030 = vrot.slane %v4029, 2
          %v4031 = vadd.f32 %v4029, %v4030
          %v4032 = vrot.slane %v4031, 1
          %v4033 = vadd.f32 %v4031, %v4032
          %v4034 = vsel %vm4012, %v3986, 0.0
          %v4035 = vrot.slane %v4034, 4
          %v4036 = vadd.f32 %v4034, %v4035
          %v4037 = vrot.slane %v4036, 2
          %v4038 = vadd.f32 %v4036, %v4037
          %v4039 = vrot.slane %v4038, 1
          %v4040 = vadd.f32 %v4038, %v4039
          %v4041 = vsel %vm4012, %v3994, 0.0
          %v4042 = vrot.slane %v4041, 4
          %v4043 = vadd.f32 %v4041, %v4042
          %v4044 = vrot.slane %v4043, 2
          %v4045 = vadd.f32 %v4043, %v4044
          %v4046 = vrot.slane %v4045, 1
          %v4047 = vadd.f32 %v4045, %v4046
          %v4048 = vsel %vm4012, %v4002, 0.0
          %v4049 = vrot.slane %v4048, 4
          %v4050 = vadd.f32 %v4048, %v4049
          %v4051 = vrot.slane %v4050, 2
          %v4052 = vadd.f32 %v4050, %v4051
          %v4053 = vrot.slane %v4052, 1
          %v4054 = vadd.f32 %v4052, %v4053
          %v4055 = vsel %vm4012, %v4001, 0.0
          %v4056 = vrot.slane %v4055, 4
          %v4057 = vadd.f32 %v4055, %v4056
          %v4058 = vrot.slane %v4057, 2
          %v4059 = vadd.f32 %v4057, %v4058
          %v4060 = vrot.slane %v4059, 1
          %v4061 = vadd.f32 %v4059, %v4060
          %v4062 = vsel %vm4012, %v4003, 0.0
          %v4063 = vrot.slane %v4062, 4
          %v4064 = vadd.f32 %v4062, %v4063
          %v4065 = vrot.slane %v4064, 2
          %v4066 = vadd.f32 %v4064, %v4065
          %v4067 = vrot.slane %v4066, 1
          %v4068 = vadd.f32 %v4066, %v4067
          %v4069 = vmul.f32 %v4019, 0.5
          %v4070 = vmul.f32 %v4026, 0.5
          %v4071 = vmul.f32 %v4033, 0.5
          %v4072 = vmul.f32 %v4040, 0.5
          %v4073 = vmul.f32 %v4047, 0.5
          %v4074 = vmul.f32 %v4054, 0.5
          %v4075 = vmul.f32 %v4061, 0.5
          %v4076 = vmul.f32 %v4068, 0.5
          %v4085 = vcombine.low %v4069, %v4070
          %v4086 = vcombine.low %v4071, %v4072
          %v4088 = vunpack.c.l.s4 1983009808
          %v4089 = vunpack.c.0.s8 %v4088
          %v4090 = vlaneseq
          %v4091 = vshrl.u32 %v4090, 7
          %v4092 = vsub.s32 %v4089, %v4091
          %v4093 = vrot.slane %v4085, %v4092
          %v4095 = vunpack.c.l.s4 1983009808
          %v4096 = vunpack.c.0.s8 %v4095
          %v4097 = vlaneseq
          %v4098 = vshrl.u32 %v4097, 7
          %v4099 = vsub.s32 %v4096, %v4098
          %v4100 = vrot.slane %v4086, %v4099
          %v4101 = vcombine.low %v4093, %v4100
          %v4102 = vcombine.low %v4073, %v4074
          %v4103 = vcombine.low %v4075, %v4076
          %v4105 = vunpack.c.l.s4 1983009808
          %v4106 = vunpack.c.0.s8 %v4105
          %v4107 = vlaneseq
          %v4108 = vshrl.u32 %v4107, 7
          %v4109 = vsub.s32 %v4106, %v4108
          %v4110 = vrot.slane %v4102, %v4109
          %v4112 = vunpack.c.l.s4 1983009808
          %v4113 = vunpack.c.0.s8 %v4112
          %v4114 = vlaneseq
          %v4115 = vshrl.u32 %v4114, 7
          %v4116 = vsub.s32 %v4113, %v4115
          %v4117 = vrot.slane %v4103, %v4116
          %v4118 = vcombine.low %v4110, %v4117
          %v4121 = vsub.f32 %v3964, %v4101
          %v4122 = vsub.f32 %v3965, %v4118
          %v4123 = vmul.f32 %v4121, %v4121
          %v4124 = vmul.f32 %v4122, %v4122
          %v4127 = vcombine.high %v4123, %v4123
          %v4129 = vunpack.c.l.s4 1983009808
          %v4130 = vunpack.c.0.s8 %v4129
          %v4131 = vlaneseq
          %v4132 = vshrl.u32 %v4131, 7
          %v4133 = vsub.s32 %v4130, %v4132
          %v4134 = vrot.slane %v4123, %v4133
          %v4136 = vunpack.c.l.s4 1983009808
          %v4137 = vunpack.c.0.s8 %v4136
          %v4138 = vlaneseq
          %v4139 = vshrl.u32 %v4138, 7
          %v4140 = vsub.s32 %v4137, %v4139
          %v4141 = vrot.slane %v4127, %v4140
          %v4142 = vcombine.high %v4134, %v4134
          %v4143 = vcombine.high %v4141, %v4141
          %v4144 = vcombine.high %v4124, %v4124
          %v4146 = vunpack.c.l.s4 1983009808
          %v4147 = vunpack.c.0.s8 %v4146
          %v4148 = vlaneseq
          %v4149 = vshrl.u32 %v4148, 7
          %v4150 = vsub.s32 %v4147, %v4149
          %v4151 = vrot.slane %v4124, %v4150
          %v4153 = vunpack.c.l.s4 1983009808
          %v4154 = vunpack.c.0.s8 %v4153
          %v4155 = vlaneseq
          %v4156 = vshrl.u32 %v4155, 7
          %v4157 = vsub.s32 %v4154, %v4156
          %v4158 = vrot.slane %v4144, %v4157
          %v4159 = vcombine.high %v4151, %v4151
          %v4160 = vcombine.high %v4158, %v4158
          %v4169 = vsel %vm4012, %v4134, 0.0
          %v4170 = vrot.slane %v4169, 4
          %v4171 = vadd.f32 %v4169, %v4170
          %v4172 = vrot.slane %v4171, 2
          %v4173 = vadd.f32 %v4171, %v4172
          %v4174 = vrot.slane %v4173, 1
          %v4175 = vadd.f32 %v4173, %v4174
          %v4176 = vsel %vm4012, %v4142, 0.0
          %v4177 = vrot.slane %v4176, 4
          %v4178 = vadd.f32 %v4176, %v4177
          %v4179 = vrot.slane %v4178, 2
          %v4180 = vadd.f32 %v4178, %v4179
          %v4181 = vrot.slane %v4180, 1
          %v4182 = vadd.f32 %v4180, %v4181
          %v4183 = vsel %vm4012, %v4141, 0.0
          %v4184 = vrot.slane %v4183, 4
          %v4185 = vadd.f32 %v4183, %v4184
          %v4186 = vrot.slane %v4185, 2
          %v4187 = vadd.f32 %v4185, %v4186
          %v4188 = vrot.slane %v4187, 1
          %v4189 = vadd.f32 %v4187, %v4188
          %v4190 = vsel %vm4012, %v4143, 0.0
          %v4191 = vrot.slane %v4190, 4
          %v4192 = vadd.f32 %v4190, %v4191
          %v4193 = vrot.slane %v4192, 2
          %v4194 = vadd.f32 %v4192, %v4193
          %v4195 = vrot.slane %v4194, 1
          %v4196 = vadd.f32 %v4194, %v4195
          %v4197 = vsel %vm4012, %v4151, 0.0
          %v4198 = vrot.slane %v4197, 4
          %v4199 = vadd.f32 %v4197, %v4198
          %v4200 = vrot.slane %v4199, 2
          %v4201 = vadd.f32 %v4199, %v4200
          %v4202 = vrot.slane %v4201, 1
          %v4203 = vadd.f32 %v4201, %v4202
          %v4204 = vsel %vm4012, %v4159, 0.0
          %v4205 = vrot.slane %v4204, 4
          %v4206 = vadd.f32 %v4204, %v4205
          %v4207 = vrot.slane %v4206, 2
          %v4208 = vadd.f32 %v4206, %v4207
          %v4209 = vrot.slane %v4208, 1
          %v4210 = vadd.f32 %v4208, %v4209
          %v4211 = vsel %vm4012, %v4158, 0.0
          %v4212 = vrot.slane %v4211, 4
          %v4213 = vadd.f32 %v4211, %v4212
          %v4214 = vrot.slane %v4213, 2
          %v4215 = vadd.f32 %v4213, %v4214
          %v4216 = vrot.slane %v4215, 1
          %v4217 = vadd.f32 %v4215, %v4216
          %v4218 = vsel %vm4012, %v4160, 0.0
          %v4219 = vrot.slane %v4218, 4
          %v4220 = vadd.f32 %v4218, %v4219
          %v4221 = vrot.slane %v4220, 2
          %v4222 = vadd.f32 %v4220, %v4221
          %v4223 = vrot.slane %v4222, 1
          %v4224 = vadd.f32 %v4222, %v4223
          %v4225 = vmul.f32 %v4175, 0.5
          %v4226 = vmul.f32 %v4182, 0.5
          %v4227 = vmul.f32 %v4189, 0.5
          %v4228 = vmul.f32 %v4196, 0.5
          %v4229 = vmul.f32 %v4203, 0.5
          %v4230 = vmul.f32 %v4210, 0.5
          %v4231 = vmul.f32 %v4217, 0.5
          %v4232 = vmul.f32 %v4224, 0.5
          %v4233 = vadd.f32 %v4225, 1e-05
          %v4234 = vadd.f32 %v4226, 1e-05
          %v4235 = vadd.f32 %v4227, 1e-05
          %v4236 = vadd.f32 %v4228, 1e-05
          %v4237 = vadd.f32 %v4229, 1e-05
          %v4238 = vadd.f32 %v4230, 1e-05
          %v4239 = vadd.f32 %v4231, 1e-05
          %v4240 = vadd.f32 %v4232, 1e-05
          %v4241 = vrsqrt.pop %v4233
          %v4242 = vrsqrt.pop %v4234
          %v4243 = vrsqrt.pop %v4235
          %v4244 = vrsqrt.pop %v4236
          %v4245 = vrsqrt.pop %v4237
          %v4246 = vrsqrt.pop %v4238
          %v4247 = vrsqrt.pop %v4239
          %v4248 = vrsqrt.pop %v4240
          %v4250 = vlaneseq
          %v4251 = vshrl.u32 %v4250, 7
          %v4252 = vsub.s32 0, %v4251
          %v4253 = vrot.slane %v3966, %v4252
          %v4254 = vlaneseq
          %v4255 = vshrl.u32 %v4254, 7
          %v4256 = vsub.s32 1, %v4255
          %v4257 = vrot.slane %v3966, %v4256
          %v4258 = vlaneseq
          %v4259 = vshrl.u32 %v4258, 7
          %v4260 = vsub.s32 2, %v4259
          %v4261 = vrot.slane %v3966, %v4260
          %v4262 = vlaneseq
          %v4263 = vshrl.u32 %v4262, 7
          %v4264 = vsub.s32 3, %v4263
          %v4265 = vrot.slane %v3966, %v4264
          %v4266 = vlaneseq
          %v4267 = vshrl.u32 %v4266, 7
          %v4268 = vsub.s32 4, %v4267
          %v4269 = vrot.slane %v3966, %v4268
          %v4270 = vlaneseq
          %v4271 = vshrl.u32 %v4270, 7
          %v4272 = vsub.s32 5, %v4271
          %v4273 = vrot.slane %v3966, %v4272
          %v4274 = vlaneseq
          %v4275 = vshrl.u32 %v4274, 7
          %v4276 = vsub.s32 6, %v4275
          %v4277 = vrot.slane %v3966, %v4276
          %v4278 = vlaneseq
          %v4279 = vshrl.u32 %v4278, 7
          %v4280 = vsub.s32 7, %v4279
          %v4281 = vrot.slane %v3966, %v4280
          %v4290 = vmul.f32 %v4241, %v4253
          %v4291 = vmul.f32 %v4242, %v4257
          %v4292 = vmul.f32 %v4243, %v4261
          %v4293 = vmul.f32 %v4244, %v4265
          %v4294 = vmul.f32 %v4245, %v4269
          %v4295 = vmul.f32 %v4246, %v4273
          %v4296 = vmul.f32 %v4247, %v4277
          %v4297 = vmul.f32 %v4248, %v4281
          %v4298 = vlaneseq
          %v4299 = vshrl.u32 %v4298, 7
          %v4300 = vsub.s32 0, %v4299
          %v4301 = vrot.slane %v4290, %v4300
          %v4302 = vlaneseq
          %v4303 = vshrl.u32 %v4302, 7
          %v4304 = vsub.s32 0, %v4303
          %v4305 = vrot.slane %v4291, %v4304
          %v4306 = vlaneseq
          %v4307 = vshrl.u32 %v4306, 7
          %v4308 = vsub.s32 0, %v4307
          %v4309 = vrot.slane %v4292, %v4308
          %v4310 = vlaneseq
          %v4311 = vshrl.u32 %v4310, 7
          %v4312 = vsub.s32 0, %v4311
          %v4313 = vrot.slane %v4293, %v4312
          %v4314 = vlaneseq
          %v4315 = vshrl.u32 %v4314, 7
          %v4316 = vsub.s32 0, %v4315
          %v4317 = vrot.slane %v4294, %v4316
          %v4318 = vlaneseq
          %v4319 = vshrl.u32 %v4318, 7
          %v4320 = vsub.s32 0, %v4319
          %v4321 = vrot.slane %v4295, %v4320
          %v4322 = vlaneseq
          %v4323 = vshrl.u32 %v4322, 7
          %v4324 = vsub.s32 0, %v4323
          %v4325 = vrot.slane %v4296, %v4324
          %v4326 = vlaneseq
          %v4327 = vshrl.u32 %v4326, 7
          %v4328 = vsub.s32 0, %v4327
          %v4329 = vrot.slane %v4297, %v4328
          %v4338 = vcombine.low %v4301, %v4305
          %v4339 = vcombine.low %v4309, %v4313
          %v4341 = vunpack.c.l.s4 1983009808
          %v4342 = vunpack.c.0.s8 %v4341
          %v4343 = vlaneseq
          %v4344 = vshrl.u32 %v4343, 7
          %v4345 = vsub.s32 %v4342, %v4344
          %v4346 = vrot.slane %v4338, %v4345
          %v4348 = vunpack.c.l.s4 1983009808
          %v4349 = vunpack.c.0.s8 %v4348
          %v4350 = vlaneseq
          %v4351 = vshrl.u32 %v4350, 7
          %v4352 = vsub.s32 %v4349, %v4351
          %v4353 = vrot.slane %v4339, %v4352
          %v4354 = vcombine.low %v4346, %v4353
          %v4355 = vcombine.low %v4317, %v4321
          %v4356 = vcombine.low %v4325, %v4329
          %v4358 = vunpack.c.l.s4 1983009808
          %v4359 = vunpack.c.0.s8 %v4358
          %v4360 = vlaneseq
          %v4361 = vshrl.u32 %v4360, 7
          %v4362 = vsub.s32 %v4359, %v4361
          %v4363 = vrot.slane %v4355, %v4362
          %v4365 = vunpack.c.l.s4 1983009808
          %v4366 = vunpack.c.0.s8 %v4365
          %v4367 = vlaneseq
          %v4368 = vshrl.u32 %v4367, 7
          %v4369 = vsub.s32 %v4366, %v4368
          %v4370 = vrot.slane %v4356, %v4369
          %v4371 = vcombine.low %v4363, %v4370
          %v4374 = vmul.f32 %v4121, %v4354
          %v4375 = vmul.f32 %v4122, %v4371
          %v4377 = vlaneseq
          %v4378 = vshrl.u32 %v4377, 7
          %v4379 = vsub.s32 0, %v4378
          %v4380 = vrot.slane %v3967, %v4379
          %v4381 = vlaneseq
          %v4382 = vshrl.u32 %v4381, 7
          %v4383 = vsub.s32 1, %v4382
          %v4384 = vrot.slane %v3967, %v4383
          %v4385 = vlaneseq
          %v4386 = vshrl.u32 %v4385, 7
          %v4387 = vsub.s32 2, %v4386
          %v4388 = vrot.slane %v3967, %v4387
          %v4389 = vlaneseq
          %v4390 = vshrl.u32 %v4389, 7
          %v4391 = vsub.s32 3, %v4390
          %v4392 = vrot.slane %v3967, %v4391
          %v4393 = vlaneseq
          %v4394 = vshrl.u32 %v4393, 7
          %v4395 = vsub.s32 4, %v4394
          %v4396 = vrot.slane %v3967, %v4395
          %v4397 = vlaneseq
          %v4398 = vshrl.u32 %v4397, 7
          %v4399 = vsub.s32 5, %v4398
          %v4400 = vrot.slane %v3967, %v4399
          %v4401 = vlaneseq
          %v4402 = vshrl.u32 %v4401, 7
          %v4403 = vsub.s32 6, %v4402
          %v4404 = vrot.slane %v3967, %v4403
          %v4405 = vlaneseq
          %v4406 = vshrl.u32 %v4405, 7
          %v4407 = vsub.s32 7, %v4406
          %v4408 = vrot.slane %v3967, %v4407
          %v4409 = vcombine.low %v4380, %v4384
          %v4410 = vcombine.low %v4388, %v4392
          %v4412 = vunpack.c.l.s4 1983009808
          %v4413 = vunpack.c.0.s8 %v4412
          %v4414 = vlaneseq
          %v4415 = vshrl.u32 %v4414, 7
          %v4416 = vsub.s32 %v4413, %v4415
          %v4417 = vrot.slane %v4409, %v4416
          %v4419 = vunpack.c.l.s4 1983009808
          %v4420 = vunpack.c.0.s8 %v4419
          %v4421 = vlaneseq
          %v4422 = vshrl.u32 %v4421, 7
          %v4423 = vsub.s32 %v4420, %v4422
          %v4424 = vrot.slane %v4410, %v4423
          %v4425 = vcombine.low %v4417, %v4424
          %v4426 = vcombine.low %v4396, %v4400
          %v4427 = vcombine.low %v4404, %v4408
          %v4429 = vunpack.c.l.s4 1983009808
          %v4430 = vunpack.c.0.s8 %v4429
          %v4431 = vlaneseq
          %v4432 = vshrl.u32 %v4431, 7
          %v4433 = vsub.s32 %v4430, %v4432
          %v4434 = vrot.slane %v4426, %v4433
          %v4436 = vunpack.c.l.s4 1983009808
          %v4437 = vunpack.c.0.s8 %v4436
          %v4438 = vlaneseq
          %v4439 = vshrl.u32 %v4438, 7
          %v4440 = vsub.s32 %v4437, %v4439
          %v4441 = vrot.slane %v4427, %v4440
          %v4442 = vcombine.low %v4434, %v4441
          %v4445 = vadd.f32 %v4374, %v4425
          %v4446 = vadd.f32 %v4375, %v4442
          %vm4447 = vcmp.gt.f32.partialorder %v4445, 0.0
          %vm4448 = vcmp.gt.f32.partialorder %v4446, 0.0
          %v4449 = vmul.f32 %v4445, 0.2
          %v4450 = vmul.f32 %v4446, 0.2
          %v4451 = vsel %vm4447, %v4445, %v4449
          %v4452 = vsel %vm4448, %v4446, %v4450
          %v4455 = vcombine.high %v4451, %v4451
          %v4457 = vunpack.c.l.s4 1983009808
          %v4458 = vunpack.c.0.s8 %v4457
          %v4459 = vlaneseq
          %v4460 = vshrl.u32 %v4459, 7
          %v4461 = vsub.s32 %v4458, %v4460
          %v4462 = vrot.slane %v4451, %v4461
          %v4464 = vunpack.c.l.s4 1983009808
          %v4465 = vunpack.c.0.s8 %v4464
          %v4466 = vlaneseq
          %v4467 = vshrl.u32 %v4466, 7
          %v4468 = vsub.s32 %v4465, %v4467
          %v4469 = vrot.slane %v4455, %v4468
          %v4470 = vcombine.high %v4462, %v4462
          %v4471 = vcombine.high %v4469, %v4469
          %v4472 = vcombine.high %v4452, %v4452
          %v4474 = vunpack.c.l.s4 1983009808
          %v4475 = vunpack.c.0.s8 %v4474
          %v4476 = vlaneseq
          %v4477 = vshrl.u32 %v4476, 7
          %v4478 = vsub.s32 %v4475, %v4477
          %v4479 = vrot.slane %v4452, %v4478
          %v4481 = vunpack.c.l.s4 1983009808
          %v4482 = vunpack.c.0.s8 %v4481
          %v4483 = vlaneseq
          %v4484 = vshrl.u32 %v4483, 7
          %v4485 = vsub.s32 %v4482, %v4484
          %v4486 = vrot.slane %v4472, %v4485
          %v4487 = vcombine.high %v4479, %v4479
          %v4488 = vcombine.high %v4486, %v4486
          %v4497 = vpack.c.bf16 %v4462, %v4462
          %v4498 = vpack.c.bf16 %v4470, %v4470
          %v4499 = vpack.c.bf16 %v4469, %v4469
          %v4500 = vpack.c.bf16 %v4471, %v4471
          %v4501 = vpack.c.bf16 %v4479, %v4479
          %v4502 = vpack.c.bf16 %v4487, %v4487
          %v4503 = vpack.c.bf16 %v4486, %v4486
          %v4504 = vpack.c.bf16 %v4488, %v4488
          %v4505 = vld [vmem:[#allocation11] sm:$0xf]
          %v4506 = vld [vmem:[#allocation11 + $0x4] sm:$0xf]
          %v4507 = vld [vmem:[#allocation11 + $0x8] sm:$0xf]
          %v4508 = vld [vmem:[#allocation11 + $0xc] sm:$0xf]
          %v4509 = vld [vmem:[#allocation11 + $0x10] sm:$0xf]
          %v4510 = vld [vmem:[#allocation11 + $0x14] sm:$0xf]
          %v4511 = vld [vmem:[#allocation11 + $0x18] sm:$0xf]
          %v4512 = vld [vmem:[#allocation11 + $0x1c] sm:$0xf]
          %v4513 = vld [vmem:[#allocation11 + $0x20] sm:$0xf]
          %v4514 = vld [vmem:[#allocation11 + $0x24] sm:$0xf]
          %v4515 = vld [vmem:[#allocation11 + $0x28] sm:$0xf]
          %v4516 = vld [vmem:[#allocation11 + $0x2c] sm:$0xf]
          %v4517 = vld [vmem:[#allocation11 + $0x30] sm:$0xf]
          %v4518 = vld [vmem:[#allocation11 + $0x34] sm:$0xf]
          %v4519 = vld [vmem:[#allocation11 + $0x38] sm:$0xf]
          %v4520 = vld [vmem:[#allocation11 + $0x3c] sm:$0xf]
          %v4521 = vld [vmem:[#allocation11 + $0x40] sm:$0xf]
          %v4522 = vld [vmem:[#allocation11 + $0x44] sm:$0xf]
          %v4523 = vld [vmem:[#allocation11 + $0x48] sm:$0xf]
          %v4524 = vld [vmem:[#allocation11 + $0x4c] sm:$0xf]
          %v4525 = vld [vmem:[#allocation11 + $0x50] sm:$0xf]
          %v4526 = vld [vmem:[#allocation11 + $0x54] sm:$0xf]
          %v4527 = vld [vmem:[#allocation11 + $0x58] sm:$0xf]
          %v4528 = vld [vmem:[#allocation11 + $0x5c] sm:$0xf]
          %v4529 = vld [vmem:[#allocation11 + $0x60] sm:$0xf]
          %v4530 = vld [vmem:[#allocation11 + $0x64] sm:$0xf]
          %v4531 = vld [vmem:[#allocation11 + $0x68] sm:$0xf]
          %v4532 = vld [vmem:[#allocation11 + $0x6c] sm:$0xf]
          %v4533 = vld [vmem:[#allocation11 + $0x70] sm:$0xf]
          %v4534 = vld [vmem:[#allocation11 + $0x74] sm:$0xf]
          %v4535 = vld [vmem:[#allocation11 + $0x78] sm:$0xf]
          %v4536 = vld [vmem:[#allocation11 + $0x7c] sm:$0xf]
          %v4537 = vld [vmem:[#allocation11 + $0x80] sm:$0xf]
          %v4538 = vld [vmem:[#allocation11 + $0x84] sm:$0xf]
          %v4539 = vld [vmem:[#allocation11 + $0x88] sm:$0xf]
          %v4540 = vld [vmem:[#allocation11 + $0x8c] sm:$0xf]
          %v4541 = vld [vmem:[#allocation11 + $0x90] sm:$0xf]
          %v4542 = vld [vmem:[#allocation11 + $0x94] sm:$0xf]
          %v4543 = vld [vmem:[#allocation11 + $0x98] sm:$0xf]
          %v4544 = vld [vmem:[#allocation11 + $0x9c] sm:$0xf]
          %v4545 = vld [vmem:[#allocation11 + $0xa0] sm:$0xf]
          %v4546 = vld [vmem:[#allocation11 + $0xa4] sm:$0xf]
          %v4547 = vld [vmem:[#allocation11 + $0xa8] sm:$0xf]
          %v4548 = vld [vmem:[#allocation11 + $0xac] sm:$0xf]
          %v4549 = vld [vmem:[#allocation11 + $0xb0] sm:$0xf]
          %v4550 = vld [vmem:[#allocation11 + $0xb4] sm:$0xf]
          %v4551 = vld [vmem:[#allocation11 + $0xb8] sm:$0xf]
          %v4552 = vld [vmem:[#allocation11 + $0xbc] sm:$0xf]
          %v4553 = vld [vmem:[#allocation11 + $0xc0] sm:$0xf]
          %v4554 = vld [vmem:[#allocation11 + $0xc4] sm:$0xf]
          %v4555 = vld [vmem:[#allocation11 + $0xc8] sm:$0xf]
          %v4556 = vld [vmem:[#allocation11 + $0xcc] sm:$0xf]
          %v4557 = vld [vmem:[#allocation11 + $0xd0] sm:$0xf]
          %v4558 = vld [vmem:[#allocation11 + $0xd4] sm:$0xf]
          %v4559 = vld [vmem:[#allocation11 + $0xd8] sm:$0xf]
          %v4560 = vld [vmem:[#allocation11 + $0xdc] sm:$0xf]
          %v4561 = vld [vmem:[#allocation11 + $0xe0] sm:$0xf]
          %v4562 = vld [vmem:[#allocation11 + $0xe4] sm:$0xf]
          %v4563 = vld [vmem:[#allocation11 + $0xe8] sm:$0xf]
          %v4564 = vld [vmem:[#allocation11 + $0xec] sm:$0xf]
          %v4565 = vld [vmem:[#allocation11 + $0xf0] sm:$0xf]
          %v4566 = vld [vmem:[#allocation11 + $0xf4] sm:$0xf]
          %v4567 = vld [vmem:[#allocation11 + $0xf8] sm:$0xf]
          %v4568 = vld [vmem:[#allocation11 + $0xfc] sm:$0xf]
          %v4569 = vld [vmem:[#allocation11 + $0x100] sm:$0xf]
          %v4570 = vld [vmem:[#allocation11 + $0x104] sm:$0xf]
          %v4571 = vld [vmem:[#allocation11 + $0x108] sm:$0xf]
          %v4572 = vld [vmem:[#allocation11 + $0x10c] sm:$0xf]
          %v4573 = vld [vmem:[#allocation11 + $0x110] sm:$0xf]
          %v4574 = vld [vmem:[#allocation11 + $0x114] sm:$0xf]
          %v4575 = vld [vmem:[#allocation11 + $0x118] sm:$0xf]
          %v4576 = vld [vmem:[#allocation11 + $0x11c] sm:$0xf]
          %v4577 = vld [vmem:[#allocation11 + $0x120] sm:$0xf]
          %v4578 = vld [vmem:[#allocation11 + $0x124] sm:$0xf]
          %v4579 = vld [vmem:[#allocation11 + $0x128] sm:$0xf]
          %v4580 = vld [vmem:[#allocation11 + $0x12c] sm:$0xf]
          %v4581 = vld [vmem:[#allocation11 + $0x130] sm:$0xf]
          %v4582 = vld [vmem:[#allocation11 + $0x134] sm:$0xf]
          %v4583 = vld [vmem:[#allocation11 + $0x138] sm:$0xf]
          %v4584 = vld [vmem:[#allocation11 + $0x13c] sm:$0xf]
          %v4585 = vld [vmem:[#allocation11 + $0x140] sm:$0xf]
          %v4586 = vld [vmem:[#allocation11 + $0x144] sm:$0xf]
          %v4587 = vld [vmem:[#allocation11 + $0x148] sm:$0xf]
          %v4588 = vld [vmem:[#allocation11 + $0x14c] sm:$0xf]
          %v4589 = vld [vmem:[#allocation11 + $0x150] sm:$0xf]
          %v4590 = vld [vmem:[#allocation11 + $0x154] sm:$0xf]
          %v4591 = vld [vmem:[#allocation11 + $0x158] sm:$0xf]
          %v4592 = vld [vmem:[#allocation11 + $0x15c] sm:$0xf]
          %v4593 = vld [vmem:[#allocation11 + $0x160] sm:$0xf]
          %v4594 = vld [vmem:[#allocation11 + $0x164] sm:$0xf]
          %v4595 = vld [vmem:[#allocation11 + $0x168] sm:$0xf]
          %v4596 = vld [vmem:[#allocation11 + $0x16c] sm:$0xf]
          %v4597 = vld [vmem:[#allocation11 + $0x170] sm:$0xf]
          %v4598 = vld [vmem:[#allocation11 + $0x174] sm:$0xf]
          %v4599 = vld [vmem:[#allocation11 + $0x178] sm:$0xf]
          %v4600 = vld [vmem:[#allocation11 + $0x17c] sm:$0xf]
          %v4601 = vld [vmem:[#allocation11 + $0x180] sm:$0xf]
          %v4602 = vld [vmem:[#allocation11 + $0x184] sm:$0xf]
          %v4603 = vld [vmem:[#allocation11 + $0x188] sm:$0xf]
          %v4604 = vld [vmem:[#allocation11 + $0x18c] sm:$0xf]
          %v4605 = vld [vmem:[#allocation11 + $0x190] sm:$0xf]
          %v4606 = vld [vmem:[#allocation11 + $0x194] sm:$0xf]
          %v4607 = vld [vmem:[#allocation11 + $0x198] sm:$0xf]
          %v4608 = vld [vmem:[#allocation11 + $0x19c] sm:$0xf]
          %v4609 = vld [vmem:[#allocation11 + $0x1a0] sm:$0xf]
          %v4610 = vld [vmem:[#allocation11 + $0x1a4] sm:$0xf]
          %v4611 = vld [vmem:[#allocation11 + $0x1a8] sm:$0xf]
          %v4612 = vld [vmem:[#allocation11 + $0x1ac] sm:$0xf]
          %v4613 = vld [vmem:[#allocation11 + $0x1b0] sm:$0xf]
          %v4614 = vld [vmem:[#allocation11 + $0x1b4] sm:$0xf]
          %v4615 = vld [vmem:[#allocation11 + $0x1b8] sm:$0xf]
          %v4616 = vld [vmem:[#allocation11 + $0x1bc] sm:$0xf]
          %v4617 = vld [vmem:[#allocation11 + $0x1c0] sm:$0xf]
          %v4618 = vld [vmem:[#allocation11 + $0x1c4] sm:$0xf]
          %v4619 = vld [vmem:[#allocation11 + $0x1c8] sm:$0xf]
          %v4620 = vld [vmem:[#allocation11 + $0x1cc] sm:$0xf]
          %v4621 = vld [vmem:[#allocation11 + $0x1d0] sm:$0xf]
          %v4622 = vld [vmem:[#allocation11 + $0x1d4] sm:$0xf]
          %v4623 = vld [vmem:[#allocation11 + $0x1d8] sm:$0xf]
          %v4624 = vld [vmem:[#allocation11 + $0x1dc] sm:$0xf]
          %v4625 = vld [vmem:[#allocation11 + $0x1e0] sm:$0xf]
          %v4626 = vld [vmem:[#allocation11 + $0x1e4] sm:$0xf]
          %v4627 = vld [vmem:[#allocation11 + $0x1e8] sm:$0xf]
          %v4628 = vld [vmem:[#allocation11 + $0x1ec] sm:$0xf]
          %v4629 = vld [vmem:[#allocation11 + $0x1f0] sm:$0xf]
          %v4630 = vld [vmem:[#allocation11 + $0x1f4] sm:$0xf]
          %v4631 = vld [vmem:[#allocation11 + $0x1f8] sm:$0xf]
          %v4632 = vld [vmem:[#allocation11 + $0x1fc] sm:$0xf]
          %v4633 = vld [vmem:[#allocation13] sm:$0x1]
          %v4635 = vlaneseq
          %v4636 = vshrl.u32 %v4635, 7
          %v4637 = vsub.s32 0, %v4636
          %v4638 = vrot.slane %v4633, %v4637
          %v4768 = vunpack.c.l.b16 %v4505
          %v4769 = vunpack.c.l.b16 %v4506
          %v4770 = vunpack.c.l.b16 %v4507
          %v4771 = vunpack.c.l.b16 %v4508
          %v4772 = vunpack.c.l.b16 %v4509
          %v4773 = vunpack.c.l.b16 %v4510
          %v4774 = vunpack.c.l.b16 %v4511
          %v4775 = vunpack.c.l.b16 %v4512
          %v4776 = vunpack.c.l.b16 %v4513
          %v4777 = vunpack.c.l.b16 %v4514
          %v4778 = vunpack.c.l.b16 %v4515
          %v4779 = vunpack.c.l.b16 %v4516
          %v4780 = vunpack.c.l.b16 %v4517
          %v4781 = vunpack.c.l.b16 %v4518
          %v4782 = vunpack.c.l.b16 %v4519
          %v4783 = vunpack.c.l.b16 %v4520
          %v4784 = vunpack.c.l.b16 %v4521
          %v4785 = vunpack.c.l.b16 %v4522
          %v4786 = vunpack.c.l.b16 %v4523
          %v4787 = vunpack.c.l.b16 %v4524
          %v4788 = vunpack.c.l.b16 %v4525
          %v4789 = vunpack.c.l.b16 %v4526
          %v4790 = vunpack.c.l.b16 %v4527
          %v4791 = vunpack.c.l.b16 %v4528
          %v4792 = vunpack.c.l.b16 %v4529
          %v4793 = vunpack.c.l.b16 %v4530
          %v4794 = vunpack.c.l.b16 %v4531
          %v4795 = vunpack.c.l.b16 %v4532
          %v4796 = vunpack.c.l.b16 %v4533
          %v4797 = vunpack.c.l.b16 %v4534
          %v4798 = vunpack.c.l.b16 %v4535
          %v4799 = vunpack.c.l.b16 %v4536
          %v4800 = vunpack.c.l.b16 %v4537
          %v4801 = vunpack.c.l.b16 %v4538
          %v4802 = vunpack.c.l.b16 %v4539
          %v4803 = vunpack.c.l.b16 %v4540
          %v4804 = vunpack.c.l.b16 %v4541
          %v4805 = vunpack.c.l.b16 %v4542
          %v4806 = vunpack.c.l.b16 %v4543
          %v4807 = vunpack.c.l.b16 %v4544
          %v4808 = vunpack.c.l.b16 %v4545
          %v4809 = vunpack.c.l.b16 %v4546
          %v4810 = vunpack.c.l.b16 %v4547
          %v4811 = vunpack.c.l.b16 %v4548
          %v4812 = vunpack.c.l.b16 %v4549
          %v4813 = vunpack.c.l.b16 %v4550
          %v4814 = vunpack.c.l.b16 %v4551
          %v4815 = vunpack.c.l.b16 %v4552
          %v4816 = vunpack.c.l.b16 %v4553
          %v4817 = vunpack.c.l.b16 %v4554
          %v4818 = vunpack.c.l.b16 %v4555
          %v4819 = vunpack.c.l.b16 %v4556
          %v4820 = vunpack.c.l.b16 %v4557
          %v4821 = vunpack.c.l.b16 %v4558
          %v4822 = vunpack.c.l.b16 %v4559
          %v4823 = vunpack.c.l.b16 %v4560
          %v4824 = vunpack.c.l.b16 %v4561
          %v4825 = vunpack.c.l.b16 %v4562
          %v4826 = vunpack.c.l.b16 %v4563
          %v4827 = vunpack.c.l.b16 %v4564
          %v4828 = vunpack.c.l.b16 %v4565
          %v4829 = vunpack.c.l.b16 %v4566
          %v4830 = vunpack.c.l.b16 %v4567
          %v4831 = vunpack.c.l.b16 %v4568
          %v4832 = vunpack.c.l.b16 %v4569
          %v4833 = vunpack.c.l.b16 %v4570
          %v4834 = vunpack.c.l.b16 %v4571
          %v4835 = vunpack.c.l.b16 %v4572
          %v4836 = vunpack.c.l.b16 %v4573
          %v4837 = vunpack.c.l.b16 %v4574
          %v4838 = vunpack.c.l.b16 %v4575
          %v4839 = vunpack.c.l.b16 %v4576
          %v4840 = vunpack.c.l.b16 %v4577
          %v4841 = vunpack.c.l.b16 %v4578
          %v4842 = vunpack.c.l.b16 %v4579
          %v4843 = vunpack.c.l.b16 %v4580
          %v4844 = vunpack.c.l.b16 %v4581
          %v4845 = vunpack.c.l.b16 %v4582
          %v4846 = vunpack.c.l.b16 %v4583
          %v4847 = vunpack.c.l.b16 %v4584
          %v4848 = vunpack.c.l.b16 %v4585
          %v4849 = vunpack.c.l.b16 %v4586
          %v4850 = vunpack.c.l.b16 %v4587
          %v4851 = vunpack.c.l.b16 %v4588
          %v4852 = vunpack.c.l.b16 %v4589
          %v4853 = vunpack.c.l.b16 %v4590
          %v4854 = vunpack.c.l.b16 %v4591
          %v4855 = vunpack.c.l.b16 %v4592
          %v4856 = vunpack.c.l.b16 %v4593
          %v4857 = vunpack.c.l.b16 %v4594
          %v4858 = vunpack.c.l.b16 %v4595
          %v4859 = vunpack.c.l.b16 %v4596
          %v4860 = vunpack.c.l.b16 %v4597
          %v4861 = vunpack.c.l.b16 %v4598
          %v4862 = vunpack.c.l.b16 %v4599
          %v4863 = vunpack.c.l.b16 %v4600
          %v4864 = vunpack.c.l.b16 %v4601
          %v4865 = vunpack.c.l.b16 %v4602
          %v4866 = vunpack.c.l.b16 %v4603
          %v4867 = vunpack.c.l.b16 %v4604
          %v4868 = vunpack.c.l.b16 %v4605
          %v4869 = vunpack.c.l.b16 %v4606
          %v4870 = vunpack.c.l.b16 %v4607
          %v4871 = vunpack.c.l.b16 %v4608
          %v4872 = vunpack.c.l.b16 %v4609
          %v4873 = vunpack.c.l.b16 %v4610
          %v4874 = vunpack.c.l.b16 %v4611
          %v4875 = vunpack.c.l.b16 %v4612
          %v4876 = vunpack.c.l.b16 %v4613
          %v4877 = vunpack.c.l.b16 %v4614
          %v4878 = vunpack.c.l.b16 %v4615
          %v4879 = vunpack.c.l.b16 %v4616
          %v4880 = vunpack.c.l.b16 %v4617
          %v4881 = vunpack.c.l.b16 %v4618
          %v4882 = vunpack.c.l.b16 %v4619
          %v4883 = vunpack.c.l.b16 %v4620
          %v4884 = vunpack.c.l.b16 %v4621
          %v4885 = vunpack.c.l.b16 %v4622
          %v4886 = vunpack.c.l.b16 %v4623
          %v4887 = vunpack.c.l.b16 %v4624
          %v4888 = vunpack.c.l.b16 %v4625
          %v4889 = vunpack.c.l.b16 %v4626
          %v4890 = vunpack.c.l.b16 %v4627
          %v4891 = vunpack.c.l.b16 %v4628
          %v4892 = vunpack.c.l.b16 %v4629
          %v4893 = vunpack.c.l.b16 %v4630
          %v4894 = vunpack.c.l.b16 %v4631
          %v4895 = vunpack.c.l.b16 %v4632
          %v4896 = vpack.c.b16 %v4769, %v4768
          %v4897 = vpack.c.b16 %v4771, %v4770
          %v4898 = vpack.c.b16 %v4773, %v4772
          %v4899 = vpack.c.b16 %v4775, %v4774
          %v4900 = vpack.c.b16 %v4777, %v4776
          %v4901 = vpack.c.b16 %v4779, %v4778
          %v4902 = vpack.c.b16 %v4781, %v4780
          %v4903 = vpack.c.b16 %v4783, %v4782
          %v4904 = vpack.c.b16 %v4785, %v4784
          %v4905 = vpack.c.b16 %v4787, %v4786
          %v4906 = vpack.c.b16 %v4789, %v4788
          %v4907 = vpack.c.b16 %v4791, %v4790
          %v4908 = vpack.c.b16 %v4793, %v4792
          %v4909 = vpack.c.b16 %v4795, %v4794
          %v4910 = vpack.c.b16 %v4797, %v4796
          %v4911 = vpack.c.b16 %v4799, %v4798
          %v4912 = vpack.c.b16 %v4801, %v4800
          %v4913 = vpack.c.b16 %v4803, %v4802
          %v4914 = vpack.c.b16 %v4805, %v4804
          %v4915 = vpack.c.b16 %v4807, %v4806
          %v4916 = vpack.c.b16 %v4809, %v4808
          %v4917 = vpack.c.b16 %v4811, %v4810
          %v4918 = vpack.c.b16 %v4813, %v4812
          %v4919 = vpack.c.b16 %v4815, %v4814
          %v4920 = vpack.c.b16 %v4817, %v4816
          %v4921 = vpack.c.b16 %v4819, %v4818
          %v4922 = vpack.c.b16 %v4821, %v4820
          %v4923 = vpack.c.b16 %v4823, %v4822
          %v4924 = vpack.c.b16 %v4825, %v4824
          %v4925 = vpack.c.b16 %v4827, %v4826
          %v4926 = vpack.c.b16 %v4829, %v4828
          %v4927 = vpack.c.b16 %v4831, %v4830
          %v4928 = vpack.c.b16 %v4833, %v4832
          %v4929 = vpack.c.b16 %v4835, %v4834
          %v4930 = vpack.c.b16 %v4837, %v4836
          %v4931 = vpack.c.b16 %v4839, %v4838
          %v4932 = vpack.c.b16 %v4841, %v4840
          %v4933 = vpack.c.b16 %v4843, %v4842
          %v4934 = vpack.c.b16 %v4845, %v4844
          %v4935 = vpack.c.b16 %v4847, %v4846
          %v4936 = vpack.c.b16 %v4849, %v4848
          %v4937 = vpack.c.b16 %v4851, %v4850
          %v4938 = vpack.c.b16 %v4853, %v4852
          %v4939 = vpack.c.b16 %v4855, %v4854
          %v4940 = vpack.c.b16 %v4857, %v4856
          %v4941 = vpack.c.b16 %v4859, %v4858
          %v4942 = vpack.c.b16 %v4861, %v4860
          %v4943 = vpack.c.b16 %v4863, %v4862
          %v4944 = vpack.c.b16 %v4865, %v4864
          %v4945 = vpack.c.b16 %v4867, %v4866
          %v4946 = vpack.c.b16 %v4869, %v4868
          %v4947 = vpack.c.b16 %v4871, %v4870
          %v4948 = vpack.c.b16 %v4873, %v4872
          %v4949 = vpack.c.b16 %v4875, %v4874
          %v4950 = vpack.c.b16 %v4877, %v4876
          %v4951 = vpack.c.b16 %v4879, %v4878
          %v4952 = vpack.c.b16 %v4881, %v4880
          %v4953 = vpack.c.b16 %v4883, %v4882
          %v4954 = vpack.c.b16 %v4885, %v4884
          %v4955 = vpack.c.b16 %v4887, %v4886
          %v4956 = vpack.c.b16 %v4889, %v4888
          %v4957 = vpack.c.b16 %v4891, %v4890
          %v4958 = vpack.c.b16 %v4893, %v4892
          %v4959 = vpack.c.b16 %v4895, %v4894
          %5024 = vmatprep.subr.bf16.mxu0 0
          %5025 = vmatpush1.bf16.msra.mxu0 %v4903
          %5026 = vmatprep.subr.bf16.mxu0 0
          %5027 = vmatpush1.bf16.msra.mxu0 %v4902
          %5028 = vmatprep.subr.bf16.mxu0 0
          %5029 = vmatpush1.bf16.msra.mxu0 %v4901
          %5030 = vmatprep.subr.bf16.mxu0 0
          %5031 = vmatpush1.bf16.msra.mxu0 %v4900
          %5032 = vmatprep.subr.bf16.mxu0 0
          %5033 = vmatpush1.bf16.msra.mxu0 %v4899
          %5034 = vmatprep.subr.bf16.mxu0 0
          %5035 = vmatpush1.bf16.msra.mxu0 %v4898
          %5036 = vmatprep.subr.bf16.mxu0 0
          %5037 = vmatpush1.bf16.msra.mxu0 %v4897
          %5038 = vmatprep.subr.bf16.mxu0 0
          %5039 = vmatpush1.bf16.msra.mxu0 %v4896
          %5040 = vmatprep.subr.bf16.mxu0 0
          %5041 = vmatpush2.bf16.msra.mxu0 %v4911
          %5042 = vmatprep.subr.bf16.mxu0 0
          %5043 = vmatpush2.bf16.msra.mxu0 %v4910
          %5044 = vmatprep.subr.bf16.mxu0 0
          %5045 = vmatpush2.bf16.msra.mxu0 %v4909
          %5046 = vmatprep.subr.bf16.mxu0 0
          %5047 = vmatpush2.bf16.msra.mxu0 %v4908
          %5048 = vmatprep.subr.bf16.mxu0 0
          %5049 = vmatpush2.bf16.msra.mxu0 %v4907
          %5050 = vmatprep.subr.bf16.mxu0 0
          %5051 = vmatpush2.bf16.msra.mxu0 %v4906
          %5052 = vmatprep.subr.bf16.mxu0 0
          %5053 = vmatpush2.bf16.msra.mxu0 %v4905
          %5054 = vmatprep.subr.bf16.mxu0 0
          %5055 = vmatpush2.bf16.msra.mxu0 %v4904
          %5056 = vmatprep.mubr.bf16.mxu0 %v4498
          %5057 = vmatmul.mubr.bf16.gmra.mxu0 %v4497
          %v5058 = vpop.f32.mrf.mxu0
          %v5059 = vadd.f32 %v4638, %v5058
          %v5060 = vpop.f32.mrf.mxu0
          %v5061 = vpop.f32.mrf.mxu0
          %v5062 = vpop.f32.mrf.mxu0
          %5063 = vdwg.mxu0
          %5064 = vmatprep.subr.bf16.mxu0 0
          %5065 = vmatpush1.bf16.msra.mxu0 %v4919
          %5066 = vmatprep.subr.bf16.mxu0 0
          %5067 = vmatpush1.bf16.msra.mxu0 %v4918
          %5068 = vmatprep.subr.bf16.mxu0 0
          %5069 = vmatpush1.bf16.msra.mxu0 %v4917
          %5070 = vmatprep.subr.bf16.mxu0 0
          %5071 = vmatpush1.bf16.msra.mxu0 %v4916
          %5072 = vmatprep.subr.bf16.mxu0 0
          %5073 = vmatpush1.bf16.msra.mxu0 %v4915
          %5074 = vmatprep.subr.bf16.mxu0 0
          %5075 = vmatpush1.bf16.msra.mxu0 %v4914
          %5076 = vmatprep.subr.bf16.mxu0 0
          %5077 = vmatpush1.bf16.msra.mxu0 %v4913
          %5078 = vmatprep.subr.bf16.mxu0 0
          %5079 = vmatpush1.bf16.msra.mxu0 %v4912
          %5080 = vmatprep.subr.bf16.mxu0 0
          %5081 = vmatpush2.bf16.msra.mxu0 %v4927
          %5082 = vmatprep.subr.bf16.mxu0 0
          %5083 = vmatpush2.bf16.msra.mxu0 %v4926
          %5084 = vmatprep.subr.bf16.mxu0 0
          %5085 = vmatpush2.bf16.msra.mxu0 %v4925
          %5086 = vmatprep.subr.bf16.mxu0 0
          %5087 = vmatpush2.bf16.msra.mxu0 %v4924
          %5088 = vmatprep.subr.bf16.mxu0 0
          %5089 = vmatpush2.bf16.msra.mxu0 %v4923
          %5090 = vmatprep.subr.bf16.mxu0 0
          %5091 = vmatpush2.bf16.msra.mxu0 %v4922
          %5092 = vmatprep.subr.bf16.mxu0 0
          %5093 = vmatpush2.bf16.msra.mxu0 %v4921
          %5094 = vmatprep.subr.bf16.mxu0 0
          %5095 = vmatpush2.bf16.msra.mxu0 %v4920
          %5096 = vmatprep.mubr.bf16.mxu0 %v4500
          %5097 = vmatmul.mubr.bf16.gmra.mxu0 %v4499
          %v5098 = vpop.f32.mrf.mxu0
          %v5099 = vadd.f32 %v5059, %v5098
          %v5100 = vpop.f32.mrf.mxu0
          %v5101 = vpop.f32.mrf.mxu0
          %v5102 = vpop.f32.mrf.mxu0
          %5103 = vdwg.mxu0
          %5104 = vmatprep.subr.bf16.mxu0 0
          %5105 = vmatpush1.bf16.msra.mxu0 %v4935
          %5106 = vmatprep.subr.bf16.mxu0 0
          %5107 = vmatpush1.bf16.msra.mxu0 %v4934
          %5108 = vmatprep.subr.bf16.mxu0 0
          %5109 = vmatpush1.bf16.msra.mxu0 %v4933
          %5110 = vmatprep.subr.bf16.mxu0 0
          %5111 = vmatpush1.bf16.msra.mxu0 %v4932
          %5112 = vmatprep.subr.bf16.mxu0 0
          %5113 = vmatpush1.bf16.msra.mxu0 %v4931
          %5114 = vmatprep.subr.bf16.mxu0 0
          %5115 = vmatpush1.bf16.msra.mxu0 %v4930
          %5116 = vmatprep.subr.bf16.mxu0 0
          %5117 = vmatpush1.bf16.msra.mxu0 %v4929
          %5118 = vmatprep.subr.bf16.mxu0 0
          %5119 = vmatpush1.bf16.msra.mxu0 %v4928
          %5120 = vmatprep.subr.bf16.mxu0 0
          %5121 = vmatpush2.bf16.msra.mxu0 %v4943
          %5122 = vmatprep.subr.bf16.mxu0 0
          %5123 = vmatpush2.bf16.msra.mxu0 %v4942
          %5124 = vmatprep.subr.bf16.mxu0 0
          %5125 = vmatpush2.bf16.msra.mxu0 %v4941
          %5126 = vmatprep.subr.bf16.mxu0 0
          %5127 = vmatpush2.bf16.msra.mxu0 %v4940
          %5128 = vmatprep.subr.bf16.mxu0 0
          %5129 = vmatpush2.bf16.msra.mxu0 %v4939
          %5130 = vmatprep.subr.bf16.mxu0 0
          %5131 = vmatpush2.bf16.msra.mxu0 %v4938
          %5132 = vmatprep.subr.bf16.mxu0 0
          %5133 = vmatpush2.bf16.msra.mxu0 %v4937
          %5134 = vmatprep.subr.bf16.mxu0 0
          %5135 = vmatpush2.bf16.msra.mxu0 %v4936
          %5136 = vmatprep.mubr.bf16.mxu0 %v4502
          %5137 = vmatmul.mubr.bf16.gmra.mxu0 %v4501
          %v5138 = vpop.f32.mrf.mxu0
          %v5139 = vadd.f32 %v5099, %v5138
          %v5140 = vpop.f32.mrf.mxu0
          %v5141 = vpop.f32.mrf.mxu0
          %v5142 = vpop.f32.mrf.mxu0
          %5143 = vdwg.mxu0
          %5144 = vmatprep.subr.bf16.mxu0 0
          %5145 = vmatpush1.bf16.msra.mxu0 %v4951
          %5146 = vmatprep.subr.bf16.mxu0 0
          %5147 = vmatpush1.bf16.msra.mxu0 %v4950
          %5148 = vmatprep.subr.bf16.mxu0 0
          %5149 = vmatpush1.bf16.msra.mxu0 %v4949
          %5150 = vmatprep.subr.bf16.mxu0 0
          %5151 = vmatpush1.bf16.msra.mxu0 %v4948
          %5152 = vmatprep.subr.bf16.mxu0 0
          %5153 = vmatpush1.bf16.msra.mxu0 %v4947
          %5154 = vmatprep.subr.bf16.mxu0 0
          %5155 = vmatpush1.bf16.msra.mxu0 %v4946
          %5156 = vmatprep.subr.bf16.mxu0 0
          %5157 = vmatpush1.bf16.msra.mxu0 %v4945
          %5158 = vmatprep.subr.bf16.mxu0 0
          %5159 = vmatpush1.bf16.msra.mxu0 %v4944
          %5160 = vmatprep.subr.bf16.mxu0 0
          %5161 = vmatpush2.bf16.msra.mxu0 %v4959
          %5162 = vmatprep.subr.bf16.mxu0 0
          %5163 = vmatpush2.bf16.msra.mxu0 %v4958
          %5164 = vmatprep.subr.bf16.mxu0 0
          %5165 = vmatpush2.bf16.msra.mxu0 %v4957
          %5166 = vmatprep.subr.bf16.mxu0 0
          %5167 = vmatpush2.bf16.msra.mxu0 %v4956
          %5168 = vmatprep.subr.bf16.mxu0 0
          %5169 = vmatpush2.bf16.msra.mxu0 %v4955
          %5170 = vmatprep.subr.bf16.mxu0 0
          %5171 = vmatpush2.bf16.msra.mxu0 %v4954
          %5172 = vmatprep.subr.bf16.mxu0 0
          %5173 = vmatpush2.bf16.msra.mxu0 %v4953
          %5174 = vmatprep.subr.bf16.mxu0 0
          %5175 = vmatpush2.bf16.msra.mxu0 %v4952
          %5176 = vmatprep.mubr.bf16.mxu0 %v4504
          %5177 = vmatmul.mubr.bf16.gmra.mxu0 %v4503
          %v5178 = vpop.f32.mrf.mxu0
          %v5179 = vadd.f32 %v5139, %v5178
          %v5180 = vpop.f32.mrf.mxu0
          %v5181 = vpop.f32.mrf.mxu0
          %v5182 = vpop.f32.mrf.mxu0
          %5183 = vdwg.mxu0
          %v5184 = vand.u32 2147483647, %v5179
          %v5185 = vsub.f32 0.0, %v5184
          %v5186 = vmul.f32 %v5185, 1.442695
          %v5187 = vpow.pop %v5186
          %v5188 = vadd.f32 %v5187, 1.0
          %v5189 = vrcp.pop %v5188
          %v5190 = vmul.f32 1.0, %v5189
          %vm5191 = vcmp.ge.f32.partialorder %v5179, 0.0
          %v5192 = vsub.f32 1.0, %v5190
          %v5193 = vsel %vm5191, %v5190, %v5192
          %5194 = vst [vmem:[%s10] sm:$0x3] %v5193
        $region96: #{discriminator_forward.5} parent=59 // pred_fallthru
          _
        // Predicated region
        $region97: #{discriminator_forward.5} parent=59 // pred_check
          %p5195 = pneg %p270
        $region98: #{discriminator_forward.5} parent=59 // pred_check_branch
          %5197 = sbr.rel (%p5195) target = $region100
        $region99: #{discriminator_forward.5} parent=59 // pred_region
          _
        $region100: #{discriminator_forward.5} parent=59 // pred_fallthru
          _
        // Predicated region
        $region101: #{discriminator_forward.5} parent=59 // pred_check
          %p5198 = pneg %p270
        $region102: #{discriminator_forward.5} parent=59 // pred_check_branch
          %5200 = sbr.rel (%p5198) target = $region104
        $region103: #{discriminator_forward.5} parent=59 // pred_region
          _
        $region104: #{discriminator_forward.5} parent=59 // pred_fallthru
          _
      $region60: #{discriminator_forward.5} parent=5 // pred_fallthru
        _
      %p5201 = scmp.le.s32.totalorder 2, %s22
      // Predicated region
      $region105: #{discriminator_forward.5} parent=5 // pred_check
        %p5202 = pneg %p5201
      $region106: #{discriminator_forward.5} parent=5 // pred_check_branch
        %5204 = sbr.rel (%p5202) target = $region108
      $region107: #{discriminator_forward.5} parent=5 // pred_region
        %s5205 = ssub.s32 %s22, 2
      $region108: #{discriminator_forward.5} parent=5 // pred_fallthru
        _
    $region6: #{discriminator_forward.5} parent=1 // loop_footer
      %s26 = sadd.s32 1, %s22
    $region7: #{discriminator_forward.5} parent=1 // loop_footer_branch
      %21 = sbr.rel target = $region3
    $region8: #{discriminator_forward.5} parent=1 // loop_exit
      _
    %5206 = vsyncpa [#allocation4], 1
    %s5207 = scalar_lea.sflag [#allocation4], 1
    %5208 = vsyncpa %s5207, 1
    %5209 = vsyncpa [#allocation6], 1
    %5210 = vsyncpa [#allocation9], 1
    %5211 = vsyncpa [#allocation12], 1

</llo_original>
